<compile_context>
chip_gen: v6e
topology: v6e:2x2x1
jax: 0.10.0
libtpu: 0.0.40
codegen_flags: <defaults>
</compile_context>

<pallas_src>
import jax
import jax.numpy as jnp
from jax import lax
from jax.experimental import pallas as pl
from jax.experimental.pallas import tpu as pltpu

KSIZE = 7
PAD = KSIZE // 2


def _local_attention_kernel(gamma_ref, w_ref, b_ref, x_ref, o_ref, xp_ref):
    # gamma_ref: SMEM f32[1]
    # w_ref:     VMEM f32[49, C]        (depthwise weights, tap-major)
    # b_ref:     VMEM f32[1, C]
    # x_ref:     VMEM f32[1, H, W, C]   (input block; also the residual)
    # o_ref:     VMEM f32[1, H, W, C]
    # xp_ref:    VMEM f32[H+6, W+6, C]  scratch (zero-padded plane)
    H = o_ref.shape[1]
    W = o_ref.shape[2]

    x = x_ref[0]             # (H, W, C), C on lanes
    w = w_ref[...]           # (49, C), loaded once per step
    bias = b_ref[...]        # (1, C)
    gamma = gamma_ref[0]     # scalar

    # Build the zero-padded plane in VMEM (halo handled in-kernel; no HBM pad
    # round-trip). Zeroing the whole scratch every step keeps correctness under
    # megacore grid sharding (no reliance on program_id == 0 initialization).
    xp_ref[...] = jnp.zeros_like(xp_ref)
    xp_ref[PAD:PAD + H, PAD:PAD + W, :] = x

    # 7x7 depthwise conv = 49 shifted multiply-adds. Row (ki) shifts are
    # major-dim offsets; column (kj) shifts are sublane offsets; C is dense on
    # lanes. The first tap seeds the accumulator.
    acc = w[0:1] * xp_ref[0:H, 0:W, :]
    for tap in range(1, KSIZE * KSIZE):
        ki, kj = divmod(tap, KSIZE)
        acc = acc + w[tap:tap + 1] * xp_ref[ki:ki + H, kj:kj + W, :]

    out = gamma * (acc + bias) + x
    o_ref[0] = out.astype(o_ref.dtype)


@jax.jit
def local_attention(x, weight, bias, gamma):
    """x: (N, C, H, W) f32; weight: (C, 7, 7); bias: (C,); gamma: (1,)."""
    N, C, H, W = x.shape
    # Layout plumbing: channels-last so C is on the lane axis inside the kernel.
    x_nhwc = jnp.transpose(x, (0, 2, 3, 1))                              # (N, H, W, C)
    w_slab = jnp.transpose(weight, (1, 2, 0)).reshape(KSIZE * KSIZE, C)  # (49, C)
    bias_r = bias.reshape(1, C)

    out_nhwc = pl.pallas_call(
        _local_attention_kernel,
        out_shape=jax.ShapeDtypeStruct((N, H, W, C), x.dtype),
        grid_spec=pltpu.PrefetchScalarGridSpec(
            num_scalar_prefetch=0,
            grid=(N,),
            in_specs=[
                pl.BlockSpec(memory_space=pltpu.MemorySpace.SMEM),          # gamma
                pl.BlockSpec((KSIZE * KSIZE, C), lambda n: (0, 0)),         # weights (constant block)
                pl.BlockSpec((1, C), lambda n: (0, 0)),                     # bias (constant block)
                pl.BlockSpec((1, H, W, C), lambda n: (n, 0, 0, 0)),         # x
            ],
            out_specs=pl.BlockSpec((1, H, W, C), lambda n: (n, 0, 0, 0)),
            scratch_shapes=[
                pltpu.VMEM((H + 2 * PAD, W + 2 * PAD, C), jnp.float32),     # padded plane
            ],
        ),
        compiler_params=pltpu.CompilerParams(
            dimension_semantics=("parallel",)),
        cost_estimate=pl.CostEstimate(
            flops=2 * N * H * W * C * KSIZE * KSIZE + 3 * N * H * W * C,
            transcendentals=0,
            bytes_accessed=4 * (2 * N * H * W * C + KSIZE * KSIZE * C + C + 1),
        ),
    )(gamma, w_slab, bias_r, x_nhwc)
    # TODO(synk): for large H, add a row-tile grid axis with a 3-row halo per tile.
    return jnp.transpose(out_nhwc, (0, 3, 1, 2))


def _reference(x, weight, bias, gamma):
    """Pure-JAX reference: depthwise conv (groups=C) + bias, then gamma*out + x."""
    C = x.shape[1]
    w = weight[:, None, :, :]  # (C, 1, 7, 7)
    conv = lax.conv_general_dilated(
        x, w, window_strides=(1, 1), padding=((PAD, PAD), (PAD, PAD)),
        dimension_numbers=("NCHW", "OIHW", "NCHW"), feature_group_count=C)
    conv = conv + bias[None, :, None, None]
    return gamma[0] * conv + x


if __name__ == "__main__":
    key = jax.random.PRNGKey(0)
    N, C, H, W = 2, 4, 16, 16

    kx, kw, kb, kg = jax.random.split(key, 4)
    x = jax.random.normal(kx, (N, C, H, W), jnp.float32)
    # Module shapes: conv weight (C, 1, 7, 7) -> squeezed (C, 7, 7), bias (C,),
    # gamma scalar. gamma nonzero so the conv path is actually exercised.
    weight = 0.1 * jax.random.normal(kw, (C, KSIZE, KSIZE), jnp.float32)
    bias = 0.1 * jax.random.normal(kb, (C,), jnp.float32)
    gamma = jnp.array([0.5], jnp.float32)

    out = local_attention(x, weight, bias, gamma)
    out = jax.block_until_ready(out)

    ref = _reference(x, weight, bias, gamma)
    assert out.shape == (N, C, H, W)
    assert jnp.allclose(out, ref, atol=1e-4, rtol=1e-4), "mismatch vs reference"

    print("KERNEL_OK")
</pallas_src>

<mosaic_0001>
module attributes {stable_mosaic.version = 11 : i64} {
  func.func @_local_attention_kernel(%arg0: i32, %arg1: memref<1xf32, #tpu.memory_space<smem>>, %arg2: memref<49x4xf32, #tpu.memory_space<vmem>>, %arg3: memref<1x4xf32, #tpu.memory_space<vmem>>, %arg4: memref<1x16x16x4xf32, #tpu.memory_space<vmem>>, %arg5: memref<1x16x16x4xf32, #tpu.memory_space<vmem>>, %arg6: memref<22x22x4xf32, #tpu.memory_space<vmem>>) attributes {dimension_semantics = [#tpu.dimension_semantics<parallel>], iteration_bounds = array<i64: 2>, scalar_prefetch = 0 : i64, scratch_operands = 1 : i64, tpu.core_type = #tpu.core_type<tc>, window_params = [{transform_indices = @transform_0, window_bounds = array<i64: 1>}, {pipeline_mode = #tpu.pipeline_mode<synchronous>, transform_indices = @transform_1, window_bounds = array<i64: 49, 4>}, {pipeline_mode = #tpu.pipeline_mode<synchronous>, transform_indices = @transform_2, window_bounds = array<i64: 1, 4>}, {transform_indices = @transform_3, window_bounds = array<i64: 1, 16, 16, 4>}, {transform_indices = @transform_4, window_bounds = array<i64: 1, 16, 16, 4>}]} {
    %c0 = arith.constant 0 : index
    %c0_0 = arith.constant 0 : index
    %c0_1 = arith.constant 0 : index
    %c0_2 = arith.constant 0 : index
    %0 = vector.load %arg4[%c0, %c0_0, %c0_1, %c0_2] : memref<1x16x16x4xf32, #tpu.memory_space<vmem>>, vector<1x16x16x4xf32>
    %1 = vector.shape_cast %0 : vector<1x16x16x4xf32> to vector<16x16x4xf32>
    %c0_3 = arith.constant 0 : index
    %c0_4 = arith.constant 0 : index
    %2 = vector.load %arg2[%c0_3, %c0_4] : memref<49x4xf32, #tpu.memory_space<vmem>>, vector<49x4xf32>
    %c0_5 = arith.constant 0 : index
    %c0_6 = arith.constant 0 : index
    %3 = vector.load %arg3[%c0_5, %c0_6] : memref<1x4xf32, #tpu.memory_space<vmem>>, vector<1x4xf32>
    %c0_7 = arith.constant 0 : index
    %4 = memref.load %arg1[%c0_7] : memref<1xf32, #tpu.memory_space<smem>>
    %cst = arith.constant 0.000000e+00 : f32
    %5 = vector.broadcast %cst : f32 to vector<22x22x4xf32>
    %c0_8 = arith.constant 0 : index
    %c0_9 = arith.constant 0 : index
    %c0_10 = arith.constant 0 : index
    %6 = vector.load %arg6[%c0_8, %c0_9, %c0_10] : memref<22x22x4xf32, #tpu.memory_space<vmem>>, vector<22x22x4xf32>
    tpu.vector_store %arg6[%c0_8, %c0_9, %c0_10], %5 {strides = array<i32>} : memref<22x22x4xf32, #tpu.memory_space<vmem>>, vector<22x22x4xf32>,
    %c3 = arith.constant 3 : index
    %c3_11 = arith.constant 3 : index
    %c0_12 = arith.constant 0 : index
    %7 = vector.load %arg6[%c3, %c3_11, %c0_12] : memref<22x22x4xf32, #tpu.memory_space<vmem>>, vector<16x16x4xf32>
    tpu.vector_store %arg6[%c3, %c3_11, %c0_12], %1 {strides = array<i32>} : memref<22x22x4xf32, #tpu.memory_space<vmem>>, vector<16x16x4xf32>,
    %8 = vector.extract_strided_slice %2 {offsets = [0, 0], sizes = [1, 4], strides = [1, 1]} : vector<49x4xf32> to vector<1x4xf32>
    %c0_13 = arith.constant 0 : index
    %c0_14 = arith.constant 0 : index
    %c0_15 = arith.constant 0 : index
    %9 = vector.load %arg6[%c0_13, %c0_14, %c0_15] : memref<22x22x4xf32, #tpu.memory_space<vmem>>, vector<16x16x4xf32>
    %10 = vector.shape_cast %8 : vector<1x4xf32> to vector<1x1x4xf32>
    %11 = vector.broadcast %10 : vector<1x1x4xf32> to vector<16x16x4xf32>
    %12 = arith.mulf %11, %9 : vector<16x16x4xf32>
    %13 = vector.extract_strided_slice %2 {offsets = [1, 0], sizes = [1, 4], strides = [1, 1]} : vector<49x4xf32> to vector<1x4xf32>
    %c0_16 = arith.constant 0 : index
    %c1 = arith.constant 1 : index
    %c0_17 = arith.constant 0 : index
    %14 = vector.load %arg6[%c0_16, %c1, %c0_17] : memref<22x22x4xf32, #tpu.memory_space<vmem>>, vector<16x16x4xf32>
    %15 = vector.shape_cast %13 : vector<1x4xf32> to vector<1x1x4xf32>
    %16 = vector.broadcast %15 : vector<1x1x4xf32> to vector<16x16x4xf32>
    %17 = arith.mulf %16, %14 : vector<16x16x4xf32>
    %18 = arith.addf %12, %17 : vector<16x16x4xf32>
    %19 = vector.extract_strided_slice %2 {offsets = [2, 0], sizes = [1, 4], strides = [1, 1]} : vector<49x4xf32> to vector<1x4xf32>
    %c0_18 = arith.constant 0 : index
    %c2 = arith.constant 2 : index
    %c0_19 = arith.constant 0 : index
    %20 = vector.load %arg6[%c0_18, %c2, %c0_19] : memref<22x22x4xf32, #tpu.memory_space<vmem>>, vector<16x16x4xf32>
    %21 = vector.shape_cast %19 : vector<1x4xf32> to vector<1x1x4xf32>
    %22 = vector.broadcast %21 : vector<1x1x4xf32> to vector<16x16x4xf32>
    %23 = arith.mulf %22, %20 : vector<16x16x4xf32>
    %24 = arith.addf %18, %23 : vector<16x16x4xf32>
    %25 = vector.extract_strided_slice %2 {offsets = [3, 0], sizes = [1, 4], strides = [1, 1]} : vector<49x4xf32> to vector<1x4xf32>
    %c0_20 = arith.constant 0 : index
    %c3_21 = arith.constant 3 : index
    %c0_22 = arith.constant 0 : index
    %26 = vector.load %arg6[%c0_20, %c3_21, %c0_22] : memref<22x22x4xf32, #tpu.memory_space<vmem>>, vector<16x16x4xf32>
    %27 = vector.shape_cast %25 : vector<1x4xf32> to vector<1x1x4xf32>
    %28 = vector.broadcast %27 : vector<1x1x4xf32> to vector<16x16x4xf32>
    %29 = arith.mulf %28, %26 : vector<16x16x4xf32>
    %30 = arith.addf %24, %29 : vector<16x16x4xf32>
    %31 = vector.extract_strided_slice %2 {offsets = [4, 0], sizes = [1, 4], strides = [1, 1]} : vector<49x4xf32> to vector<1x4xf32>
    %c0_23 = arith.constant 0 : index
    %c4 = arith.constant 4 : index
    %c0_24 = arith.constant 0 : index
    %32 = vector.load %arg6[%c0_23, %c4, %c0_24] : memref<22x22x4xf32, #tpu.memory_space<vmem>>, vector<16x16x4xf32>
    %33 = vector.shape_cast %31 : vector<1x4xf32> to vector<1x1x4xf32>
    %34 = vector.broadcast %33 : vector<1x1x4xf32> to vector<16x16x4xf32>
    %35 = arith.mulf %34, %32 : vector<16x16x4xf32>
    %36 = arith.addf %30, %35 : vector<16x16x4xf32>
    %37 = vector.extract_strided_slice %2 {offsets = [5, 0], sizes = [1, 4], strides = [1, 1]} : vector<49x4xf32> to vector<1x4xf32>
    %c0_25 = arith.constant 0 : index
    %c5 = arith.constant 5 : index
    %c0_26 = arith.constant 0 : index
    %38 = vector.load %arg6[%c0_25, %c5, %c0_26] : memref<22x22x4xf32, #tpu.memory_space<vmem>>, vector<16x16x4xf32>
    %39 = vector.shape_cast %37 : vector<1x4xf32> to vector<1x1x4xf32>
    %40 = vector.broadcast %39 : vector<1x1x4xf32> to vector<16x16x4xf32>
    %41 = arith.mulf %40, %38 : vector<16x16x4xf32>
    %42 = arith.addf %36, %41 : vector<16x16x4xf32>
    %43 = vector.extract_strided_slice %2 {offsets = [6, 0], sizes = [1, 4], strides = [1, 1]} : vector<49x4xf32> to vector<1x4xf32>
    %c0_27 = arith.constant 0 : index
    %c6 = arith.constant 6 : index
    %c0_28 = arith.constant 0 : index
    %44 = vector.load %arg6[%c0_27, %c6, %c0_28] : memref<22x22x4xf32, #tpu.memory_space<vmem>>, vector<16x16x4xf32>
    %45 = vector.shape_cast %43 : vector<1x4xf32> to vector<1x1x4xf32>
    %46 = vector.broadcast %45 : vector<1x1x4xf32> to vector<16x16x4xf32>
    %47 = arith.mulf %46, %44 : vector<16x16x4xf32>
    %48 = arith.addf %42, %47 : vector<16x16x4xf32>
    %49 = vector.extract_strided_slice %2 {offsets = [7, 0], sizes = [1, 4], strides = [1, 1]} : vector<49x4xf32> to vector<1x4xf32>
    %c1_29 = arith.constant 1 : index
    %c0_30 = arith.constant 0 : index
    %c0_31 = arith.constant 0 : index
    %50 = vector.load %arg6[%c1_29, %c0_30, %c0_31] : memref<22x22x4xf32, #tpu.memory_space<vmem>>, vector<16x16x4xf32>
    %51 = vector.shape_cast %49 : vector<1x4xf32> to vector<1x1x4xf32>
    %52 = vector.broadcast %51 : vector<1x1x4xf32> to vector<16x16x4xf32>
    %53 = arith.mulf %52, %50 : vector<16x16x4xf32>
    %54 = arith.addf %48, %53 : vector<16x16x4xf32>
    %55 = vector.extract_strided_slice %2 {offsets = [8, 0], sizes = [1, 4], strides = [1, 1]} : vector<49x4xf32> to vector<1x4xf32>
    %c1_32 = arith.constant 1 : index
    %c1_33 = arith.constant 1 : index
    %c0_34 = arith.constant 0 : index
    %56 = vector.load %arg6[%c1_32, %c1_33, %c0_34] : memref<22x22x4xf32, #tpu.memory_space<vmem>>, vector<16x16x4xf32>
    %57 = vector.shape_cast %55 : vector<1x4xf32> to vector<1x1x4xf32>
    %58 = vector.broadcast %57 : vector<1x1x4xf32> to vector<16x16x4xf32>
    %59 = arith.mulf %58, %56 : vector<16x16x4xf32>
    %60 = arith.addf %54, %59 : vector<16x16x4xf32>
    %61 = vector.extract_strided_slice %2 {offsets = [9, 0], sizes = [1, 4], strides = [1, 1]} : vector<49x4xf32> to vector<1x4xf32>
    %c1_35 = arith.constant 1 : index
    %c2_36 = arith.constant 2 : index
    %c0_37 = arith.constant 0 : index
    %62 = vector.load %arg6[%c1_35, %c2_36, %c0_37] : memref<22x22x4xf32, #tpu.memory_space<vmem>>, vector<16x16x4xf32>
    %63 = vector.shape_cast %61 : vector<1x4xf32> to vector<1x1x4xf32>
    %64 = vector.broadcast %63 : vector<1x1x4xf32> to vector<16x16x4xf32>
    %65 = arith.mulf %64, %62 : vector<16x16x4xf32>
    %66 = arith.addf %60, %65 : vector<16x16x4xf32>
    %67 = vector.extract_strided_slice %2 {offsets = [10, 0], sizes = [1, 4], strides = [1, 1]} : vector<49x4xf32> to vector<1x4xf32>
    %c1_38 = arith.constant 1 : index
    %c3_39 = arith.constant 3 : index
    %c0_40 = arith.constant 0 : index
    %68 = vector.load %arg6[%c1_38, %c3_39, %c0_40] : memref<22x22x4xf32, #tpu.memory_space<vmem>>, vector<16x16x4xf32>
    %69 = vector.shape_cast %67 : vector<1x4xf32> to vector<1x1x4xf32>
    %70 = vector.broadcast %69 : vector<1x1x4xf32> to vector<16x16x4xf32>
    %71 = arith.mulf %70, %68 : vector<16x16x4xf32>
    %72 = arith.addf %66, %71 : vector<16x16x4xf32>
    %73 = vector.extract_strided_slice %2 {offsets = [11, 0], sizes = [1, 4], strides = [1, 1]} : vector<49x4xf32> to vector<1x4xf32>
    %c1_41 = arith.constant 1 : index
    %c4_42 = arith.constant 4 : index
    %c0_43 = arith.constant 0 : index
    %74 = vector.load %arg6[%c1_41, %c4_42, %c0_43] : memref<22x22x4xf32, #tpu.memory_space<vmem>>, vector<16x16x4xf32>
    %75 = vector.shape_cast %73 : vector<1x4xf32> to vector<1x1x4xf32>
    %76 = vector.broadcast %75 : vector<1x1x4xf32> to vector<16x16x4xf32>
    %77 = arith.mulf %76, %74 : vector<16x16x4xf32>
    %78 = arith.addf %72, %77 : vector<16x16x4xf32>
    %79 = vector.extract_strided_slice %2 {offsets = [12, 0], sizes = [1, 4], strides = [1, 1]} : vector<49x4xf32> to vector<1x4xf32>
    %c1_44 = arith.constant 1 : index
    %c5_45 = arith.constant 5 : index
    %c0_46 = arith.constant 0 : index
    %80 = vector.load %arg6[%c1_44, %c5_45, %c0_46] : memref<22x22x4xf32, #tpu.memory_space<vmem>>, vector<16x16x4xf32>
    %81 = vector.shape_cast %79 : vector<1x4xf32> to vector<1x1x4xf32>
    %82 = vector.broadcast %81 : vector<1x1x4xf32> to vector<16x16x4xf32>
    %83 = arith.mulf %82, %80 : vector<16x16x4xf32>
    %84 = arith.addf %78, %83 : vector<16x16x4xf32>
    %85 = vector.extract_strided_slice %2 {offsets = [13, 0], sizes = [1, 4], strides = [1, 1]} : vector<49x4xf32> to vector<1x4xf32>
    %c1_47 = arith.constant 1 : index
    %c6_48 = arith.constant 6 : index
    %c0_49 = arith.constant 0 : index
    %86 = vector.load %arg6[%c1_47, %c6_48, %c0_49] : memref<22x22x4xf32, #tpu.memory_space<vmem>>, vector<16x16x4xf32>
    %87 = vector.shape_cast %85 : vector<1x4xf32> to vector<1x1x4xf32>
    %88 = vector.broadcast %87 : vector<1x1x4xf32> to vector<16x16x4xf32>
    %89 = arith.mulf %88, %86 : vector<16x16x4xf32>
    %90 = arith.addf %84, %89 : vector<16x16x4xf32>
    %91 = vector.extract_strided_slice %2 {offsets = [14, 0], sizes = [1, 4], strides = [1, 1]} : vector<49x4xf32> to vector<1x4xf32>
    %c2_50 = arith.constant 2 : index
    %c0_51 = arith.constant 0 : index
    %c0_52 = arith.constant 0 : index
    %92 = vector.load %arg6[%c2_50, %c0_51, %c0_52] : memref<22x22x4xf32, #tpu.memory_space<vmem>>, vector<16x16x4xf32>
    %93 = vector.shape_cast %91 : vector<1x4xf32> to vector<1x1x4xf32>
    %94 = vector.broadcast %93 : vector<1x1x4xf32> to vector<16x16x4xf32>
    %95 = arith.mulf %94, %92 : vector<16x16x4xf32>
    %96 = arith.addf %90, %95 : vector<16x16x4xf32>
    %97 = vector.extract_strided_slice %2 {offsets = [15, 0], sizes = [1, 4], strides = [1, 1]} : vector<49x4xf32> to vector<1x4xf32>
    %c2_53 = arith.constant 2 : index
    %c1_54 = arith.constant 1 : index
    %c0_55 = arith.constant 0 : index
    %98 = vector.load %arg6[%c2_53, %c1_54, %c0_55] : memref<22x22x4xf32, #tpu.memory_space<vmem>>, vector<16x16x4xf32>
    %99 = vector.shape_cast %97 : vector<1x4xf32> to vector<1x1x4xf32>
    %100 = vector.broadcast %99 : vector<1x1x4xf32> to vector<16x16x4xf32>
    %101 = arith.mulf %100, %98 : vector<16x16x4xf32>
    %102 = arith.addf %96, %101 : vector<16x16x4xf32>
    %103 = vector.extract_strided_slice %2 {offsets = [16, 0], sizes = [1, 4], strides = [1, 1]} : vector<49x4xf32> to vector<1x4xf32>
    %c2_56 = arith.constant 2 : index
    %c2_57 = arith.constant 2 : index
    %c0_58 = arith.constant 0 : index
    %104 = vector.load %arg6[%c2_56, %c2_57, %c0_58] : memref<22x22x4xf32, #tpu.memory_space<vmem>>, vector<16x16x4xf32>
    %105 = vector.shape_cast %103 : vector<1x4xf32> to vector<1x1x4xf32>
    %106 = vector.broadcast %105 : vector<1x1x4xf32> to vector<16x16x4xf32>
    %107 = arith.mulf %106, %104 : vector<16x16x4xf32>
    %108 = arith.addf %102, %107 : vector<16x16x4xf32>
    %109 = vector.extract_strided_slice %2 {offsets = [17, 0], sizes = [1, 4], strides = [1, 1]} : vector<49x4xf32> to vector<1x4xf32>
    %c2_59 = arith.constant 2 : index
    %c3_60 = arith.constant 3 : index
    %c0_61 = arith.constant 0 : index
    %110 = vector.load %arg6[%c2_59, %c3_60, %c0_61] : memref<22x22x4xf32, #tpu.memory_space<vmem>>, vector<16x16x4xf32>
    %111 = vector.shape_cast %109 : vector<1x4xf32> to vector<1x1x4xf32>
    %112 = vector.broadcast %111 : vector<1x1x4xf32> to vector<16x16x4xf32>
    %113 = arith.mulf %112, %110 : vector<16x16x4xf32>
    %114 = arith.addf %108, %113 : vector<16x16x4xf32>
    %115 = vector.extract_strided_slice %2 {offsets = [18, 0], sizes = [1, 4], strides = [1, 1]} : vector<49x4xf32> to vector<1x4xf32>
    %c2_62 = arith.constant 2 : index
    %c4_63 = arith.constant 4 : index
    %c0_64 = arith.constant 0 : index
    %116 = vector.load %arg6[%c2_62, %c4_63, %c0_64] : memref<22x22x4xf32, #tpu.memory_space<vmem>>, vector<16x16x4xf32>
    %117 = vector.shape_cast %115 : vector<1x4xf32> to vector<1x1x4xf32>
    %118 = vector.broadcast %117 : vector<1x1x4xf32> to vector<16x16x4xf32>
    %119 = arith.mulf %118, %116 : vector<16x16x4xf32>
    %120 = arith.addf %114, %119 : vector<16x16x4xf32>
    %121 = vector.extract_strided_slice %2 {offsets = [19, 0], sizes = [1, 4], strides = [1, 1]} : vector<49x4xf32> to vector<1x4xf32>
    %c2_65 = arith.constant 2 : index
    %c5_66 = arith.constant 5 : index
    %c0_67 = arith.constant 0 : index
    %122 = vector.load %arg6[%c2_65, %c5_66, %c0_67] : memref<22x22x4xf32, #tpu.memory_space<vmem>>, vector<16x16x4xf32>
    %123 = vector.shape_cast %121 : vector<1x4xf32> to vector<1x1x4xf32>
    %124 = vector.broadcast %123 : vector<1x1x4xf32> to vector<16x16x4xf32>
    %125 = arith.mulf %124, %122 : vector<16x16x4xf32>
    %126 = arith.addf %120, %125 : vector<16x16x4xf32>
    %127 = vector.extract_strided_slice %2 {offsets = [20, 0], sizes = [1, 4], strides = [1, 1]} : vector<49x4xf32> to vector<1x4xf32>
    %c2_68 = arith.constant 2 : index
    %c6_69 = arith.constant 6 : index
    %c0_70 = arith.constant 0 : index
    %128 = vector.load %arg6[%c2_68, %c6_69, %c0_70] : memref<22x22x4xf32, #tpu.memory_space<vmem>>, vector<16x16x4xf32>
    %129 = vector.shape_cast %127 : vector<1x4xf32> to vector<1x1x4xf32>
    %130 = vector.broadcast %129 : vector<1x1x4xf32> to vector<16x16x4xf32>
    %131 = arith.mulf %130, %128 : vector<16x16x4xf32>
    %132 = arith.addf %126, %131 : vector<16x16x4xf32>
    %133 = vector.extract_strided_slice %2 {offsets = [21, 0], sizes = [1, 4], strides = [1, 1]} : vector<49x4xf32> to vector<1x4xf32>
    %c3_71 = arith.constant 3 : index
    %c0_72 = arith.constant 0 : index
    %c0_73 = arith.constant 0 : index
    %134 = vector.load %arg6[%c3_71, %c0_72, %c0_73] : memref<22x22x4xf32, #tpu.memory_space<vmem>>, vector<16x16x4xf32>
    %135 = vector.shape_cast %133 : vector<1x4xf32> to vector<1x1x4xf32>
    %136 = vector.broadcast %135 : vector<1x1x4xf32> to vector<16x16x4xf32>
    %137 = arith.mulf %136, %134 : vector<16x16x4xf32>
    %138 = arith.addf %132, %137 : vector<16x16x4xf32>
    %139 = vector.extract_strided_slice %2 {offsets = [22, 0], sizes = [1, 4], strides = [1, 1]} : vector<49x4xf32> to vector<1x4xf32>
    %c3_74 = arith.constant 3 : index
    %c1_75 = arith.constant 1 : index
    %c0_76 = arith.constant 0 : index
    %140 = vector.load %arg6[%c3_74, %c1_75, %c0_76] : memref<22x22x4xf32, #tpu.memory_space<vmem>>, vector<16x16x4xf32>
    %141 = vector.shape_cast %139 : vector<1x4xf32> to vector<1x1x4xf32>
    %142 = vector.broadcast %141 : vector<1x1x4xf32> to vector<16x16x4xf32>
    %143 = arith.mulf %142, %140 : vector<16x16x4xf32>
    %144 = arith.addf %138, %143 : vector<16x16x4xf32>
    %145 = vector.extract_strided_slice %2 {offsets = [23, 0], sizes = [1, 4], strides = [1, 1]} : vector<49x4xf32> to vector<1x4xf32>
    %c3_77 = arith.constant 3 : index
    %c2_78 = arith.constant 2 : index
    %c0_79 = arith.constant 0 : index
    %146 = vector.load %arg6[%c3_77, %c2_78, %c0_79] : memref<22x22x4xf32, #tpu.memory_space<vmem>>, vector<16x16x4xf32>
    %147 = vector.shape_cast %145 : vector<1x4xf32> to vector<1x1x4xf32>
    %148 = vector.broadcast %147 : vector<1x1x4xf32> to vector<16x16x4xf32>
    %149 = arith.mulf %148, %146 : vector<16x16x4xf32>
    %150 = arith.addf %144, %149 : vector<16x16x4xf32>
    %151 = vector.extract_strided_slice %2 {offsets = [24, 0], sizes = [1, 4], strides = [1, 1]} : vector<49x4xf32> to vector<1x4xf32>
    %c3_80 = arith.constant 3 : index
    %c3_81 = arith.constant 3 : index
    %c0_82 = arith.constant 0 : index
    %152 = vector.load %arg6[%c3_80, %c3_81, %c0_82] : memref<22x22x4xf32, #tpu.memory_space<vmem>>, vector<16x16x4xf32>
    %153 = vector.shape_cast %151 : vector<1x4xf32> to vector<1x1x4xf32>
    %154 = vector.broadcast %153 : vector<1x1x4xf32> to vector<16x16x4xf32>
    %155 = arith.mulf %154, %152 : vector<16x16x4xf32>
    %156 = arith.addf %150, %155 : vector<16x16x4xf32>
    %157 = vector.extract_strided_slice %2 {offsets = [25, 0], sizes = [1, 4], strides = [1, 1]} : vector<49x4xf32> to vector<1x4xf32>
    %c3_83 = arith.constant 3 : index
    %c4_84 = arith.constant 4 : index
    %c0_85 = arith.constant 0 : index
    %158 = vector.load %arg6[%c3_83, %c4_84, %c0_85] : memref<22x22x4xf32, #tpu.memory_space<vmem>>, vector<16x16x4xf32>
    %159 = vector.shape_cast %157 : vector<1x4xf32> to vector<1x1x4xf32>
    %160 = vector.broadcast %159 : vector<1x1x4xf32> to vector<16x16x4xf32>
    %161 = arith.mulf %160, %158 : vector<16x16x4xf32>
    %162 = arith.addf %156, %161 : vector<16x16x4xf32>
    %163 = vector.extract_strided_slice %2 {offsets = [26, 0], sizes = [1, 4], strides = [1, 1]} : vector<49x4xf32> to vector<1x4xf32>
    %c3_86 = arith.constant 3 : index
    %c5_87 = arith.constant 5 : index
    %c0_88 = arith.constant 0 : index
    %164 = vector.load %arg6[%c3_86, %c5_87, %c0_88] : memref<22x22x4xf32, #tpu.memory_space<vmem>>, vector<16x16x4xf32>
    %165 = vector.shape_cast %163 : vector<1x4xf32> to vector<1x1x4xf32>
    %166 = vector.broadcast %165 : vector<1x1x4xf32> to vector<16x16x4xf32>
    %167 = arith.mulf %166, %164 : vector<16x16x4xf32>
    %168 = arith.addf %162, %167 : vector<16x16x4xf32>
    %169 = vector.extract_strided_slice %2 {offsets = [27, 0], sizes = [1, 4], strides = [1, 1]} : vector<49x4xf32> to vector<1x4xf32>
    %c3_89 = arith.constant 3 : index
    %c6_90 = arith.constant 6 : index
    %c0_91 = arith.constant 0 : index
    %170 = vector.load %arg6[%c3_89, %c6_90, %c0_91] : memref<22x22x4xf32, #tpu.memory_space<vmem>>, vector<16x16x4xf32>
    %171 = vector.shape_cast %169 : vector<1x4xf32> to vector<1x1x4xf32>
    %172 = vector.broadcast %171 : vector<1x1x4xf32> to vector<16x16x4xf32>
    %173 = arith.mulf %172, %170 : vector<16x16x4xf32>
    %174 = arith.addf %168, %173 : vector<16x16x4xf32>
    %175 = vector.extract_strided_slice %2 {offsets = [28, 0], sizes = [1, 4], strides = [1, 1]} : vector<49x4xf32> to vector<1x4xf32>
    %c4_92 = arith.constant 4 : index
    %c0_93 = arith.constant 0 : index
    %c0_94 = arith.constant 0 : index
    %176 = vector.load %arg6[%c4_92, %c0_93, %c0_94] : memref<22x22x4xf32, #tpu.memory_space<vmem>>, vector<16x16x4xf32>
    %177 = vector.shape_cast %175 : vector<1x4xf32> to vector<1x1x4xf32>
    %178 = vector.broadcast %177 : vector<1x1x4xf32> to vector<16x16x4xf32>
    %179 = arith.mulf %178, %176 : vector<16x16x4xf32>
    %180 = arith.addf %174, %179 : vector<16x16x4xf32>
    %181 = vector.extract_strided_slice %2 {offsets = [29, 0], sizes = [1, 4], strides = [1, 1]} : vector<49x4xf32> to vector<1x4xf32>
    %c4_95 = arith.constant 4 : index
    %c1_96 = arith.constant 1 : index
    %c0_97 = arith.constant 0 : index
    %182 = vector.load %arg6[%c4_95, %c1_96, %c0_97] : memref<22x22x4xf32, #tpu.memory_space<vmem>>, vector<16x16x4xf32>
    %183 = vector.shape_cast %181 : vector<1x4xf32> to vector<1x1x4xf32>
    %184 = vector.broadcast %183 : vector<1x1x4xf32> to vector<16x16x4xf32>
    %185 = arith.mulf %184, %182 : vector<16x16x4xf32>
    %186 = arith.addf %180, %185 : vector<16x16x4xf32>
    %187 = vector.extract_strided_slice %2 {offsets = [30, 0], sizes = [1, 4], strides = [1, 1]} : vector<49x4xf32> to vector<1x4xf32>
    %c4_98 = arith.constant 4 : index
    %c2_99 = arith.constant 2 : index
    %c0_100 = arith.constant 0 : index
    %188 = vector.load %arg6[%c4_98, %c2_99, %c0_100] : memref<22x22x4xf32, #tpu.memory_space<vmem>>, vector<16x16x4xf32>
    %189 = vector.shape_cast %187 : vector<1x4xf32> to vector<1x1x4xf32>
    %190 = vector.broadcast %189 : vector<1x1x4xf32> to vector<16x16x4xf32>
    %191 = arith.mulf %190, %188 : vector<16x16x4xf32>
    %192 = arith.addf %186, %191 : vector<16x16x4xf32>
    %193 = vector.extract_strided_slice %2 {offsets = [31, 0], sizes = [1, 4], strides = [1, 1]} : vector<49x4xf32> to vector<1x4xf32>
    %c4_101 = arith.constant 4 : index
    %c3_102 = arith.constant 3 : index
    %c0_103 = arith.constant 0 : index
    %194 = vector.load %arg6[%c4_101, %c3_102, %c0_103] : memref<22x22x4xf32, #tpu.memory_space<vmem>>, vector<16x16x4xf32>
    %195 = vector.shape_cast %193 : vector<1x4xf32> to vector<1x1x4xf32>
    %196 = vector.broadcast %195 : vector<1x1x4xf32> to vector<16x16x4xf32>
    %197 = arith.mulf %196, %194 : vector<16x16x4xf32>
    %198 = arith.addf %192, %197 : vector<16x16x4xf32>
    %199 = vector.extract_strided_slice %2 {offsets = [32, 0], sizes = [1, 4], strides = [1, 1]} : vector<49x4xf32> to vector<1x4xf32>
    %c4_104 = arith.constant 4 : index
    %c4_105 = arith.constant 4 : index
    %c0_106 = arith.constant 0 : index
    %200 = vector.load %arg6[%c4_104, %c4_105, %c0_106] : memref<22x22x4xf32, #tpu.memory_space<vmem>>, vector<16x16x4xf32>
    %201 = vector.shape_cast %199 : vector<1x4xf32> to vector<1x1x4xf32>
    %202 = vector.broadcast %201 : vector<1x1x4xf32> to vector<16x16x4xf32>
    %203 = arith.mulf %202, %200 : vector<16x16x4xf32>
    %204 = arith.addf %198, %203 : vector<16x16x4xf32>
    %205 = vector.extract_strided_slice %2 {offsets = [33, 0], sizes = [1, 4], strides = [1, 1]} : vector<49x4xf32> to vector<1x4xf32>
    %c4_107 = arith.constant 4 : index
    %c5_108 = arith.constant 5 : index
    %c0_109 = arith.constant 0 : index
    %206 = vector.load %arg6[%c4_107, %c5_108, %c0_109] : memref<22x22x4xf32, #tpu.memory_space<vmem>>, vector<16x16x4xf32>
    %207 = vector.shape_cast %205 : vector<1x4xf32> to vector<1x1x4xf32>
    %208 = vector.broadcast %207 : vector<1x1x4xf32> to vector<16x16x4xf32>
    %209 = arith.mulf %208, %206 : vector<16x16x4xf32>
    %210 = arith.addf %204, %209 : vector<16x16x4xf32>
    %211 = vector.extract_strided_slice %2 {offsets = [34, 0], sizes = [1, 4], strides = [1, 1]} : vector<49x4xf32> to vector<1x4xf32>
    %c4_110 = arith.constant 4 : index
    %c6_111 = arith.constant 6 : index
    %c0_112 = arith.constant 0 : index
    %212 = vector.load %arg6[%c4_110, %c6_111, %c0_112] : memref<22x22x4xf32, #tpu.memory_space<vmem>>, vector<16x16x4xf32>
    %213 = vector.shape_cast %211 : vector<1x4xf32> to vector<1x1x4xf32>
    %214 = vector.broadcast %213 : vector<1x1x4xf32> to vector<16x16x4xf32>
    %215 = arith.mulf %214, %212 : vector<16x16x4xf32>
    %216 = arith.addf %210, %215 : vector<16x16x4xf32>
    %217 = vector.extract_strided_slice %2 {offsets = [35, 0], sizes = [1, 4], strides = [1, 1]} : vector<49x4xf32> to vector<1x4xf32>
    %c5_113 = arith.constant 5 : index
    %c0_114 = arith.constant 0 : index
    %c0_115 = arith.constant 0 : index
    %218 = vector.load %arg6[%c5_113, %c0_114, %c0_115] : memref<22x22x4xf32, #tpu.memory_space<vmem>>, vector<16x16x4xf32>
    %219 = vector.shape_cast %217 : vector<1x4xf32> to vector<1x1x4xf32>
    %220 = vector.broadcast %219 : vector<1x1x4xf32> to vector<16x16x4xf32>
    %221 = arith.mulf %220, %218 : vector<16x16x4xf32>
    %222 = arith.addf %216, %221 : vector<16x16x4xf32>
    %223 = vector.extract_strided_slice %2 {offsets = [36, 0], sizes = [1, 4], strides = [1, 1]} : vector<49x4xf32> to vector<1x4xf32>
    %c5_116 = arith.constant 5 : index
    %c1_117 = arith.constant 1 : index
    %c0_118 = arith.constant 0 : index
    %224 = vector.load %arg6[%c5_116, %c1_117, %c0_118] : memref<22x22x4xf32, #tpu.memory_space<vmem>>, vector<16x16x4xf32>
    %225 = vector.shape_cast %223 : vector<1x4xf32> to vector<1x1x4xf32>
    %226 = vector.broadcast %225 : vector<1x1x4xf32> to vector<16x16x4xf32>
    %227 = arith.mulf %226, %224 : vector<16x16x4xf32>
    %228 = arith.addf %222, %227 : vector<16x16x4xf32>
    %229 = vector.extract_strided_slice %2 {offsets = [37, 0], sizes = [1, 4], strides = [1, 1]} : vector<49x4xf32> to vector<1x4xf32>
    %c5_119 = arith.constant 5 : index
    %c2_120 = arith.constant 2 : index
    %c0_121 = arith.constant 0 : index
    %230 = vector.load %arg6[%c5_119, %c2_120, %c0_121] : memref<22x22x4xf32, #tpu.memory_space<vmem>>, vector<16x16x4xf32>
    %231 = vector.shape_cast %229 : vector<1x4xf32> to vector<1x1x4xf32>
    %232 = vector.broadcast %231 : vector<1x1x4xf32> to vector<16x16x4xf32>
    %233 = arith.mulf %232, %230 : vector<16x16x4xf32>
    %234 = arith.addf %228, %233 : vector<16x16x4xf32>
    %235 = vector.extract_strided_slice %2 {offsets = [38, 0], sizes = [1, 4], strides = [1, 1]} : vector<49x4xf32> to vector<1x4xf32>
    %c5_122 = arith.constant 5 : index
    %c3_123 = arith.constant 3 : index
    %c0_124 = arith.constant 0 : index
    %236 = vector.load %arg6[%c5_122, %c3_123, %c0_124] : memref<22x22x4xf32, #tpu.memory_space<vmem>>, vector<16x16x4xf32>
    %237 = vector.shape_cast %235 : vector<1x4xf32> to vector<1x1x4xf32>
    %238 = vector.broadcast %237 : vector<1x1x4xf32> to vector<16x16x4xf32>
    %239 = arith.mulf %238, %236 : vector<16x16x4xf32>
    %240 = arith.addf %234, %239 : vector<16x16x4xf32>
    %241 = vector.extract_strided_slice %2 {offsets = [39, 0], sizes = [1, 4], strides = [1, 1]} : vector<49x4xf32> to vector<1x4xf32>
    %c5_125 = arith.constant 5 : index
    %c4_126 = arith.constant 4 : index
    %c0_127 = arith.constant 0 : index
    %242 = vector.load %arg6[%c5_125, %c4_126, %c0_127] : memref<22x22x4xf32, #tpu.memory_space<vmem>>, vector<16x16x4xf32>
    %243 = vector.shape_cast %241 : vector<1x4xf32> to vector<1x1x4xf32>
    %244 = vector.broadcast %243 : vector<1x1x4xf32> to vector<16x16x4xf32>
    %245 = arith.mulf %244, %242 : vector<16x16x4xf32>
    %246 = arith.addf %240, %245 : vector<16x16x4xf32>
    %247 = vector.extract_strided_slice %2 {offsets = [40, 0], sizes = [1, 4], strides = [1, 1]} : vector<49x4xf32> to vector<1x4xf32>
    %c5_128 = arith.constant 5 : index
    %c5_129 = arith.constant 5 : index
    %c0_130 = arith.constant 0 : index
    %248 = vector.load %arg6[%c5_128, %c5_129, %c0_130] : memref<22x22x4xf32, #tpu.memory_space<vmem>>, vector<16x16x4xf32>
    %249 = vector.shape_cast %247 : vector<1x4xf32> to vector<1x1x4xf32>
    %250 = vector.broadcast %249 : vector<1x1x4xf32> to vector<16x16x4xf32>
    %251 = arith.mulf %250, %248 : vector<16x16x4xf32>
    %252 = arith.addf %246, %251 : vector<16x16x4xf32>
    %253 = vector.extract_strided_slice %2 {offsets = [41, 0], sizes = [1, 4], strides = [1, 1]} : vector<49x4xf32> to vector<1x4xf32>
    %c5_131 = arith.constant 5 : index
    %c6_132 = arith.constant 6 : index
    %c0_133 = arith.constant 0 : index
    %254 = vector.load %arg6[%c5_131, %c6_132, %c0_133] : memref<22x22x4xf32, #tpu.memory_space<vmem>>, vector<16x16x4xf32>
    %255 = vector.shape_cast %253 : vector<1x4xf32> to vector<1x1x4xf32>
    %256 = vector.broadcast %255 : vector<1x1x4xf32> to vector<16x16x4xf32>
    %257 = arith.mulf %256, %254 : vector<16x16x4xf32>
    %258 = arith.addf %252, %257 : vector<16x16x4xf32>
    %259 = vector.extract_strided_slice %2 {offsets = [42, 0], sizes = [1, 4], strides = [1, 1]} : vector<49x4xf32> to vector<1x4xf32>
    %c6_134 = arith.constant 6 : index
    %c0_135 = arith.constant 0 : index
    %c0_136 = arith.constant 0 : index
    %260 = vector.load %arg6[%c6_134, %c0_135, %c0_136] : memref<22x22x4xf32, #tpu.memory_space<vmem>>, vector<16x16x4xf32>
    %261 = vector.shape_cast %259 : vector<1x4xf32> to vector<1x1x4xf32>
    %262 = vector.broadcast %261 : vector<1x1x4xf32> to vector<16x16x4xf32>
    %263 = arith.mulf %262, %260 : vector<16x16x4xf32>
    %264 = arith.addf %258, %263 : vector<16x16x4xf32>
    %265 = vector.extract_strided_slice %2 {offsets = [43, 0], sizes = [1, 4], strides = [1, 1]} : vector<49x4xf32> to vector<1x4xf32>
    %c6_137 = arith.constant 6 : index
    %c1_138 = arith.constant 1 : index
    %c0_139 = arith.constant 0 : index
    %266 = vector.load %arg6[%c6_137, %c1_138, %c0_139] : memref<22x22x4xf32, #tpu.memory_space<vmem>>, vector<16x16x4xf32>
    %267 = vector.shape_cast %265 : vector<1x4xf32> to vector<1x1x4xf32>
    %268 = vector.broadcast %267 : vector<1x1x4xf32> to vector<16x16x4xf32>
    %269 = arith.mulf %268, %266 : vector<16x16x4xf32>
    %270 = arith.addf %264, %269 : vector<16x16x4xf32>
    %271 = vector.extract_strided_slice %2 {offsets = [44, 0], sizes = [1, 4], strides = [1, 1]} : vector<49x4xf32> to vector<1x4xf32>
    %c6_140 = arith.constant 6 : index
    %c2_141 = arith.constant 2 : index
    %c0_142 = arith.constant 0 : index
    %272 = vector.load %arg6[%c6_140, %c2_141, %c0_142] : memref<22x22x4xf32, #tpu.memory_space<vmem>>, vector<16x16x4xf32>
    %273 = vector.shape_cast %271 : vector<1x4xf32> to vector<1x1x4xf32>
    %274 = vector.broadcast %273 : vector<1x1x4xf32> to vector<16x16x4xf32>
    %275 = arith.mulf %274, %272 : vector<16x16x4xf32>
    %276 = arith.addf %270, %275 : vector<16x16x4xf32>
    %277 = vector.extract_strided_slice %2 {offsets = [45, 0], sizes = [1, 4], strides = [1, 1]} : vector<49x4xf32> to vector<1x4xf32>
    %c6_143 = arith.constant 6 : index
    %c3_144 = arith.constant 3 : index
    %c0_145 = arith.constant 0 : index
    %278 = vector.load %arg6[%c6_143, %c3_144, %c0_145] : memref<22x22x4xf32, #tpu.memory_space<vmem>>, vector<16x16x4xf32>
    %279 = vector.shape_cast %277 : vector<1x4xf32> to vector<1x1x4xf32>
    %280 = vector.broadcast %279 : vector<1x1x4xf32> to vector<16x16x4xf32>
    %281 = arith.mulf %280, %278 : vector<16x16x4xf32>
    %282 = arith.addf %276, %281 : vector<16x16x4xf32>
    %283 = vector.extract_strided_slice %2 {offsets = [46, 0], sizes = [1, 4], strides = [1, 1]} : vector<49x4xf32> to vector<1x4xf32>
    %c6_146 = arith.constant 6 : index
    %c4_147 = arith.constant 4 : index
    %c0_148 = arith.constant 0 : index
    %284 = vector.load %arg6[%c6_146, %c4_147, %c0_148] : memref<22x22x4xf32, #tpu.memory_space<vmem>>, vector<16x16x4xf32>
    %285 = vector.shape_cast %283 : vector<1x4xf32> to vector<1x1x4xf32>
    %286 = vector.broadcast %285 : vector<1x1x4xf32> to vector<16x16x4xf32>
    %287 = arith.mulf %286, %284 : vector<16x16x4xf32>
    %288 = arith.addf %282, %287 : vector<16x16x4xf32>
    %289 = vector.extract_strided_slice %2 {offsets = [47, 0], sizes = [1, 4], strides = [1, 1]} : vector<49x4xf32> to vector<1x4xf32>
    %c6_149 = arith.constant 6 : index
    %c5_150 = arith.constant 5 : index
    %c0_151 = arith.constant 0 : index
    %290 = vector.load %arg6[%c6_149, %c5_150, %c0_151] : memref<22x22x4xf32, #tpu.memory_space<vmem>>, vector<16x16x4xf32>
    %291 = vector.shape_cast %289 : vector<1x4xf32> to vector<1x1x4xf32>
    %292 = vector.broadcast %291 : vector<1x1x4xf32> to vector<16x16x4xf32>
    %293 = arith.mulf %292, %290 : vector<16x16x4xf32>
    %294 = arith.addf %288, %293 : vector<16x16x4xf32>
    %295 = vector.extract_strided_slice %2 {offsets = [48, 0], sizes = [1, 4], strides = [1, 1]} : vector<49x4xf32> to vector<1x4xf32>
    %c6_152 = arith.constant 6 : index
    %c6_153 = arith.constant 6 : index
    %c0_154 = arith.constant 0 : index
    %296 = vector.load %arg6[%c6_152, %c6_153, %c0_154] : memref<22x22x4xf32, #tpu.memory_space<vmem>>, vector<16x16x4xf32>
    %297 = vector.shape_cast %295 : vector<1x4xf32> to vector<1x1x4xf32>
    %298 = vector.broadcast %297 : vector<1x1x4xf32> to vector<16x16x4xf32>
    %299 = arith.mulf %298, %296 : vector<16x16x4xf32>
    %300 = arith.addf %294, %299 : vector<16x16x4xf32>
    %301 = vector.shape_cast %3 : vector<1x4xf32> to vector<1x1x4xf32>
    %302 = vector.broadcast %301 : vector<1x1x4xf32> to vector<16x16x4xf32>
    %303 = arith.addf %300, %302 : vector<16x16x4xf32>
    %304 = vector.broadcast %4 : f32 to vector<16x16x4xf32>
    %305 = arith.mulf %304, %303 : vector<16x16x4xf32>
    %306 = arith.addf %305, %1 : vector<16x16x4xf32>
    %c0_155 = arith.constant 0 : index
    %c0_156 = arith.constant 0 : index
    %c0_157 = arith.constant 0 : index
    %c0_158 = arith.constant 0 : index
    %307 = vector.load %arg5[%c0_155, %c0_156, %c0_157, %c0_158] : memref<1x16x16x4xf32, #tpu.memory_space<vmem>>, vector<1x16x16x4xf32>
    %308 = vector.shape_cast %307 : vector<1x16x16x4xf32> to vector<16x16x4xf32>
    %309 = vector.shape_cast %306 : vector<16x16x4xf32> to vector<1x16x16x4xf32>
    tpu.vector_store %arg5[%c0_155, %c0_156, %c0_157, %c0_158], %309 {strides = array<i32>} : memref<1x16x16x4xf32, #tpu.memory_space<vmem>>, vector<1x16x16x4xf32>,
    return
  }
  func.func @transform_0(%arg0: i32) -> i32 {
    %c0_i32 = arith.constant 0 : i32
    %c0_i32_0 = arith.constant 0 : i32
    return %c0_i32 : i32
  }
  func.func @transform_1(%arg0: i32) -> (i32, i32) {
    %c0_i32 = arith.constant 0 : i32
    %c0_i32_0 = arith.constant 0 : i32
    %c0_i32_1 = arith.constant 0 : i32
    return %c0_i32, %c0_i32_0 : i32, i32
  }
  func.func @transform_2(%arg0: i32) -> (i32, i32) {
    %c0_i32 = arith.constant 0 : i32
    %c0_i32_0 = arith.constant 0 : i32
    %c0_i32_1 = arith.constant 0 : i32
    return %c0_i32, %c0_i32_0 : i32, i32
  }
  func.func @transform_3(%arg0: i32) -> (i32, i32, i32, i32) {
    %c0_i32 = arith.constant 0 : i32
    %c0_i32_0 = arith.constant 0 : i32
    %c0_i32_1 = arith.constant 0 : i32
    %c0_i32_2 = arith.constant 0 : i32
    return %arg0, %c0_i32, %c0_i32_0, %c0_i32_1 : i32, i32, i32, i32
  }
  func.func @transform_4(%arg0: i32) -> (i32, i32, i32, i32) {
    %c0_i32 = arith.constant 0 : i32
    %c0_i32_0 = arith.constant 0 : i32
    %c0_i32_1 = arith.constant 0 : i32
    %c0_i32_2 = arith.constant 0 : i32
    return %arg0, %c0_i32, %c0_i32_0, %c0_i32_1 : i32, i32, i32, i32
  }
}

</mosaic_0001>

<llo_original>
// kernel: local_attention.1
$region0: #{local_attention.1}
  #allocation0 [shape = 'u32[]', space=smem, size = 0x4, offset = 0x4, fixed_abs, tag = 'smem constant byte address 0x4 - core index']
  #allocation1 [shape = 'u32[144,128]{1,0:T(1,128)}', space=vmem, size = 0x12000, scoped, tag = 'internal scratch']
  #allocation2 [shape = 'f32[22,22,4]{2,1,0:T(8,128)}', space=vmem, size = 0x42000, scoped, tag = 'scratch operand']
  #allocation3 [shape = 'f32[1]{0:T(128)S(6)}', space=smem, size = 0x200, scoped, tag = 'scoped memory for local_attention.1']
  %s0 = inlined_call_operand.<no memory space> [shape: f32[1], index: 0, kind: input, shape index: {}]
  %s1 = inlined_call_operand.vmem [shape: f32[49,4], index: 1, kind: input, shape index: {}]
  %s2 = inlined_call_operand.vmem [shape: f32[1,4], index: 2, kind: input, shape index: {}]
  %s3 = inlined_call_operand.vmem [shape: f32[2,16,16,4], index: 3, kind: input, shape index: {}]
  %s4 = inlined_call_operand.vmem [shape: f32[2,16,16,4], index: 4, kind: output, shape index: {}]
  %s5 = sld [smem:[#allocation0]]
  $region49: #{local_attention.1} parent=0
    _
  %s7 = ssub.s32 1, %s5
  %s8 = scalar_select 0, %s7, %s5
  %9 = sst [smem:[#allocation3]] %s0
  loop: start=0, step=1, limit=4
  $region2: #{local_attention.1} parent=0 // loop_pre_header
    _
  $region3: #{local_attention.1} parent=0 // loop_header
    %s11 = sphi 0, %s15
    %p12 = scmp.ge.s32.totalorder %s11, 4
    %s19 = sphi 0, %s19
    %s21 = sphi 0, %s19
    %s22 = sphi 0, %s21
    %s36 = sphi 0, %s22
    %s40 = sphi 0, %s40
    %s42 = sphi 0, %s40
    %s43 = sphi 0, %s42
    %s57 = sphi 0, %s43
    %s61 = sphi 0, %s61
    %s63 = sphi 0, %s61
    %s64 = sphi 0, %s63
    %s78 = sphi 0, %s64
    %s84 = sphi 0, %s86
    %s87 = sphi 0, %s84
    %s88 = sphi 0, %s87
    %s104 = sphi 0, %s88
    %s110 = sphi 0, %s112
    %s113 = sphi 0, %s110
    %s114 = sphi 0, %s113
    %s130 = sphi 0, %s114
  $region4: #{local_attention.1} parent=0 // loop_header_branch
    %14 = sbr.rel (%p12) target = $region8
  $region5: #{local_attention.1} parent=0 // loop_body
    %s16 = ssub.s32 %s11, 1
    %s17 = ssub.s32 %s11, 2
    %s18 = sadd.s32 %s11, 1
    %s20 = sadd.s32 %s19, 1
    %p23 = scmp.eq.s32.totalorder %s11, 1
    %p24 = scmp.ne.s32.totalorder %s19, %s21
    %p25 = scmp.eq.s32.totalorder %s11, 0
    %p26 = por %p24, %p25
    %p27 = scmp.ne.s32.totalorder %s19, %s21
    %p28 = scmp.eq.s32.totalorder %s16, 1
    %p29 = por %p27, %p28
    %p30 = scmp.ne.s32.totalorder %s21, %s22
    %p31 = scmp.eq.s32.totalorder %s16, 0
    %p32 = por %p30, %p31
    %p33 = scmp.ne.s32.totalorder %s21, %s22
    %p34 = scmp.eq.s32.totalorder %s17, 1
    %p35 = por %p33, %p34
    %p37 = scmp.ne.s32.totalorder %s22, %s36
    %p38 = scmp.eq.s32.totalorder %s17, 0
    %p39 = por %p37, %p38
    %s41 = sadd.s32 %s40, 1
    %p44 = scmp.eq.s32.totalorder %s11, 1
    %p45 = scmp.ne.s32.totalorder %s40, %s42
    %p46 = scmp.eq.s32.totalorder %s11, 0
    %p47 = por %p45, %p46
    %p48 = scmp.ne.s32.totalorder %s40, %s42
    %p49 = scmp.eq.s32.totalorder %s16, 1
    %p50 = por %p48, %p49
    %p51 = scmp.ne.s32.totalorder %s42, %s43
    %p52 = scmp.eq.s32.totalorder %s16, 0
    %p53 = por %p51, %p52
    %p54 = scmp.ne.s32.totalorder %s42, %s43
    %p55 = scmp.eq.s32.totalorder %s17, 1
    %p56 = por %p54, %p55
    %p58 = scmp.ne.s32.totalorder %s43, %s57
    %p59 = scmp.eq.s32.totalorder %s17, 0
    %p60 = por %p58, %p59
    %s62 = sadd.s32 %s61, 1
    %p65 = scmp.eq.s32.totalorder %s11, 1
    %p66 = scmp.ne.s32.totalorder %s61, %s63
    %p67 = scmp.eq.s32.totalorder %s11, 0
    %p68 = por %p66, %p67
    %p69 = scmp.ne.s32.totalorder %s61, %s63
    %p70 = scmp.eq.s32.totalorder %s16, 1
    %p71 = por %p69, %p70
    %p72 = scmp.ne.s32.totalorder %s63, %s64
    %p73 = scmp.eq.s32.totalorder %s16, 0
    %p74 = por %p72, %p73
    %p75 = scmp.ne.s32.totalorder %s63, %s64
    %p76 = scmp.eq.s32.totalorder %s17, 1
    %p77 = por %p75, %p76
    %p79 = scmp.ne.s32.totalorder %s64, %s78
    %p80 = scmp.eq.s32.totalorder %s17, 0
    %p81 = por %p79, %p80
    %s82 = ssub.s32 %s11, %s18
    %p83 = scmp.eq.s32.totalorder %s82, 0
    %s85 = sadd.s32 %s84, 1
    %s86 = scalar_select %p83, %s84, %s85
    %p89 = pneg %p83
    %p90 = scmp.eq.s32.totalorder %s11, 1
    %p91 = por %p89, %p90
    %p92 = scmp.ne.s32.totalorder %s84, %s87
    %p93 = scmp.eq.s32.totalorder %s11, 0
    %p94 = por %p92, %p93
    %p95 = scmp.ne.s32.totalorder %s84, %s87
    %p96 = scmp.eq.s32.totalorder %s16, 1
    %p97 = por %p95, %p96
    %p98 = scmp.ne.s32.totalorder %s87, %s88
    %p99 = scmp.eq.s32.totalorder %s16, 0
    %p100 = por %p98, %p99
    %p101 = scmp.ne.s32.totalorder %s87, %s88
    %p102 = scmp.eq.s32.totalorder %s17, 1
    %p103 = por %p101, %p102
    %p105 = scmp.ne.s32.totalorder %s88, %s104
    %p106 = scmp.eq.s32.totalorder %s17, 0
    %p107 = por %p105, %p106
    %s108 = ssub.s32 %s11, %s18
    %p109 = scmp.eq.s32.totalorder %s108, 0
    %s111 = sadd.s32 %s110, 1
    %s112 = scalar_select %p109, %s110, %s111
    %p115 = pneg %p109
    %p116 = scmp.eq.s32.totalorder %s11, 1
    %p117 = por %p115, %p116
    %p118 = scmp.ne.s32.totalorder %s110, %s113
    %p119 = scmp.eq.s32.totalorder %s11, 0
    %p120 = por %p118, %p119
    %p121 = scmp.ne.s32.totalorder %s110, %s113
    %p122 = scmp.eq.s32.totalorder %s16, 1
    %p123 = por %p121, %p122
    %p124 = scmp.ne.s32.totalorder %s113, %s114
    %p125 = scmp.eq.s32.totalorder %s16, 0
    %p126 = por %p124, %p125
    %p127 = scmp.ne.s32.totalorder %s113, %s114
    %p128 = scmp.eq.s32.totalorder %s17, 1
    %p129 = por %p127, %p128
    %p131 = scmp.ne.s32.totalorder %s114, %s130
    %p132 = scmp.eq.s32.totalorder %s17, 0
    %p133 = por %p131, %p132
    %p134 = scmp.le.s32.totalorder 1, %s11
    %p135 = scmp.lt.s32.totalorder %s11, 3
    %p136 = pnand %p134, %p135
    %p137 = pneg %p136
    // Predicated region
    $region9: #{local_attention.1} parent=5 // pred_check
      _
    $region10: #{local_attention.1} parent=5 // pred_check_branch
      %139 = sbr.rel (%p136) target = $region12
    $region11: #{local_attention.1} parent=5 // pred_region
      %s140 = ssub.s32 %s11, 1
      // Predicated region
      $region13: #{local_attention.1} parent=11 // pred_check
        %p141 = pneg %p32
      $region14: #{local_attention.1} parent=11 // pred_check_branch
        %143 = sbr.rel (%p141) target = $region16
      $region15: #{local_attention.1} parent=11 // pred_region
        _
      $region16: #{local_attention.1} parent=11 // pred_fallthru
        _
      // Predicated region
      $region17: #{local_attention.1} parent=11 // pred_check
        %p144 = pneg %p53
      $region18: #{local_attention.1} parent=11 // pred_check_branch
        %146 = sbr.rel (%p144) target = $region20
      $region19: #{local_attention.1} parent=11 // pred_region
        _
      $region20: #{local_attention.1} parent=11 // pred_fallthru
        _
      // Predicated region
      $region21: #{local_attention.1} parent=11 // pred_check
        %p147 = pneg %p74
      $region22: #{local_attention.1} parent=11 // pred_check_branch
        %149 = sbr.rel (%p147) target = $region24
      $region23: #{local_attention.1} parent=11 // pred_region
        _
      $region24: #{local_attention.1} parent=11 // pred_fallthru
        _
    $region12: #{local_attention.1} parent=5 // pred_fallthru
      _
    %p150 = scmp.lt.s32.totalorder %s11, 2
    // Predicated region
    $region25: #{local_attention.1} parent=5 // pred_check
      %p151 = pneg %p150
    $region26: #{local_attention.1} parent=5 // pred_check_branch
      %153 = sbr.rel (%p151) target = $region28
    $region27: #{local_attention.1} parent=5 // pred_region
      // Predicated region
      $region29: #{local_attention.1} parent=27 // pred_check
        %p154 = pneg %p94
      $region30: #{local_attention.1} parent=27 // pred_check_branch
        %156 = sbr.rel (%p154) target = $region32
      $region31: #{local_attention.1} parent=27 // pred_region
        %p157 = scmp.lt.s32.totalorder %s11, 1
        %s158 = scalar_select %p157, %s11, 1
        %s159 = smul.addr %s158, 32
        %s160 = smul.addr %s159, 8
        %s161 = scalar_lea.vmem %s3, %s160
      $region32: #{local_attention.1} parent=27 // pred_fallthru
        _
    $region28: #{local_attention.1} parent=5 // pred_fallthru
      _
    %p162 = scmp.le.s32.totalorder 1, %s11
    %p163 = scmp.lt.s32.totalorder %s11, 3
    %p164 = pnand %p162, %p163
    %p165 = pneg %p164
    // Predicated region
    $region33: #{local_attention.1} parent=5 // pred_check
      _
    $region34: #{local_attention.1} parent=5 // pred_check_branch
      %167 = sbr.rel (%p164) target = $region36
    $region35: #{local_attention.1} parent=5 // pred_region
      %s168 = ssub.s32 %s11, 1
      %p169 = pneg %p32
      %p170 = pneg %p29
      %p171 = pneg %p53
      %p172 = pneg %p50
      %p173 = pneg %p74
      %p174 = pneg %p71
      %p175 = scmp.lt.s32.totalorder %s16, 1
      %s176 = scalar_select %p175, %s16, 1
      %s177 = smul.addr %s176, 32
      %s178 = smul.addr %s177, 8
      %s179 = scalar_lea.vmem %s3, %s178
      %p180 = pneg %p100
      %p181 = pneg %p97
      %p182 = pneg %p126
      %p183 = pneg %p123
      %p184 = scmp.lt.s32.totalorder %s16, 1
      %s185 = scalar_select %p184, %s16, 1
      %s186 = smul.addr %s185, 32
      %s187 = smul.addr %s186, 8
      %s188 = scalar_lea.vmem %s4, %s187
      %p189 = scmp.lt.s32.totalorder %s16, 1
      %s190 = scalar_select %p189, %s16, 1
      %s191 = smul.addr %s190, 32
      %s192 = smul.addr %s191, 8
      %s193 = scalar_lea.vmem %s3, %s192
      %p194 = scmp.lt.s32.totalorder %s16, 1
      %s195 = scalar_select %p194, %s16, 1
      %s196 = smul.addr %s195, 32
      %s197 = smul.addr %s196, 8
      %s198 = scalar_lea.vmem %s4, %s197
      %v199 = vld [vmem:[%s193] sm:$0xff]
      %v200 = vld [vmem:[%s193 + $0x8] sm:$0xff]
      %v201 = vld [vmem:[%s193 + $0x10] sm:$0xff]
      %v202 = vld [vmem:[%s193 + $0x18] sm:$0xff]
      %v203 = vld [vmem:[%s193 + $0x20] sm:$0xff]
      %v204 = vld [vmem:[%s193 + $0x28] sm:$0xff]
      %v205 = vld [vmem:[%s193 + $0x30] sm:$0xff]
      %v206 = vld [vmem:[%s193 + $0x38] sm:$0xff]
      %v207 = vld [vmem:[%s193 + $0x40] sm:$0xff]
      %v208 = vld [vmem:[%s193 + $0x48] sm:$0xff]
      %v209 = vld [vmem:[%s193 + $0x50] sm:$0xff]
      %v210 = vld [vmem:[%s193 + $0x58] sm:$0xff]
      %v211 = vld [vmem:[%s193 + $0x60] sm:$0xff]
      %v212 = vld [vmem:[%s193 + $0x68] sm:$0xff]
      %v213 = vld [vmem:[%s193 + $0x70] sm:$0xff]
      %v214 = vld [vmem:[%s193 + $0x78] sm:$0xff]
      %v215 = vld [vmem:[%s193 + $0x80] sm:$0xff]
      %v216 = vld [vmem:[%s193 + $0x88] sm:$0xff]
      %v217 = vld [vmem:[%s193 + $0x90] sm:$0xff]
      %v218 = vld [vmem:[%s193 + $0x98] sm:$0xff]
      %v219 = vld [vmem:[%s193 + $0xa0] sm:$0xff]
      %v220 = vld [vmem:[%s193 + $0xa8] sm:$0xff]
      %v221 = vld [vmem:[%s193 + $0xb0] sm:$0xff]
      %v222 = vld [vmem:[%s193 + $0xb8] sm:$0xff]
      %v223 = vld [vmem:[%s193 + $0xc0] sm:$0xff]
      %v224 = vld [vmem:[%s193 + $0xc8] sm:$0xff]
      %v225 = vld [vmem:[%s193 + $0xd0] sm:$0xff]
      %v226 = vld [vmem:[%s193 + $0xd8] sm:$0xff]
      %v227 = vld [vmem:[%s193 + $0xe0] sm:$0xff]
      %v228 = vld [vmem:[%s193 + $0xe8] sm:$0xff]
      %v229 = vld [vmem:[%s193 + $0xf0] sm:$0xff]
      %v230 = vld [vmem:[%s193 + $0xf8] sm:$0xff]
      %v231 = vld [vmem:[%s1] sm:$0xff]
      %v232 = vld [vmem:[%s1 + $0x8] sm:$0xff]
      %v233 = vld [vmem:[%s1 + $0x10] sm:$0xff]
      %v234 = vld [vmem:[%s1 + $0x18] sm:$0xff]
      %v235 = vld [vmem:[%s1 + $0x20] sm:$0xff]
      %v236 = vld [vmem:[%s1 + $0x28] sm:$0xff]
      %v237 = vld [vmem:[%s1 + $0x30] sm:$0x1]
      %v238 = vld [vmem:[%s2] sm:$0x1]
      %s239 = sld [smem:[#allocation3]]
      %vm240 = vcmask 31744
      %241 = vst.msk [vmem:[#allocation2] sm:$0xff] %vm240, 0.0
      %242 = vst.msk [vmem:[#allocation2 + $0x8] sm:$0xff] %vm240, 0.0
      %vm243 = vcmask 29696
      %244 = vst.msk [vmem:[#allocation2 + $0x10] sm:$0x3f] %vm243, 0.0
      %245 = vst.msk [vmem:[#allocation2 + $0x18] sm:$0xff] %vm240, 0.0
      %246 = vst.msk [vmem:[#allocation2 + $0x20] sm:$0xff] %vm240, 0.0
      %247 = vst.msk [vmem:[#allocation2 + $0x28] sm:$0x3f] %vm243, 0.0
      %248 = vst.msk [vmem:[#allocation2 + $0x30] sm:$0xff] %vm240, 0.0
      %249 = vst.msk [vmem:[#allocation2 + $0x38] sm:$0xff] %vm240, 0.0
      %250 = vst.msk [vmem:[#allocation2 + $0x40] sm:$0x3f] %vm243, 0.0
      %251 = vst.msk [vmem:[#allocation2 + $0x48] sm:$0xff] %vm240, 0.0
      %252 = vst.msk [vmem:[#allocation2 + $0x50] sm:$0xff] %vm240, 0.0
      %253 = vst.msk [vmem:[#allocation2 + $0x58] sm:$0x3f] %vm243, 0.0
      %254 = vst.msk [vmem:[#allocation2 + $0x60] sm:$0xff] %vm240, 0.0
      %255 = vst.msk [vmem:[#allocation2 + $0x68] sm:$0xff] %vm240, 0.0
      %256 = vst.msk [vmem:[#allocation2 + $0x70] sm:$0x3f] %vm243, 0.0
      %257 = vst.msk [vmem:[#allocation2 + $0x78] sm:$0xff] %vm240, 0.0
      %258 = vst.msk [vmem:[#allocation2 + $0x80] sm:$0xff] %vm240, 0.0
      %259 = vst.msk [vmem:[#allocation2 + $0x88] sm:$0x3f] %vm243, 0.0
      %260 = vst.msk [vmem:[#allocation2 + $0x90] sm:$0xff] %vm240, 0.0
      %261 = vst.msk [vmem:[#allocation2 + $0x98] sm:$0xff] %vm240, 0.0
      %262 = vst.msk [vmem:[#allocation2 + $0xa0] sm:$0x3f] %vm243, 0.0
      %263 = vst.msk [vmem:[#allocation2 + $0xa8] sm:$0xff] %vm240, 0.0
      %264 = vst.msk [vmem:[#allocation2 + $0xb0] sm:$0xff] %vm240, 0.0
      %265 = vst.msk [vmem:[#allocation2 + $0xb8] sm:$0x3f] %vm243, 0.0
      %266 = vst.msk [vmem:[#allocation2 + $0xc0] sm:$0xff] %vm240, 0.0
      %267 = vst.msk [vmem:[#allocation2 + $0xc8] sm:$0xff] %vm240, 0.0
      %268 = vst.msk [vmem:[#allocation2 + $0xd0] sm:$0x3f] %vm243, 0.0
      %269 = vst.msk [vmem:[#allocation2 + $0xd8] sm:$0xff] %vm240, 0.0
      %270 = vst.msk [vmem:[#allocation2 + $0xe0] sm:$0xff] %vm240, 0.0
      %271 = vst.msk [vmem:[#allocation2 + $0xe8] sm:$0x3f] %vm243, 0.0
      %272 = vst.msk [vmem:[#allocation2 + $0xf0] sm:$0xff] %vm240, 0.0
      %273 = vst.msk [vmem:[#allocation2 + $0xf8] sm:$0xff] %vm240, 0.0
      %274 = vst.msk [vmem:[#allocation2 + $0x100] sm:$0x3f] %vm243, 0.0
      %275 = vst.msk [vmem:[#allocation2 + $0x108] sm:$0xff] %vm240, 0.0
      %276 = vst.msk [vmem:[#allocation2 + $0x110] sm:$0xff] %vm240, 0.0
      %277 = vst.msk [vmem:[#allocation2 + $0x118] sm:$0x3f] %vm243, 0.0
      %278 = vst.msk [vmem:[#allocation2 + $0x120] sm:$0xff] %vm240, 0.0
      %279 = vst.msk [vmem:[#allocation2 + $0x128] sm:$0xff] %vm240, 0.0
      %280 = vst.msk [vmem:[#allocation2 + $0x130] sm:$0x3f] %vm243, 0.0
      %281 = vst.msk [vmem:[#allocation2 + $0x138] sm:$0xff] %vm240, 0.0
      %282 = vst.msk [vmem:[#allocation2 + $0x140] sm:$0xff] %vm240, 0.0
      %283 = vst.msk [vmem:[#allocation2 + $0x148] sm:$0x3f] %vm243, 0.0
      %284 = vst.msk [vmem:[#allocation2 + $0x150] sm:$0xff] %vm240, 0.0
      %285 = vst.msk [vmem:[#allocation2 + $0x158] sm:$0xff] %vm240, 0.0
      %286 = vst.msk [vmem:[#allocation2 + $0x160] sm:$0x3f] %vm243, 0.0
      %287 = vst.msk [vmem:[#allocation2 + $0x168] sm:$0xff] %vm240, 0.0
      %288 = vst.msk [vmem:[#allocation2 + $0x170] sm:$0xff] %vm240, 0.0
      %289 = vst.msk [vmem:[#allocation2 + $0x178] sm:$0x3f] %vm243, 0.0
      %290 = vst.msk [vmem:[#allocation2 + $0x180] sm:$0xff] %vm240, 0.0
      %291 = vst.msk [vmem:[#allocation2 + $0x188] sm:$0xff] %vm240, 0.0
      %292 = vst.msk [vmem:[#allocation2 + $0x190] sm:$0x3f] %vm243, 0.0
      %293 = vst.msk [vmem:[#allocation2 + $0x198] sm:$0xff] %vm240, 0.0
      %294 = vst.msk [vmem:[#allocation2 + $0x1a0] sm:$0xff] %vm240, 0.0
      %295 = vst.msk [vmem:[#allocation2 + $0x1a8] sm:$0x3f] %vm243, 0.0
      %296 = vst.msk [vmem:[#allocation2 + $0x1b0] sm:$0xff] %vm240, 0.0
      %297 = vst.msk [vmem:[#allocation2 + $0x1b8] sm:$0xff] %vm240, 0.0
      %298 = vst.msk [vmem:[#allocation2 + $0x1c0] sm:$0x3f] %vm243, 0.0
      %299 = vst.msk [vmem:[#allocation2 + $0x1c8] sm:$0xff] %vm240, 0.0
      %300 = vst.msk [vmem:[#allocation2 + $0x1d0] sm:$0xff] %vm240, 0.0
      %301 = vst.msk [vmem:[#allocation2 + $0x1d8] sm:$0x3f] %vm243, 0.0
      %302 = vst.msk [vmem:[#allocation2 + $0x1e0] sm:$0xff] %vm240, 0.0
      %303 = vst.msk [vmem:[#allocation2 + $0x1e8] sm:$0xff] %vm240, 0.0
      %304 = vst.msk [vmem:[#allocation2 + $0x1f0] sm:$0x3f] %vm243, 0.0
      %305 = vst.msk [vmem:[#allocation2 + $0x1f8] sm:$0xff] %vm240, 0.0
      %306 = vst.msk [vmem:[#allocation2 + $0x200] sm:$0xff] %vm240, 0.0
      %307 = vst.msk [vmem:[#allocation2 + $0x208] sm:$0x3f] %vm243, 0.0
      %s308 = scalar_lea.vmem [#allocation2], 72
      %309 = vst.msk [vmem:[%s308 + $0x3] sm:$0xff] %vm240, %v199
      %310 = vst.msk [vmem:[%s308 + $0xb] sm:$0xff] %vm240, %v200
      %311 = vst.msk [vmem:[%s308 + $0x1b] sm:$0xff] %vm240, %v201
      %312 = vst.msk [vmem:[%s308 + $0x23] sm:$0xff] %vm240, %v202
      %313 = vst.msk [vmem:[%s308 + $0x33] sm:$0xff] %vm240, %v203
      %314 = vst.msk [vmem:[%s308 + $0x3b] sm:$0xff] %vm240, %v204
      %315 = vst.msk [vmem:[%s308 + $0x4b] sm:$0xff] %vm240, %v205
      %316 = vst.msk [vmem:[%s308 + $0x53] sm:$0xff] %vm240, %v206
      %317 = vst.msk [vmem:[%s308 + $0x63] sm:$0xff] %vm240, %v207
      %318 = vst.msk [vmem:[%s308 + $0x6b] sm:$0xff] %vm240, %v208
      %319 = vst.msk [vmem:[%s308 + $0x7b] sm:$0xff] %vm240, %v209
      %320 = vst.msk [vmem:[%s308 + $0x83] sm:$0xff] %vm240, %v210
      %321 = vst.msk [vmem:[%s308 + $0x93] sm:$0xff] %vm240, %v211
      %322 = vst.msk [vmem:[%s308 + $0x9b] sm:$0xff] %vm240, %v212
      %323 = vst.msk [vmem:[%s308 + $0xab] sm:$0xff] %vm240, %v213
      %324 = vst.msk [vmem:[%s308 + $0xb3] sm:$0xff] %vm240, %v214
      %325 = vst.msk [vmem:[%s308 + $0xc3] sm:$0xff] %vm240, %v215
      %326 = vst.msk [vmem:[%s308 + $0xcb] sm:$0xff] %vm240, %v216
      %327 = vst.msk [vmem:[%s308 + $0xdb] sm:$0xff] %vm240, %v217
      %328 = vst.msk [vmem:[%s308 + $0xe3] sm:$0xff] %vm240, %v218
      %329 = vst.msk [vmem:[%s308 + $0xf3] sm:$0xff] %vm240, %v219
      %330 = vst.msk [vmem:[%s308 + $0xfb] sm:$0xff] %vm240, %v220
      %331 = vst.msk [vmem:[%s308 + $0x10b] sm:$0xff] %vm240, %v221
      %332 = vst.msk [vmem:[%s308 + $0x113] sm:$0xff] %vm240, %v222
      %333 = vst.msk [vmem:[%s308 + $0x123] sm:$0xff] %vm240, %v223
      %334 = vst.msk [vmem:[%s308 + $0x12b] sm:$0xff] %vm240, %v224
      %335 = vst.msk [vmem:[%s308 + $0x13b] sm:$0xff] %vm240, %v225
      %336 = vst.msk [vmem:[%s308 + $0x143] sm:$0xff] %vm240, %v226
      %337 = vst.msk [vmem:[%s308 + $0x153] sm:$0xff] %vm240, %v227
      %338 = vst.msk [vmem:[%s308 + $0x15b] sm:$0xff] %vm240, %v228
      %339 = vst.msk [vmem:[%s308 + $0x16b] sm:$0xff] %vm240, %v229
      %340 = vst.msk [vmem:[%s308 + $0x173] sm:$0xff] %vm240, %v230
      %v341 = vld [vmem:[#allocation2] sm:$0xff]
      %v342 = vld [vmem:[#allocation2 + $0x8] sm:$0xff]
      %v343 = vld [vmem:[#allocation2 + $0x18] sm:$0xff]
      %v344 = vld [vmem:[#allocation2 + $0x20] sm:$0xff]
      %v345 = vld [vmem:[#allocation2 + $0x30] sm:$0xff]
      %v346 = vld [vmem:[#allocation2 + $0x38] sm:$0xff]
      %v347 = vld [vmem:[#allocation2 + $0x48] sm:$0xff]
      %v348 = vld [vmem:[#allocation2 + $0x50] sm:$0xff]
      %v349 = vld [vmem:[#allocation2 + $0x60] sm:$0xff]
      %v350 = vld [vmem:[#allocation2 + $0x68] sm:$0xff]
      %v351 = vld [vmem:[#allocation2 + $0x78] sm:$0xff]
      %v352 = vld [vmem:[#allocation2 + $0x80] sm:$0xff]
      %v353 = vld [vmem:[#allocation2 + $0x90] sm:$0xff]
      %v354 = vld [vmem:[#allocation2 + $0x98] sm:$0xff]
      %v355 = vld [vmem:[#allocation2 + $0xa8] sm:$0xff]
      %v356 = vld [vmem:[#allocation2 + $0xb0] sm:$0xff]
      %v357 = vld [vmem:[#allocation2 + $0xc0] sm:$0xff]
      %v358 = vld [vmem:[#allocation2 + $0xc8] sm:$0xff]
      %v359 = vld [vmem:[#allocation2 + $0xd8] sm:$0xff]
      %v360 = vld [vmem:[#allocation2 + $0xe0] sm:$0xff]
      %v361 = vld [vmem:[#allocation2 + $0xf0] sm:$0xff]
      %v362 = vld [vmem:[#allocation2 + $0xf8] sm:$0xff]
      %v363 = vld [vmem:[#allocation2 + $0x108] sm:$0xff]
      %v364 = vld [vmem:[#allocation2 + $0x110] sm:$0xff]
      %v365 = vld [vmem:[#allocation2 + $0x120] sm:$0xff]
      %v366 = vld [vmem:[#allocation2 + $0x128] sm:$0xff]
      %v367 = vld [vmem:[#allocation2 + $0x138] sm:$0xff]
      %v368 = vld [vmem:[#allocation2 + $0x140] sm:$0xff]
      %v369 = vld [vmem:[#allocation2 + $0x150] sm:$0xff]
      %v370 = vld [vmem:[#allocation2 + $0x158] sm:$0xff]
      %v371 = vld [vmem:[#allocation2 + $0x168] sm:$0xff]
      %v372 = vld [vmem:[#allocation2 + $0x170] sm:$0xff]
      %v373 = vlaneseq
      %v374 = vshrl.u32 %v373, 7
      %v375 = vsub.s32 0, %v374
      %v376 = vrot.slane %v231, %v375
      %v377 = vmul.f32 %v376, %v341
      %v378 = vmul.f32 %v376, %v342
      %v379 = vmul.f32 %v376, %v343
      %v380 = vmul.f32 %v376, %v344
      %v381 = vmul.f32 %v376, %v345
      %v382 = vmul.f32 %v376, %v346
      %v383 = vmul.f32 %v376, %v347
      %v384 = vmul.f32 %v376, %v348
      %v385 = vmul.f32 %v376, %v349
      %v386 = vmul.f32 %v376, %v350
      %v387 = vmul.f32 %v376, %v351
      %v388 = vmul.f32 %v376, %v352
      %v389 = vmul.f32 %v376, %v353
      %v390 = vmul.f32 %v376, %v354
      %v391 = vmul.f32 %v376, %v355
      %v392 = vmul.f32 %v376, %v356
      %v393 = vmul.f32 %v376, %v357
      %v394 = vmul.f32 %v376, %v358
      %v395 = vmul.f32 %v376, %v359
      %v396 = vmul.f32 %v376, %v360
      %v397 = vmul.f32 %v376, %v361
      %v398 = vmul.f32 %v376, %v362
      %v399 = vmul.f32 %v376, %v363
      %v400 = vmul.f32 %v376, %v364
      %v401 = vmul.f32 %v376, %v365
      %v402 = vmul.f32 %v376, %v366
      %v403 = vmul.f32 %v376, %v367
      %v404 = vmul.f32 %v376, %v368
      %v405 = vmul.f32 %v376, %v369
      %v406 = vmul.f32 %v376, %v370
      %v407 = vmul.f32 %v376, %v371
      %v408 = vmul.f32 %v376, %v372
      %v409 = vld [vmem:[#allocation2 + $0x1] sm:$0xff]
      %v410 = vld [vmem:[#allocation2 + $0x9] sm:$0xff]
      %v411 = vld [vmem:[#allocation2 + $0x19] sm:$0xff]
      %v412 = vld [vmem:[#allocation2 + $0x21] sm:$0xff]
      %v413 = vld [vmem:[#allocation2 + $0x31] sm:$0xff]
      %v414 = vld [vmem:[#allocation2 + $0x39] sm:$0xff]
      %v415 = vld [vmem:[#allocation2 + $0x49] sm:$0xff]
      %v416 = vld [vmem:[#allocation2 + $0x51] sm:$0xff]
      %v417 = vld [vmem:[#allocation2 + $0x61] sm:$0xff]
      %v418 = vld [vmem:[#allocation2 + $0x69] sm:$0xff]
      %v419 = vld [vmem:[#allocation2 + $0x79] sm:$0xff]
      %v420 = vld [vmem:[#allocation2 + $0x81] sm:$0xff]
      %v421 = vld [vmem:[#allocation2 + $0x91] sm:$0xff]
      %v422 = vld [vmem:[#allocation2 + $0x99] sm:$0xff]
      %v423 = vld [vmem:[#allocation2 + $0xa9] sm:$0xff]
      %v424 = vld [vmem:[#allocation2 + $0xb1] sm:$0xff]
      %v425 = vld [vmem:[#allocation2 + $0xc1] sm:$0xff]
      %v426 = vld [vmem:[#allocation2 + $0xc9] sm:$0xff]
      %v427 = vld [vmem:[#allocation2 + $0xd9] sm:$0xff]
      %v428 = vld [vmem:[#allocation2 + $0xe1] sm:$0xff]
      %v429 = vld [vmem:[#allocation2 + $0xf1] sm:$0xff]
      %v430 = vld [vmem:[#allocation2 + $0xf9] sm:$0xff]
      %v431 = vld [vmem:[#allocation2 + $0x109] sm:$0xff]
      %v432 = vld [vmem:[#allocation2 + $0x111] sm:$0xff]
      %v433 = vld [vmem:[#allocation2 + $0x121] sm:$0xff]
      %v434 = vld [vmem:[#allocation2 + $0x129] sm:$0xff]
      %v435 = vld [vmem:[#allocation2 + $0x139] sm:$0xff]
      %v436 = vld [vmem:[#allocation2 + $0x141] sm:$0xff]
      %v437 = vld [vmem:[#allocation2 + $0x151] sm:$0xff]
      %v438 = vld [vmem:[#allocation2 + $0x159] sm:$0xff]
      %v439 = vld [vmem:[#allocation2 + $0x169] sm:$0xff]
      %v440 = vld [vmem:[#allocation2 + $0x171] sm:$0xff]
      %v441 = vlaneseq
      %v442 = vshrl.u32 %v441, 7
      %v443 = vsub.s32 1, %v442
      %v444 = vrot.slane %v231, %v443
      %v445 = vmul.f32 %v444, %v409
      %v446 = vmul.f32 %v444, %v410
      %v447 = vmul.f32 %v444, %v411
      %v448 = vmul.f32 %v444, %v412
      %v449 = vmul.f32 %v444, %v413
      %v450 = vmul.f32 %v444, %v414
      %v451 = vmul.f32 %v444, %v415
      %v452 = vmul.f32 %v444, %v416
      %v453 = vmul.f32 %v444, %v417
      %v454 = vmul.f32 %v444, %v418
      %v455 = vmul.f32 %v444, %v419
      %v456 = vmul.f32 %v444, %v420
      %v457 = vmul.f32 %v444, %v421
      %v458 = vmul.f32 %v444, %v422
      %v459 = vmul.f32 %v444, %v423
      %v460 = vmul.f32 %v444, %v424
      %v461 = vmul.f32 %v444, %v425
      %v462 = vmul.f32 %v444, %v426
      %v463 = vmul.f32 %v444, %v427
      %v464 = vmul.f32 %v444, %v428
      %v465 = vmul.f32 %v444, %v429
      %v466 = vmul.f32 %v444, %v430
      %v467 = vmul.f32 %v444, %v431
      %v468 = vmul.f32 %v444, %v432
      %v469 = vmul.f32 %v444, %v433
      %v470 = vmul.f32 %v444, %v434
      %v471 = vmul.f32 %v444, %v435
      %v472 = vmul.f32 %v444, %v436
      %v473 = vmul.f32 %v444, %v437
      %v474 = vmul.f32 %v444, %v438
      %v475 = vmul.f32 %v444, %v439
      %v476 = vmul.f32 %v444, %v440
      %v477 = vadd.f32 %v377, %v445
      %v478 = vadd.f32 %v378, %v446
      %v479 = vadd.f32 %v379, %v447
      %v480 = vadd.f32 %v380, %v448
      %v481 = vadd.f32 %v381, %v449
      %v482 = vadd.f32 %v382, %v450
      %v483 = vadd.f32 %v383, %v451
      %v484 = vadd.f32 %v384, %v452
      %v485 = vadd.f32 %v385, %v453
      %v486 = vadd.f32 %v386, %v454
      %v487 = vadd.f32 %v387, %v455
      %v488 = vadd.f32 %v388, %v456
      %v489 = vadd.f32 %v389, %v457
      %v490 = vadd.f32 %v390, %v458
      %v491 = vadd.f32 %v391, %v459
      %v492 = vadd.f32 %v392, %v460
      %v493 = vadd.f32 %v393, %v461
      %v494 = vadd.f32 %v394, %v462
      %v495 = vadd.f32 %v395, %v463
      %v496 = vadd.f32 %v396, %v464
      %v497 = vadd.f32 %v397, %v465
      %v498 = vadd.f32 %v398, %v466
      %v499 = vadd.f32 %v399, %v467
      %v500 = vadd.f32 %v400, %v468
      %v501 = vadd.f32 %v401, %v469
      %v502 = vadd.f32 %v402, %v470
      %v503 = vadd.f32 %v403, %v471
      %v504 = vadd.f32 %v404, %v472
      %v505 = vadd.f32 %v405, %v473
      %v506 = vadd.f32 %v406, %v474
      %v507 = vadd.f32 %v407, %v475
      %v508 = vadd.f32 %v408, %v476
      %v509 = vld [vmem:[#allocation2 + $0x2] sm:$0xff]
      %v510 = vld [vmem:[#allocation2 + $0xa] sm:$0xff]
      %v511 = vld [vmem:[#allocation2 + $0x1a] sm:$0xff]
      %v512 = vld [vmem:[#allocation2 + $0x22] sm:$0xff]
      %v513 = vld [vmem:[#allocation2 + $0x32] sm:$0xff]
      %v514 = vld [vmem:[#allocation2 + $0x3a] sm:$0xff]
      %v515 = vld [vmem:[#allocation2 + $0x4a] sm:$0xff]
      %v516 = vld [vmem:[#allocation2 + $0x52] sm:$0xff]
      %v517 = vld [vmem:[#allocation2 + $0x62] sm:$0xff]
      %v518 = vld [vmem:[#allocation2 + $0x6a] sm:$0xff]
      %v519 = vld [vmem:[#allocation2 + $0x7a] sm:$0xff]
      %v520 = vld [vmem:[#allocation2 + $0x82] sm:$0xff]
      %v521 = vld [vmem:[#allocation2 + $0x92] sm:$0xff]
      %v522 = vld [vmem:[#allocation2 + $0x9a] sm:$0xff]
      %v523 = vld [vmem:[#allocation2 + $0xaa] sm:$0xff]
      %v524 = vld [vmem:[#allocation2 + $0xb2] sm:$0xff]
      %v525 = vld [vmem:[#allocation2 + $0xc2] sm:$0xff]
      %v526 = vld [vmem:[#allocation2 + $0xca] sm:$0xff]
      %v527 = vld [vmem:[#allocation2 + $0xda] sm:$0xff]
      %v528 = vld [vmem:[#allocation2 + $0xe2] sm:$0xff]
      %v529 = vld [vmem:[#allocation2 + $0xf2] sm:$0xff]
      %v530 = vld [vmem:[#allocation2 + $0xfa] sm:$0xff]
      %v531 = vld [vmem:[#allocation2 + $0x10a] sm:$0xff]
      %v532 = vld [vmem:[#allocation2 + $0x112] sm:$0xff]
      %v533 = vld [vmem:[#allocation2 + $0x122] sm:$0xff]
      %v534 = vld [vmem:[#allocation2 + $0x12a] sm:$0xff]
      %v535 = vld [vmem:[#allocation2 + $0x13a] sm:$0xff]
      %v536 = vld [vmem:[#allocation2 + $0x142] sm:$0xff]
      %v537 = vld [vmem:[#allocation2 + $0x152] sm:$0xff]
      %v538 = vld [vmem:[#allocation2 + $0x15a] sm:$0xff]
      %v539 = vld [vmem:[#allocation2 + $0x16a] sm:$0xff]
      %v540 = vld [vmem:[#allocation2 + $0x172] sm:$0xff]
      %v541 = vlaneseq
      %v542 = vshrl.u32 %v541, 7
      %v543 = vsub.s32 2, %v542
      %v544 = vrot.slane %v231, %v543
      %v545 = vmul.f32 %v544, %v509
      %v546 = vmul.f32 %v544, %v510
      %v547 = vmul.f32 %v544, %v511
      %v548 = vmul.f32 %v544, %v512
      %v549 = vmul.f32 %v544, %v513
      %v550 = vmul.f32 %v544, %v514
      %v551 = vmul.f32 %v544, %v515
      %v552 = vmul.f32 %v544, %v516
      %v553 = vmul.f32 %v544, %v517
      %v554 = vmul.f32 %v544, %v518
      %v555 = vmul.f32 %v544, %v519
      %v556 = vmul.f32 %v544, %v520
      %v557 = vmul.f32 %v544, %v521
      %v558 = vmul.f32 %v544, %v522
      %v559 = vmul.f32 %v544, %v523
      %v560 = vmul.f32 %v544, %v524
      %v561 = vmul.f32 %v544, %v525
      %v562 = vmul.f32 %v544, %v526
      %v563 = vmul.f32 %v544, %v527
      %v564 = vmul.f32 %v544, %v528
      %v565 = vmul.f32 %v544, %v529
      %v566 = vmul.f32 %v544, %v530
      %v567 = vmul.f32 %v544, %v531
      %v568 = vmul.f32 %v544, %v532
      %v569 = vmul.f32 %v544, %v533
      %v570 = vmul.f32 %v544, %v534
      %v571 = vmul.f32 %v544, %v535
      %v572 = vmul.f32 %v544, %v536
      %v573 = vmul.f32 %v544, %v537
      %v574 = vmul.f32 %v544, %v538
      %v575 = vmul.f32 %v544, %v539
      %v576 = vmul.f32 %v544, %v540
      %v577 = vadd.f32 %v477, %v545
      %v578 = vadd.f32 %v478, %v546
      %v579 = vadd.f32 %v479, %v547
      %v580 = vadd.f32 %v480, %v548
      %v581 = vadd.f32 %v481, %v549
      %v582 = vadd.f32 %v482, %v550
      %v583 = vadd.f32 %v483, %v551
      %v584 = vadd.f32 %v484, %v552
      %v585 = vadd.f32 %v485, %v553
      %v586 = vadd.f32 %v486, %v554
      %v587 = vadd.f32 %v487, %v555
      %v588 = vadd.f32 %v488, %v556
      %v589 = vadd.f32 %v489, %v557
      %v590 = vadd.f32 %v490, %v558
      %v591 = vadd.f32 %v491, %v559
      %v592 = vadd.f32 %v492, %v560
      %v593 = vadd.f32 %v493, %v561
      %v594 = vadd.f32 %v494, %v562
      %v595 = vadd.f32 %v495, %v563
      %v596 = vadd.f32 %v496, %v564
      %v597 = vadd.f32 %v497, %v565
      %v598 = vadd.f32 %v498, %v566
      %v599 = vadd.f32 %v499, %v567
      %v600 = vadd.f32 %v500, %v568
      %v601 = vadd.f32 %v501, %v569
      %v602 = vadd.f32 %v502, %v570
      %v603 = vadd.f32 %v503, %v571
      %v604 = vadd.f32 %v504, %v572
      %v605 = vadd.f32 %v505, %v573
      %v606 = vadd.f32 %v506, %v574
      %v607 = vadd.f32 %v507, %v575
      %v608 = vadd.f32 %v508, %v576
      %v609 = vld [vmem:[#allocation2 + $0x3] sm:$0xff]
      %v610 = vld [vmem:[#allocation2 + $0xb] sm:$0xff]
      %v611 = vld [vmem:[#allocation2 + $0x1b] sm:$0xff]
      %v612 = vld [vmem:[#allocation2 + $0x23] sm:$0xff]
      %v613 = vld [vmem:[#allocation2 + $0x33] sm:$0xff]
      %v614 = vld [vmem:[#allocation2 + $0x3b] sm:$0xff]
      %v615 = vld [vmem:[#allocation2 + $0x4b] sm:$0xff]
      %v616 = vld [vmem:[#allocation2 + $0x53] sm:$0xff]
      %v617 = vld [vmem:[#allocation2 + $0x63] sm:$0xff]
      %v618 = vld [vmem:[#allocation2 + $0x6b] sm:$0xff]
      %v619 = vld [vmem:[#allocation2 + $0x7b] sm:$0xff]
      %v620 = vld [vmem:[#allocation2 + $0x83] sm:$0xff]
      %v621 = vld [vmem:[#allocation2 + $0x93] sm:$0xff]
      %v622 = vld [vmem:[#allocation2 + $0x9b] sm:$0xff]
      %v623 = vld [vmem:[#allocation2 + $0xab] sm:$0xff]
      %v624 = vld [vmem:[#allocation2 + $0xb3] sm:$0xff]
      %v625 = vld [vmem:[#allocation2 + $0xc3] sm:$0xff]
      %v626 = vld [vmem:[#allocation2 + $0xcb] sm:$0xff]
      %v627 = vld [vmem:[#allocation2 + $0xdb] sm:$0xff]
      %v628 = vld [vmem:[#allocation2 + $0xe3] sm:$0xff]
      %v629 = vld [vmem:[#allocation2 + $0xf3] sm:$0xff]
      %v630 = vld [vmem:[#allocation2 + $0xfb] sm:$0xff]
      %v631 = vld [vmem:[#allocation2 + $0x10b] sm:$0xff]
      %v632 = vld [vmem:[#allocation2 + $0x113] sm:$0xff]
      %v633 = vld [vmem:[#allocation2 + $0x123] sm:$0xff]
      %v634 = vld [vmem:[#allocation2 + $0x12b] sm:$0xff]
      %v635 = vld [vmem:[#allocation2 + $0x13b] sm:$0xff]
      %v636 = vld [vmem:[#allocation2 + $0x143] sm:$0xff]
      %v637 = vld [vmem:[#allocation2 + $0x153] sm:$0xff]
      %v638 = vld [vmem:[#allocation2 + $0x15b] sm:$0xff]
      %v639 = vld [vmem:[#allocation2 + $0x16b] sm:$0xff]
      %v640 = vld [vmem:[#allocation2 + $0x173] sm:$0xff]
      %v641 = vlaneseq
      %v642 = vshrl.u32 %v641, 7
      %v643 = vsub.s32 3, %v642
      %v644 = vrot.slane %v231, %v643
      %v645 = vmul.f32 %v644, %v609
      %v646 = vmul.f32 %v644, %v610
      %v647 = vmul.f32 %v644, %v611
      %v648 = vmul.f32 %v644, %v612
      %v649 = vmul.f32 %v644, %v613
      %v650 = vmul.f32 %v644, %v614
      %v651 = vmul.f32 %v644, %v615
      %v652 = vmul.f32 %v644, %v616
      %v653 = vmul.f32 %v644, %v617
      %v654 = vmul.f32 %v644, %v618
      %v655 = vmul.f32 %v644, %v619
      %v656 = vmul.f32 %v644, %v620
      %v657 = vmul.f32 %v644, %v621
      %v658 = vmul.f32 %v644, %v622
      %v659 = vmul.f32 %v644, %v623
      %v660 = vmul.f32 %v644, %v624
      %v661 = vmul.f32 %v644, %v625
      %v662 = vmul.f32 %v644, %v626
      %v663 = vmul.f32 %v644, %v627
      %v664 = vmul.f32 %v644, %v628
      %v665 = vmul.f32 %v644, %v629
      %v666 = vmul.f32 %v644, %v630
      %v667 = vmul.f32 %v644, %v631
      %v668 = vmul.f32 %v644, %v632
      %v669 = vmul.f32 %v644, %v633
      %v670 = vmul.f32 %v644, %v634
      %v671 = vmul.f32 %v644, %v635
      %v672 = vmul.f32 %v644, %v636
      %v673 = vmul.f32 %v644, %v637
      %v674 = vmul.f32 %v644, %v638
      %v675 = vmul.f32 %v644, %v639
      %v676 = vmul.f32 %v644, %v640
      %v677 = vadd.f32 %v577, %v645
      %v678 = vadd.f32 %v578, %v646
      %v679 = vadd.f32 %v579, %v647
      %v680 = vadd.f32 %v580, %v648
      %v681 = vadd.f32 %v581, %v649
      %v682 = vadd.f32 %v582, %v650
      %v683 = vadd.f32 %v583, %v651
      %v684 = vadd.f32 %v584, %v652
      %v685 = vadd.f32 %v585, %v653
      %v686 = vadd.f32 %v586, %v654
      %v687 = vadd.f32 %v587, %v655
      %v688 = vadd.f32 %v588, %v656
      %v689 = vadd.f32 %v589, %v657
      %v690 = vadd.f32 %v590, %v658
      %v691 = vadd.f32 %v591, %v659
      %v692 = vadd.f32 %v592, %v660
      %v693 = vadd.f32 %v593, %v661
      %v694 = vadd.f32 %v594, %v662
      %v695 = vadd.f32 %v595, %v663
      %v696 = vadd.f32 %v596, %v664
      %v697 = vadd.f32 %v597, %v665
      %v698 = vadd.f32 %v598, %v666
      %v699 = vadd.f32 %v599, %v667
      %v700 = vadd.f32 %v600, %v668
      %v701 = vadd.f32 %v601, %v669
      %v702 = vadd.f32 %v602, %v670
      %v703 = vadd.f32 %v603, %v671
      %v704 = vadd.f32 %v604, %v672
      %v705 = vadd.f32 %v605, %v673
      %v706 = vadd.f32 %v606, %v674
      %v707 = vadd.f32 %v607, %v675
      %v708 = vadd.f32 %v608, %v676
      %v709 = vld [vmem:[#allocation2 + $0x4] sm:$0xff]
      %v710 = vld [vmem:[#allocation2 + $0xc] sm:$0xff]
      %v711 = vld [vmem:[#allocation2 + $0x1c] sm:$0xff]
      %v712 = vld [vmem:[#allocation2 + $0x24] sm:$0xff]
      %v713 = vld [vmem:[#allocation2 + $0x34] sm:$0xff]
      %v714 = vld [vmem:[#allocation2 + $0x3c] sm:$0xff]
      %v715 = vld [vmem:[#allocation2 + $0x4c] sm:$0xff]
      %v716 = vld [vmem:[#allocation2 + $0x54] sm:$0xff]
      %v717 = vld [vmem:[#allocation2 + $0x64] sm:$0xff]
      %v718 = vld [vmem:[#allocation2 + $0x6c] sm:$0xff]
      %v719 = vld [vmem:[#allocation2 + $0x7c] sm:$0xff]
      %v720 = vld [vmem:[#allocation2 + $0x84] sm:$0xff]
      %v721 = vld [vmem:[#allocation2 + $0x94] sm:$0xff]
      %v722 = vld [vmem:[#allocation2 + $0x9c] sm:$0xff]
      %v723 = vld [vmem:[#allocation2 + $0xac] sm:$0xff]
      %v724 = vld [vmem:[#allocation2 + $0xb4] sm:$0xff]
      %v725 = vld [vmem:[#allocation2 + $0xc4] sm:$0xff]
      %v726 = vld [vmem:[#allocation2 + $0xcc] sm:$0xff]
      %v727 = vld [vmem:[#allocation2 + $0xdc] sm:$0xff]
      %v728 = vld [vmem:[#allocation2 + $0xe4] sm:$0xff]
      %v729 = vld [vmem:[#allocation2 + $0xf4] sm:$0xff]
      %v730 = vld [vmem:[#allocation2 + $0xfc] sm:$0xff]
      %v731 = vld [vmem:[#allocation2 + $0x10c] sm:$0xff]
      %v732 = vld [vmem:[#allocation2 + $0x114] sm:$0xff]
      %v733 = vld [vmem:[#allocation2 + $0x124] sm:$0xff]
      %v734 = vld [vmem:[#allocation2 + $0x12c] sm:$0xff]
      %v735 = vld [vmem:[#allocation2 + $0x13c] sm:$0xff]
      %v736 = vld [vmem:[#allocation2 + $0x144] sm:$0xff]
      %v737 = vld [vmem:[#allocation2 + $0x154] sm:$0xff]
      %v738 = vld [vmem:[#allocation2 + $0x15c] sm:$0xff]
      %v739 = vld [vmem:[#allocation2 + $0x16c] sm:$0xff]
      %v740 = vld [vmem:[#allocation2 + $0x174] sm:$0xff]
      %v741 = vlaneseq
      %v742 = vshrl.u32 %v741, 7
      %v743 = vsub.s32 4, %v742
      %v744 = vrot.slane %v231, %v743
      %v745 = vmul.f32 %v744, %v709
      %v746 = vmul.f32 %v744, %v710
      %v747 = vmul.f32 %v744, %v711
      %v748 = vmul.f32 %v744, %v712
      %v749 = vmul.f32 %v744, %v713
      %v750 = vmul.f32 %v744, %v714
      %v751 = vmul.f32 %v744, %v715
      %v752 = vmul.f32 %v744, %v716
      %v753 = vmul.f32 %v744, %v717
      %v754 = vmul.f32 %v744, %v718
      %v755 = vmul.f32 %v744, %v719
      %v756 = vmul.f32 %v744, %v720
      %v757 = vmul.f32 %v744, %v721
      %v758 = vmul.f32 %v744, %v722
      %v759 = vmul.f32 %v744, %v723
      %v760 = vmul.f32 %v744, %v724
      %v761 = vmul.f32 %v744, %v725
      %v762 = vmul.f32 %v744, %v726
      %v763 = vmul.f32 %v744, %v727
      %v764 = vmul.f32 %v744, %v728
      %v765 = vmul.f32 %v744, %v729
      %v766 = vmul.f32 %v744, %v730
      %v767 = vmul.f32 %v744, %v731
      %v768 = vmul.f32 %v744, %v732
      %v769 = vmul.f32 %v744, %v733
      %v770 = vmul.f32 %v744, %v734
      %v771 = vmul.f32 %v744, %v735
      %v772 = vmul.f32 %v744, %v736
      %v773 = vmul.f32 %v744, %v737
      %v774 = vmul.f32 %v744, %v738
      %v775 = vmul.f32 %v744, %v739
      %v776 = vmul.f32 %v744, %v740
      %v777 = vadd.f32 %v677, %v745
      %v778 = vadd.f32 %v678, %v746
      %v779 = vadd.f32 %v679, %v747
      %v780 = vadd.f32 %v680, %v748
      %v781 = vadd.f32 %v681, %v749
      %v782 = vadd.f32 %v682, %v750
      %v783 = vadd.f32 %v683, %v751
      %v784 = vadd.f32 %v684, %v752
      %v785 = vadd.f32 %v685, %v753
      %v786 = vadd.f32 %v686, %v754
      %v787 = vadd.f32 %v687, %v755
      %v788 = vadd.f32 %v688, %v756
      %v789 = vadd.f32 %v689, %v757
      %v790 = vadd.f32 %v690, %v758
      %v791 = vadd.f32 %v691, %v759
      %v792 = vadd.f32 %v692, %v760
      %v793 = vadd.f32 %v693, %v761
      %v794 = vadd.f32 %v694, %v762
      %v795 = vadd.f32 %v695, %v763
      %v796 = vadd.f32 %v696, %v764
      %v797 = vadd.f32 %v697, %v765
      %v798 = vadd.f32 %v698, %v766
      %v799 = vadd.f32 %v699, %v767
      %v800 = vadd.f32 %v700, %v768
      %v801 = vadd.f32 %v701, %v769
      %v802 = vadd.f32 %v702, %v770
      %v803 = vadd.f32 %v703, %v771
      %v804 = vadd.f32 %v704, %v772
      %v805 = vadd.f32 %v705, %v773
      %v806 = vadd.f32 %v706, %v774
      %v807 = vadd.f32 %v707, %v775
      %v808 = vadd.f32 %v708, %v776
      %v809 = vld [vmem:[#allocation2 + $0x5] sm:$0xff]
      %v810 = vld [vmem:[#allocation2 + $0xd] sm:$0xff]
      %v811 = vld [vmem:[#allocation2 + $0x1d] sm:$0xff]
      %v812 = vld [vmem:[#allocation2 + $0x25] sm:$0xff]
      %v813 = vld [vmem:[#allocation2 + $0x35] sm:$0xff]
      %v814 = vld [vmem:[#allocation2 + $0x3d] sm:$0xff]
      %v815 = vld [vmem:[#allocation2 + $0x4d] sm:$0xff]
      %v816 = vld [vmem:[#allocation2 + $0x55] sm:$0xff]
      %v817 = vld [vmem:[#allocation2 + $0x65] sm:$0xff]
      %v818 = vld [vmem:[#allocation2 + $0x6d] sm:$0xff]
      %v819 = vld [vmem:[#allocation2 + $0x7d] sm:$0xff]
      %v820 = vld [vmem:[#allocation2 + $0x85] sm:$0xff]
      %v821 = vld [vmem:[#allocation2 + $0x95] sm:$0xff]
      %v822 = vld [vmem:[#allocation2 + $0x9d] sm:$0xff]
      %v823 = vld [vmem:[#allocation2 + $0xad] sm:$0xff]
      %v824 = vld [vmem:[#allocation2 + $0xb5] sm:$0xff]
      %v825 = vld [vmem:[#allocation2 + $0xc5] sm:$0xff]
      %v826 = vld [vmem:[#allocation2 + $0xcd] sm:$0xff]
      %v827 = vld [vmem:[#allocation2 + $0xdd] sm:$0xff]
      %v828 = vld [vmem:[#allocation2 + $0xe5] sm:$0xff]
      %v829 = vld [vmem:[#allocation2 + $0xf5] sm:$0xff]
      %v830 = vld [vmem:[#allocation2 + $0xfd] sm:$0xff]
      %v831 = vld [vmem:[#allocation2 + $0x10d] sm:$0xff]
      %v832 = vld [vmem:[#allocation2 + $0x115] sm:$0xff]
      %v833 = vld [vmem:[#allocation2 + $0x125] sm:$0xff]
      %v834 = vld [vmem:[#allocation2 + $0x12d] sm:$0xff]
      %v835 = vld [vmem:[#allocation2 + $0x13d] sm:$0xff]
      %v836 = vld [vmem:[#allocation2 + $0x145] sm:$0xff]
      %v837 = vld [vmem:[#allocation2 + $0x155] sm:$0xff]
      %v838 = vld [vmem:[#allocation2 + $0x15d] sm:$0xff]
      %v839 = vld [vmem:[#allocation2 + $0x16d] sm:$0xff]
      %v840 = vld [vmem:[#allocation2 + $0x175] sm:$0xff]
      %v841 = vlaneseq
      %v842 = vshrl.u32 %v841, 7
      %v843 = vsub.s32 5, %v842
      %v844 = vrot.slane %v231, %v843
      %v845 = vmul.f32 %v844, %v809
      %v846 = vmul.f32 %v844, %v810
      %v847 = vmul.f32 %v844, %v811
      %v848 = vmul.f32 %v844, %v812
      %v849 = vmul.f32 %v844, %v813
      %v850 = vmul.f32 %v844, %v814
      %v851 = vmul.f32 %v844, %v815
      %v852 = vmul.f32 %v844, %v816
      %v853 = vmul.f32 %v844, %v817
      %v854 = vmul.f32 %v844, %v818
      %v855 = vmul.f32 %v844, %v819
      %v856 = vmul.f32 %v844, %v820
      %v857 = vmul.f32 %v844, %v821
      %v858 = vmul.f32 %v844, %v822
      %v859 = vmul.f32 %v844, %v823
      %v860 = vmul.f32 %v844, %v824
      %v861 = vmul.f32 %v844, %v825
      %v862 = vmul.f32 %v844, %v826
      %v863 = vmul.f32 %v844, %v827
      %v864 = vmul.f32 %v844, %v828
      %v865 = vmul.f32 %v844, %v829
      %v866 = vmul.f32 %v844, %v830
      %v867 = vmul.f32 %v844, %v831
      %v868 = vmul.f32 %v844, %v832
      %v869 = vmul.f32 %v844, %v833
      %v870 = vmul.f32 %v844, %v834
      %v871 = vmul.f32 %v844, %v835
      %v872 = vmul.f32 %v844, %v836
      %v873 = vmul.f32 %v844, %v837
      %v874 = vmul.f32 %v844, %v838
      %v875 = vmul.f32 %v844, %v839
      %v876 = vmul.f32 %v844, %v840
      %v877 = vadd.f32 %v777, %v845
      %v878 = vadd.f32 %v778, %v846
      %v879 = vadd.f32 %v779, %v847
      %v880 = vadd.f32 %v780, %v848
      %v881 = vadd.f32 %v781, %v849
      %v882 = vadd.f32 %v782, %v850
      %v883 = vadd.f32 %v783, %v851
      %v884 = vadd.f32 %v784, %v852
      %v885 = vadd.f32 %v785, %v853
      %v886 = vadd.f32 %v786, %v854
      %v887 = vadd.f32 %v787, %v855
      %v888 = vadd.f32 %v788, %v856
      %v889 = vadd.f32 %v789, %v857
      %v890 = vadd.f32 %v790, %v858
      %v891 = vadd.f32 %v791, %v859
      %v892 = vadd.f32 %v792, %v860
      %v893 = vadd.f32 %v793, %v861
      %v894 = vadd.f32 %v794, %v862
      %v895 = vadd.f32 %v795, %v863
      %v896 = vadd.f32 %v796, %v864
      %v897 = vadd.f32 %v797, %v865
      %v898 = vadd.f32 %v798, %v866
      %v899 = vadd.f32 %v799, %v867
      %v900 = vadd.f32 %v800, %v868
      %v901 = vadd.f32 %v801, %v869
      %v902 = vadd.f32 %v802, %v870
      %v903 = vadd.f32 %v803, %v871
      %v904 = vadd.f32 %v804, %v872
      %v905 = vadd.f32 %v805, %v873
      %v906 = vadd.f32 %v806, %v874
      %v907 = vadd.f32 %v807, %v875
      %v908 = vadd.f32 %v808, %v876
      %v909 = vld [vmem:[#allocation2 + $0x6] sm:$0xff]
      %v910 = vld [vmem:[#allocation2 + $0xe] sm:$0xff]
      %v911 = vld [vmem:[#allocation2 + $0x1e] sm:$0xff]
      %v912 = vld [vmem:[#allocation2 + $0x26] sm:$0xff]
      %v913 = vld [vmem:[#allocation2 + $0x36] sm:$0xff]
      %v914 = vld [vmem:[#allocation2 + $0x3e] sm:$0xff]
      %v915 = vld [vmem:[#allocation2 + $0x4e] sm:$0xff]
      %v916 = vld [vmem:[#allocation2 + $0x56] sm:$0xff]
      %v917 = vld [vmem:[#allocation2 + $0x66] sm:$0xff]
      %v918 = vld [vmem:[#allocation2 + $0x6e] sm:$0xff]
      %v919 = vld [vmem:[#allocation2 + $0x7e] sm:$0xff]
      %v920 = vld [vmem:[#allocation2 + $0x86] sm:$0xff]
      %v921 = vld [vmem:[#allocation2 + $0x96] sm:$0xff]
      %v922 = vld [vmem:[#allocation2 + $0x9e] sm:$0xff]
      %v923 = vld [vmem:[#allocation2 + $0xae] sm:$0xff]
      %v924 = vld [vmem:[#allocation2 + $0xb6] sm:$0xff]
      %v925 = vld [vmem:[#allocation2 + $0xc6] sm:$0xff]
      %v926 = vld [vmem:[#allocation2 + $0xce] sm:$0xff]
      %v927 = vld [vmem:[#allocation2 + $0xde] sm:$0xff]
      %v928 = vld [vmem:[#allocation2 + $0xe6] sm:$0xff]
      %v929 = vld [vmem:[#allocation2 + $0xf6] sm:$0xff]
      %v930 = vld [vmem:[#allocation2 + $0xfe] sm:$0xff]
      %v931 = vld [vmem:[#allocation2 + $0x10e] sm:$0xff]
      %v932 = vld [vmem:[#allocation2 + $0x116] sm:$0xff]
      %v933 = vld [vmem:[#allocation2 + $0x126] sm:$0xff]
      %v934 = vld [vmem:[#allocation2 + $0x12e] sm:$0xff]
      %v935 = vld [vmem:[#allocation2 + $0x13e] sm:$0xff]
      %v936 = vld [vmem:[#allocation2 + $0x146] sm:$0xff]
      %v937 = vld [vmem:[#allocation2 + $0x156] sm:$0xff]
      %v938 = vld [vmem:[#allocation2 + $0x15e] sm:$0xff]
      %v939 = vld [vmem:[#allocation2 + $0x16e] sm:$0xff]
      %v940 = vld [vmem:[#allocation2 + $0x176] sm:$0xff]
      %v941 = vlaneseq
      %v942 = vshrl.u32 %v941, 7
      %v943 = vsub.s32 6, %v942
      %v944 = vrot.slane %v231, %v943
      %v945 = vmul.f32 %v944, %v909
      %v946 = vmul.f32 %v944, %v910
      %v947 = vmul.f32 %v944, %v911
      %v948 = vmul.f32 %v944, %v912
      %v949 = vmul.f32 %v944, %v913
      %v950 = vmul.f32 %v944, %v914
      %v951 = vmul.f32 %v944, %v915
      %v952 = vmul.f32 %v944, %v916
      %v953 = vmul.f32 %v944, %v917
      %v954 = vmul.f32 %v944, %v918
      %v955 = vmul.f32 %v944, %v919
      %v956 = vmul.f32 %v944, %v920
      %v957 = vmul.f32 %v944, %v921
      %v958 = vmul.f32 %v944, %v922
      %v959 = vmul.f32 %v944, %v923
      %v960 = vmul.f32 %v944, %v924
      %v961 = vmul.f32 %v944, %v925
      %v962 = vmul.f32 %v944, %v926
      %v963 = vmul.f32 %v944, %v927
      %v964 = vmul.f32 %v944, %v928
      %v965 = vmul.f32 %v944, %v929
      %v966 = vmul.f32 %v944, %v930
      %v967 = vmul.f32 %v944, %v931
      %v968 = vmul.f32 %v944, %v932
      %v969 = vmul.f32 %v944, %v933
      %v970 = vmul.f32 %v944, %v934
      %v971 = vmul.f32 %v944, %v935
      %v972 = vmul.f32 %v944, %v936
      %v973 = vmul.f32 %v944, %v937
      %v974 = vmul.f32 %v944, %v938
      %v975 = vmul.f32 %v944, %v939
      %v976 = vmul.f32 %v944, %v940
      %v977 = vadd.f32 %v877, %v945
      %v978 = vadd.f32 %v878, %v946
      %v979 = vadd.f32 %v879, %v947
      %v980 = vadd.f32 %v880, %v948
      %v981 = vadd.f32 %v881, %v949
      %v982 = vadd.f32 %v882, %v950
      %v983 = vadd.f32 %v883, %v951
      %v984 = vadd.f32 %v884, %v952
      %v985 = vadd.f32 %v885, %v953
      %v986 = vadd.f32 %v886, %v954
      %v987 = vadd.f32 %v887, %v955
      %v988 = vadd.f32 %v888, %v956
      %v989 = vadd.f32 %v889, %v957
      %v990 = vadd.f32 %v890, %v958
      %v991 = vadd.f32 %v891, %v959
      %v992 = vadd.f32 %v892, %v960
      %v993 = vadd.f32 %v893, %v961
      %v994 = vadd.f32 %v894, %v962
      %v995 = vadd.f32 %v895, %v963
      %v996 = vadd.f32 %v896, %v964
      %v997 = vadd.f32 %v897, %v965
      %v998 = vadd.f32 %v898, %v966
      %v999 = vadd.f32 %v899, %v967
      %v1000 = vadd.f32 %v900, %v968
      %v1001 = vadd.f32 %v901, %v969
      %v1002 = vadd.f32 %v902, %v970
      %v1003 = vadd.f32 %v903, %v971
      %v1004 = vadd.f32 %v904, %v972
      %v1005 = vadd.f32 %v905, %v973
      %v1006 = vadd.f32 %v906, %v974
      %v1007 = vadd.f32 %v907, %v975
      %v1008 = vadd.f32 %v908, %v976
      %s1009 = scalar_lea.vmem [#allocation2], 24
      %v1010 = vld [vmem:[%s1009] sm:$0xff]
      %v1011 = vld [vmem:[%s1009 + $0x8] sm:$0xff]
      %v1012 = vld [vmem:[%s1009 + $0x18] sm:$0xff]
      %v1013 = vld [vmem:[%s1009 + $0x20] sm:$0xff]
      %v1014 = vld [vmem:[%s1009 + $0x30] sm:$0xff]
      %v1015 = vld [vmem:[%s1009 + $0x38] sm:$0xff]
      %v1016 = vld [vmem:[%s1009 + $0x48] sm:$0xff]
      %v1017 = vld [vmem:[%s1009 + $0x50] sm:$0xff]
      %v1018 = vld [vmem:[%s1009 + $0x60] sm:$0xff]
      %v1019 = vld [vmem:[%s1009 + $0x68] sm:$0xff]
      %v1020 = vld [vmem:[%s1009 + $0x78] sm:$0xff]
      %v1021 = vld [vmem:[%s1009 + $0x80] sm:$0xff]
      %v1022 = vld [vmem:[%s1009 + $0x90] sm:$0xff]
      %v1023 = vld [vmem:[%s1009 + $0x98] sm:$0xff]
      %v1024 = vld [vmem:[%s1009 + $0xa8] sm:$0xff]
      %v1025 = vld [vmem:[%s1009 + $0xb0] sm:$0xff]
      %v1026 = vld [vmem:[%s1009 + $0xc0] sm:$0xff]
      %v1027 = vld [vmem:[%s1009 + $0xc8] sm:$0xff]
      %v1028 = vld [vmem:[%s1009 + $0xd8] sm:$0xff]
      %v1029 = vld [vmem:[%s1009 + $0xe0] sm:$0xff]
      %v1030 = vld [vmem:[%s1009 + $0xf0] sm:$0xff]
      %v1031 = vld [vmem:[%s1009 + $0xf8] sm:$0xff]
      %v1032 = vld [vmem:[%s1009 + $0x108] sm:$0xff]
      %v1033 = vld [vmem:[%s1009 + $0x110] sm:$0xff]
      %v1034 = vld [vmem:[%s1009 + $0x120] sm:$0xff]
      %v1035 = vld [vmem:[%s1009 + $0x128] sm:$0xff]
      %v1036 = vld [vmem:[%s1009 + $0x138] sm:$0xff]
      %v1037 = vld [vmem:[%s1009 + $0x140] sm:$0xff]
      %v1038 = vld [vmem:[%s1009 + $0x150] sm:$0xff]
      %v1039 = vld [vmem:[%s1009 + $0x158] sm:$0xff]
      %v1040 = vld [vmem:[%s1009 + $0x168] sm:$0xff]
      %v1041 = vld [vmem:[%s1009 + $0x170] sm:$0xff]
      %v1042 = vlaneseq
      %v1043 = vshrl.u32 %v1042, 7
      %v1044 = vsub.s32 7, %v1043
      %v1045 = vrot.slane %v231, %v1044
      %v1046 = vmul.f32 %v1045, %v1010
      %v1047 = vmul.f32 %v1045, %v1011
      %v1048 = vmul.f32 %v1045, %v1012
      %v1049 = vmul.f32 %v1045, %v1013
      %v1050 = vmul.f32 %v1045, %v1014
      %v1051 = vmul.f32 %v1045, %v1015
      %v1052 = vmul.f32 %v1045, %v1016
      %v1053 = vmul.f32 %v1045, %v1017
      %v1054 = vmul.f32 %v1045, %v1018
      %v1055 = vmul.f32 %v1045, %v1019
      %v1056 = vmul.f32 %v1045, %v1020
      %v1057 = vmul.f32 %v1045, %v1021
      %v1058 = vmul.f32 %v1045, %v1022
      %v1059 = vmul.f32 %v1045, %v1023
      %v1060 = vmul.f32 %v1045, %v1024
      %v1061 = vmul.f32 %v1045, %v1025
      %v1062 = vmul.f32 %v1045, %v1026
      %v1063 = vmul.f32 %v1045, %v1027
      %v1064 = vmul.f32 %v1045, %v1028
      %v1065 = vmul.f32 %v1045, %v1029
      %v1066 = vmul.f32 %v1045, %v1030
      %v1067 = vmul.f32 %v1045, %v1031
      %v1068 = vmul.f32 %v1045, %v1032
      %v1069 = vmul.f32 %v1045, %v1033
      %v1070 = vmul.f32 %v1045, %v1034
      %v1071 = vmul.f32 %v1045, %v1035
      %v1072 = vmul.f32 %v1045, %v1036
      %v1073 = vmul.f32 %v1045, %v1037
      %v1074 = vmul.f32 %v1045, %v1038
      %v1075 = vmul.f32 %v1045, %v1039
      %v1076 = vmul.f32 %v1045, %v1040
      %v1077 = vmul.f32 %v1045, %v1041
      %v1078 = vadd.f32 %v977, %v1046
      %v1079 = vadd.f32 %v978, %v1047
      %v1080 = vadd.f32 %v979, %v1048
      %v1081 = vadd.f32 %v980, %v1049
      %v1082 = vadd.f32 %v981, %v1050
      %v1083 = vadd.f32 %v982, %v1051
      %v1084 = vadd.f32 %v983, %v1052
      %v1085 = vadd.f32 %v984, %v1053
      %v1086 = vadd.f32 %v985, %v1054
      %v1087 = vadd.f32 %v986, %v1055
      %v1088 = vadd.f32 %v987, %v1056
      %v1089 = vadd.f32 %v988, %v1057
      %v1090 = vadd.f32 %v989, %v1058
      %v1091 = vadd.f32 %v990, %v1059
      %v1092 = vadd.f32 %v991, %v1060
      %v1093 = vadd.f32 %v992, %v1061
      %v1094 = vadd.f32 %v993, %v1062
      %v1095 = vadd.f32 %v994, %v1063
      %v1096 = vadd.f32 %v995, %v1064
      %v1097 = vadd.f32 %v996, %v1065
      %v1098 = vadd.f32 %v997, %v1066
      %v1099 = vadd.f32 %v998, %v1067
      %v1100 = vadd.f32 %v999, %v1068
      %v1101 = vadd.f32 %v1000, %v1069
      %v1102 = vadd.f32 %v1001, %v1070
      %v1103 = vadd.f32 %v1002, %v1071
      %v1104 = vadd.f32 %v1003, %v1072
      %v1105 = vadd.f32 %v1004, %v1073
      %v1106 = vadd.f32 %v1005, %v1074
      %v1107 = vadd.f32 %v1006, %v1075
      %v1108 = vadd.f32 %v1007, %v1076
      %v1109 = vadd.f32 %v1008, %v1077
      %v1110 = vld [vmem:[%s1009 + $0x1] sm:$0xff]
      %v1111 = vld [vmem:[%s1009 + $0x9] sm:$0xff]
      %v1112 = vld [vmem:[%s1009 + $0x19] sm:$0xff]
      %v1113 = vld [vmem:[%s1009 + $0x21] sm:$0xff]
      %v1114 = vld [vmem:[%s1009 + $0x31] sm:$0xff]
      %v1115 = vld [vmem:[%s1009 + $0x39] sm:$0xff]
      %v1116 = vld [vmem:[%s1009 + $0x49] sm:$0xff]
      %v1117 = vld [vmem:[%s1009 + $0x51] sm:$0xff]
      %v1118 = vld [vmem:[%s1009 + $0x61] sm:$0xff]
      %v1119 = vld [vmem:[%s1009 + $0x69] sm:$0xff]
      %v1120 = vld [vmem:[%s1009 + $0x79] sm:$0xff]
      %v1121 = vld [vmem:[%s1009 + $0x81] sm:$0xff]
      %v1122 = vld [vmem:[%s1009 + $0x91] sm:$0xff]
      %v1123 = vld [vmem:[%s1009 + $0x99] sm:$0xff]
      %v1124 = vld [vmem:[%s1009 + $0xa9] sm:$0xff]
      %v1125 = vld [vmem:[%s1009 + $0xb1] sm:$0xff]
      %v1126 = vld [vmem:[%s1009 + $0xc1] sm:$0xff]
      %v1127 = vld [vmem:[%s1009 + $0xc9] sm:$0xff]
      %v1128 = vld [vmem:[%s1009 + $0xd9] sm:$0xff]
      %v1129 = vld [vmem:[%s1009 + $0xe1] sm:$0xff]
      %v1130 = vld [vmem:[%s1009 + $0xf1] sm:$0xff]
      %v1131 = vld [vmem:[%s1009 + $0xf9] sm:$0xff]
      %v1132 = vld [vmem:[%s1009 + $0x109] sm:$0xff]
      %v1133 = vld [vmem:[%s1009 + $0x111] sm:$0xff]
      %v1134 = vld [vmem:[%s1009 + $0x121] sm:$0xff]
      %v1135 = vld [vmem:[%s1009 + $0x129] sm:$0xff]
      %v1136 = vld [vmem:[%s1009 + $0x139] sm:$0xff]
      %v1137 = vld [vmem:[%s1009 + $0x141] sm:$0xff]
      %v1138 = vld [vmem:[%s1009 + $0x151] sm:$0xff]
      %v1139 = vld [vmem:[%s1009 + $0x159] sm:$0xff]
      %v1140 = vld [vmem:[%s1009 + $0x169] sm:$0xff]
      %v1141 = vld [vmem:[%s1009 + $0x171] sm:$0xff]
      %v1142 = vlaneseq
      %v1143 = vshrl.u32 %v1142, 7
      %v1144 = vsub.s32 0, %v1143
      %v1145 = vrot.slane %v232, %v1144
      %v1146 = vmul.f32 %v1145, %v1110
      %v1147 = vmul.f32 %v1145, %v1111
      %v1148 = vmul.f32 %v1145, %v1112
      %v1149 = vmul.f32 %v1145, %v1113
      %v1150 = vmul.f32 %v1145, %v1114
      %v1151 = vmul.f32 %v1145, %v1115
      %v1152 = vmul.f32 %v1145, %v1116
      %v1153 = vmul.f32 %v1145, %v1117
      %v1154 = vmul.f32 %v1145, %v1118
      %v1155 = vmul.f32 %v1145, %v1119
      %v1156 = vmul.f32 %v1145, %v1120
      %v1157 = vmul.f32 %v1145, %v1121
      %v1158 = vmul.f32 %v1145, %v1122
      %v1159 = vmul.f32 %v1145, %v1123
      %v1160 = vmul.f32 %v1145, %v1124
      %v1161 = vmul.f32 %v1145, %v1125
      %v1162 = vmul.f32 %v1145, %v1126
      %v1163 = vmul.f32 %v1145, %v1127
      %v1164 = vmul.f32 %v1145, %v1128
      %v1165 = vmul.f32 %v1145, %v1129
      %v1166 = vmul.f32 %v1145, %v1130
      %v1167 = vmul.f32 %v1145, %v1131
      %v1168 = vmul.f32 %v1145, %v1132
      %v1169 = vmul.f32 %v1145, %v1133
      %v1170 = vmul.f32 %v1145, %v1134
      %v1171 = vmul.f32 %v1145, %v1135
      %v1172 = vmul.f32 %v1145, %v1136
      %v1173 = vmul.f32 %v1145, %v1137
      %v1174 = vmul.f32 %v1145, %v1138
      %v1175 = vmul.f32 %v1145, %v1139
      %v1176 = vmul.f32 %v1145, %v1140
      %v1177 = vmul.f32 %v1145, %v1141
      %v1178 = vadd.f32 %v1078, %v1146
      %v1179 = vadd.f32 %v1079, %v1147
      %v1180 = vadd.f32 %v1080, %v1148
      %v1181 = vadd.f32 %v1081, %v1149
      %v1182 = vadd.f32 %v1082, %v1150
      %v1183 = vadd.f32 %v1083, %v1151
      %v1184 = vadd.f32 %v1084, %v1152
      %v1185 = vadd.f32 %v1085, %v1153
      %v1186 = vadd.f32 %v1086, %v1154
      %v1187 = vadd.f32 %v1087, %v1155
      %v1188 = vadd.f32 %v1088, %v1156
      %v1189 = vadd.f32 %v1089, %v1157
      %v1190 = vadd.f32 %v1090, %v1158
      %v1191 = vadd.f32 %v1091, %v1159
      %v1192 = vadd.f32 %v1092, %v1160
      %v1193 = vadd.f32 %v1093, %v1161
      %v1194 = vadd.f32 %v1094, %v1162
      %v1195 = vadd.f32 %v1095, %v1163
      %v1196 = vadd.f32 %v1096, %v1164
      %v1197 = vadd.f32 %v1097, %v1165
      %v1198 = vadd.f32 %v1098, %v1166
      %v1199 = vadd.f32 %v1099, %v1167
      %v1200 = vadd.f32 %v1100, %v1168
      %v1201 = vadd.f32 %v1101, %v1169
      %v1202 = vadd.f32 %v1102, %v1170
      %v1203 = vadd.f32 %v1103, %v1171
      %v1204 = vadd.f32 %v1104, %v1172
      %v1205 = vadd.f32 %v1105, %v1173
      %v1206 = vadd.f32 %v1106, %v1174
      %v1207 = vadd.f32 %v1107, %v1175
      %v1208 = vadd.f32 %v1108, %v1176
      %v1209 = vadd.f32 %v1109, %v1177
      %v1210 = vld [vmem:[%s1009 + $0x2] sm:$0xff]
      %v1211 = vld [vmem:[%s1009 + $0xa] sm:$0xff]
      %v1212 = vld [vmem:[%s1009 + $0x1a] sm:$0xff]
      %v1213 = vld [vmem:[%s1009 + $0x22] sm:$0xff]
      %v1214 = vld [vmem:[%s1009 + $0x32] sm:$0xff]
      %v1215 = vld [vmem:[%s1009 + $0x3a] sm:$0xff]
      %v1216 = vld [vmem:[%s1009 + $0x4a] sm:$0xff]
      %v1217 = vld [vmem:[%s1009 + $0x52] sm:$0xff]
      %v1218 = vld [vmem:[%s1009 + $0x62] sm:$0xff]
      %v1219 = vld [vmem:[%s1009 + $0x6a] sm:$0xff]
      %v1220 = vld [vmem:[%s1009 + $0x7a] sm:$0xff]
      %v1221 = vld [vmem:[%s1009 + $0x82] sm:$0xff]
      %v1222 = vld [vmem:[%s1009 + $0x92] sm:$0xff]
      %v1223 = vld [vmem:[%s1009 + $0x9a] sm:$0xff]
      %v1224 = vld [vmem:[%s1009 + $0xaa] sm:$0xff]
      %v1225 = vld [vmem:[%s1009 + $0xb2] sm:$0xff]
      %v1226 = vld [vmem:[%s1009 + $0xc2] sm:$0xff]
      %v1227 = vld [vmem:[%s1009 + $0xca] sm:$0xff]
      %v1228 = vld [vmem:[%s1009 + $0xda] sm:$0xff]
      %v1229 = vld [vmem:[%s1009 + $0xe2] sm:$0xff]
      %v1230 = vld [vmem:[%s1009 + $0xf2] sm:$0xff]
      %v1231 = vld [vmem:[%s1009 + $0xfa] sm:$0xff]
      %v1232 = vld [vmem:[%s1009 + $0x10a] sm:$0xff]
      %v1233 = vld [vmem:[%s1009 + $0x112] sm:$0xff]
      %v1234 = vld [vmem:[%s1009 + $0x122] sm:$0xff]
      %v1235 = vld [vmem:[%s1009 + $0x12a] sm:$0xff]
      %v1236 = vld [vmem:[%s1009 + $0x13a] sm:$0xff]
      %v1237 = vld [vmem:[%s1009 + $0x142] sm:$0xff]
      %v1238 = vld [vmem:[%s1009 + $0x152] sm:$0xff]
      %v1239 = vld [vmem:[%s1009 + $0x15a] sm:$0xff]
      %v1240 = vld [vmem:[%s1009 + $0x16a] sm:$0xff]
      %v1241 = vld [vmem:[%s1009 + $0x172] sm:$0xff]
      %v1242 = vlaneseq
      %v1243 = vshrl.u32 %v1242, 7
      %v1244 = vsub.s32 1, %v1243
      %v1245 = vrot.slane %v232, %v1244
      %v1246 = vmul.f32 %v1245, %v1210
      %v1247 = vmul.f32 %v1245, %v1211
      %v1248 = vmul.f32 %v1245, %v1212
      %v1249 = vmul.f32 %v1245, %v1213
      %v1250 = vmul.f32 %v1245, %v1214
      %v1251 = vmul.f32 %v1245, %v1215
      %v1252 = vmul.f32 %v1245, %v1216
      %v1253 = vmul.f32 %v1245, %v1217
      %v1254 = vmul.f32 %v1245, %v1218
      %v1255 = vmul.f32 %v1245, %v1219
      %v1256 = vmul.f32 %v1245, %v1220
      %v1257 = vmul.f32 %v1245, %v1221
      %v1258 = vmul.f32 %v1245, %v1222
      %v1259 = vmul.f32 %v1245, %v1223
      %v1260 = vmul.f32 %v1245, %v1224
      %v1261 = vmul.f32 %v1245, %v1225
      %v1262 = vmul.f32 %v1245, %v1226
      %v1263 = vmul.f32 %v1245, %v1227
      %v1264 = vmul.f32 %v1245, %v1228
      %v1265 = vmul.f32 %v1245, %v1229
      %v1266 = vmul.f32 %v1245, %v1230
      %v1267 = vmul.f32 %v1245, %v1231
      %v1268 = vmul.f32 %v1245, %v1232
      %v1269 = vmul.f32 %v1245, %v1233
      %v1270 = vmul.f32 %v1245, %v1234
      %v1271 = vmul.f32 %v1245, %v1235
      %v1272 = vmul.f32 %v1245, %v1236
      %v1273 = vmul.f32 %v1245, %v1237
      %v1274 = vmul.f32 %v1245, %v1238
      %v1275 = vmul.f32 %v1245, %v1239
      %v1276 = vmul.f32 %v1245, %v1240
      %v1277 = vmul.f32 %v1245, %v1241
      %v1278 = vadd.f32 %v1178, %v1246
      %v1279 = vadd.f32 %v1179, %v1247
      %v1280 = vadd.f32 %v1180, %v1248
      %v1281 = vadd.f32 %v1181, %v1249
      %v1282 = vadd.f32 %v1182, %v1250
      %v1283 = vadd.f32 %v1183, %v1251
      %v1284 = vadd.f32 %v1184, %v1252
      %v1285 = vadd.f32 %v1185, %v1253
      %v1286 = vadd.f32 %v1186, %v1254
      %v1287 = vadd.f32 %v1187, %v1255
      %v1288 = vadd.f32 %v1188, %v1256
      %v1289 = vadd.f32 %v1189, %v1257
      %v1290 = vadd.f32 %v1190, %v1258
      %v1291 = vadd.f32 %v1191, %v1259
      %v1292 = vadd.f32 %v1192, %v1260
      %v1293 = vadd.f32 %v1193, %v1261
      %v1294 = vadd.f32 %v1194, %v1262
      %v1295 = vadd.f32 %v1195, %v1263
      %v1296 = vadd.f32 %v1196, %v1264
      %v1297 = vadd.f32 %v1197, %v1265
      %v1298 = vadd.f32 %v1198, %v1266
      %v1299 = vadd.f32 %v1199, %v1267
      %v1300 = vadd.f32 %v1200, %v1268
      %v1301 = vadd.f32 %v1201, %v1269
      %v1302 = vadd.f32 %v1202, %v1270
      %v1303 = vadd.f32 %v1203, %v1271
      %v1304 = vadd.f32 %v1204, %v1272
      %v1305 = vadd.f32 %v1205, %v1273
      %v1306 = vadd.f32 %v1206, %v1274
      %v1307 = vadd.f32 %v1207, %v1275
      %v1308 = vadd.f32 %v1208, %v1276
      %v1309 = vadd.f32 %v1209, %v1277
      %v1310 = vld [vmem:[%s1009 + $0x3] sm:$0xff]
      %v1311 = vld [vmem:[%s1009 + $0xb] sm:$0xff]
      %v1312 = vld [vmem:[%s1009 + $0x1b] sm:$0xff]
      %v1313 = vld [vmem:[%s1009 + $0x23] sm:$0xff]
      %v1314 = vld [vmem:[%s1009 + $0x33] sm:$0xff]
      %v1315 = vld [vmem:[%s1009 + $0x3b] sm:$0xff]
      %v1316 = vld [vmem:[%s1009 + $0x4b] sm:$0xff]
      %v1317 = vld [vmem:[%s1009 + $0x53] sm:$0xff]
      %v1318 = vld [vmem:[%s1009 + $0x63] sm:$0xff]
      %v1319 = vld [vmem:[%s1009 + $0x6b] sm:$0xff]
      %v1320 = vld [vmem:[%s1009 + $0x7b] sm:$0xff]
      %v1321 = vld [vmem:[%s1009 + $0x83] sm:$0xff]
      %v1322 = vld [vmem:[%s1009 + $0x93] sm:$0xff]
      %v1323 = vld [vmem:[%s1009 + $0x9b] sm:$0xff]
      %v1324 = vld [vmem:[%s1009 + $0xab] sm:$0xff]
      %v1325 = vld [vmem:[%s1009 + $0xb3] sm:$0xff]
      %v1326 = vld [vmem:[%s1009 + $0xc3] sm:$0xff]
      %v1327 = vld [vmem:[%s1009 + $0xcb] sm:$0xff]
      %v1328 = vld [vmem:[%s1009 + $0xdb] sm:$0xff]
      %v1329 = vld [vmem:[%s1009 + $0xe3] sm:$0xff]
      %v1330 = vld [vmem:[%s1009 + $0xf3] sm:$0xff]
      %v1331 = vld [vmem:[%s1009 + $0xfb] sm:$0xff]
      %v1332 = vld [vmem:[%s1009 + $0x10b] sm:$0xff]
      %v1333 = vld [vmem:[%s1009 + $0x113] sm:$0xff]
      %v1334 = vld [vmem:[%s1009 + $0x123] sm:$0xff]
      %v1335 = vld [vmem:[%s1009 + $0x12b] sm:$0xff]
      %v1336 = vld [vmem:[%s1009 + $0x13b] sm:$0xff]
      %v1337 = vld [vmem:[%s1009 + $0x143] sm:$0xff]
      %v1338 = vld [vmem:[%s1009 + $0x153] sm:$0xff]
      %v1339 = vld [vmem:[%s1009 + $0x15b] sm:$0xff]
      %v1340 = vld [vmem:[%s1009 + $0x16b] sm:$0xff]
      %v1341 = vld [vmem:[%s1009 + $0x173] sm:$0xff]
      %v1342 = vlaneseq
      %v1343 = vshrl.u32 %v1342, 7
      %v1344 = vsub.s32 2, %v1343
      %v1345 = vrot.slane %v232, %v1344
      %v1346 = vmul.f32 %v1345, %v1310
      %v1347 = vmul.f32 %v1345, %v1311
      %v1348 = vmul.f32 %v1345, %v1312
      %v1349 = vmul.f32 %v1345, %v1313
      %v1350 = vmul.f32 %v1345, %v1314
      %v1351 = vmul.f32 %v1345, %v1315
      %v1352 = vmul.f32 %v1345, %v1316
      %v1353 = vmul.f32 %v1345, %v1317
      %v1354 = vmul.f32 %v1345, %v1318
      %v1355 = vmul.f32 %v1345, %v1319
      %v1356 = vmul.f32 %v1345, %v1320
      %v1357 = vmul.f32 %v1345, %v1321
      %v1358 = vmul.f32 %v1345, %v1322
      %v1359 = vmul.f32 %v1345, %v1323
      %v1360 = vmul.f32 %v1345, %v1324
      %v1361 = vmul.f32 %v1345, %v1325
      %v1362 = vmul.f32 %v1345, %v1326
      %v1363 = vmul.f32 %v1345, %v1327
      %v1364 = vmul.f32 %v1345, %v1328
      %v1365 = vmul.f32 %v1345, %v1329
      %v1366 = vmul.f32 %v1345, %v1330
      %v1367 = vmul.f32 %v1345, %v1331
      %v1368 = vmul.f32 %v1345, %v1332
      %v1369 = vmul.f32 %v1345, %v1333
      %v1370 = vmul.f32 %v1345, %v1334
      %v1371 = vmul.f32 %v1345, %v1335
      %v1372 = vmul.f32 %v1345, %v1336
      %v1373 = vmul.f32 %v1345, %v1337
      %v1374 = vmul.f32 %v1345, %v1338
      %v1375 = vmul.f32 %v1345, %v1339
      %v1376 = vmul.f32 %v1345, %v1340
      %v1377 = vmul.f32 %v1345, %v1341
      %v1378 = vadd.f32 %v1278, %v1346
      %v1379 = vadd.f32 %v1279, %v1347
      %v1380 = vadd.f32 %v1280, %v1348
      %v1381 = vadd.f32 %v1281, %v1349
      %v1382 = vadd.f32 %v1282, %v1350
      %v1383 = vadd.f32 %v1283, %v1351
      %v1384 = vadd.f32 %v1284, %v1352
      %v1385 = vadd.f32 %v1285, %v1353
      %v1386 = vadd.f32 %v1286, %v1354
      %v1387 = vadd.f32 %v1287, %v1355
      %v1388 = vadd.f32 %v1288, %v1356
      %v1389 = vadd.f32 %v1289, %v1357
      %v1390 = vadd.f32 %v1290, %v1358
      %v1391 = vadd.f32 %v1291, %v1359
      %v1392 = vadd.f32 %v1292, %v1360
      %v1393 = vadd.f32 %v1293, %v1361
      %v1394 = vadd.f32 %v1294, %v1362
      %v1395 = vadd.f32 %v1295, %v1363
      %v1396 = vadd.f32 %v1296, %v1364
      %v1397 = vadd.f32 %v1297, %v1365
      %v1398 = vadd.f32 %v1298, %v1366
      %v1399 = vadd.f32 %v1299, %v1367
      %v1400 = vadd.f32 %v1300, %v1368
      %v1401 = vadd.f32 %v1301, %v1369
      %v1402 = vadd.f32 %v1302, %v1370
      %v1403 = vadd.f32 %v1303, %v1371
      %v1404 = vadd.f32 %v1304, %v1372
      %v1405 = vadd.f32 %v1305, %v1373
      %v1406 = vadd.f32 %v1306, %v1374
      %v1407 = vadd.f32 %v1307, %v1375
      %v1408 = vadd.f32 %v1308, %v1376
      %v1409 = vadd.f32 %v1309, %v1377
      %v1410 = vld [vmem:[%s1009 + $0x4] sm:$0xff]
      %v1411 = vld [vmem:[%s1009 + $0xc] sm:$0xff]
      %v1412 = vld [vmem:[%s1009 + $0x1c] sm:$0xff]
      %v1413 = vld [vmem:[%s1009 + $0x24] sm:$0xff]
      %v1414 = vld [vmem:[%s1009 + $0x34] sm:$0xff]
      %v1415 = vld [vmem:[%s1009 + $0x3c] sm:$0xff]
      %v1416 = vld [vmem:[%s1009 + $0x4c] sm:$0xff]
      %v1417 = vld [vmem:[%s1009 + $0x54] sm:$0xff]
      %v1418 = vld [vmem:[%s1009 + $0x64] sm:$0xff]
      %v1419 = vld [vmem:[%s1009 + $0x6c] sm:$0xff]
      %v1420 = vld [vmem:[%s1009 + $0x7c] sm:$0xff]
      %v1421 = vld [vmem:[%s1009 + $0x84] sm:$0xff]
      %v1422 = vld [vmem:[%s1009 + $0x94] sm:$0xff]
      %v1423 = vld [vmem:[%s1009 + $0x9c] sm:$0xff]
      %v1424 = vld [vmem:[%s1009 + $0xac] sm:$0xff]
      %v1425 = vld [vmem:[%s1009 + $0xb4] sm:$0xff]
      %v1426 = vld [vmem:[%s1009 + $0xc4] sm:$0xff]
      %v1427 = vld [vmem:[%s1009 + $0xcc] sm:$0xff]
      %v1428 = vld [vmem:[%s1009 + $0xdc] sm:$0xff]
      %v1429 = vld [vmem:[%s1009 + $0xe4] sm:$0xff]
      %v1430 = vld [vmem:[%s1009 + $0xf4] sm:$0xff]
      %v1431 = vld [vmem:[%s1009 + $0xfc] sm:$0xff]
      %v1432 = vld [vmem:[%s1009 + $0x10c] sm:$0xff]
      %v1433 = vld [vmem:[%s1009 + $0x114] sm:$0xff]
      %v1434 = vld [vmem:[%s1009 + $0x124] sm:$0xff]
      %v1435 = vld [vmem:[%s1009 + $0x12c] sm:$0xff]
      %v1436 = vld [vmem:[%s1009 + $0x13c] sm:$0xff]
      %v1437 = vld [vmem:[%s1009 + $0x144] sm:$0xff]
      %v1438 = vld [vmem:[%s1009 + $0x154] sm:$0xff]
      %v1439 = vld [vmem:[%s1009 + $0x15c] sm:$0xff]
      %v1440 = vld [vmem:[%s1009 + $0x16c] sm:$0xff]
      %v1441 = vld [vmem:[%s1009 + $0x174] sm:$0xff]
      %v1442 = vlaneseq
      %v1443 = vshrl.u32 %v1442, 7
      %v1444 = vsub.s32 3, %v1443
      %v1445 = vrot.slane %v232, %v1444
      %v1446 = vmul.f32 %v1445, %v1410
      %v1447 = vmul.f32 %v1445, %v1411
      %v1448 = vmul.f32 %v1445, %v1412
      %v1449 = vmul.f32 %v1445, %v1413
      %v1450 = vmul.f32 %v1445, %v1414
      %v1451 = vmul.f32 %v1445, %v1415
      %v1452 = vmul.f32 %v1445, %v1416
      %v1453 = vmul.f32 %v1445, %v1417
      %v1454 = vmul.f32 %v1445, %v1418
      %v1455 = vmul.f32 %v1445, %v1419
      %v1456 = vmul.f32 %v1445, %v1420
      %v1457 = vmul.f32 %v1445, %v1421
      %v1458 = vmul.f32 %v1445, %v1422
      %v1459 = vmul.f32 %v1445, %v1423
      %v1460 = vmul.f32 %v1445, %v1424
      %v1461 = vmul.f32 %v1445, %v1425
      %v1462 = vmul.f32 %v1445, %v1426
      %v1463 = vmul.f32 %v1445, %v1427
      %v1464 = vmul.f32 %v1445, %v1428
      %v1465 = vmul.f32 %v1445, %v1429
      %v1466 = vmul.f32 %v1445, %v1430
      %v1467 = vmul.f32 %v1445, %v1431
      %v1468 = vmul.f32 %v1445, %v1432
      %v1469 = vmul.f32 %v1445, %v1433
      %v1470 = vmul.f32 %v1445, %v1434
      %v1471 = vmul.f32 %v1445, %v1435
      %v1472 = vmul.f32 %v1445, %v1436
      %v1473 = vmul.f32 %v1445, %v1437
      %v1474 = vmul.f32 %v1445, %v1438
      %v1475 = vmul.f32 %v1445, %v1439
      %v1476 = vmul.f32 %v1445, %v1440
      %v1477 = vmul.f32 %v1445, %v1441
      %v1478 = vadd.f32 %v1378, %v1446
      %v1479 = vadd.f32 %v1379, %v1447
      %v1480 = vadd.f32 %v1380, %v1448
      %v1481 = vadd.f32 %v1381, %v1449
      %v1482 = vadd.f32 %v1382, %v1450
      %v1483 = vadd.f32 %v1383, %v1451
      %v1484 = vadd.f32 %v1384, %v1452
      %v1485 = vadd.f32 %v1385, %v1453
      %v1486 = vadd.f32 %v1386, %v1454
      %v1487 = vadd.f32 %v1387, %v1455
      %v1488 = vadd.f32 %v1388, %v1456
      %v1489 = vadd.f32 %v1389, %v1457
      %v1490 = vadd.f32 %v1390, %v1458
      %v1491 = vadd.f32 %v1391, %v1459
      %v1492 = vadd.f32 %v1392, %v1460
      %v1493 = vadd.f32 %v1393, %v1461
      %v1494 = vadd.f32 %v1394, %v1462
      %v1495 = vadd.f32 %v1395, %v1463
      %v1496 = vadd.f32 %v1396, %v1464
      %v1497 = vadd.f32 %v1397, %v1465
      %v1498 = vadd.f32 %v1398, %v1466
      %v1499 = vadd.f32 %v1399, %v1467
      %v1500 = vadd.f32 %v1400, %v1468
      %v1501 = vadd.f32 %v1401, %v1469
      %v1502 = vadd.f32 %v1402, %v1470
      %v1503 = vadd.f32 %v1403, %v1471
      %v1504 = vadd.f32 %v1404, %v1472
      %v1505 = vadd.f32 %v1405, %v1473
      %v1506 = vadd.f32 %v1406, %v1474
      %v1507 = vadd.f32 %v1407, %v1475
      %v1508 = vadd.f32 %v1408, %v1476
      %v1509 = vadd.f32 %v1409, %v1477
      %v1510 = vld [vmem:[%s1009 + $0x5] sm:$0xff]
      %v1511 = vld [vmem:[%s1009 + $0xd] sm:$0xff]
      %v1512 = vld [vmem:[%s1009 + $0x1d] sm:$0xff]
      %v1513 = vld [vmem:[%s1009 + $0x25] sm:$0xff]
      %v1514 = vld [vmem:[%s1009 + $0x35] sm:$0xff]
      %v1515 = vld [vmem:[%s1009 + $0x3d] sm:$0xff]
      %v1516 = vld [vmem:[%s1009 + $0x4d] sm:$0xff]
      %v1517 = vld [vmem:[%s1009 + $0x55] sm:$0xff]
      %v1518 = vld [vmem:[%s1009 + $0x65] sm:$0xff]
      %v1519 = vld [vmem:[%s1009 + $0x6d] sm:$0xff]
      %v1520 = vld [vmem:[%s1009 + $0x7d] sm:$0xff]
      %v1521 = vld [vmem:[%s1009 + $0x85] sm:$0xff]
      %v1522 = vld [vmem:[%s1009 + $0x95] sm:$0xff]
      %v1523 = vld [vmem:[%s1009 + $0x9d] sm:$0xff]
      %v1524 = vld [vmem:[%s1009 + $0xad] sm:$0xff]
      %v1525 = vld [vmem:[%s1009 + $0xb5] sm:$0xff]
      %v1526 = vld [vmem:[%s1009 + $0xc5] sm:$0xff]
      %v1527 = vld [vmem:[%s1009 + $0xcd] sm:$0xff]
      %v1528 = vld [vmem:[%s1009 + $0xdd] sm:$0xff]
      %v1529 = vld [vmem:[%s1009 + $0xe5] sm:$0xff]
      %v1530 = vld [vmem:[%s1009 + $0xf5] sm:$0xff]
      %v1531 = vld [vmem:[%s1009 + $0xfd] sm:$0xff]
      %v1532 = vld [vmem:[%s1009 + $0x10d] sm:$0xff]
      %v1533 = vld [vmem:[%s1009 + $0x115] sm:$0xff]
      %v1534 = vld [vmem:[%s1009 + $0x125] sm:$0xff]
      %v1535 = vld [vmem:[%s1009 + $0x12d] sm:$0xff]
      %v1536 = vld [vmem:[%s1009 + $0x13d] sm:$0xff]
      %v1537 = vld [vmem:[%s1009 + $0x145] sm:$0xff]
      %v1538 = vld [vmem:[%s1009 + $0x155] sm:$0xff]
      %v1539 = vld [vmem:[%s1009 + $0x15d] sm:$0xff]
      %v1540 = vld [vmem:[%s1009 + $0x16d] sm:$0xff]
      %v1541 = vld [vmem:[%s1009 + $0x175] sm:$0xff]
      %v1542 = vlaneseq
      %v1543 = vshrl.u32 %v1542, 7
      %v1544 = vsub.s32 4, %v1543
      %v1545 = vrot.slane %v232, %v1544
      %v1546 = vmul.f32 %v1545, %v1510
      %v1547 = vmul.f32 %v1545, %v1511
      %v1548 = vmul.f32 %v1545, %v1512
      %v1549 = vmul.f32 %v1545, %v1513
      %v1550 = vmul.f32 %v1545, %v1514
      %v1551 = vmul.f32 %v1545, %v1515
      %v1552 = vmul.f32 %v1545, %v1516
      %v1553 = vmul.f32 %v1545, %v1517
      %v1554 = vmul.f32 %v1545, %v1518
      %v1555 = vmul.f32 %v1545, %v1519
      %v1556 = vmul.f32 %v1545, %v1520
      %v1557 = vmul.f32 %v1545, %v1521
      %v1558 = vmul.f32 %v1545, %v1522
      %v1559 = vmul.f32 %v1545, %v1523
      %v1560 = vmul.f32 %v1545, %v1524
      %v1561 = vmul.f32 %v1545, %v1525
      %v1562 = vmul.f32 %v1545, %v1526
      %v1563 = vmul.f32 %v1545, %v1527
      %v1564 = vmul.f32 %v1545, %v1528
      %v1565 = vmul.f32 %v1545, %v1529
      %v1566 = vmul.f32 %v1545, %v1530
      %v1567 = vmul.f32 %v1545, %v1531
      %v1568 = vmul.f32 %v1545, %v1532
      %v1569 = vmul.f32 %v1545, %v1533
      %v1570 = vmul.f32 %v1545, %v1534
      %v1571 = vmul.f32 %v1545, %v1535
      %v1572 = vmul.f32 %v1545, %v1536
      %v1573 = vmul.f32 %v1545, %v1537
      %v1574 = vmul.f32 %v1545, %v1538
      %v1575 = vmul.f32 %v1545, %v1539
      %v1576 = vmul.f32 %v1545, %v1540
      %v1577 = vmul.f32 %v1545, %v1541
      %v1578 = vadd.f32 %v1478, %v1546
      %v1579 = vadd.f32 %v1479, %v1547
      %v1580 = vadd.f32 %v1480, %v1548
      %v1581 = vadd.f32 %v1481, %v1549
      %v1582 = vadd.f32 %v1482, %v1550
      %v1583 = vadd.f32 %v1483, %v1551
      %v1584 = vadd.f32 %v1484, %v1552
      %v1585 = vadd.f32 %v1485, %v1553
      %v1586 = vadd.f32 %v1486, %v1554
      %v1587 = vadd.f32 %v1487, %v1555
      %v1588 = vadd.f32 %v1488, %v1556
      %v1589 = vadd.f32 %v1489, %v1557
      %v1590 = vadd.f32 %v1490, %v1558
      %v1591 = vadd.f32 %v1491, %v1559
      %v1592 = vadd.f32 %v1492, %v1560
      %v1593 = vadd.f32 %v1493, %v1561
      %v1594 = vadd.f32 %v1494, %v1562
      %v1595 = vadd.f32 %v1495, %v1563
      %v1596 = vadd.f32 %v1496, %v1564
      %v1597 = vadd.f32 %v1497, %v1565
      %v1598 = vadd.f32 %v1498, %v1566
      %v1599 = vadd.f32 %v1499, %v1567
      %v1600 = vadd.f32 %v1500, %v1568
      %v1601 = vadd.f32 %v1501, %v1569
      %v1602 = vadd.f32 %v1502, %v1570
      %v1603 = vadd.f32 %v1503, %v1571
      %v1604 = vadd.f32 %v1504, %v1572
      %v1605 = vadd.f32 %v1505, %v1573
      %v1606 = vadd.f32 %v1506, %v1574
      %v1607 = vadd.f32 %v1507, %v1575
      %v1608 = vadd.f32 %v1508, %v1576
      %v1609 = vadd.f32 %v1509, %v1577
      %v1610 = vld [vmem:[%s1009 + $0x6] sm:$0xff]
      %v1611 = vld [vmem:[%s1009 + $0xe] sm:$0xff]
      %v1612 = vld [vmem:[%s1009 + $0x1e] sm:$0xff]
      %v1613 = vld [vmem:[%s1009 + $0x26] sm:$0xff]
      %v1614 = vld [vmem:[%s1009 + $0x36] sm:$0xff]
      %v1615 = vld [vmem:[%s1009 + $0x3e] sm:$0xff]
      %v1616 = vld [vmem:[%s1009 + $0x4e] sm:$0xff]
      %v1617 = vld [vmem:[%s1009 + $0x56] sm:$0xff]
      %v1618 = vld [vmem:[%s1009 + $0x66] sm:$0xff]
      %v1619 = vld [vmem:[%s1009 + $0x6e] sm:$0xff]
      %v1620 = vld [vmem:[%s1009 + $0x7e] sm:$0xff]
      %v1621 = vld [vmem:[%s1009 + $0x86] sm:$0xff]
      %v1622 = vld [vmem:[%s1009 + $0x96] sm:$0xff]
      %v1623 = vld [vmem:[%s1009 + $0x9e] sm:$0xff]
      %v1624 = vld [vmem:[%s1009 + $0xae] sm:$0xff]
      %v1625 = vld [vmem:[%s1009 + $0xb6] sm:$0xff]
      %v1626 = vld [vmem:[%s1009 + $0xc6] sm:$0xff]
      %v1627 = vld [vmem:[%s1009 + $0xce] sm:$0xff]
      %v1628 = vld [vmem:[%s1009 + $0xde] sm:$0xff]
      %v1629 = vld [vmem:[%s1009 + $0xe6] sm:$0xff]
      %v1630 = vld [vmem:[%s1009 + $0xf6] sm:$0xff]
      %v1631 = vld [vmem:[%s1009 + $0xfe] sm:$0xff]
      %v1632 = vld [vmem:[%s1009 + $0x10e] sm:$0xff]
      %v1633 = vld [vmem:[%s1009 + $0x116] sm:$0xff]
      %v1634 = vld [vmem:[%s1009 + $0x126] sm:$0xff]
      %v1635 = vld [vmem:[%s1009 + $0x12e] sm:$0xff]
      %v1636 = vld [vmem:[%s1009 + $0x13e] sm:$0xff]
      %v1637 = vld [vmem:[%s1009 + $0x146] sm:$0xff]
      %v1638 = vld [vmem:[%s1009 + $0x156] sm:$0xff]
      %v1639 = vld [vmem:[%s1009 + $0x15e] sm:$0xff]
      %v1640 = vld [vmem:[%s1009 + $0x16e] sm:$0xff]
      %v1641 = vld [vmem:[%s1009 + $0x176] sm:$0xff]
      %v1642 = vlaneseq
      %v1643 = vshrl.u32 %v1642, 7
      %v1644 = vsub.s32 5, %v1643
      %v1645 = vrot.slane %v232, %v1644
      %v1646 = vmul.f32 %v1645, %v1610
      %v1647 = vmul.f32 %v1645, %v1611
      %v1648 = vmul.f32 %v1645, %v1612
      %v1649 = vmul.f32 %v1645, %v1613
      %v1650 = vmul.f32 %v1645, %v1614
      %v1651 = vmul.f32 %v1645, %v1615
      %v1652 = vmul.f32 %v1645, %v1616
      %v1653 = vmul.f32 %v1645, %v1617
      %v1654 = vmul.f32 %v1645, %v1618
      %v1655 = vmul.f32 %v1645, %v1619
      %v1656 = vmul.f32 %v1645, %v1620
      %v1657 = vmul.f32 %v1645, %v1621
      %v1658 = vmul.f32 %v1645, %v1622
      %v1659 = vmul.f32 %v1645, %v1623
      %v1660 = vmul.f32 %v1645, %v1624
      %v1661 = vmul.f32 %v1645, %v1625
      %v1662 = vmul.f32 %v1645, %v1626
      %v1663 = vmul.f32 %v1645, %v1627
      %v1664 = vmul.f32 %v1645, %v1628
      %v1665 = vmul.f32 %v1645, %v1629
      %v1666 = vmul.f32 %v1645, %v1630
      %v1667 = vmul.f32 %v1645, %v1631
      %v1668 = vmul.f32 %v1645, %v1632
      %v1669 = vmul.f32 %v1645, %v1633
      %v1670 = vmul.f32 %v1645, %v1634
      %v1671 = vmul.f32 %v1645, %v1635
      %v1672 = vmul.f32 %v1645, %v1636
      %v1673 = vmul.f32 %v1645, %v1637
      %v1674 = vmul.f32 %v1645, %v1638
      %v1675 = vmul.f32 %v1645, %v1639
      %v1676 = vmul.f32 %v1645, %v1640
      %v1677 = vmul.f32 %v1645, %v1641
      %v1678 = vadd.f32 %v1578, %v1646
      %v1679 = vadd.f32 %v1579, %v1647
      %v1680 = vadd.f32 %v1580, %v1648
      %v1681 = vadd.f32 %v1581, %v1649
      %v1682 = vadd.f32 %v1582, %v1650
      %v1683 = vadd.f32 %v1583, %v1651
      %v1684 = vadd.f32 %v1584, %v1652
      %v1685 = vadd.f32 %v1585, %v1653
      %v1686 = vadd.f32 %v1586, %v1654
      %v1687 = vadd.f32 %v1587, %v1655
      %v1688 = vadd.f32 %v1588, %v1656
      %v1689 = vadd.f32 %v1589, %v1657
      %v1690 = vadd.f32 %v1590, %v1658
      %v1691 = vadd.f32 %v1591, %v1659
      %v1692 = vadd.f32 %v1592, %v1660
      %v1693 = vadd.f32 %v1593, %v1661
      %v1694 = vadd.f32 %v1594, %v1662
      %v1695 = vadd.f32 %v1595, %v1663
      %v1696 = vadd.f32 %v1596, %v1664
      %v1697 = vadd.f32 %v1597, %v1665
      %v1698 = vadd.f32 %v1598, %v1666
      %v1699 = vadd.f32 %v1599, %v1667
      %v1700 = vadd.f32 %v1600, %v1668
      %v1701 = vadd.f32 %v1601, %v1669
      %v1702 = vadd.f32 %v1602, %v1670
      %v1703 = vadd.f32 %v1603, %v1671
      %v1704 = vadd.f32 %v1604, %v1672
      %v1705 = vadd.f32 %v1605, %v1673
      %v1706 = vadd.f32 %v1606, %v1674
      %v1707 = vadd.f32 %v1607, %v1675
      %v1708 = vadd.f32 %v1608, %v1676
      %v1709 = vadd.f32 %v1609, %v1677
      %s1710 = scalar_lea.vmem [#allocation2], 48
      %v1711 = vld [vmem:[%s1710] sm:$0xff]
      %v1712 = vld [vmem:[%s1710 + $0x8] sm:$0xff]
      %v1713 = vld [vmem:[%s1710 + $0x18] sm:$0xff]
      %v1714 = vld [vmem:[%s1710 + $0x20] sm:$0xff]
      %v1715 = vld [vmem:[%s1710 + $0x30] sm:$0xff]
      %v1716 = vld [vmem:[%s1710 + $0x38] sm:$0xff]
      %v1717 = vld [vmem:[%s1710 + $0x48] sm:$0xff]
      %v1718 = vld [vmem:[%s1710 + $0x50] sm:$0xff]
      %v1719 = vld [vmem:[%s1710 + $0x60] sm:$0xff]
      %v1720 = vld [vmem:[%s1710 + $0x68] sm:$0xff]
      %v1721 = vld [vmem:[%s1710 + $0x78] sm:$0xff]
      %v1722 = vld [vmem:[%s1710 + $0x80] sm:$0xff]
      %v1723 = vld [vmem:[%s1710 + $0x90] sm:$0xff]
      %v1724 = vld [vmem:[%s1710 + $0x98] sm:$0xff]
      %v1725 = vld [vmem:[%s1710 + $0xa8] sm:$0xff]
      %v1726 = vld [vmem:[%s1710 + $0xb0] sm:$0xff]
      %v1727 = vld [vmem:[%s1710 + $0xc0] sm:$0xff]
      %v1728 = vld [vmem:[%s1710 + $0xc8] sm:$0xff]
      %v1729 = vld [vmem:[%s1710 + $0xd8] sm:$0xff]
      %v1730 = vld [vmem:[%s1710 + $0xe0] sm:$0xff]
      %v1731 = vld [vmem:[%s1710 + $0xf0] sm:$0xff]
      %v1732 = vld [vmem:[%s1710 + $0xf8] sm:$0xff]
      %v1733 = vld [vmem:[%s1710 + $0x108] sm:$0xff]
      %v1734 = vld [vmem:[%s1710 + $0x110] sm:$0xff]
      %v1735 = vld [vmem:[%s1710 + $0x120] sm:$0xff]
      %v1736 = vld [vmem:[%s1710 + $0x128] sm:$0xff]
      %v1737 = vld [vmem:[%s1710 + $0x138] sm:$0xff]
      %v1738 = vld [vmem:[%s1710 + $0x140] sm:$0xff]
      %v1739 = vld [vmem:[%s1710 + $0x150] sm:$0xff]
      %v1740 = vld [vmem:[%s1710 + $0x158] sm:$0xff]
      %v1741 = vld [vmem:[%s1710 + $0x168] sm:$0xff]
      %v1742 = vld [vmem:[%s1710 + $0x170] sm:$0xff]
      %v1743 = vlaneseq
      %v1744 = vshrl.u32 %v1743, 7
      %v1745 = vsub.s32 6, %v1744
      %v1746 = vrot.slane %v232, %v1745
      %v1747 = vmul.f32 %v1746, %v1711
      %v1748 = vmul.f32 %v1746, %v1712
      %v1749 = vmul.f32 %v1746, %v1713
      %v1750 = vmul.f32 %v1746, %v1714
      %v1751 = vmul.f32 %v1746, %v1715
      %v1752 = vmul.f32 %v1746, %v1716
      %v1753 = vmul.f32 %v1746, %v1717
      %v1754 = vmul.f32 %v1746, %v1718
      %v1755 = vmul.f32 %v1746, %v1719
      %v1756 = vmul.f32 %v1746, %v1720
      %v1757 = vmul.f32 %v1746, %v1721
      %v1758 = vmul.f32 %v1746, %v1722
      %v1759 = vmul.f32 %v1746, %v1723
      %v1760 = vmul.f32 %v1746, %v1724
      %v1761 = vmul.f32 %v1746, %v1725
      %v1762 = vmul.f32 %v1746, %v1726
      %v1763 = vmul.f32 %v1746, %v1727
      %v1764 = vmul.f32 %v1746, %v1728
      %v1765 = vmul.f32 %v1746, %v1729
      %v1766 = vmul.f32 %v1746, %v1730
      %v1767 = vmul.f32 %v1746, %v1731
      %v1768 = vmul.f32 %v1746, %v1732
      %v1769 = vmul.f32 %v1746, %v1733
      %v1770 = vmul.f32 %v1746, %v1734
      %v1771 = vmul.f32 %v1746, %v1735
      %v1772 = vmul.f32 %v1746, %v1736
      %v1773 = vmul.f32 %v1746, %v1737
      %v1774 = vmul.f32 %v1746, %v1738
      %v1775 = vmul.f32 %v1746, %v1739
      %v1776 = vmul.f32 %v1746, %v1740
      %v1777 = vmul.f32 %v1746, %v1741
      %v1778 = vmul.f32 %v1746, %v1742
      %v1779 = vadd.f32 %v1678, %v1747
      %v1780 = vadd.f32 %v1679, %v1748
      %v1781 = vadd.f32 %v1680, %v1749
      %v1782 = vadd.f32 %v1681, %v1750
      %v1783 = vadd.f32 %v1682, %v1751
      %v1784 = vadd.f32 %v1683, %v1752
      %v1785 = vadd.f32 %v1684, %v1753
      %v1786 = vadd.f32 %v1685, %v1754
      %v1787 = vadd.f32 %v1686, %v1755
      %v1788 = vadd.f32 %v1687, %v1756
      %v1789 = vadd.f32 %v1688, %v1757
      %v1790 = vadd.f32 %v1689, %v1758
      %v1791 = vadd.f32 %v1690, %v1759
      %v1792 = vadd.f32 %v1691, %v1760
      %v1793 = vadd.f32 %v1692, %v1761
      %v1794 = vadd.f32 %v1693, %v1762
      %v1795 = vadd.f32 %v1694, %v1763
      %v1796 = vadd.f32 %v1695, %v1764
      %v1797 = vadd.f32 %v1696, %v1765
      %v1798 = vadd.f32 %v1697, %v1766
      %v1799 = vadd.f32 %v1698, %v1767
      %v1800 = vadd.f32 %v1699, %v1768
      %v1801 = vadd.f32 %v1700, %v1769
      %v1802 = vadd.f32 %v1701, %v1770
      %v1803 = vadd.f32 %v1702, %v1771
      %v1804 = vadd.f32 %v1703, %v1772
      %v1805 = vadd.f32 %v1704, %v1773
      %v1806 = vadd.f32 %v1705, %v1774
      %v1807 = vadd.f32 %v1706, %v1775
      %v1808 = vadd.f32 %v1707, %v1776
      %v1809 = vadd.f32 %v1708, %v1777
      %v1810 = vadd.f32 %v1709, %v1778
      %v1811 = vld [vmem:[%s1710 + $0x1] sm:$0xff]
      %v1812 = vld [vmem:[%s1710 + $0x9] sm:$0xff]
      %v1813 = vld [vmem:[%s1710 + $0x19] sm:$0xff]
      %v1814 = vld [vmem:[%s1710 + $0x21] sm:$0xff]
      %v1815 = vld [vmem:[%s1710 + $0x31] sm:$0xff]
      %v1816 = vld [vmem:[%s1710 + $0x39] sm:$0xff]
      %v1817 = vld [vmem:[%s1710 + $0x49] sm:$0xff]
      %v1818 = vld [vmem:[%s1710 + $0x51] sm:$0xff]
      %v1819 = vld [vmem:[%s1710 + $0x61] sm:$0xff]
      %v1820 = vld [vmem:[%s1710 + $0x69] sm:$0xff]
      %v1821 = vld [vmem:[%s1710 + $0x79] sm:$0xff]
      %v1822 = vld [vmem:[%s1710 + $0x81] sm:$0xff]
      %v1823 = vld [vmem:[%s1710 + $0x91] sm:$0xff]
      %v1824 = vld [vmem:[%s1710 + $0x99] sm:$0xff]
      %v1825 = vld [vmem:[%s1710 + $0xa9] sm:$0xff]
      %v1826 = vld [vmem:[%s1710 + $0xb1] sm:$0xff]
      %v1827 = vld [vmem:[%s1710 + $0xc1] sm:$0xff]
      %v1828 = vld [vmem:[%s1710 + $0xc9] sm:$0xff]
      %v1829 = vld [vmem:[%s1710 + $0xd9] sm:$0xff]
      %v1830 = vld [vmem:[%s1710 + $0xe1] sm:$0xff]
      %v1831 = vld [vmem:[%s1710 + $0xf1] sm:$0xff]
      %v1832 = vld [vmem:[%s1710 + $0xf9] sm:$0xff]
      %v1833 = vld [vmem:[%s1710 + $0x109] sm:$0xff]
      %v1834 = vld [vmem:[%s1710 + $0x111] sm:$0xff]
      %v1835 = vld [vmem:[%s1710 + $0x121] sm:$0xff]
      %v1836 = vld [vmem:[%s1710 + $0x129] sm:$0xff]
      %v1837 = vld [vmem:[%s1710 + $0x139] sm:$0xff]
      %v1838 = vld [vmem:[%s1710 + $0x141] sm:$0xff]
      %v1839 = vld [vmem:[%s1710 + $0x151] sm:$0xff]
      %v1840 = vld [vmem:[%s1710 + $0x159] sm:$0xff]
      %v1841 = vld [vmem:[%s1710 + $0x169] sm:$0xff]
      %v1842 = vld [vmem:[%s1710 + $0x171] sm:$0xff]
      %v1843 = vlaneseq
      %v1844 = vshrl.u32 %v1843, 7
      %v1845 = vsub.s32 7, %v1844
      %v1846 = vrot.slane %v232, %v1845
      %v1847 = vmul.f32 %v1846, %v1811
      %v1848 = vmul.f32 %v1846, %v1812
      %v1849 = vmul.f32 %v1846, %v1813
      %v1850 = vmul.f32 %v1846, %v1814
      %v1851 = vmul.f32 %v1846, %v1815
      %v1852 = vmul.f32 %v1846, %v1816
      %v1853 = vmul.f32 %v1846, %v1817
      %v1854 = vmul.f32 %v1846, %v1818
      %v1855 = vmul.f32 %v1846, %v1819
      %v1856 = vmul.f32 %v1846, %v1820
      %v1857 = vmul.f32 %v1846, %v1821
      %v1858 = vmul.f32 %v1846, %v1822
      %v1859 = vmul.f32 %v1846, %v1823
      %v1860 = vmul.f32 %v1846, %v1824
      %v1861 = vmul.f32 %v1846, %v1825
      %v1862 = vmul.f32 %v1846, %v1826
      %v1863 = vmul.f32 %v1846, %v1827
      %v1864 = vmul.f32 %v1846, %v1828
      %v1865 = vmul.f32 %v1846, %v1829
      %v1866 = vmul.f32 %v1846, %v1830
      %v1867 = vmul.f32 %v1846, %v1831
      %v1868 = vmul.f32 %v1846, %v1832
      %v1869 = vmul.f32 %v1846, %v1833
      %v1870 = vmul.f32 %v1846, %v1834
      %v1871 = vmul.f32 %v1846, %v1835
      %v1872 = vmul.f32 %v1846, %v1836
      %v1873 = vmul.f32 %v1846, %v1837
      %v1874 = vmul.f32 %v1846, %v1838
      %v1875 = vmul.f32 %v1846, %v1839
      %v1876 = vmul.f32 %v1846, %v1840
      %v1877 = vmul.f32 %v1846, %v1841
      %v1878 = vmul.f32 %v1846, %v1842
      %v1879 = vadd.f32 %v1779, %v1847
      %v1880 = vadd.f32 %v1780, %v1848
      %v1881 = vadd.f32 %v1781, %v1849
      %v1882 = vadd.f32 %v1782, %v1850
      %v1883 = vadd.f32 %v1783, %v1851
      %v1884 = vadd.f32 %v1784, %v1852
      %v1885 = vadd.f32 %v1785, %v1853
      %v1886 = vadd.f32 %v1786, %v1854
      %v1887 = vadd.f32 %v1787, %v1855
      %v1888 = vadd.f32 %v1788, %v1856
      %v1889 = vadd.f32 %v1789, %v1857
      %v1890 = vadd.f32 %v1790, %v1858
      %v1891 = vadd.f32 %v1791, %v1859
      %v1892 = vadd.f32 %v1792, %v1860
      %v1893 = vadd.f32 %v1793, %v1861
      %v1894 = vadd.f32 %v1794, %v1862
      %v1895 = vadd.f32 %v1795, %v1863
      %v1896 = vadd.f32 %v1796, %v1864
      %v1897 = vadd.f32 %v1797, %v1865
      %v1898 = vadd.f32 %v1798, %v1866
      %v1899 = vadd.f32 %v1799, %v1867
      %v1900 = vadd.f32 %v1800, %v1868
      %v1901 = vadd.f32 %v1801, %v1869
      %v1902 = vadd.f32 %v1802, %v1870
      %v1903 = vadd.f32 %v1803, %v1871
      %v1904 = vadd.f32 %v1804, %v1872
      %v1905 = vadd.f32 %v1805, %v1873
      %v1906 = vadd.f32 %v1806, %v1874
      %v1907 = vadd.f32 %v1807, %v1875
      %v1908 = vadd.f32 %v1808, %v1876
      %v1909 = vadd.f32 %v1809, %v1877
      %v1910 = vadd.f32 %v1810, %v1878
      %v1911 = vld [vmem:[%s1710 + $0x2] sm:$0xff]
      %v1912 = vld [vmem:[%s1710 + $0xa] sm:$0xff]
      %v1913 = vld [vmem:[%s1710 + $0x1a] sm:$0xff]
      %v1914 = vld [vmem:[%s1710 + $0x22] sm:$0xff]
      %v1915 = vld [vmem:[%s1710 + $0x32] sm:$0xff]
      %v1916 = vld [vmem:[%s1710 + $0x3a] sm:$0xff]
      %v1917 = vld [vmem:[%s1710 + $0x4a] sm:$0xff]
      %v1918 = vld [vmem:[%s1710 + $0x52] sm:$0xff]
      %v1919 = vld [vmem:[%s1710 + $0x62] sm:$0xff]
      %v1920 = vld [vmem:[%s1710 + $0x6a] sm:$0xff]
      %v1921 = vld [vmem:[%s1710 + $0x7a] sm:$0xff]
      %v1922 = vld [vmem:[%s1710 + $0x82] sm:$0xff]
      %v1923 = vld [vmem:[%s1710 + $0x92] sm:$0xff]
      %v1924 = vld [vmem:[%s1710 + $0x9a] sm:$0xff]
      %v1925 = vld [vmem:[%s1710 + $0xaa] sm:$0xff]
      %v1926 = vld [vmem:[%s1710 + $0xb2] sm:$0xff]
      %v1927 = vld [vmem:[%s1710 + $0xc2] sm:$0xff]
      %v1928 = vld [vmem:[%s1710 + $0xca] sm:$0xff]
      %v1929 = vld [vmem:[%s1710 + $0xda] sm:$0xff]
      %v1930 = vld [vmem:[%s1710 + $0xe2] sm:$0xff]
      %v1931 = vld [vmem:[%s1710 + $0xf2] sm:$0xff]
      %v1932 = vld [vmem:[%s1710 + $0xfa] sm:$0xff]
      %v1933 = vld [vmem:[%s1710 + $0x10a] sm:$0xff]
      %v1934 = vld [vmem:[%s1710 + $0x112] sm:$0xff]
      %v1935 = vld [vmem:[%s1710 + $0x122] sm:$0xff]
      %v1936 = vld [vmem:[%s1710 + $0x12a] sm:$0xff]
      %v1937 = vld [vmem:[%s1710 + $0x13a] sm:$0xff]
      %v1938 = vld [vmem:[%s1710 + $0x142] sm:$0xff]
      %v1939 = vld [vmem:[%s1710 + $0x152] sm:$0xff]
      %v1940 = vld [vmem:[%s1710 + $0x15a] sm:$0xff]
      %v1941 = vld [vmem:[%s1710 + $0x16a] sm:$0xff]
      %v1942 = vld [vmem:[%s1710 + $0x172] sm:$0xff]
      %v1943 = vlaneseq
      %v1944 = vshrl.u32 %v1943, 7
      %v1945 = vsub.s32 0, %v1944
      %v1946 = vrot.slane %v233, %v1945
      %v1947 = vmul.f32 %v1946, %v1911
      %v1948 = vmul.f32 %v1946, %v1912
      %v1949 = vmul.f32 %v1946, %v1913
      %v1950 = vmul.f32 %v1946, %v1914
      %v1951 = vmul.f32 %v1946, %v1915
      %v1952 = vmul.f32 %v1946, %v1916
      %v1953 = vmul.f32 %v1946, %v1917
      %v1954 = vmul.f32 %v1946, %v1918
      %v1955 = vmul.f32 %v1946, %v1919
      %v1956 = vmul.f32 %v1946, %v1920
      %v1957 = vmul.f32 %v1946, %v1921
      %v1958 = vmul.f32 %v1946, %v1922
      %v1959 = vmul.f32 %v1946, %v1923
      %v1960 = vmul.f32 %v1946, %v1924
      %v1961 = vmul.f32 %v1946, %v1925
      %v1962 = vmul.f32 %v1946, %v1926
      %v1963 = vmul.f32 %v1946, %v1927
      %v1964 = vmul.f32 %v1946, %v1928
      %v1965 = vmul.f32 %v1946, %v1929
      %v1966 = vmul.f32 %v1946, %v1930
      %v1967 = vmul.f32 %v1946, %v1931
      %v1968 = vmul.f32 %v1946, %v1932
      %v1969 = vmul.f32 %v1946, %v1933
      %v1970 = vmul.f32 %v1946, %v1934
      %v1971 = vmul.f32 %v1946, %v1935
      %v1972 = vmul.f32 %v1946, %v1936
      %v1973 = vmul.f32 %v1946, %v1937
      %v1974 = vmul.f32 %v1946, %v1938
      %v1975 = vmul.f32 %v1946, %v1939
      %v1976 = vmul.f32 %v1946, %v1940
      %v1977 = vmul.f32 %v1946, %v1941
      %v1978 = vmul.f32 %v1946, %v1942
      %v1979 = vadd.f32 %v1879, %v1947
      %v1980 = vadd.f32 %v1880, %v1948
      %v1981 = vadd.f32 %v1881, %v1949
      %v1982 = vadd.f32 %v1882, %v1950
      %v1983 = vadd.f32 %v1883, %v1951
      %v1984 = vadd.f32 %v1884, %v1952
      %v1985 = vadd.f32 %v1885, %v1953
      %v1986 = vadd.f32 %v1886, %v1954
      %v1987 = vadd.f32 %v1887, %v1955
      %v1988 = vadd.f32 %v1888, %v1956
      %v1989 = vadd.f32 %v1889, %v1957
      %v1990 = vadd.f32 %v1890, %v1958
      %v1991 = vadd.f32 %v1891, %v1959
      %v1992 = vadd.f32 %v1892, %v1960
      %v1993 = vadd.f32 %v1893, %v1961
      %v1994 = vadd.f32 %v1894, %v1962
      %v1995 = vadd.f32 %v1895, %v1963
      %v1996 = vadd.f32 %v1896, %v1964
      %v1997 = vadd.f32 %v1897, %v1965
      %v1998 = vadd.f32 %v1898, %v1966
      %v1999 = vadd.f32 %v1899, %v1967
      %v2000 = vadd.f32 %v1900, %v1968
      %v2001 = vadd.f32 %v1901, %v1969
      %v2002 = vadd.f32 %v1902, %v1970
      %v2003 = vadd.f32 %v1903, %v1971
      %v2004 = vadd.f32 %v1904, %v1972
      %v2005 = vadd.f32 %v1905, %v1973
      %v2006 = vadd.f32 %v1906, %v1974
      %v2007 = vadd.f32 %v1907, %v1975
      %v2008 = vadd.f32 %v1908, %v1976
      %v2009 = vadd.f32 %v1909, %v1977
      %v2010 = vadd.f32 %v1910, %v1978
      %v2011 = vld [vmem:[%s1710 + $0x3] sm:$0xff]
      %v2012 = vld [vmem:[%s1710 + $0xb] sm:$0xff]
      %v2013 = vld [vmem:[%s1710 + $0x1b] sm:$0xff]
      %v2014 = vld [vmem:[%s1710 + $0x23] sm:$0xff]
      %v2015 = vld [vmem:[%s1710 + $0x33] sm:$0xff]
      %v2016 = vld [vmem:[%s1710 + $0x3b] sm:$0xff]
      %v2017 = vld [vmem:[%s1710 + $0x4b] sm:$0xff]
      %v2018 = vld [vmem:[%s1710 + $0x53] sm:$0xff]
      %v2019 = vld [vmem:[%s1710 + $0x63] sm:$0xff]
      %v2020 = vld [vmem:[%s1710 + $0x6b] sm:$0xff]
      %v2021 = vld [vmem:[%s1710 + $0x7b] sm:$0xff]
      %v2022 = vld [vmem:[%s1710 + $0x83] sm:$0xff]
      %v2023 = vld [vmem:[%s1710 + $0x93] sm:$0xff]
      %v2024 = vld [vmem:[%s1710 + $0x9b] sm:$0xff]
      %v2025 = vld [vmem:[%s1710 + $0xab] sm:$0xff]
      %v2026 = vld [vmem:[%s1710 + $0xb3] sm:$0xff]
      %v2027 = vld [vmem:[%s1710 + $0xc3] sm:$0xff]
      %v2028 = vld [vmem:[%s1710 + $0xcb] sm:$0xff]
      %v2029 = vld [vmem:[%s1710 + $0xdb] sm:$0xff]
      %v2030 = vld [vmem:[%s1710 + $0xe3] sm:$0xff]
      %v2031 = vld [vmem:[%s1710 + $0xf3] sm:$0xff]
      %v2032 = vld [vmem:[%s1710 + $0xfb] sm:$0xff]
      %v2033 = vld [vmem:[%s1710 + $0x10b] sm:$0xff]
      %v2034 = vld [vmem:[%s1710 + $0x113] sm:$0xff]
      %v2035 = vld [vmem:[%s1710 + $0x123] sm:$0xff]
      %v2036 = vld [vmem:[%s1710 + $0x12b] sm:$0xff]
      %v2037 = vld [vmem:[%s1710 + $0x13b] sm:$0xff]
      %v2038 = vld [vmem:[%s1710 + $0x143] sm:$0xff]
      %v2039 = vld [vmem:[%s1710 + $0x153] sm:$0xff]
      %v2040 = vld [vmem:[%s1710 + $0x15b] sm:$0xff]
      %v2041 = vld [vmem:[%s1710 + $0x16b] sm:$0xff]
      %v2042 = vld [vmem:[%s1710 + $0x173] sm:$0xff]
      %v2043 = vlaneseq
      %v2044 = vshrl.u32 %v2043, 7
      %v2045 = vsub.s32 1, %v2044
      %v2046 = vrot.slane %v233, %v2045
      %v2047 = vmul.f32 %v2046, %v2011
      %v2048 = vmul.f32 %v2046, %v2012
      %v2049 = vmul.f32 %v2046, %v2013
      %v2050 = vmul.f32 %v2046, %v2014
      %v2051 = vmul.f32 %v2046, %v2015
      %v2052 = vmul.f32 %v2046, %v2016
      %v2053 = vmul.f32 %v2046, %v2017
      %v2054 = vmul.f32 %v2046, %v2018
      %v2055 = vmul.f32 %v2046, %v2019
      %v2056 = vmul.f32 %v2046, %v2020
      %v2057 = vmul.f32 %v2046, %v2021
      %v2058 = vmul.f32 %v2046, %v2022
      %v2059 = vmul.f32 %v2046, %v2023
      %v2060 = vmul.f32 %v2046, %v2024
      %v2061 = vmul.f32 %v2046, %v2025
      %v2062 = vmul.f32 %v2046, %v2026
      %v2063 = vmul.f32 %v2046, %v2027
      %v2064 = vmul.f32 %v2046, %v2028
      %v2065 = vmul.f32 %v2046, %v2029
      %v2066 = vmul.f32 %v2046, %v2030
      %v2067 = vmul.f32 %v2046, %v2031
      %v2068 = vmul.f32 %v2046, %v2032
      %v2069 = vmul.f32 %v2046, %v2033
      %v2070 = vmul.f32 %v2046, %v2034
      %v2071 = vmul.f32 %v2046, %v2035
      %v2072 = vmul.f32 %v2046, %v2036
      %v2073 = vmul.f32 %v2046, %v2037
      %v2074 = vmul.f32 %v2046, %v2038
      %v2075 = vmul.f32 %v2046, %v2039
      %v2076 = vmul.f32 %v2046, %v2040
      %v2077 = vmul.f32 %v2046, %v2041
      %v2078 = vmul.f32 %v2046, %v2042
      %v2079 = vadd.f32 %v1979, %v2047
      %v2080 = vadd.f32 %v1980, %v2048
      %v2081 = vadd.f32 %v1981, %v2049
      %v2082 = vadd.f32 %v1982, %v2050
      %v2083 = vadd.f32 %v1983, %v2051
      %v2084 = vadd.f32 %v1984, %v2052
      %v2085 = vadd.f32 %v1985, %v2053
      %v2086 = vadd.f32 %v1986, %v2054
      %v2087 = vadd.f32 %v1987, %v2055
      %v2088 = vadd.f32 %v1988, %v2056
      %v2089 = vadd.f32 %v1989, %v2057
      %v2090 = vadd.f32 %v1990, %v2058
      %v2091 = vadd.f32 %v1991, %v2059
      %v2092 = vadd.f32 %v1992, %v2060
      %v2093 = vadd.f32 %v1993, %v2061
      %v2094 = vadd.f32 %v1994, %v2062
      %v2095 = vadd.f32 %v1995, %v2063
      %v2096 = vadd.f32 %v1996, %v2064
      %v2097 = vadd.f32 %v1997, %v2065
      %v2098 = vadd.f32 %v1998, %v2066
      %v2099 = vadd.f32 %v1999, %v2067
      %v2100 = vadd.f32 %v2000, %v2068
      %v2101 = vadd.f32 %v2001, %v2069
      %v2102 = vadd.f32 %v2002, %v2070
      %v2103 = vadd.f32 %v2003, %v2071
      %v2104 = vadd.f32 %v2004, %v2072
      %v2105 = vadd.f32 %v2005, %v2073
      %v2106 = vadd.f32 %v2006, %v2074
      %v2107 = vadd.f32 %v2007, %v2075
      %v2108 = vadd.f32 %v2008, %v2076
      %v2109 = vadd.f32 %v2009, %v2077
      %v2110 = vadd.f32 %v2010, %v2078
      %v2111 = vld [vmem:[%s1710 + $0x4] sm:$0xff]
      %v2112 = vld [vmem:[%s1710 + $0xc] sm:$0xff]
      %v2113 = vld [vmem:[%s1710 + $0x1c] sm:$0xff]
      %v2114 = vld [vmem:[%s1710 + $0x24] sm:$0xff]
      %v2115 = vld [vmem:[%s1710 + $0x34] sm:$0xff]
      %v2116 = vld [vmem:[%s1710 + $0x3c] sm:$0xff]
      %v2117 = vld [vmem:[%s1710 + $0x4c] sm:$0xff]
      %v2118 = vld [vmem:[%s1710 + $0x54] sm:$0xff]
      %v2119 = vld [vmem:[%s1710 + $0x64] sm:$0xff]
      %v2120 = vld [vmem:[%s1710 + $0x6c] sm:$0xff]
      %v2121 = vld [vmem:[%s1710 + $0x7c] sm:$0xff]
      %v2122 = vld [vmem:[%s1710 + $0x84] sm:$0xff]
      %v2123 = vld [vmem:[%s1710 + $0x94] sm:$0xff]
      %v2124 = vld [vmem:[%s1710 + $0x9c] sm:$0xff]
      %v2125 = vld [vmem:[%s1710 + $0xac] sm:$0xff]
      %v2126 = vld [vmem:[%s1710 + $0xb4] sm:$0xff]
      %v2127 = vld [vmem:[%s1710 + $0xc4] sm:$0xff]
      %v2128 = vld [vmem:[%s1710 + $0xcc] sm:$0xff]
      %v2129 = vld [vmem:[%s1710 + $0xdc] sm:$0xff]
      %v2130 = vld [vmem:[%s1710 + $0xe4] sm:$0xff]
      %v2131 = vld [vmem:[%s1710 + $0xf4] sm:$0xff]
      %v2132 = vld [vmem:[%s1710 + $0xfc] sm:$0xff]
      %v2133 = vld [vmem:[%s1710 + $0x10c] sm:$0xff]
      %v2134 = vld [vmem:[%s1710 + $0x114] sm:$0xff]
      %v2135 = vld [vmem:[%s1710 + $0x124] sm:$0xff]
      %v2136 = vld [vmem:[%s1710 + $0x12c] sm:$0xff]
      %v2137 = vld [vmem:[%s1710 + $0x13c] sm:$0xff]
      %v2138 = vld [vmem:[%s1710 + $0x144] sm:$0xff]
      %v2139 = vld [vmem:[%s1710 + $0x154] sm:$0xff]
      %v2140 = vld [vmem:[%s1710 + $0x15c] sm:$0xff]
      %v2141 = vld [vmem:[%s1710 + $0x16c] sm:$0xff]
      %v2142 = vld [vmem:[%s1710 + $0x174] sm:$0xff]
      %v2143 = vlaneseq
      %v2144 = vshrl.u32 %v2143, 7
      %v2145 = vsub.s32 2, %v2144
      %v2146 = vrot.slane %v233, %v2145
      %v2147 = vmul.f32 %v2146, %v2111
      %v2148 = vmul.f32 %v2146, %v2112
      %v2149 = vmul.f32 %v2146, %v2113
      %v2150 = vmul.f32 %v2146, %v2114
      %v2151 = vmul.f32 %v2146, %v2115
      %v2152 = vmul.f32 %v2146, %v2116
      %v2153 = vmul.f32 %v2146, %v2117
      %v2154 = vmul.f32 %v2146, %v2118
      %v2155 = vmul.f32 %v2146, %v2119
      %v2156 = vmul.f32 %v2146, %v2120
      %v2157 = vmul.f32 %v2146, %v2121
      %v2158 = vmul.f32 %v2146, %v2122
      %v2159 = vmul.f32 %v2146, %v2123
      %v2160 = vmul.f32 %v2146, %v2124
      %v2161 = vmul.f32 %v2146, %v2125
      %v2162 = vmul.f32 %v2146, %v2126
      %v2163 = vmul.f32 %v2146, %v2127
      %v2164 = vmul.f32 %v2146, %v2128
      %v2165 = vmul.f32 %v2146, %v2129
      %v2166 = vmul.f32 %v2146, %v2130
      %v2167 = vmul.f32 %v2146, %v2131
      %v2168 = vmul.f32 %v2146, %v2132
      %v2169 = vmul.f32 %v2146, %v2133
      %v2170 = vmul.f32 %v2146, %v2134
      %v2171 = vmul.f32 %v2146, %v2135
      %v2172 = vmul.f32 %v2146, %v2136
      %v2173 = vmul.f32 %v2146, %v2137
      %v2174 = vmul.f32 %v2146, %v2138
      %v2175 = vmul.f32 %v2146, %v2139
      %v2176 = vmul.f32 %v2146, %v2140
      %v2177 = vmul.f32 %v2146, %v2141
      %v2178 = vmul.f32 %v2146, %v2142
      %v2179 = vadd.f32 %v2079, %v2147
      %v2180 = vadd.f32 %v2080, %v2148
      %v2181 = vadd.f32 %v2081, %v2149
      %v2182 = vadd.f32 %v2082, %v2150
      %v2183 = vadd.f32 %v2083, %v2151
      %v2184 = vadd.f32 %v2084, %v2152
      %v2185 = vadd.f32 %v2085, %v2153
      %v2186 = vadd.f32 %v2086, %v2154
      %v2187 = vadd.f32 %v2087, %v2155
      %v2188 = vadd.f32 %v2088, %v2156
      %v2189 = vadd.f32 %v2089, %v2157
      %v2190 = vadd.f32 %v2090, %v2158
      %v2191 = vadd.f32 %v2091, %v2159
      %v2192 = vadd.f32 %v2092, %v2160
      %v2193 = vadd.f32 %v2093, %v2161
      %v2194 = vadd.f32 %v2094, %v2162
      %v2195 = vadd.f32 %v2095, %v2163
      %v2196 = vadd.f32 %v2096, %v2164
      %v2197 = vadd.f32 %v2097, %v2165
      %v2198 = vadd.f32 %v2098, %v2166
      %v2199 = vadd.f32 %v2099, %v2167
      %v2200 = vadd.f32 %v2100, %v2168
      %v2201 = vadd.f32 %v2101, %v2169
      %v2202 = vadd.f32 %v2102, %v2170
      %v2203 = vadd.f32 %v2103, %v2171
      %v2204 = vadd.f32 %v2104, %v2172
      %v2205 = vadd.f32 %v2105, %v2173
      %v2206 = vadd.f32 %v2106, %v2174
      %v2207 = vadd.f32 %v2107, %v2175
      %v2208 = vadd.f32 %v2108, %v2176
      %v2209 = vadd.f32 %v2109, %v2177
      %v2210 = vadd.f32 %v2110, %v2178
      %v2211 = vld [vmem:[%s1710 + $0x5] sm:$0xff]
      %v2212 = vld [vmem:[%s1710 + $0xd] sm:$0xff]
      %v2213 = vld [vmem:[%s1710 + $0x1d] sm:$0xff]
      %v2214 = vld [vmem:[%s1710 + $0x25] sm:$0xff]
      %v2215 = vld [vmem:[%s1710 + $0x35] sm:$0xff]
      %v2216 = vld [vmem:[%s1710 + $0x3d] sm:$0xff]
      %v2217 = vld [vmem:[%s1710 + $0x4d] sm:$0xff]
      %v2218 = vld [vmem:[%s1710 + $0x55] sm:$0xff]
      %v2219 = vld [vmem:[%s1710 + $0x65] sm:$0xff]
      %v2220 = vld [vmem:[%s1710 + $0x6d] sm:$0xff]
      %v2221 = vld [vmem:[%s1710 + $0x7d] sm:$0xff]
      %v2222 = vld [vmem:[%s1710 + $0x85] sm:$0xff]
      %v2223 = vld [vmem:[%s1710 + $0x95] sm:$0xff]
      %v2224 = vld [vmem:[%s1710 + $0x9d] sm:$0xff]
      %v2225 = vld [vmem:[%s1710 + $0xad] sm:$0xff]
      %v2226 = vld [vmem:[%s1710 + $0xb5] sm:$0xff]
      %v2227 = vld [vmem:[%s1710 + $0xc5] sm:$0xff]
      %v2228 = vld [vmem:[%s1710 + $0xcd] sm:$0xff]
      %v2229 = vld [vmem:[%s1710 + $0xdd] sm:$0xff]
      %v2230 = vld [vmem:[%s1710 + $0xe5] sm:$0xff]
      %v2231 = vld [vmem:[%s1710 + $0xf5] sm:$0xff]
      %v2232 = vld [vmem:[%s1710 + $0xfd] sm:$0xff]
      %v2233 = vld [vmem:[%s1710 + $0x10d] sm:$0xff]
      %v2234 = vld [vmem:[%s1710 + $0x115] sm:$0xff]
      %v2235 = vld [vmem:[%s1710 + $0x125] sm:$0xff]
      %v2236 = vld [vmem:[%s1710 + $0x12d] sm:$0xff]
      %v2237 = vld [vmem:[%s1710 + $0x13d] sm:$0xff]
      %v2238 = vld [vmem:[%s1710 + $0x145] sm:$0xff]
      %v2239 = vld [vmem:[%s1710 + $0x155] sm:$0xff]
      %v2240 = vld [vmem:[%s1710 + $0x15d] sm:$0xff]
      %v2241 = vld [vmem:[%s1710 + $0x16d] sm:$0xff]
      %v2242 = vld [vmem:[%s1710 + $0x175] sm:$0xff]
      %v2243 = vlaneseq
      %v2244 = vshrl.u32 %v2243, 7
      %v2245 = vsub.s32 3, %v2244
      %v2246 = vrot.slane %v233, %v2245
      %v2247 = vmul.f32 %v2246, %v2211
      %v2248 = vmul.f32 %v2246, %v2212
      %v2249 = vmul.f32 %v2246, %v2213
      %v2250 = vmul.f32 %v2246, %v2214
      %v2251 = vmul.f32 %v2246, %v2215
      %v2252 = vmul.f32 %v2246, %v2216
      %v2253 = vmul.f32 %v2246, %v2217
      %v2254 = vmul.f32 %v2246, %v2218
      %v2255 = vmul.f32 %v2246, %v2219
      %v2256 = vmul.f32 %v2246, %v2220
      %v2257 = vmul.f32 %v2246, %v2221
      %v2258 = vmul.f32 %v2246, %v2222
      %v2259 = vmul.f32 %v2246, %v2223
      %v2260 = vmul.f32 %v2246, %v2224
      %v2261 = vmul.f32 %v2246, %v2225
      %v2262 = vmul.f32 %v2246, %v2226
      %v2263 = vmul.f32 %v2246, %v2227
      %v2264 = vmul.f32 %v2246, %v2228
      %v2265 = vmul.f32 %v2246, %v2229
      %v2266 = vmul.f32 %v2246, %v2230
      %v2267 = vmul.f32 %v2246, %v2231
      %v2268 = vmul.f32 %v2246, %v2232
      %v2269 = vmul.f32 %v2246, %v2233
      %v2270 = vmul.f32 %v2246, %v2234
      %v2271 = vmul.f32 %v2246, %v2235
      %v2272 = vmul.f32 %v2246, %v2236
      %v2273 = vmul.f32 %v2246, %v2237
      %v2274 = vmul.f32 %v2246, %v2238
      %v2275 = vmul.f32 %v2246, %v2239
      %v2276 = vmul.f32 %v2246, %v2240
      %v2277 = vmul.f32 %v2246, %v2241
      %v2278 = vmul.f32 %v2246, %v2242
      %v2279 = vadd.f32 %v2179, %v2247
      %v2280 = vadd.f32 %v2180, %v2248
      %v2281 = vadd.f32 %v2181, %v2249
      %v2282 = vadd.f32 %v2182, %v2250
      %v2283 = vadd.f32 %v2183, %v2251
      %v2284 = vadd.f32 %v2184, %v2252
      %v2285 = vadd.f32 %v2185, %v2253
      %v2286 = vadd.f32 %v2186, %v2254
      %v2287 = vadd.f32 %v2187, %v2255
      %v2288 = vadd.f32 %v2188, %v2256
      %v2289 = vadd.f32 %v2189, %v2257
      %v2290 = vadd.f32 %v2190, %v2258
      %v2291 = vadd.f32 %v2191, %v2259
      %v2292 = vadd.f32 %v2192, %v2260
      %v2293 = vadd.f32 %v2193, %v2261
      %v2294 = vadd.f32 %v2194, %v2262
      %v2295 = vadd.f32 %v2195, %v2263
      %v2296 = vadd.f32 %v2196, %v2264
      %v2297 = vadd.f32 %v2197, %v2265
      %v2298 = vadd.f32 %v2198, %v2266
      %v2299 = vadd.f32 %v2199, %v2267
      %v2300 = vadd.f32 %v2200, %v2268
      %v2301 = vadd.f32 %v2201, %v2269
      %v2302 = vadd.f32 %v2202, %v2270
      %v2303 = vadd.f32 %v2203, %v2271
      %v2304 = vadd.f32 %v2204, %v2272
      %v2305 = vadd.f32 %v2205, %v2273
      %v2306 = vadd.f32 %v2206, %v2274
      %v2307 = vadd.f32 %v2207, %v2275
      %v2308 = vadd.f32 %v2208, %v2276
      %v2309 = vadd.f32 %v2209, %v2277
      %v2310 = vadd.f32 %v2210, %v2278
      %v2311 = vld [vmem:[%s1710 + $0x6] sm:$0xff]
      %v2312 = vld [vmem:[%s1710 + $0xe] sm:$0xff]
      %v2313 = vld [vmem:[%s1710 + $0x1e] sm:$0xff]
      %v2314 = vld [vmem:[%s1710 + $0x26] sm:$0xff]
      %v2315 = vld [vmem:[%s1710 + $0x36] sm:$0xff]
      %v2316 = vld [vmem:[%s1710 + $0x3e] sm:$0xff]
      %v2317 = vld [vmem:[%s1710 + $0x4e] sm:$0xff]
      %v2318 = vld [vmem:[%s1710 + $0x56] sm:$0xff]
      %v2319 = vld [vmem:[%s1710 + $0x66] sm:$0xff]
      %v2320 = vld [vmem:[%s1710 + $0x6e] sm:$0xff]
      %v2321 = vld [vmem:[%s1710 + $0x7e] sm:$0xff]
      %v2322 = vld [vmem:[%s1710 + $0x86] sm:$0xff]
      %v2323 = vld [vmem:[%s1710 + $0x96] sm:$0xff]
      %v2324 = vld [vmem:[%s1710 + $0x9e] sm:$0xff]
      %v2325 = vld [vmem:[%s1710 + $0xae] sm:$0xff]
      %v2326 = vld [vmem:[%s1710 + $0xb6] sm:$0xff]
      %v2327 = vld [vmem:[%s1710 + $0xc6] sm:$0xff]
      %v2328 = vld [vmem:[%s1710 + $0xce] sm:$0xff]
      %v2329 = vld [vmem:[%s1710 + $0xde] sm:$0xff]
      %v2330 = vld [vmem:[%s1710 + $0xe6] sm:$0xff]
      %v2331 = vld [vmem:[%s1710 + $0xf6] sm:$0xff]
      %v2332 = vld [vmem:[%s1710 + $0xfe] sm:$0xff]
      %v2333 = vld [vmem:[%s1710 + $0x10e] sm:$0xff]
      %v2334 = vld [vmem:[%s1710 + $0x116] sm:$0xff]
      %v2335 = vld [vmem:[%s1710 + $0x126] sm:$0xff]
      %v2336 = vld [vmem:[%s1710 + $0x12e] sm:$0xff]
      %v2337 = vld [vmem:[%s1710 + $0x13e] sm:$0xff]
      %v2338 = vld [vmem:[%s1710 + $0x146] sm:$0xff]
      %v2339 = vld [vmem:[%s1710 + $0x156] sm:$0xff]
      %v2340 = vld [vmem:[%s1710 + $0x15e] sm:$0xff]
      %v2341 = vld [vmem:[%s1710 + $0x16e] sm:$0xff]
      %v2342 = vld [vmem:[%s1710 + $0x176] sm:$0xff]
      %v2343 = vlaneseq
      %v2344 = vshrl.u32 %v2343, 7
      %v2345 = vsub.s32 4, %v2344
      %v2346 = vrot.slane %v233, %v2345
      %v2347 = vmul.f32 %v2346, %v2311
      %v2348 = vmul.f32 %v2346, %v2312
      %v2349 = vmul.f32 %v2346, %v2313
      %v2350 = vmul.f32 %v2346, %v2314
      %v2351 = vmul.f32 %v2346, %v2315
      %v2352 = vmul.f32 %v2346, %v2316
      %v2353 = vmul.f32 %v2346, %v2317
      %v2354 = vmul.f32 %v2346, %v2318
      %v2355 = vmul.f32 %v2346, %v2319
      %v2356 = vmul.f32 %v2346, %v2320
      %v2357 = vmul.f32 %v2346, %v2321
      %v2358 = vmul.f32 %v2346, %v2322
      %v2359 = vmul.f32 %v2346, %v2323
      %v2360 = vmul.f32 %v2346, %v2324
      %v2361 = vmul.f32 %v2346, %v2325
      %v2362 = vmul.f32 %v2346, %v2326
      %v2363 = vmul.f32 %v2346, %v2327
      %v2364 = vmul.f32 %v2346, %v2328
      %v2365 = vmul.f32 %v2346, %v2329
      %v2366 = vmul.f32 %v2346, %v2330
      %v2367 = vmul.f32 %v2346, %v2331
      %v2368 = vmul.f32 %v2346, %v2332
      %v2369 = vmul.f32 %v2346, %v2333
      %v2370 = vmul.f32 %v2346, %v2334
      %v2371 = vmul.f32 %v2346, %v2335
      %v2372 = vmul.f32 %v2346, %v2336
      %v2373 = vmul.f32 %v2346, %v2337
      %v2374 = vmul.f32 %v2346, %v2338
      %v2375 = vmul.f32 %v2346, %v2339
      %v2376 = vmul.f32 %v2346, %v2340
      %v2377 = vmul.f32 %v2346, %v2341
      %v2378 = vmul.f32 %v2346, %v2342
      %v2379 = vadd.f32 %v2279, %v2347
      %v2380 = vadd.f32 %v2280, %v2348
      %v2381 = vadd.f32 %v2281, %v2349
      %v2382 = vadd.f32 %v2282, %v2350
      %v2383 = vadd.f32 %v2283, %v2351
      %v2384 = vadd.f32 %v2284, %v2352
      %v2385 = vadd.f32 %v2285, %v2353
      %v2386 = vadd.f32 %v2286, %v2354
      %v2387 = vadd.f32 %v2287, %v2355
      %v2388 = vadd.f32 %v2288, %v2356
      %v2389 = vadd.f32 %v2289, %v2357
      %v2390 = vadd.f32 %v2290, %v2358
      %v2391 = vadd.f32 %v2291, %v2359
      %v2392 = vadd.f32 %v2292, %v2360
      %v2393 = vadd.f32 %v2293, %v2361
      %v2394 = vadd.f32 %v2294, %v2362
      %v2395 = vadd.f32 %v2295, %v2363
      %v2396 = vadd.f32 %v2296, %v2364
      %v2397 = vadd.f32 %v2297, %v2365
      %v2398 = vadd.f32 %v2298, %v2366
      %v2399 = vadd.f32 %v2299, %v2367
      %v2400 = vadd.f32 %v2300, %v2368
      %v2401 = vadd.f32 %v2301, %v2369
      %v2402 = vadd.f32 %v2302, %v2370
      %v2403 = vadd.f32 %v2303, %v2371
      %v2404 = vadd.f32 %v2304, %v2372
      %v2405 = vadd.f32 %v2305, %v2373
      %v2406 = vadd.f32 %v2306, %v2374
      %v2407 = vadd.f32 %v2307, %v2375
      %v2408 = vadd.f32 %v2308, %v2376
      %v2409 = vadd.f32 %v2309, %v2377
      %v2410 = vadd.f32 %v2310, %v2378
      %v2411 = vld [vmem:[%s308] sm:$0xff]
      %v2412 = vld [vmem:[%s308 + $0x8] sm:$0xff]
      %v2413 = vld [vmem:[%s308 + $0x18] sm:$0xff]
      %v2414 = vld [vmem:[%s308 + $0x20] sm:$0xff]
      %v2415 = vld [vmem:[%s308 + $0x30] sm:$0xff]
      %v2416 = vld [vmem:[%s308 + $0x38] sm:$0xff]
      %v2417 = vld [vmem:[%s308 + $0x48] sm:$0xff]
      %v2418 = vld [vmem:[%s308 + $0x50] sm:$0xff]
      %v2419 = vld [vmem:[%s308 + $0x60] sm:$0xff]
      %v2420 = vld [vmem:[%s308 + $0x68] sm:$0xff]
      %v2421 = vld [vmem:[%s308 + $0x78] sm:$0xff]
      %v2422 = vld [vmem:[%s308 + $0x80] sm:$0xff]
      %v2423 = vld [vmem:[%s308 + $0x90] sm:$0xff]
      %v2424 = vld [vmem:[%s308 + $0x98] sm:$0xff]
      %v2425 = vld [vmem:[%s308 + $0xa8] sm:$0xff]
      %v2426 = vld [vmem:[%s308 + $0xb0] sm:$0xff]
      %v2427 = vld [vmem:[%s308 + $0xc0] sm:$0xff]
      %v2428 = vld [vmem:[%s308 + $0xc8] sm:$0xff]
      %v2429 = vld [vmem:[%s308 + $0xd8] sm:$0xff]
      %v2430 = vld [vmem:[%s308 + $0xe0] sm:$0xff]
      %v2431 = vld [vmem:[%s308 + $0xf0] sm:$0xff]
      %v2432 = vld [vmem:[%s308 + $0xf8] sm:$0xff]
      %v2433 = vld [vmem:[%s308 + $0x108] sm:$0xff]
      %v2434 = vld [vmem:[%s308 + $0x110] sm:$0xff]
      %v2435 = vld [vmem:[%s308 + $0x120] sm:$0xff]
      %v2436 = vld [vmem:[%s308 + $0x128] sm:$0xff]
      %v2437 = vld [vmem:[%s308 + $0x138] sm:$0xff]
      %v2438 = vld [vmem:[%s308 + $0x140] sm:$0xff]
      %v2439 = vld [vmem:[%s308 + $0x150] sm:$0xff]
      %v2440 = vld [vmem:[%s308 + $0x158] sm:$0xff]
      %v2441 = vld [vmem:[%s308 + $0x168] sm:$0xff]
      %v2442 = vld [vmem:[%s308 + $0x170] sm:$0xff]
      %v2443 = vlaneseq
      %v2444 = vshrl.u32 %v2443, 7
      %v2445 = vsub.s32 5, %v2444
      %v2446 = vrot.slane %v233, %v2445
      %v2447 = vmul.f32 %v2446, %v2411
      %v2448 = vmul.f32 %v2446, %v2412
      %v2449 = vmul.f32 %v2446, %v2413
      %v2450 = vmul.f32 %v2446, %v2414
      %v2451 = vmul.f32 %v2446, %v2415
      %v2452 = vmul.f32 %v2446, %v2416
      %v2453 = vmul.f32 %v2446, %v2417
      %v2454 = vmul.f32 %v2446, %v2418
      %v2455 = vmul.f32 %v2446, %v2419
      %v2456 = vmul.f32 %v2446, %v2420
      %v2457 = vmul.f32 %v2446, %v2421
      %v2458 = vmul.f32 %v2446, %v2422
      %v2459 = vmul.f32 %v2446, %v2423
      %v2460 = vmul.f32 %v2446, %v2424
      %v2461 = vmul.f32 %v2446, %v2425
      %v2462 = vmul.f32 %v2446, %v2426
      %v2463 = vmul.f32 %v2446, %v2427
      %v2464 = vmul.f32 %v2446, %v2428
      %v2465 = vmul.f32 %v2446, %v2429
      %v2466 = vmul.f32 %v2446, %v2430
      %v2467 = vmul.f32 %v2446, %v2431
      %v2468 = vmul.f32 %v2446, %v2432
      %v2469 = vmul.f32 %v2446, %v2433
      %v2470 = vmul.f32 %v2446, %v2434
      %v2471 = vmul.f32 %v2446, %v2435
      %v2472 = vmul.f32 %v2446, %v2436
      %v2473 = vmul.f32 %v2446, %v2437
      %v2474 = vmul.f32 %v2446, %v2438
      %v2475 = vmul.f32 %v2446, %v2439
      %v2476 = vmul.f32 %v2446, %v2440
      %v2477 = vmul.f32 %v2446, %v2441
      %v2478 = vmul.f32 %v2446, %v2442
      %v2479 = vadd.f32 %v2379, %v2447
      %v2480 = vadd.f32 %v2380, %v2448
      %v2481 = vadd.f32 %v2381, %v2449
      %v2482 = vadd.f32 %v2382, %v2450
      %v2483 = vadd.f32 %v2383, %v2451
      %v2484 = vadd.f32 %v2384, %v2452
      %v2485 = vadd.f32 %v2385, %v2453
      %v2486 = vadd.f32 %v2386, %v2454
      %v2487 = vadd.f32 %v2387, %v2455
      %v2488 = vadd.f32 %v2388, %v2456
      %v2489 = vadd.f32 %v2389, %v2457
      %v2490 = vadd.f32 %v2390, %v2458
      %v2491 = vadd.f32 %v2391, %v2459
      %v2492 = vadd.f32 %v2392, %v2460
      %v2493 = vadd.f32 %v2393, %v2461
      %v2494 = vadd.f32 %v2394, %v2462
      %v2495 = vadd.f32 %v2395, %v2463
      %v2496 = vadd.f32 %v2396, %v2464
      %v2497 = vadd.f32 %v2397, %v2465
      %v2498 = vadd.f32 %v2398, %v2466
      %v2499 = vadd.f32 %v2399, %v2467
      %v2500 = vadd.f32 %v2400, %v2468
      %v2501 = vadd.f32 %v2401, %v2469
      %v2502 = vadd.f32 %v2402, %v2470
      %v2503 = vadd.f32 %v2403, %v2471
      %v2504 = vadd.f32 %v2404, %v2472
      %v2505 = vadd.f32 %v2405, %v2473
      %v2506 = vadd.f32 %v2406, %v2474
      %v2507 = vadd.f32 %v2407, %v2475
      %v2508 = vadd.f32 %v2408, %v2476
      %v2509 = vadd.f32 %v2409, %v2477
      %v2510 = vadd.f32 %v2410, %v2478
      %v2511 = vld [vmem:[%s308 + $0x1] sm:$0xff]
      %v2512 = vld [vmem:[%s308 + $0x9] sm:$0xff]
      %v2513 = vld [vmem:[%s308 + $0x19] sm:$0xff]
      %v2514 = vld [vmem:[%s308 + $0x21] sm:$0xff]
      %v2515 = vld [vmem:[%s308 + $0x31] sm:$0xff]
      %v2516 = vld [vmem:[%s308 + $0x39] sm:$0xff]
      %v2517 = vld [vmem:[%s308 + $0x49] sm:$0xff]
      %v2518 = vld [vmem:[%s308 + $0x51] sm:$0xff]
      %v2519 = vld [vmem:[%s308 + $0x61] sm:$0xff]
      %v2520 = vld [vmem:[%s308 + $0x69] sm:$0xff]
      %v2521 = vld [vmem:[%s308 + $0x79] sm:$0xff]
      %v2522 = vld [vmem:[%s308 + $0x81] sm:$0xff]
      %v2523 = vld [vmem:[%s308 + $0x91] sm:$0xff]
      %v2524 = vld [vmem:[%s308 + $0x99] sm:$0xff]
      %v2525 = vld [vmem:[%s308 + $0xa9] sm:$0xff]
      %v2526 = vld [vmem:[%s308 + $0xb1] sm:$0xff]
      %v2527 = vld [vmem:[%s308 + $0xc1] sm:$0xff]
      %v2528 = vld [vmem:[%s308 + $0xc9] sm:$0xff]
      %v2529 = vld [vmem:[%s308 + $0xd9] sm:$0xff]
      %v2530 = vld [vmem:[%s308 + $0xe1] sm:$0xff]
      %v2531 = vld [vmem:[%s308 + $0xf1] sm:$0xff]
      %v2532 = vld [vmem:[%s308 + $0xf9] sm:$0xff]
      %v2533 = vld [vmem:[%s308 + $0x109] sm:$0xff]
      %v2534 = vld [vmem:[%s308 + $0x111] sm:$0xff]
      %v2535 = vld [vmem:[%s308 + $0x121] sm:$0xff]
      %v2536 = vld [vmem:[%s308 + $0x129] sm:$0xff]
      %v2537 = vld [vmem:[%s308 + $0x139] sm:$0xff]
      %v2538 = vld [vmem:[%s308 + $0x141] sm:$0xff]
      %v2539 = vld [vmem:[%s308 + $0x151] sm:$0xff]
      %v2540 = vld [vmem:[%s308 + $0x159] sm:$0xff]
      %v2541 = vld [vmem:[%s308 + $0x169] sm:$0xff]
      %v2542 = vld [vmem:[%s308 + $0x171] sm:$0xff]
      %v2543 = vlaneseq
      %v2544 = vshrl.u32 %v2543, 7
      %v2545 = vsub.s32 6, %v2544
      %v2546 = vrot.slane %v233, %v2545
      %v2547 = vmul.f32 %v2546, %v2511
      %v2548 = vmul.f32 %v2546, %v2512
      %v2549 = vmul.f32 %v2546, %v2513
      %v2550 = vmul.f32 %v2546, %v2514
      %v2551 = vmul.f32 %v2546, %v2515
      %v2552 = vmul.f32 %v2546, %v2516
      %v2553 = vmul.f32 %v2546, %v2517
      %v2554 = vmul.f32 %v2546, %v2518
      %v2555 = vmul.f32 %v2546, %v2519
      %v2556 = vmul.f32 %v2546, %v2520
      %v2557 = vmul.f32 %v2546, %v2521
      %v2558 = vmul.f32 %v2546, %v2522
      %v2559 = vmul.f32 %v2546, %v2523
      %v2560 = vmul.f32 %v2546, %v2524
      %v2561 = vmul.f32 %v2546, %v2525
      %v2562 = vmul.f32 %v2546, %v2526
      %v2563 = vmul.f32 %v2546, %v2527
      %v2564 = vmul.f32 %v2546, %v2528
      %v2565 = vmul.f32 %v2546, %v2529
      %v2566 = vmul.f32 %v2546, %v2530
      %v2567 = vmul.f32 %v2546, %v2531
      %v2568 = vmul.f32 %v2546, %v2532
      %v2569 = vmul.f32 %v2546, %v2533
      %v2570 = vmul.f32 %v2546, %v2534
      %v2571 = vmul.f32 %v2546, %v2535
      %v2572 = vmul.f32 %v2546, %v2536
      %v2573 = vmul.f32 %v2546, %v2537
      %v2574 = vmul.f32 %v2546, %v2538
      %v2575 = vmul.f32 %v2546, %v2539
      %v2576 = vmul.f32 %v2546, %v2540
      %v2577 = vmul.f32 %v2546, %v2541
      %v2578 = vmul.f32 %v2546, %v2542
      %v2579 = vadd.f32 %v2479, %v2547
      %v2580 = vadd.f32 %v2480, %v2548
      %v2581 = vadd.f32 %v2481, %v2549
      %v2582 = vadd.f32 %v2482, %v2550
      %v2583 = vadd.f32 %v2483, %v2551
      %v2584 = vadd.f32 %v2484, %v2552
      %v2585 = vadd.f32 %v2485, %v2553
      %v2586 = vadd.f32 %v2486, %v2554
      %v2587 = vadd.f32 %v2487, %v2555
      %v2588 = vadd.f32 %v2488, %v2556
      %v2589 = vadd.f32 %v2489, %v2557
      %v2590 = vadd.f32 %v2490, %v2558
      %v2591 = vadd.f32 %v2491, %v2559
      %v2592 = vadd.f32 %v2492, %v2560
      %v2593 = vadd.f32 %v2493, %v2561
      %v2594 = vadd.f32 %v2494, %v2562
      %v2595 = vadd.f32 %v2495, %v2563
      %v2596 = vadd.f32 %v2496, %v2564
      %v2597 = vadd.f32 %v2497, %v2565
      %v2598 = vadd.f32 %v2498, %v2566
      %v2599 = vadd.f32 %v2499, %v2567
      %v2600 = vadd.f32 %v2500, %v2568
      %v2601 = vadd.f32 %v2501, %v2569
      %v2602 = vadd.f32 %v2502, %v2570
      %v2603 = vadd.f32 %v2503, %v2571
      %v2604 = vadd.f32 %v2504, %v2572
      %v2605 = vadd.f32 %v2505, %v2573
      %v2606 = vadd.f32 %v2506, %v2574
      %v2607 = vadd.f32 %v2507, %v2575
      %v2608 = vadd.f32 %v2508, %v2576
      %v2609 = vadd.f32 %v2509, %v2577
      %v2610 = vadd.f32 %v2510, %v2578
      %v2611 = vld [vmem:[%s308 + $0x2] sm:$0xff]
      %v2612 = vld [vmem:[%s308 + $0xa] sm:$0xff]
      %v2613 = vld [vmem:[%s308 + $0x1a] sm:$0xff]
      %v2614 = vld [vmem:[%s308 + $0x22] sm:$0xff]
      %v2615 = vld [vmem:[%s308 + $0x32] sm:$0xff]
      %v2616 = vld [vmem:[%s308 + $0x3a] sm:$0xff]
      %v2617 = vld [vmem:[%s308 + $0x4a] sm:$0xff]
      %v2618 = vld [vmem:[%s308 + $0x52] sm:$0xff]
      %v2619 = vld [vmem:[%s308 + $0x62] sm:$0xff]
      %v2620 = vld [vmem:[%s308 + $0x6a] sm:$0xff]
      %v2621 = vld [vmem:[%s308 + $0x7a] sm:$0xff]
      %v2622 = vld [vmem:[%s308 + $0x82] sm:$0xff]
      %v2623 = vld [vmem:[%s308 + $0x92] sm:$0xff]
      %v2624 = vld [vmem:[%s308 + $0x9a] sm:$0xff]
      %v2625 = vld [vmem:[%s308 + $0xaa] sm:$0xff]
      %v2626 = vld [vmem:[%s308 + $0xb2] sm:$0xff]
      %v2627 = vld [vmem:[%s308 + $0xc2] sm:$0xff]
      %v2628 = vld [vmem:[%s308 + $0xca] sm:$0xff]
      %v2629 = vld [vmem:[%s308 + $0xda] sm:$0xff]
      %v2630 = vld [vmem:[%s308 + $0xe2] sm:$0xff]
      %v2631 = vld [vmem:[%s308 + $0xf2] sm:$0xff]
      %v2632 = vld [vmem:[%s308 + $0xfa] sm:$0xff]
      %v2633 = vld [vmem:[%s308 + $0x10a] sm:$0xff]
      %v2634 = vld [vmem:[%s308 + $0x112] sm:$0xff]
      %v2635 = vld [vmem:[%s308 + $0x122] sm:$0xff]
      %v2636 = vld [vmem:[%s308 + $0x12a] sm:$0xff]
      %v2637 = vld [vmem:[%s308 + $0x13a] sm:$0xff]
      %v2638 = vld [vmem:[%s308 + $0x142] sm:$0xff]
      %v2639 = vld [vmem:[%s308 + $0x152] sm:$0xff]
      %v2640 = vld [vmem:[%s308 + $0x15a] sm:$0xff]
      %v2641 = vld [vmem:[%s308 + $0x16a] sm:$0xff]
      %v2642 = vld [vmem:[%s308 + $0x172] sm:$0xff]
      %v2643 = vlaneseq
      %v2644 = vshrl.u32 %v2643, 7
      %v2645 = vsub.s32 7, %v2644
      %v2646 = vrot.slane %v233, %v2645
      %v2647 = vmul.f32 %v2646, %v2611
      %v2648 = vmul.f32 %v2646, %v2612
      %v2649 = vmul.f32 %v2646, %v2613
      %v2650 = vmul.f32 %v2646, %v2614
      %v2651 = vmul.f32 %v2646, %v2615
      %v2652 = vmul.f32 %v2646, %v2616
      %v2653 = vmul.f32 %v2646, %v2617
      %v2654 = vmul.f32 %v2646, %v2618
      %v2655 = vmul.f32 %v2646, %v2619
      %v2656 = vmul.f32 %v2646, %v2620
      %v2657 = vmul.f32 %v2646, %v2621
      %v2658 = vmul.f32 %v2646, %v2622
      %v2659 = vmul.f32 %v2646, %v2623
      %v2660 = vmul.f32 %v2646, %v2624
      %v2661 = vmul.f32 %v2646, %v2625
      %v2662 = vmul.f32 %v2646, %v2626
      %v2663 = vmul.f32 %v2646, %v2627
      %v2664 = vmul.f32 %v2646, %v2628
      %v2665 = vmul.f32 %v2646, %v2629
      %v2666 = vmul.f32 %v2646, %v2630
      %v2667 = vmul.f32 %v2646, %v2631
      %v2668 = vmul.f32 %v2646, %v2632
      %v2669 = vmul.f32 %v2646, %v2633
      %v2670 = vmul.f32 %v2646, %v2634
      %v2671 = vmul.f32 %v2646, %v2635
      %v2672 = vmul.f32 %v2646, %v2636
      %v2673 = vmul.f32 %v2646, %v2637
      %v2674 = vmul.f32 %v2646, %v2638
      %v2675 = vmul.f32 %v2646, %v2639
      %v2676 = vmul.f32 %v2646, %v2640
      %v2677 = vmul.f32 %v2646, %v2641
      %v2678 = vmul.f32 %v2646, %v2642
      %v2679 = vadd.f32 %v2579, %v2647
      %v2680 = vadd.f32 %v2580, %v2648
      %v2681 = vadd.f32 %v2581, %v2649
      %v2682 = vadd.f32 %v2582, %v2650
      %v2683 = vadd.f32 %v2583, %v2651
      %v2684 = vadd.f32 %v2584, %v2652
      %v2685 = vadd.f32 %v2585, %v2653
      %v2686 = vadd.f32 %v2586, %v2654
      %v2687 = vadd.f32 %v2587, %v2655
      %v2688 = vadd.f32 %v2588, %v2656
      %v2689 = vadd.f32 %v2589, %v2657
      %v2690 = vadd.f32 %v2590, %v2658
      %v2691 = vadd.f32 %v2591, %v2659
      %v2692 = vadd.f32 %v2592, %v2660
      %v2693 = vadd.f32 %v2593, %v2661
      %v2694 = vadd.f32 %v2594, %v2662
      %v2695 = vadd.f32 %v2595, %v2663
      %v2696 = vadd.f32 %v2596, %v2664
      %v2697 = vadd.f32 %v2597, %v2665
      %v2698 = vadd.f32 %v2598, %v2666
      %v2699 = vadd.f32 %v2599, %v2667
      %v2700 = vadd.f32 %v2600, %v2668
      %v2701 = vadd.f32 %v2601, %v2669
      %v2702 = vadd.f32 %v2602, %v2670
      %v2703 = vadd.f32 %v2603, %v2671
      %v2704 = vadd.f32 %v2604, %v2672
      %v2705 = vadd.f32 %v2605, %v2673
      %v2706 = vadd.f32 %v2606, %v2674
      %v2707 = vadd.f32 %v2607, %v2675
      %v2708 = vadd.f32 %v2608, %v2676
      %v2709 = vadd.f32 %v2609, %v2677
      %v2710 = vadd.f32 %v2610, %v2678
      %v2711 = vld [vmem:[%s308 + $0x3] sm:$0xff]
      %v2712 = vld [vmem:[%s308 + $0xb] sm:$0xff]
      %v2713 = vld [vmem:[%s308 + $0x1b] sm:$0xff]
      %v2714 = vld [vmem:[%s308 + $0x23] sm:$0xff]
      %v2715 = vld [vmem:[%s308 + $0x33] sm:$0xff]
      %v2716 = vld [vmem:[%s308 + $0x3b] sm:$0xff]
      %v2717 = vld [vmem:[%s308 + $0x4b] sm:$0xff]
      %v2718 = vld [vmem:[%s308 + $0x53] sm:$0xff]
      %v2719 = vld [vmem:[%s308 + $0x63] sm:$0xff]
      %v2720 = vld [vmem:[%s308 + $0x6b] sm:$0xff]
      %v2721 = vld [vmem:[%s308 + $0x7b] sm:$0xff]
      %v2722 = vld [vmem:[%s308 + $0x83] sm:$0xff]
      %v2723 = vld [vmem:[%s308 + $0x93] sm:$0xff]
      %v2724 = vld [vmem:[%s308 + $0x9b] sm:$0xff]
      %v2725 = vld [vmem:[%s308 + $0xab] sm:$0xff]
      %v2726 = vld [vmem:[%s308 + $0xb3] sm:$0xff]
      %v2727 = vld [vmem:[%s308 + $0xc3] sm:$0xff]
      %v2728 = vld [vmem:[%s308 + $0xcb] sm:$0xff]
      %v2729 = vld [vmem:[%s308 + $0xdb] sm:$0xff]
      %v2730 = vld [vmem:[%s308 + $0xe3] sm:$0xff]
      %v2731 = vld [vmem:[%s308 + $0xf3] sm:$0xff]
      %v2732 = vld [vmem:[%s308 + $0xfb] sm:$0xff]
      %v2733 = vld [vmem:[%s308 + $0x10b] sm:$0xff]
      %v2734 = vld [vmem:[%s308 + $0x113] sm:$0xff]
      %v2735 = vld [vmem:[%s308 + $0x123] sm:$0xff]
      %v2736 = vld [vmem:[%s308 + $0x12b] sm:$0xff]
      %v2737 = vld [vmem:[%s308 + $0x13b] sm:$0xff]
      %v2738 = vld [vmem:[%s308 + $0x143] sm:$0xff]
      %v2739 = vld [vmem:[%s308 + $0x153] sm:$0xff]
      %v2740 = vld [vmem:[%s308 + $0x15b] sm:$0xff]
      %v2741 = vld [vmem:[%s308 + $0x16b] sm:$0xff]
      %v2742 = vld [vmem:[%s308 + $0x173] sm:$0xff]
      %v2743 = vlaneseq
      %v2744 = vshrl.u32 %v2743, 7
      %v2745 = vsub.s32 0, %v2744
      %v2746 = vrot.slane %v234, %v2745
      %v2747 = vmul.f32 %v2746, %v2711
      %v2748 = vmul.f32 %v2746, %v2712
      %v2749 = vmul.f32 %v2746, %v2713
      %v2750 = vmul.f32 %v2746, %v2714
      %v2751 = vmul.f32 %v2746, %v2715
      %v2752 = vmul.f32 %v2746, %v2716
      %v2753 = vmul.f32 %v2746, %v2717
      %v2754 = vmul.f32 %v2746, %v2718
      %v2755 = vmul.f32 %v2746, %v2719
      %v2756 = vmul.f32 %v2746, %v2720
      %v2757 = vmul.f32 %v2746, %v2721
      %v2758 = vmul.f32 %v2746, %v2722
      %v2759 = vmul.f32 %v2746, %v2723
      %v2760 = vmul.f32 %v2746, %v2724
      %v2761 = vmul.f32 %v2746, %v2725
      %v2762 = vmul.f32 %v2746, %v2726
      %v2763 = vmul.f32 %v2746, %v2727
      %v2764 = vmul.f32 %v2746, %v2728
      %v2765 = vmul.f32 %v2746, %v2729
      %v2766 = vmul.f32 %v2746, %v2730
      %v2767 = vmul.f32 %v2746, %v2731
      %v2768 = vmul.f32 %v2746, %v2732
      %v2769 = vmul.f32 %v2746, %v2733
      %v2770 = vmul.f32 %v2746, %v2734
      %v2771 = vmul.f32 %v2746, %v2735
      %v2772 = vmul.f32 %v2746, %v2736
      %v2773 = vmul.f32 %v2746, %v2737
      %v2774 = vmul.f32 %v2746, %v2738
      %v2775 = vmul.f32 %v2746, %v2739
      %v2776 = vmul.f32 %v2746, %v2740
      %v2777 = vmul.f32 %v2746, %v2741
      %v2778 = vmul.f32 %v2746, %v2742
      %v2779 = vadd.f32 %v2679, %v2747
      %v2780 = vadd.f32 %v2680, %v2748
      %v2781 = vadd.f32 %v2681, %v2749
      %v2782 = vadd.f32 %v2682, %v2750
      %v2783 = vadd.f32 %v2683, %v2751
      %v2784 = vadd.f32 %v2684, %v2752
      %v2785 = vadd.f32 %v2685, %v2753
      %v2786 = vadd.f32 %v2686, %v2754
      %v2787 = vadd.f32 %v2687, %v2755
      %v2788 = vadd.f32 %v2688, %v2756
      %v2789 = vadd.f32 %v2689, %v2757
      %v2790 = vadd.f32 %v2690, %v2758
      %v2791 = vadd.f32 %v2691, %v2759
      %v2792 = vadd.f32 %v2692, %v2760
      %v2793 = vadd.f32 %v2693, %v2761
      %v2794 = vadd.f32 %v2694, %v2762
      %v2795 = vadd.f32 %v2695, %v2763
      %v2796 = vadd.f32 %v2696, %v2764
      %v2797 = vadd.f32 %v2697, %v2765
      %v2798 = vadd.f32 %v2698, %v2766
      %v2799 = vadd.f32 %v2699, %v2767
      %v2800 = vadd.f32 %v2700, %v2768
      %v2801 = vadd.f32 %v2701, %v2769
      %v2802 = vadd.f32 %v2702, %v2770
      %v2803 = vadd.f32 %v2703, %v2771
      %v2804 = vadd.f32 %v2704, %v2772
      %v2805 = vadd.f32 %v2705, %v2773
      %v2806 = vadd.f32 %v2706, %v2774
      %v2807 = vadd.f32 %v2707, %v2775
      %v2808 = vadd.f32 %v2708, %v2776
      %v2809 = vadd.f32 %v2709, %v2777
      %v2810 = vadd.f32 %v2710, %v2778
      %v2811 = vld [vmem:[%s308 + $0x4] sm:$0xff]
      %v2812 = vld [vmem:[%s308 + $0xc] sm:$0xff]
      %v2813 = vld [vmem:[%s308 + $0x1c] sm:$0xff]
      %v2814 = vld [vmem:[%s308 + $0x24] sm:$0xff]
      %v2815 = vld [vmem:[%s308 + $0x34] sm:$0xff]
      %v2816 = vld [vmem:[%s308 + $0x3c] sm:$0xff]
      %v2817 = vld [vmem:[%s308 + $0x4c] sm:$0xff]
      %v2818 = vld [vmem:[%s308 + $0x54] sm:$0xff]
      %v2819 = vld [vmem:[%s308 + $0x64] sm:$0xff]
      %v2820 = vld [vmem:[%s308 + $0x6c] sm:$0xff]
      %v2821 = vld [vmem:[%s308 + $0x7c] sm:$0xff]
      %v2822 = vld [vmem:[%s308 + $0x84] sm:$0xff]
      %v2823 = vld [vmem:[%s308 + $0x94] sm:$0xff]
      %v2824 = vld [vmem:[%s308 + $0x9c] sm:$0xff]
      %v2825 = vld [vmem:[%s308 + $0xac] sm:$0xff]
      %v2826 = vld [vmem:[%s308 + $0xb4] sm:$0xff]
      %v2827 = vld [vmem:[%s308 + $0xc4] sm:$0xff]
      %v2828 = vld [vmem:[%s308 + $0xcc] sm:$0xff]
      %v2829 = vld [vmem:[%s308 + $0xdc] sm:$0xff]
      %v2830 = vld [vmem:[%s308 + $0xe4] sm:$0xff]
      %v2831 = vld [vmem:[%s308 + $0xf4] sm:$0xff]
      %v2832 = vld [vmem:[%s308 + $0xfc] sm:$0xff]
      %v2833 = vld [vmem:[%s308 + $0x10c] sm:$0xff]
      %v2834 = vld [vmem:[%s308 + $0x114] sm:$0xff]
      %v2835 = vld [vmem:[%s308 + $0x124] sm:$0xff]
      %v2836 = vld [vmem:[%s308 + $0x12c] sm:$0xff]
      %v2837 = vld [vmem:[%s308 + $0x13c] sm:$0xff]
      %v2838 = vld [vmem:[%s308 + $0x144] sm:$0xff]
      %v2839 = vld [vmem:[%s308 + $0x154] sm:$0xff]
      %v2840 = vld [vmem:[%s308 + $0x15c] sm:$0xff]
      %v2841 = vld [vmem:[%s308 + $0x16c] sm:$0xff]
      %v2842 = vld [vmem:[%s308 + $0x174] sm:$0xff]
      %v2843 = vlaneseq
      %v2844 = vshrl.u32 %v2843, 7
      %v2845 = vsub.s32 1, %v2844
      %v2846 = vrot.slane %v234, %v2845
      %v2847 = vmul.f32 %v2846, %v2811
      %v2848 = vmul.f32 %v2846, %v2812
      %v2849 = vmul.f32 %v2846, %v2813
      %v2850 = vmul.f32 %v2846, %v2814
      %v2851 = vmul.f32 %v2846, %v2815
      %v2852 = vmul.f32 %v2846, %v2816
      %v2853 = vmul.f32 %v2846, %v2817
      %v2854 = vmul.f32 %v2846, %v2818
      %v2855 = vmul.f32 %v2846, %v2819
      %v2856 = vmul.f32 %v2846, %v2820
      %v2857 = vmul.f32 %v2846, %v2821
      %v2858 = vmul.f32 %v2846, %v2822
      %v2859 = vmul.f32 %v2846, %v2823
      %v2860 = vmul.f32 %v2846, %v2824
      %v2861 = vmul.f32 %v2846, %v2825
      %v2862 = vmul.f32 %v2846, %v2826
      %v2863 = vmul.f32 %v2846, %v2827
      %v2864 = vmul.f32 %v2846, %v2828
      %v2865 = vmul.f32 %v2846, %v2829
      %v2866 = vmul.f32 %v2846, %v2830
      %v2867 = vmul.f32 %v2846, %v2831
      %v2868 = vmul.f32 %v2846, %v2832
      %v2869 = vmul.f32 %v2846, %v2833
      %v2870 = vmul.f32 %v2846, %v2834
      %v2871 = vmul.f32 %v2846, %v2835
      %v2872 = vmul.f32 %v2846, %v2836
      %v2873 = vmul.f32 %v2846, %v2837
      %v2874 = vmul.f32 %v2846, %v2838
      %v2875 = vmul.f32 %v2846, %v2839
      %v2876 = vmul.f32 %v2846, %v2840
      %v2877 = vmul.f32 %v2846, %v2841
      %v2878 = vmul.f32 %v2846, %v2842
      %v2879 = vadd.f32 %v2779, %v2847
      %v2880 = vadd.f32 %v2780, %v2848
      %v2881 = vadd.f32 %v2781, %v2849
      %v2882 = vadd.f32 %v2782, %v2850
      %v2883 = vadd.f32 %v2783, %v2851
      %v2884 = vadd.f32 %v2784, %v2852
      %v2885 = vadd.f32 %v2785, %v2853
      %v2886 = vadd.f32 %v2786, %v2854
      %v2887 = vadd.f32 %v2787, %v2855
      %v2888 = vadd.f32 %v2788, %v2856
      %v2889 = vadd.f32 %v2789, %v2857
      %v2890 = vadd.f32 %v2790, %v2858
      %v2891 = vadd.f32 %v2791, %v2859
      %v2892 = vadd.f32 %v2792, %v2860
      %v2893 = vadd.f32 %v2793, %v2861
      %v2894 = vadd.f32 %v2794, %v2862
      %v2895 = vadd.f32 %v2795, %v2863
      %v2896 = vadd.f32 %v2796, %v2864
      %v2897 = vadd.f32 %v2797, %v2865
      %v2898 = vadd.f32 %v2798, %v2866
      %v2899 = vadd.f32 %v2799, %v2867
      %v2900 = vadd.f32 %v2800, %v2868
      %v2901 = vadd.f32 %v2801, %v2869
      %v2902 = vadd.f32 %v2802, %v2870
      %v2903 = vadd.f32 %v2803, %v2871
      %v2904 = vadd.f32 %v2804, %v2872
      %v2905 = vadd.f32 %v2805, %v2873
      %v2906 = vadd.f32 %v2806, %v2874
      %v2907 = vadd.f32 %v2807, %v2875
      %v2908 = vadd.f32 %v2808, %v2876
      %v2909 = vadd.f32 %v2809, %v2877
      %v2910 = vadd.f32 %v2810, %v2878
      %v2911 = vld [vmem:[%s308 + $0x5] sm:$0xff]
      %v2912 = vld [vmem:[%s308 + $0xd] sm:$0xff]
      %v2913 = vld [vmem:[%s308 + $0x1d] sm:$0xff]
      %v2914 = vld [vmem:[%s308 + $0x25] sm:$0xff]
      %v2915 = vld [vmem:[%s308 + $0x35] sm:$0xff]
      %v2916 = vld [vmem:[%s308 + $0x3d] sm:$0xff]
      %v2917 = vld [vmem:[%s308 + $0x4d] sm:$0xff]
      %v2918 = vld [vmem:[%s308 + $0x55] sm:$0xff]
      %v2919 = vld [vmem:[%s308 + $0x65] sm:$0xff]
      %v2920 = vld [vmem:[%s308 + $0x6d] sm:$0xff]
      %v2921 = vld [vmem:[%s308 + $0x7d] sm:$0xff]
      %v2922 = vld [vmem:[%s308 + $0x85] sm:$0xff]
      %v2923 = vld [vmem:[%s308 + $0x95] sm:$0xff]
      %v2924 = vld [vmem:[%s308 + $0x9d] sm:$0xff]
      %v2925 = vld [vmem:[%s308 + $0xad] sm:$0xff]
      %v2926 = vld [vmem:[%s308 + $0xb5] sm:$0xff]
      %v2927 = vld [vmem:[%s308 + $0xc5] sm:$0xff]
      %v2928 = vld [vmem:[%s308 + $0xcd] sm:$0xff]
      %v2929 = vld [vmem:[%s308 + $0xdd] sm:$0xff]
      %v2930 = vld [vmem:[%s308 + $0xe5] sm:$0xff]
      %v2931 = vld [vmem:[%s308 + $0xf5] sm:$0xff]
      %v2932 = vld [vmem:[%s308 + $0xfd] sm:$0xff]
      %v2933 = vld [vmem:[%s308 + $0x10d] sm:$0xff]
      %v2934 = vld [vmem:[%s308 + $0x115] sm:$0xff]
      %v2935 = vld [vmem:[%s308 + $0x125] sm:$0xff]
      %v2936 = vld [vmem:[%s308 + $0x12d] sm:$0xff]
      %v2937 = vld [vmem:[%s308 + $0x13d] sm:$0xff]
      %v2938 = vld [vmem:[%s308 + $0x145] sm:$0xff]
      %v2939 = vld [vmem:[%s308 + $0x155] sm:$0xff]
      %v2940 = vld [vmem:[%s308 + $0x15d] sm:$0xff]
      %v2941 = vld [vmem:[%s308 + $0x16d] sm:$0xff]
      %v2942 = vld [vmem:[%s308 + $0x175] sm:$0xff]
      %v2943 = vlaneseq
      %v2944 = vshrl.u32 %v2943, 7
      %v2945 = vsub.s32 2, %v2944
      %v2946 = vrot.slane %v234, %v2945
      %v2947 = vmul.f32 %v2946, %v2911
      %v2948 = vmul.f32 %v2946, %v2912
      %v2949 = vmul.f32 %v2946, %v2913
      %v2950 = vmul.f32 %v2946, %v2914
      %v2951 = vmul.f32 %v2946, %v2915
      %v2952 = vmul.f32 %v2946, %v2916
      %v2953 = vmul.f32 %v2946, %v2917
      %v2954 = vmul.f32 %v2946, %v2918
      %v2955 = vmul.f32 %v2946, %v2919
      %v2956 = vmul.f32 %v2946, %v2920
      %v2957 = vmul.f32 %v2946, %v2921
      %v2958 = vmul.f32 %v2946, %v2922
      %v2959 = vmul.f32 %v2946, %v2923
      %v2960 = vmul.f32 %v2946, %v2924
      %v2961 = vmul.f32 %v2946, %v2925
      %v2962 = vmul.f32 %v2946, %v2926
      %v2963 = vmul.f32 %v2946, %v2927
      %v2964 = vmul.f32 %v2946, %v2928
      %v2965 = vmul.f32 %v2946, %v2929
      %v2966 = vmul.f32 %v2946, %v2930
      %v2967 = vmul.f32 %v2946, %v2931
      %v2968 = vmul.f32 %v2946, %v2932
      %v2969 = vmul.f32 %v2946, %v2933
      %v2970 = vmul.f32 %v2946, %v2934
      %v2971 = vmul.f32 %v2946, %v2935
      %v2972 = vmul.f32 %v2946, %v2936
      %v2973 = vmul.f32 %v2946, %v2937
      %v2974 = vmul.f32 %v2946, %v2938
      %v2975 = vmul.f32 %v2946, %v2939
      %v2976 = vmul.f32 %v2946, %v2940
      %v2977 = vmul.f32 %v2946, %v2941
      %v2978 = vmul.f32 %v2946, %v2942
      %v2979 = vadd.f32 %v2879, %v2947
      %v2980 = vadd.f32 %v2880, %v2948
      %v2981 = vadd.f32 %v2881, %v2949
      %v2982 = vadd.f32 %v2882, %v2950
      %v2983 = vadd.f32 %v2883, %v2951
      %v2984 = vadd.f32 %v2884, %v2952
      %v2985 = vadd.f32 %v2885, %v2953
      %v2986 = vadd.f32 %v2886, %v2954
      %v2987 = vadd.f32 %v2887, %v2955
      %v2988 = vadd.f32 %v2888, %v2956
      %v2989 = vadd.f32 %v2889, %v2957
      %v2990 = vadd.f32 %v2890, %v2958
      %v2991 = vadd.f32 %v2891, %v2959
      %v2992 = vadd.f32 %v2892, %v2960
      %v2993 = vadd.f32 %v2893, %v2961
      %v2994 = vadd.f32 %v2894, %v2962
      %v2995 = vadd.f32 %v2895, %v2963
      %v2996 = vadd.f32 %v2896, %v2964
      %v2997 = vadd.f32 %v2897, %v2965
      %v2998 = vadd.f32 %v2898, %v2966
      %v2999 = vadd.f32 %v2899, %v2967
      %v3000 = vadd.f32 %v2900, %v2968
      %v3001 = vadd.f32 %v2901, %v2969
      %v3002 = vadd.f32 %v2902, %v2970
      %v3003 = vadd.f32 %v2903, %v2971
      %v3004 = vadd.f32 %v2904, %v2972
      %v3005 = vadd.f32 %v2905, %v2973
      %v3006 = vadd.f32 %v2906, %v2974
      %v3007 = vadd.f32 %v2907, %v2975
      %v3008 = vadd.f32 %v2908, %v2976
      %v3009 = vadd.f32 %v2909, %v2977
      %v3010 = vadd.f32 %v2910, %v2978
      %v3011 = vld [vmem:[%s308 + $0x6] sm:$0xff]
      %v3012 = vld [vmem:[%s308 + $0xe] sm:$0xff]
      %v3013 = vld [vmem:[%s308 + $0x1e] sm:$0xff]
      %v3014 = vld [vmem:[%s308 + $0x26] sm:$0xff]
      %v3015 = vld [vmem:[%s308 + $0x36] sm:$0xff]
      %v3016 = vld [vmem:[%s308 + $0x3e] sm:$0xff]
      %v3017 = vld [vmem:[%s308 + $0x4e] sm:$0xff]
      %v3018 = vld [vmem:[%s308 + $0x56] sm:$0xff]
      %v3019 = vld [vmem:[%s308 + $0x66] sm:$0xff]
      %v3020 = vld [vmem:[%s308 + $0x6e] sm:$0xff]
      %v3021 = vld [vmem:[%s308 + $0x7e] sm:$0xff]
      %v3022 = vld [vmem:[%s308 + $0x86] sm:$0xff]
      %v3023 = vld [vmem:[%s308 + $0x96] sm:$0xff]
      %v3024 = vld [vmem:[%s308 + $0x9e] sm:$0xff]
      %v3025 = vld [vmem:[%s308 + $0xae] sm:$0xff]
      %v3026 = vld [vmem:[%s308 + $0xb6] sm:$0xff]
      %v3027 = vld [vmem:[%s308 + $0xc6] sm:$0xff]
      %v3028 = vld [vmem:[%s308 + $0xce] sm:$0xff]
      %v3029 = vld [vmem:[%s308 + $0xde] sm:$0xff]
      %v3030 = vld [vmem:[%s308 + $0xe6] sm:$0xff]
      %v3031 = vld [vmem:[%s308 + $0xf6] sm:$0xff]
      %v3032 = vld [vmem:[%s308 + $0xfe] sm:$0xff]
      %v3033 = vld [vmem:[%s308 + $0x10e] sm:$0xff]
      %v3034 = vld [vmem:[%s308 + $0x116] sm:$0xff]
      %v3035 = vld [vmem:[%s308 + $0x126] sm:$0xff]
      %v3036 = vld [vmem:[%s308 + $0x12e] sm:$0xff]
      %v3037 = vld [vmem:[%s308 + $0x13e] sm:$0xff]
      %v3038 = vld [vmem:[%s308 + $0x146] sm:$0xff]
      %v3039 = vld [vmem:[%s308 + $0x156] sm:$0xff]
      %v3040 = vld [vmem:[%s308 + $0x15e] sm:$0xff]
      %v3041 = vld [vmem:[%s308 + $0x16e] sm:$0xff]
      %v3042 = vld [vmem:[%s308 + $0x176] sm:$0xff]
      %v3043 = vlaneseq
      %v3044 = vshrl.u32 %v3043, 7
      %v3045 = vsub.s32 3, %v3044
      %v3046 = vrot.slane %v234, %v3045
      %v3047 = vmul.f32 %v3046, %v3011
      %v3048 = vmul.f32 %v3046, %v3012
      %v3049 = vmul.f32 %v3046, %v3013
      %v3050 = vmul.f32 %v3046, %v3014
      %v3051 = vmul.f32 %v3046, %v3015
      %v3052 = vmul.f32 %v3046, %v3016
      %v3053 = vmul.f32 %v3046, %v3017
      %v3054 = vmul.f32 %v3046, %v3018
      %v3055 = vmul.f32 %v3046, %v3019
      %v3056 = vmul.f32 %v3046, %v3020
      %v3057 = vmul.f32 %v3046, %v3021
      %v3058 = vmul.f32 %v3046, %v3022
      %v3059 = vmul.f32 %v3046, %v3023
      %v3060 = vmul.f32 %v3046, %v3024
      %v3061 = vmul.f32 %v3046, %v3025
      %v3062 = vmul.f32 %v3046, %v3026
      %v3063 = vmul.f32 %v3046, %v3027
      %v3064 = vmul.f32 %v3046, %v3028
      %v3065 = vmul.f32 %v3046, %v3029
      %v3066 = vmul.f32 %v3046, %v3030
      %v3067 = vmul.f32 %v3046, %v3031
      %v3068 = vmul.f32 %v3046, %v3032
      %v3069 = vmul.f32 %v3046, %v3033
      %v3070 = vmul.f32 %v3046, %v3034
      %v3071 = vmul.f32 %v3046, %v3035
      %v3072 = vmul.f32 %v3046, %v3036
      %v3073 = vmul.f32 %v3046, %v3037
      %v3074 = vmul.f32 %v3046, %v3038
      %v3075 = vmul.f32 %v3046, %v3039
      %v3076 = vmul.f32 %v3046, %v3040
      %v3077 = vmul.f32 %v3046, %v3041
      %v3078 = vmul.f32 %v3046, %v3042
      %v3079 = vadd.f32 %v2979, %v3047
      %v3080 = vadd.f32 %v2980, %v3048
      %v3081 = vadd.f32 %v2981, %v3049
      %v3082 = vadd.f32 %v2982, %v3050
      %v3083 = vadd.f32 %v2983, %v3051
      %v3084 = vadd.f32 %v2984, %v3052
      %v3085 = vadd.f32 %v2985, %v3053
      %v3086 = vadd.f32 %v2986, %v3054
      %v3087 = vadd.f32 %v2987, %v3055
      %v3088 = vadd.f32 %v2988, %v3056
      %v3089 = vadd.f32 %v2989, %v3057
      %v3090 = vadd.f32 %v2990, %v3058
      %v3091 = vadd.f32 %v2991, %v3059
      %v3092 = vadd.f32 %v2992, %v3060
      %v3093 = vadd.f32 %v2993, %v3061
      %v3094 = vadd.f32 %v2994, %v3062
      %v3095 = vadd.f32 %v2995, %v3063
      %v3096 = vadd.f32 %v2996, %v3064
      %v3097 = vadd.f32 %v2997, %v3065
      %v3098 = vadd.f32 %v2998, %v3066
      %v3099 = vadd.f32 %v2999, %v3067
      %v3100 = vadd.f32 %v3000, %v3068
      %v3101 = vadd.f32 %v3001, %v3069
      %v3102 = vadd.f32 %v3002, %v3070
      %v3103 = vadd.f32 %v3003, %v3071
      %v3104 = vadd.f32 %v3004, %v3072
      %v3105 = vadd.f32 %v3005, %v3073
      %v3106 = vadd.f32 %v3006, %v3074
      %v3107 = vadd.f32 %v3007, %v3075
      %v3108 = vadd.f32 %v3008, %v3076
      %v3109 = vadd.f32 %v3009, %v3077
      %v3110 = vadd.f32 %v3010, %v3078
      %s3111 = scalar_lea.vmem [#allocation2], 96
      %v3112 = vld [vmem:[%s3111] sm:$0xff]
      %v3113 = vld [vmem:[%s3111 + $0x8] sm:$0xff]
      %v3114 = vld [vmem:[%s3111 + $0x18] sm:$0xff]
      %v3115 = vld [vmem:[%s3111 + $0x20] sm:$0xff]
      %v3116 = vld [vmem:[%s3111 + $0x30] sm:$0xff]
      %v3117 = vld [vmem:[%s3111 + $0x38] sm:$0xff]
      %v3118 = vld [vmem:[%s3111 + $0x48] sm:$0xff]
      %v3119 = vld [vmem:[%s3111 + $0x50] sm:$0xff]
      %v3120 = vld [vmem:[%s3111 + $0x60] sm:$0xff]
      %v3121 = vld [vmem:[%s3111 + $0x68] sm:$0xff]
      %v3122 = vld [vmem:[%s3111 + $0x78] sm:$0xff]
      %v3123 = vld [vmem:[%s3111 + $0x80] sm:$0xff]
      %v3124 = vld [vmem:[%s3111 + $0x90] sm:$0xff]
      %v3125 = vld [vmem:[%s3111 + $0x98] sm:$0xff]
      %v3126 = vld [vmem:[%s3111 + $0xa8] sm:$0xff]
      %v3127 = vld [vmem:[%s3111 + $0xb0] sm:$0xff]
      %v3128 = vld [vmem:[%s3111 + $0xc0] sm:$0xff]
      %v3129 = vld [vmem:[%s3111 + $0xc8] sm:$0xff]
      %v3130 = vld [vmem:[%s3111 + $0xd8] sm:$0xff]
      %v3131 = vld [vmem:[%s3111 + $0xe0] sm:$0xff]
      %v3132 = vld [vmem:[%s3111 + $0xf0] sm:$0xff]
      %v3133 = vld [vmem:[%s3111 + $0xf8] sm:$0xff]
      %v3134 = vld [vmem:[%s3111 + $0x108] sm:$0xff]
      %v3135 = vld [vmem:[%s3111 + $0x110] sm:$0xff]
      %v3136 = vld [vmem:[%s3111 + $0x120] sm:$0xff]
      %v3137 = vld [vmem:[%s3111 + $0x128] sm:$0xff]
      %v3138 = vld [vmem:[%s3111 + $0x138] sm:$0xff]
      %v3139 = vld [vmem:[%s3111 + $0x140] sm:$0xff]
      %v3140 = vld [vmem:[%s3111 + $0x150] sm:$0xff]
      %v3141 = vld [vmem:[%s3111 + $0x158] sm:$0xff]
      %v3142 = vld [vmem:[%s3111 + $0x168] sm:$0xff]
      %v3143 = vld [vmem:[%s3111 + $0x170] sm:$0xff]
      %v3144 = vlaneseq
      %v3145 = vshrl.u32 %v3144, 7
      %v3146 = vsub.s32 4, %v3145
      %v3147 = vrot.slane %v234, %v3146
      %v3148 = vmul.f32 %v3147, %v3112
      %v3149 = vmul.f32 %v3147, %v3113
      %v3150 = vmul.f32 %v3147, %v3114
      %v3151 = vmul.f32 %v3147, %v3115
      %v3152 = vmul.f32 %v3147, %v3116
      %v3153 = vmul.f32 %v3147, %v3117
      %v3154 = vmul.f32 %v3147, %v3118
      %v3155 = vmul.f32 %v3147, %v3119
      %v3156 = vmul.f32 %v3147, %v3120
      %v3157 = vmul.f32 %v3147, %v3121
      %v3158 = vmul.f32 %v3147, %v3122
      %v3159 = vmul.f32 %v3147, %v3123
      %v3160 = vmul.f32 %v3147, %v3124
      %v3161 = vmul.f32 %v3147, %v3125
      %v3162 = vmul.f32 %v3147, %v3126
      %v3163 = vmul.f32 %v3147, %v3127
      %v3164 = vmul.f32 %v3147, %v3128
      %v3165 = vmul.f32 %v3147, %v3129
      %v3166 = vmul.f32 %v3147, %v3130
      %v3167 = vmul.f32 %v3147, %v3131
      %v3168 = vmul.f32 %v3147, %v3132
      %v3169 = vmul.f32 %v3147, %v3133
      %v3170 = vmul.f32 %v3147, %v3134
      %v3171 = vmul.f32 %v3147, %v3135
      %v3172 = vmul.f32 %v3147, %v3136
      %v3173 = vmul.f32 %v3147, %v3137
      %v3174 = vmul.f32 %v3147, %v3138
      %v3175 = vmul.f32 %v3147, %v3139
      %v3176 = vmul.f32 %v3147, %v3140
      %v3177 = vmul.f32 %v3147, %v3141
      %v3178 = vmul.f32 %v3147, %v3142
      %v3179 = vmul.f32 %v3147, %v3143
      %v3180 = vadd.f32 %v3079, %v3148
      %v3181 = vadd.f32 %v3080, %v3149
      %v3182 = vadd.f32 %v3081, %v3150
      %v3183 = vadd.f32 %v3082, %v3151
      %v3184 = vadd.f32 %v3083, %v3152
      %v3185 = vadd.f32 %v3084, %v3153
      %v3186 = vadd.f32 %v3085, %v3154
      %v3187 = vadd.f32 %v3086, %v3155
      %v3188 = vadd.f32 %v3087, %v3156
      %v3189 = vadd.f32 %v3088, %v3157
      %v3190 = vadd.f32 %v3089, %v3158
      %v3191 = vadd.f32 %v3090, %v3159
      %v3192 = vadd.f32 %v3091, %v3160
      %v3193 = vadd.f32 %v3092, %v3161
      %v3194 = vadd.f32 %v3093, %v3162
      %v3195 = vadd.f32 %v3094, %v3163
      %v3196 = vadd.f32 %v3095, %v3164
      %v3197 = vadd.f32 %v3096, %v3165
      %v3198 = vadd.f32 %v3097, %v3166
      %v3199 = vadd.f32 %v3098, %v3167
      %v3200 = vadd.f32 %v3099, %v3168
      %v3201 = vadd.f32 %v3100, %v3169
      %v3202 = vadd.f32 %v3101, %v3170
      %v3203 = vadd.f32 %v3102, %v3171
      %v3204 = vadd.f32 %v3103, %v3172
      %v3205 = vadd.f32 %v3104, %v3173
      %v3206 = vadd.f32 %v3105, %v3174
      %v3207 = vadd.f32 %v3106, %v3175
      %v3208 = vadd.f32 %v3107, %v3176
      %v3209 = vadd.f32 %v3108, %v3177
      %v3210 = vadd.f32 %v3109, %v3178
      %v3211 = vadd.f32 %v3110, %v3179
      %v3212 = vld [vmem:[%s3111 + $0x1] sm:$0xff]
      %v3213 = vld [vmem:[%s3111 + $0x9] sm:$0xff]
      %v3214 = vld [vmem:[%s3111 + $0x19] sm:$0xff]
      %v3215 = vld [vmem:[%s3111 + $0x21] sm:$0xff]
      %v3216 = vld [vmem:[%s3111 + $0x31] sm:$0xff]
      %v3217 = vld [vmem:[%s3111 + $0x39] sm:$0xff]
      %v3218 = vld [vmem:[%s3111 + $0x49] sm:$0xff]
      %v3219 = vld [vmem:[%s3111 + $0x51] sm:$0xff]
      %v3220 = vld [vmem:[%s3111 + $0x61] sm:$0xff]
      %v3221 = vld [vmem:[%s3111 + $0x69] sm:$0xff]
      %v3222 = vld [vmem:[%s3111 + $0x79] sm:$0xff]
      %v3223 = vld [vmem:[%s3111 + $0x81] sm:$0xff]
      %v3224 = vld [vmem:[%s3111 + $0x91] sm:$0xff]
      %v3225 = vld [vmem:[%s3111 + $0x99] sm:$0xff]
      %v3226 = vld [vmem:[%s3111 + $0xa9] sm:$0xff]
      %v3227 = vld [vmem:[%s3111 + $0xb1] sm:$0xff]
      %v3228 = vld [vmem:[%s3111 + $0xc1] sm:$0xff]
      %v3229 = vld [vmem:[%s3111 + $0xc9] sm:$0xff]
      %v3230 = vld [vmem:[%s3111 + $0xd9] sm:$0xff]
      %v3231 = vld [vmem:[%s3111 + $0xe1] sm:$0xff]
      %v3232 = vld [vmem:[%s3111 + $0xf1] sm:$0xff]
      %v3233 = vld [vmem:[%s3111 + $0xf9] sm:$0xff]
      %v3234 = vld [vmem:[%s3111 + $0x109] sm:$0xff]
      %v3235 = vld [vmem:[%s3111 + $0x111] sm:$0xff]
      %v3236 = vld [vmem:[%s3111 + $0x121] sm:$0xff]
      %v3237 = vld [vmem:[%s3111 + $0x129] sm:$0xff]
      %v3238 = vld [vmem:[%s3111 + $0x139] sm:$0xff]
      %v3239 = vld [vmem:[%s3111 + $0x141] sm:$0xff]
      %v3240 = vld [vmem:[%s3111 + $0x151] sm:$0xff]
      %v3241 = vld [vmem:[%s3111 + $0x159] sm:$0xff]
      %v3242 = vld [vmem:[%s3111 + $0x169] sm:$0xff]
      %v3243 = vld [vmem:[%s3111 + $0x171] sm:$0xff]
      %v3244 = vlaneseq
      %v3245 = vshrl.u32 %v3244, 7
      %v3246 = vsub.s32 5, %v3245
      %v3247 = vrot.slane %v234, %v3246
      %v3248 = vmul.f32 %v3247, %v3212
      %v3249 = vmul.f32 %v3247, %v3213
      %v3250 = vmul.f32 %v3247, %v3214
      %v3251 = vmul.f32 %v3247, %v3215
      %v3252 = vmul.f32 %v3247, %v3216
      %v3253 = vmul.f32 %v3247, %v3217
      %v3254 = vmul.f32 %v3247, %v3218
      %v3255 = vmul.f32 %v3247, %v3219
      %v3256 = vmul.f32 %v3247, %v3220
      %v3257 = vmul.f32 %v3247, %v3221
      %v3258 = vmul.f32 %v3247, %v3222
      %v3259 = vmul.f32 %v3247, %v3223
      %v3260 = vmul.f32 %v3247, %v3224
      %v3261 = vmul.f32 %v3247, %v3225
      %v3262 = vmul.f32 %v3247, %v3226
      %v3263 = vmul.f32 %v3247, %v3227
      %v3264 = vmul.f32 %v3247, %v3228
      %v3265 = vmul.f32 %v3247, %v3229
      %v3266 = vmul.f32 %v3247, %v3230
      %v3267 = vmul.f32 %v3247, %v3231
      %v3268 = vmul.f32 %v3247, %v3232
      %v3269 = vmul.f32 %v3247, %v3233
      %v3270 = vmul.f32 %v3247, %v3234
      %v3271 = vmul.f32 %v3247, %v3235
      %v3272 = vmul.f32 %v3247, %v3236
      %v3273 = vmul.f32 %v3247, %v3237
      %v3274 = vmul.f32 %v3247, %v3238
      %v3275 = vmul.f32 %v3247, %v3239
      %v3276 = vmul.f32 %v3247, %v3240
      %v3277 = vmul.f32 %v3247, %v3241
      %v3278 = vmul.f32 %v3247, %v3242
      %v3279 = vmul.f32 %v3247, %v3243
      %v3280 = vadd.f32 %v3180, %v3248
      %v3281 = vadd.f32 %v3181, %v3249
      %v3282 = vadd.f32 %v3182, %v3250
      %v3283 = vadd.f32 %v3183, %v3251
      %v3284 = vadd.f32 %v3184, %v3252
      %v3285 = vadd.f32 %v3185, %v3253
      %v3286 = vadd.f32 %v3186, %v3254
      %v3287 = vadd.f32 %v3187, %v3255
      %v3288 = vadd.f32 %v3188, %v3256
      %v3289 = vadd.f32 %v3189, %v3257
      %v3290 = vadd.f32 %v3190, %v3258
      %v3291 = vadd.f32 %v3191, %v3259
      %v3292 = vadd.f32 %v3192, %v3260
      %v3293 = vadd.f32 %v3193, %v3261
      %v3294 = vadd.f32 %v3194, %v3262
      %v3295 = vadd.f32 %v3195, %v3263
      %v3296 = vadd.f32 %v3196, %v3264
      %v3297 = vadd.f32 %v3197, %v3265
      %v3298 = vadd.f32 %v3198, %v3266
      %v3299 = vadd.f32 %v3199, %v3267
      %v3300 = vadd.f32 %v3200, %v3268
      %v3301 = vadd.f32 %v3201, %v3269
      %v3302 = vadd.f32 %v3202, %v3270
      %v3303 = vadd.f32 %v3203, %v3271
      %v3304 = vadd.f32 %v3204, %v3272
      %v3305 = vadd.f32 %v3205, %v3273
      %v3306 = vadd.f32 %v3206, %v3274
      %v3307 = vadd.f32 %v3207, %v3275
      %v3308 = vadd.f32 %v3208, %v3276
      %v3309 = vadd.f32 %v3209, %v3277
      %v3310 = vadd.f32 %v3210, %v3278
      %v3311 = vadd.f32 %v3211, %v3279
      %v3312 = vld [vmem:[%s3111 + $0x2] sm:$0xff]
      %v3313 = vld [vmem:[%s3111 + $0xa] sm:$0xff]
      %v3314 = vld [vmem:[%s3111 + $0x1a] sm:$0xff]
      %v3315 = vld [vmem:[%s3111 + $0x22] sm:$0xff]
      %v3316 = vld [vmem:[%s3111 + $0x32] sm:$0xff]
      %v3317 = vld [vmem:[%s3111 + $0x3a] sm:$0xff]
      %v3318 = vld [vmem:[%s3111 + $0x4a] sm:$0xff]
      %v3319 = vld [vmem:[%s3111 + $0x52] sm:$0xff]
      %v3320 = vld [vmem:[%s3111 + $0x62] sm:$0xff]
      %v3321 = vld [vmem:[%s3111 + $0x6a] sm:$0xff]
      %v3322 = vld [vmem:[%s3111 + $0x7a] sm:$0xff]
      %v3323 = vld [vmem:[%s3111 + $0x82] sm:$0xff]
      %v3324 = vld [vmem:[%s3111 + $0x92] sm:$0xff]
      %v3325 = vld [vmem:[%s3111 + $0x9a] sm:$0xff]
      %v3326 = vld [vmem:[%s3111 + $0xaa] sm:$0xff]
      %v3327 = vld [vmem:[%s3111 + $0xb2] sm:$0xff]
      %v3328 = vld [vmem:[%s3111 + $0xc2] sm:$0xff]
      %v3329 = vld [vmem:[%s3111 + $0xca] sm:$0xff]
      %v3330 = vld [vmem:[%s3111 + $0xda] sm:$0xff]
      %v3331 = vld [vmem:[%s3111 + $0xe2] sm:$0xff]
      %v3332 = vld [vmem:[%s3111 + $0xf2] sm:$0xff]
      %v3333 = vld [vmem:[%s3111 + $0xfa] sm:$0xff]
      %v3334 = vld [vmem:[%s3111 + $0x10a] sm:$0xff]
      %v3335 = vld [vmem:[%s3111 + $0x112] sm:$0xff]
      %v3336 = vld [vmem:[%s3111 + $0x122] sm:$0xff]
      %v3337 = vld [vmem:[%s3111 + $0x12a] sm:$0xff]
      %v3338 = vld [vmem:[%s3111 + $0x13a] sm:$0xff]
      %v3339 = vld [vmem:[%s3111 + $0x142] sm:$0xff]
      %v3340 = vld [vmem:[%s3111 + $0x152] sm:$0xff]
      %v3341 = vld [vmem:[%s3111 + $0x15a] sm:$0xff]
      %v3342 = vld [vmem:[%s3111 + $0x16a] sm:$0xff]
      %v3343 = vld [vmem:[%s3111 + $0x172] sm:$0xff]
      %v3344 = vlaneseq
      %v3345 = vshrl.u32 %v3344, 7
      %v3346 = vsub.s32 6, %v3345
      %v3347 = vrot.slane %v234, %v3346
      %v3348 = vmul.f32 %v3347, %v3312
      %v3349 = vmul.f32 %v3347, %v3313
      %v3350 = vmul.f32 %v3347, %v3314
      %v3351 = vmul.f32 %v3347, %v3315
      %v3352 = vmul.f32 %v3347, %v3316
      %v3353 = vmul.f32 %v3347, %v3317
      %v3354 = vmul.f32 %v3347, %v3318
      %v3355 = vmul.f32 %v3347, %v3319
      %v3356 = vmul.f32 %v3347, %v3320
      %v3357 = vmul.f32 %v3347, %v3321
      %v3358 = vmul.f32 %v3347, %v3322
      %v3359 = vmul.f32 %v3347, %v3323
      %v3360 = vmul.f32 %v3347, %v3324
      %v3361 = vmul.f32 %v3347, %v3325
      %v3362 = vmul.f32 %v3347, %v3326
      %v3363 = vmul.f32 %v3347, %v3327
      %v3364 = vmul.f32 %v3347, %v3328
      %v3365 = vmul.f32 %v3347, %v3329
      %v3366 = vmul.f32 %v3347, %v3330
      %v3367 = vmul.f32 %v3347, %v3331
      %v3368 = vmul.f32 %v3347, %v3332
      %v3369 = vmul.f32 %v3347, %v3333
      %v3370 = vmul.f32 %v3347, %v3334
      %v3371 = vmul.f32 %v3347, %v3335
      %v3372 = vmul.f32 %v3347, %v3336
      %v3373 = vmul.f32 %v3347, %v3337
      %v3374 = vmul.f32 %v3347, %v3338
      %v3375 = vmul.f32 %v3347, %v3339
      %v3376 = vmul.f32 %v3347, %v3340
      %v3377 = vmul.f32 %v3347, %v3341
      %v3378 = vmul.f32 %v3347, %v3342
      %v3379 = vmul.f32 %v3347, %v3343
      %v3380 = vadd.f32 %v3280, %v3348
      %v3381 = vadd.f32 %v3281, %v3349
      %v3382 = vadd.f32 %v3282, %v3350
      %v3383 = vadd.f32 %v3283, %v3351
      %v3384 = vadd.f32 %v3284, %v3352
      %v3385 = vadd.f32 %v3285, %v3353
      %v3386 = vadd.f32 %v3286, %v3354
      %v3387 = vadd.f32 %v3287, %v3355
      %v3388 = vadd.f32 %v3288, %v3356
      %v3389 = vadd.f32 %v3289, %v3357
      %v3390 = vadd.f32 %v3290, %v3358
      %v3391 = vadd.f32 %v3291, %v3359
      %v3392 = vadd.f32 %v3292, %v3360
      %v3393 = vadd.f32 %v3293, %v3361
      %v3394 = vadd.f32 %v3294, %v3362
      %v3395 = vadd.f32 %v3295, %v3363
      %v3396 = vadd.f32 %v3296, %v3364
      %v3397 = vadd.f32 %v3297, %v3365
      %v3398 = vadd.f32 %v3298, %v3366
      %v3399 = vadd.f32 %v3299, %v3367
      %v3400 = vadd.f32 %v3300, %v3368
      %v3401 = vadd.f32 %v3301, %v3369
      %v3402 = vadd.f32 %v3302, %v3370
      %v3403 = vadd.f32 %v3303, %v3371
      %v3404 = vadd.f32 %v3304, %v3372
      %v3405 = vadd.f32 %v3305, %v3373
      %v3406 = vadd.f32 %v3306, %v3374
      %v3407 = vadd.f32 %v3307, %v3375
      %v3408 = vadd.f32 %v3308, %v3376
      %v3409 = vadd.f32 %v3309, %v3377
      %v3410 = vadd.f32 %v3310, %v3378
      %v3411 = vadd.f32 %v3311, %v3379
      %v3412 = vld [vmem:[%s3111 + $0x3] sm:$0xff]
      %v3413 = vld [vmem:[%s3111 + $0xb] sm:$0xff]
      %v3414 = vld [vmem:[%s3111 + $0x1b] sm:$0xff]
      %v3415 = vld [vmem:[%s3111 + $0x23] sm:$0xff]
      %v3416 = vld [vmem:[%s3111 + $0x33] sm:$0xff]
      %v3417 = vld [vmem:[%s3111 + $0x3b] sm:$0xff]
      %v3418 = vld [vmem:[%s3111 + $0x4b] sm:$0xff]
      %v3419 = vld [vmem:[%s3111 + $0x53] sm:$0xff]
      %v3420 = vld [vmem:[%s3111 + $0x63] sm:$0xff]
      %v3421 = vld [vmem:[%s3111 + $0x6b] sm:$0xff]
      %v3422 = vld [vmem:[%s3111 + $0x7b] sm:$0xff]
      %v3423 = vld [vmem:[%s3111 + $0x83] sm:$0xff]
      %v3424 = vld [vmem:[%s3111 + $0x93] sm:$0xff]
      %v3425 = vld [vmem:[%s3111 + $0x9b] sm:$0xff]
      %v3426 = vld [vmem:[%s3111 + $0xab] sm:$0xff]
      %v3427 = vld [vmem:[%s3111 + $0xb3] sm:$0xff]
      %v3428 = vld [vmem:[%s3111 + $0xc3] sm:$0xff]
      %v3429 = vld [vmem:[%s3111 + $0xcb] sm:$0xff]
      %v3430 = vld [vmem:[%s3111 + $0xdb] sm:$0xff]
      %v3431 = vld [vmem:[%s3111 + $0xe3] sm:$0xff]
      %v3432 = vld [vmem:[%s3111 + $0xf3] sm:$0xff]
      %v3433 = vld [vmem:[%s3111 + $0xfb] sm:$0xff]
      %v3434 = vld [vmem:[%s3111 + $0x10b] sm:$0xff]
      %v3435 = vld [vmem:[%s3111 + $0x113] sm:$0xff]
      %v3436 = vld [vmem:[%s3111 + $0x123] sm:$0xff]
      %v3437 = vld [vmem:[%s3111 + $0x12b] sm:$0xff]
      %v3438 = vld [vmem:[%s3111 + $0x13b] sm:$0xff]
      %v3439 = vld [vmem:[%s3111 + $0x143] sm:$0xff]
      %v3440 = vld [vmem:[%s3111 + $0x153] sm:$0xff]
      %v3441 = vld [vmem:[%s3111 + $0x15b] sm:$0xff]
      %v3442 = vld [vmem:[%s3111 + $0x16b] sm:$0xff]
      %v3443 = vld [vmem:[%s3111 + $0x173] sm:$0xff]
      %v3444 = vlaneseq
      %v3445 = vshrl.u32 %v3444, 7
      %v3446 = vsub.s32 7, %v3445
      %v3447 = vrot.slane %v234, %v3446
      %v3448 = vmul.f32 %v3447, %v3412
      %v3449 = vmul.f32 %v3447, %v3413
      %v3450 = vmul.f32 %v3447, %v3414
      %v3451 = vmul.f32 %v3447, %v3415
      %v3452 = vmul.f32 %v3447, %v3416
      %v3453 = vmul.f32 %v3447, %v3417
      %v3454 = vmul.f32 %v3447, %v3418
      %v3455 = vmul.f32 %v3447, %v3419
      %v3456 = vmul.f32 %v3447, %v3420
      %v3457 = vmul.f32 %v3447, %v3421
      %v3458 = vmul.f32 %v3447, %v3422
      %v3459 = vmul.f32 %v3447, %v3423
      %v3460 = vmul.f32 %v3447, %v3424
      %v3461 = vmul.f32 %v3447, %v3425
      %v3462 = vmul.f32 %v3447, %v3426
      %v3463 = vmul.f32 %v3447, %v3427
      %v3464 = vmul.f32 %v3447, %v3428
      %v3465 = vmul.f32 %v3447, %v3429
      %v3466 = vmul.f32 %v3447, %v3430
      %v3467 = vmul.f32 %v3447, %v3431
      %v3468 = vmul.f32 %v3447, %v3432
      %v3469 = vmul.f32 %v3447, %v3433
      %v3470 = vmul.f32 %v3447, %v3434
      %v3471 = vmul.f32 %v3447, %v3435
      %v3472 = vmul.f32 %v3447, %v3436
      %v3473 = vmul.f32 %v3447, %v3437
      %v3474 = vmul.f32 %v3447, %v3438
      %v3475 = vmul.f32 %v3447, %v3439
      %v3476 = vmul.f32 %v3447, %v3440
      %v3477 = vmul.f32 %v3447, %v3441
      %v3478 = vmul.f32 %v3447, %v3442
      %v3479 = vmul.f32 %v3447, %v3443
      %v3480 = vadd.f32 %v3380, %v3448
      %v3481 = vadd.f32 %v3381, %v3449
      %v3482 = vadd.f32 %v3382, %v3450
      %v3483 = vadd.f32 %v3383, %v3451
      %v3484 = vadd.f32 %v3384, %v3452
      %v3485 = vadd.f32 %v3385, %v3453
      %v3486 = vadd.f32 %v3386, %v3454
      %v3487 = vadd.f32 %v3387, %v3455
      %v3488 = vadd.f32 %v3388, %v3456
      %v3489 = vadd.f32 %v3389, %v3457
      %v3490 = vadd.f32 %v3390, %v3458
      %v3491 = vadd.f32 %v3391, %v3459
      %v3492 = vadd.f32 %v3392, %v3460
      %v3493 = vadd.f32 %v3393, %v3461
      %v3494 = vadd.f32 %v3394, %v3462
      %v3495 = vadd.f32 %v3395, %v3463
      %v3496 = vadd.f32 %v3396, %v3464
      %v3497 = vadd.f32 %v3397, %v3465
      %v3498 = vadd.f32 %v3398, %v3466
      %v3499 = vadd.f32 %v3399, %v3467
      %v3500 = vadd.f32 %v3400, %v3468
      %v3501 = vadd.f32 %v3401, %v3469
      %v3502 = vadd.f32 %v3402, %v3470
      %v3503 = vadd.f32 %v3403, %v3471
      %v3504 = vadd.f32 %v3404, %v3472
      %v3505 = vadd.f32 %v3405, %v3473
      %v3506 = vadd.f32 %v3406, %v3474
      %v3507 = vadd.f32 %v3407, %v3475
      %v3508 = vadd.f32 %v3408, %v3476
      %v3509 = vadd.f32 %v3409, %v3477
      %v3510 = vadd.f32 %v3410, %v3478
      %v3511 = vadd.f32 %v3411, %v3479
      %v3512 = vld [vmem:[%s3111 + $0x4] sm:$0xff]
      %v3513 = vld [vmem:[%s3111 + $0xc] sm:$0xff]
      %v3514 = vld [vmem:[%s3111 + $0x1c] sm:$0xff]
      %v3515 = vld [vmem:[%s3111 + $0x24] sm:$0xff]
      %v3516 = vld [vmem:[%s3111 + $0x34] sm:$0xff]
      %v3517 = vld [vmem:[%s3111 + $0x3c] sm:$0xff]
      %v3518 = vld [vmem:[%s3111 + $0x4c] sm:$0xff]
      %v3519 = vld [vmem:[%s3111 + $0x54] sm:$0xff]
      %v3520 = vld [vmem:[%s3111 + $0x64] sm:$0xff]
      %v3521 = vld [vmem:[%s3111 + $0x6c] sm:$0xff]
      %v3522 = vld [vmem:[%s3111 + $0x7c] sm:$0xff]
      %v3523 = vld [vmem:[%s3111 + $0x84] sm:$0xff]
      %v3524 = vld [vmem:[%s3111 + $0x94] sm:$0xff]
      %v3525 = vld [vmem:[%s3111 + $0x9c] sm:$0xff]
      %v3526 = vld [vmem:[%s3111 + $0xac] sm:$0xff]
      %v3527 = vld [vmem:[%s3111 + $0xb4] sm:$0xff]
      %v3528 = vld [vmem:[%s3111 + $0xc4] sm:$0xff]
      %v3529 = vld [vmem:[%s3111 + $0xcc] sm:$0xff]
      %v3530 = vld [vmem:[%s3111 + $0xdc] sm:$0xff]
      %v3531 = vld [vmem:[%s3111 + $0xe4] sm:$0xff]
      %v3532 = vld [vmem:[%s3111 + $0xf4] sm:$0xff]
      %v3533 = vld [vmem:[%s3111 + $0xfc] sm:$0xff]
      %v3534 = vld [vmem:[%s3111 + $0x10c] sm:$0xff]
      %v3535 = vld [vmem:[%s3111 + $0x114] sm:$0xff]
      %v3536 = vld [vmem:[%s3111 + $0x124] sm:$0xff]
      %v3537 = vld [vmem:[%s3111 + $0x12c] sm:$0xff]
      %v3538 = vld [vmem:[%s3111 + $0x13c] sm:$0xff]
      %v3539 = vld [vmem:[%s3111 + $0x144] sm:$0xff]
      %v3540 = vld [vmem:[%s3111 + $0x154] sm:$0xff]
      %v3541 = vld [vmem:[%s3111 + $0x15c] sm:$0xff]
      %v3542 = vld [vmem:[%s3111 + $0x16c] sm:$0xff]
      %v3543 = vld [vmem:[%s3111 + $0x174] sm:$0xff]
      %v3544 = vlaneseq
      %v3545 = vshrl.u32 %v3544, 7
      %v3546 = vsub.s32 0, %v3545
      %v3547 = vrot.slane %v235, %v3546
      %v3548 = vmul.f32 %v3547, %v3512
      %v3549 = vmul.f32 %v3547, %v3513
      %v3550 = vmul.f32 %v3547, %v3514
      %v3551 = vmul.f32 %v3547, %v3515
      %v3552 = vmul.f32 %v3547, %v3516
      %v3553 = vmul.f32 %v3547, %v3517
      %v3554 = vmul.f32 %v3547, %v3518
      %v3555 = vmul.f32 %v3547, %v3519
      %v3556 = vmul.f32 %v3547, %v3520
      %v3557 = vmul.f32 %v3547, %v3521
      %v3558 = vmul.f32 %v3547, %v3522
      %v3559 = vmul.f32 %v3547, %v3523
      %v3560 = vmul.f32 %v3547, %v3524
      %v3561 = vmul.f32 %v3547, %v3525
      %v3562 = vmul.f32 %v3547, %v3526
      %v3563 = vmul.f32 %v3547, %v3527
      %v3564 = vmul.f32 %v3547, %v3528
      %v3565 = vmul.f32 %v3547, %v3529
      %v3566 = vmul.f32 %v3547, %v3530
      %v3567 = vmul.f32 %v3547, %v3531
      %v3568 = vmul.f32 %v3547, %v3532
      %v3569 = vmul.f32 %v3547, %v3533
      %v3570 = vmul.f32 %v3547, %v3534
      %v3571 = vmul.f32 %v3547, %v3535
      %v3572 = vmul.f32 %v3547, %v3536
      %v3573 = vmul.f32 %v3547, %v3537
      %v3574 = vmul.f32 %v3547, %v3538
      %v3575 = vmul.f32 %v3547, %v3539
      %v3576 = vmul.f32 %v3547, %v3540
      %v3577 = vmul.f32 %v3547, %v3541
      %v3578 = vmul.f32 %v3547, %v3542
      %v3579 = vmul.f32 %v3547, %v3543
      %v3580 = vadd.f32 %v3480, %v3548
      %v3581 = vadd.f32 %v3481, %v3549
      %v3582 = vadd.f32 %v3482, %v3550
      %v3583 = vadd.f32 %v3483, %v3551
      %v3584 = vadd.f32 %v3484, %v3552
      %v3585 = vadd.f32 %v3485, %v3553
      %v3586 = vadd.f32 %v3486, %v3554
      %v3587 = vadd.f32 %v3487, %v3555
      %v3588 = vadd.f32 %v3488, %v3556
      %v3589 = vadd.f32 %v3489, %v3557
      %v3590 = vadd.f32 %v3490, %v3558
      %v3591 = vadd.f32 %v3491, %v3559
      %v3592 = vadd.f32 %v3492, %v3560
      %v3593 = vadd.f32 %v3493, %v3561
      %v3594 = vadd.f32 %v3494, %v3562
      %v3595 = vadd.f32 %v3495, %v3563
      %v3596 = vadd.f32 %v3496, %v3564
      %v3597 = vadd.f32 %v3497, %v3565
      %v3598 = vadd.f32 %v3498, %v3566
      %v3599 = vadd.f32 %v3499, %v3567
      %v3600 = vadd.f32 %v3500, %v3568
      %v3601 = vadd.f32 %v3501, %v3569
      %v3602 = vadd.f32 %v3502, %v3570
      %v3603 = vadd.f32 %v3503, %v3571
      %v3604 = vadd.f32 %v3504, %v3572
      %v3605 = vadd.f32 %v3505, %v3573
      %v3606 = vadd.f32 %v3506, %v3574
      %v3607 = vadd.f32 %v3507, %v3575
      %v3608 = vadd.f32 %v3508, %v3576
      %v3609 = vadd.f32 %v3509, %v3577
      %v3610 = vadd.f32 %v3510, %v3578
      %v3611 = vadd.f32 %v3511, %v3579
      %v3612 = vld [vmem:[%s3111 + $0x5] sm:$0xff]
      %v3613 = vld [vmem:[%s3111 + $0xd] sm:$0xff]
      %v3614 = vld [vmem:[%s3111 + $0x1d] sm:$0xff]
      %v3615 = vld [vmem:[%s3111 + $0x25] sm:$0xff]
      %v3616 = vld [vmem:[%s3111 + $0x35] sm:$0xff]
      %v3617 = vld [vmem:[%s3111 + $0x3d] sm:$0xff]
      %v3618 = vld [vmem:[%s3111 + $0x4d] sm:$0xff]
      %v3619 = vld [vmem:[%s3111 + $0x55] sm:$0xff]
      %v3620 = vld [vmem:[%s3111 + $0x65] sm:$0xff]
      %v3621 = vld [vmem:[%s3111 + $0x6d] sm:$0xff]
      %v3622 = vld [vmem:[%s3111 + $0x7d] sm:$0xff]
      %v3623 = vld [vmem:[%s3111 + $0x85] sm:$0xff]
      %v3624 = vld [vmem:[%s3111 + $0x95] sm:$0xff]
      %v3625 = vld [vmem:[%s3111 + $0x9d] sm:$0xff]
      %v3626 = vld [vmem:[%s3111 + $0xad] sm:$0xff]
      %v3627 = vld [vmem:[%s3111 + $0xb5] sm:$0xff]
      %v3628 = vld [vmem:[%s3111 + $0xc5] sm:$0xff]
      %v3629 = vld [vmem:[%s3111 + $0xcd] sm:$0xff]
      %v3630 = vld [vmem:[%s3111 + $0xdd] sm:$0xff]
      %v3631 = vld [vmem:[%s3111 + $0xe5] sm:$0xff]
      %v3632 = vld [vmem:[%s3111 + $0xf5] sm:$0xff]
      %v3633 = vld [vmem:[%s3111 + $0xfd] sm:$0xff]
      %v3634 = vld [vmem:[%s3111 + $0x10d] sm:$0xff]
      %v3635 = vld [vmem:[%s3111 + $0x115] sm:$0xff]
      %v3636 = vld [vmem:[%s3111 + $0x125] sm:$0xff]
      %v3637 = vld [vmem:[%s3111 + $0x12d] sm:$0xff]
      %v3638 = vld [vmem:[%s3111 + $0x13d] sm:$0xff]
      %v3639 = vld [vmem:[%s3111 + $0x145] sm:$0xff]
      %v3640 = vld [vmem:[%s3111 + $0x155] sm:$0xff]
      %v3641 = vld [vmem:[%s3111 + $0x15d] sm:$0xff]
      %v3642 = vld [vmem:[%s3111 + $0x16d] sm:$0xff]
      %v3643 = vld [vmem:[%s3111 + $0x175] sm:$0xff]
      %v3644 = vlaneseq
      %v3645 = vshrl.u32 %v3644, 7
      %v3646 = vsub.s32 1, %v3645
      %v3647 = vrot.slane %v235, %v3646
      %v3648 = vmul.f32 %v3647, %v3612
      %v3649 = vmul.f32 %v3647, %v3613
      %v3650 = vmul.f32 %v3647, %v3614
      %v3651 = vmul.f32 %v3647, %v3615
      %v3652 = vmul.f32 %v3647, %v3616
      %v3653 = vmul.f32 %v3647, %v3617
      %v3654 = vmul.f32 %v3647, %v3618
      %v3655 = vmul.f32 %v3647, %v3619
      %v3656 = vmul.f32 %v3647, %v3620
      %v3657 = vmul.f32 %v3647, %v3621
      %v3658 = vmul.f32 %v3647, %v3622
      %v3659 = vmul.f32 %v3647, %v3623
      %v3660 = vmul.f32 %v3647, %v3624
      %v3661 = vmul.f32 %v3647, %v3625
      %v3662 = vmul.f32 %v3647, %v3626
      %v3663 = vmul.f32 %v3647, %v3627
      %v3664 = vmul.f32 %v3647, %v3628
      %v3665 = vmul.f32 %v3647, %v3629
      %v3666 = vmul.f32 %v3647, %v3630
      %v3667 = vmul.f32 %v3647, %v3631
      %v3668 = vmul.f32 %v3647, %v3632
      %v3669 = vmul.f32 %v3647, %v3633
      %v3670 = vmul.f32 %v3647, %v3634
      %v3671 = vmul.f32 %v3647, %v3635
      %v3672 = vmul.f32 %v3647, %v3636
      %v3673 = vmul.f32 %v3647, %v3637
      %v3674 = vmul.f32 %v3647, %v3638
      %v3675 = vmul.f32 %v3647, %v3639
      %v3676 = vmul.f32 %v3647, %v3640
      %v3677 = vmul.f32 %v3647, %v3641
      %v3678 = vmul.f32 %v3647, %v3642
      %v3679 = vmul.f32 %v3647, %v3643
      %v3680 = vadd.f32 %v3580, %v3648
      %v3681 = vadd.f32 %v3581, %v3649
      %v3682 = vadd.f32 %v3582, %v3650
      %v3683 = vadd.f32 %v3583, %v3651
      %v3684 = vadd.f32 %v3584, %v3652
      %v3685 = vadd.f32 %v3585, %v3653
      %v3686 = vadd.f32 %v3586, %v3654
      %v3687 = vadd.f32 %v3587, %v3655
      %v3688 = vadd.f32 %v3588, %v3656
      %v3689 = vadd.f32 %v3589, %v3657
      %v3690 = vadd.f32 %v3590, %v3658
      %v3691 = vadd.f32 %v3591, %v3659
      %v3692 = vadd.f32 %v3592, %v3660
      %v3693 = vadd.f32 %v3593, %v3661
      %v3694 = vadd.f32 %v3594, %v3662
      %v3695 = vadd.f32 %v3595, %v3663
      %v3696 = vadd.f32 %v3596, %v3664
      %v3697 = vadd.f32 %v3597, %v3665
      %v3698 = vadd.f32 %v3598, %v3666
      %v3699 = vadd.f32 %v3599, %v3667
      %v3700 = vadd.f32 %v3600, %v3668
      %v3701 = vadd.f32 %v3601, %v3669
      %v3702 = vadd.f32 %v3602, %v3670
      %v3703 = vadd.f32 %v3603, %v3671
      %v3704 = vadd.f32 %v3604, %v3672
      %v3705 = vadd.f32 %v3605, %v3673
      %v3706 = vadd.f32 %v3606, %v3674
      %v3707 = vadd.f32 %v3607, %v3675
      %v3708 = vadd.f32 %v3608, %v3676
      %v3709 = vadd.f32 %v3609, %v3677
      %v3710 = vadd.f32 %v3610, %v3678
      %v3711 = vadd.f32 %v3611, %v3679
      %v3712 = vld [vmem:[%s3111 + $0x6] sm:$0xff]
      %v3713 = vld [vmem:[%s3111 + $0xe] sm:$0xff]
      %v3714 = vld [vmem:[%s3111 + $0x1e] sm:$0xff]
      %v3715 = vld [vmem:[%s3111 + $0x26] sm:$0xff]
      %v3716 = vld [vmem:[%s3111 + $0x36] sm:$0xff]
      %v3717 = vld [vmem:[%s3111 + $0x3e] sm:$0xff]
      %v3718 = vld [vmem:[%s3111 + $0x4e] sm:$0xff]
      %v3719 = vld [vmem:[%s3111 + $0x56] sm:$0xff]
      %v3720 = vld [vmem:[%s3111 + $0x66] sm:$0xff]
      %v3721 = vld [vmem:[%s3111 + $0x6e] sm:$0xff]
      %v3722 = vld [vmem:[%s3111 + $0x7e] sm:$0xff]
      %v3723 = vld [vmem:[%s3111 + $0x86] sm:$0xff]
      %v3724 = vld [vmem:[%s3111 + $0x96] sm:$0xff]
      %v3725 = vld [vmem:[%s3111 + $0x9e] sm:$0xff]
      %v3726 = vld [vmem:[%s3111 + $0xae] sm:$0xff]
      %v3727 = vld [vmem:[%s3111 + $0xb6] sm:$0xff]
      %v3728 = vld [vmem:[%s3111 + $0xc6] sm:$0xff]
      %v3729 = vld [vmem:[%s3111 + $0xce] sm:$0xff]
      %v3730 = vld [vmem:[%s3111 + $0xde] sm:$0xff]
      %v3731 = vld [vmem:[%s3111 + $0xe6] sm:$0xff]
      %v3732 = vld [vmem:[%s3111 + $0xf6] sm:$0xff]
      %v3733 = vld [vmem:[%s3111 + $0xfe] sm:$0xff]
      %v3734 = vld [vmem:[%s3111 + $0x10e] sm:$0xff]
      %v3735 = vld [vmem:[%s3111 + $0x116] sm:$0xff]
      %v3736 = vld [vmem:[%s3111 + $0x126] sm:$0xff]
      %v3737 = vld [vmem:[%s3111 + $0x12e] sm:$0xff]
      %v3738 = vld [vmem:[%s3111 + $0x13e] sm:$0xff]
      %v3739 = vld [vmem:[%s3111 + $0x146] sm:$0xff]
      %v3740 = vld [vmem:[%s3111 + $0x156] sm:$0xff]
      %v3741 = vld [vmem:[%s3111 + $0x15e] sm:$0xff]
      %v3742 = vld [vmem:[%s3111 + $0x16e] sm:$0xff]
      %v3743 = vld [vmem:[%s3111 + $0x176] sm:$0xff]
      %v3744 = vlaneseq
      %v3745 = vshrl.u32 %v3744, 7
      %v3746 = vsub.s32 2, %v3745
      %v3747 = vrot.slane %v235, %v3746
      %v3748 = vmul.f32 %v3747, %v3712
      %v3749 = vmul.f32 %v3747, %v3713
      %v3750 = vmul.f32 %v3747, %v3714
      %v3751 = vmul.f32 %v3747, %v3715
      %v3752 = vmul.f32 %v3747, %v3716
      %v3753 = vmul.f32 %v3747, %v3717
      %v3754 = vmul.f32 %v3747, %v3718
      %v3755 = vmul.f32 %v3747, %v3719
      %v3756 = vmul.f32 %v3747, %v3720
      %v3757 = vmul.f32 %v3747, %v3721
      %v3758 = vmul.f32 %v3747, %v3722
      %v3759 = vmul.f32 %v3747, %v3723
      %v3760 = vmul.f32 %v3747, %v3724
      %v3761 = vmul.f32 %v3747, %v3725
      %v3762 = vmul.f32 %v3747, %v3726
      %v3763 = vmul.f32 %v3747, %v3727
      %v3764 = vmul.f32 %v3747, %v3728
      %v3765 = vmul.f32 %v3747, %v3729
      %v3766 = vmul.f32 %v3747, %v3730
      %v3767 = vmul.f32 %v3747, %v3731
      %v3768 = vmul.f32 %v3747, %v3732
      %v3769 = vmul.f32 %v3747, %v3733
      %v3770 = vmul.f32 %v3747, %v3734
      %v3771 = vmul.f32 %v3747, %v3735
      %v3772 = vmul.f32 %v3747, %v3736
      %v3773 = vmul.f32 %v3747, %v3737
      %v3774 = vmul.f32 %v3747, %v3738
      %v3775 = vmul.f32 %v3747, %v3739
      %v3776 = vmul.f32 %v3747, %v3740
      %v3777 = vmul.f32 %v3747, %v3741
      %v3778 = vmul.f32 %v3747, %v3742
      %v3779 = vmul.f32 %v3747, %v3743
      %v3780 = vadd.f32 %v3680, %v3748
      %v3781 = vadd.f32 %v3681, %v3749
      %v3782 = vadd.f32 %v3682, %v3750
      %v3783 = vadd.f32 %v3683, %v3751
      %v3784 = vadd.f32 %v3684, %v3752
      %v3785 = vadd.f32 %v3685, %v3753
      %v3786 = vadd.f32 %v3686, %v3754
      %v3787 = vadd.f32 %v3687, %v3755
      %v3788 = vadd.f32 %v3688, %v3756
      %v3789 = vadd.f32 %v3689, %v3757
      %v3790 = vadd.f32 %v3690, %v3758
      %v3791 = vadd.f32 %v3691, %v3759
      %v3792 = vadd.f32 %v3692, %v3760
      %v3793 = vadd.f32 %v3693, %v3761
      %v3794 = vadd.f32 %v3694, %v3762
      %v3795 = vadd.f32 %v3695, %v3763
      %v3796 = vadd.f32 %v3696, %v3764
      %v3797 = vadd.f32 %v3697, %v3765
      %v3798 = vadd.f32 %v3698, %v3766
      %v3799 = vadd.f32 %v3699, %v3767
      %v3800 = vadd.f32 %v3700, %v3768
      %v3801 = vadd.f32 %v3701, %v3769
      %v3802 = vadd.f32 %v3702, %v3770
      %v3803 = vadd.f32 %v3703, %v3771
      %v3804 = vadd.f32 %v3704, %v3772
      %v3805 = vadd.f32 %v3705, %v3773
      %v3806 = vadd.f32 %v3706, %v3774
      %v3807 = vadd.f32 %v3707, %v3775
      %v3808 = vadd.f32 %v3708, %v3776
      %v3809 = vadd.f32 %v3709, %v3777
      %v3810 = vadd.f32 %v3710, %v3778
      %v3811 = vadd.f32 %v3711, %v3779
      %s3812 = scalar_lea.vmem [#allocation2], 120
      %v3813 = vld [vmem:[%s3812] sm:$0xff]
      %v3814 = vld [vmem:[%s3812 + $0x8] sm:$0xff]
      %v3815 = vld [vmem:[%s3812 + $0x18] sm:$0xff]
      %v3816 = vld [vmem:[%s3812 + $0x20] sm:$0xff]
      %v3817 = vld [vmem:[%s3812 + $0x30] sm:$0xff]
      %v3818 = vld [vmem:[%s3812 + $0x38] sm:$0xff]
      %v3819 = vld [vmem:[%s3812 + $0x48] sm:$0xff]
      %v3820 = vld [vmem:[%s3812 + $0x50] sm:$0xff]
      %v3821 = vld [vmem:[%s3812 + $0x60] sm:$0xff]
      %v3822 = vld [vmem:[%s3812 + $0x68] sm:$0xff]
      %v3823 = vld [vmem:[%s3812 + $0x78] sm:$0xff]
      %v3824 = vld [vmem:[%s3812 + $0x80] sm:$0xff]
      %v3825 = vld [vmem:[%s3812 + $0x90] sm:$0xff]
      %v3826 = vld [vmem:[%s3812 + $0x98] sm:$0xff]
      %v3827 = vld [vmem:[%s3812 + $0xa8] sm:$0xff]
      %v3828 = vld [vmem:[%s3812 + $0xb0] sm:$0xff]
      %v3829 = vld [vmem:[%s3812 + $0xc0] sm:$0xff]
      %v3830 = vld [vmem:[%s3812 + $0xc8] sm:$0xff]
      %v3831 = vld [vmem:[%s3812 + $0xd8] sm:$0xff]
      %v3832 = vld [vmem:[%s3812 + $0xe0] sm:$0xff]
      %v3833 = vld [vmem:[%s3812 + $0xf0] sm:$0xff]
      %v3834 = vld [vmem:[%s3812 + $0xf8] sm:$0xff]
      %v3835 = vld [vmem:[%s3812 + $0x108] sm:$0xff]
      %v3836 = vld [vmem:[%s3812 + $0x110] sm:$0xff]
      %v3837 = vld [vmem:[%s3812 + $0x120] sm:$0xff]
      %v3838 = vld [vmem:[%s3812 + $0x128] sm:$0xff]
      %v3839 = vld [vmem:[%s3812 + $0x138] sm:$0xff]
      %v3840 = vld [vmem:[%s3812 + $0x140] sm:$0xff]
      %v3841 = vld [vmem:[%s3812 + $0x150] sm:$0xff]
      %v3842 = vld [vmem:[%s3812 + $0x158] sm:$0xff]
      %v3843 = vld [vmem:[%s3812 + $0x168] sm:$0xff]
      %v3844 = vld [vmem:[%s3812 + $0x170] sm:$0xff]
      %v3845 = vlaneseq
      %v3846 = vshrl.u32 %v3845, 7
      %v3847 = vsub.s32 3, %v3846
      %v3848 = vrot.slane %v235, %v3847
      %v3849 = vmul.f32 %v3848, %v3813
      %v3850 = vmul.f32 %v3848, %v3814
      %v3851 = vmul.f32 %v3848, %v3815
      %v3852 = vmul.f32 %v3848, %v3816
      %v3853 = vmul.f32 %v3848, %v3817
      %v3854 = vmul.f32 %v3848, %v3818
      %v3855 = vmul.f32 %v3848, %v3819
      %v3856 = vmul.f32 %v3848, %v3820
      %v3857 = vmul.f32 %v3848, %v3821
      %v3858 = vmul.f32 %v3848, %v3822
      %v3859 = vmul.f32 %v3848, %v3823
      %v3860 = vmul.f32 %v3848, %v3824
      %v3861 = vmul.f32 %v3848, %v3825
      %v3862 = vmul.f32 %v3848, %v3826
      %v3863 = vmul.f32 %v3848, %v3827
      %v3864 = vmul.f32 %v3848, %v3828
      %v3865 = vmul.f32 %v3848, %v3829
      %v3866 = vmul.f32 %v3848, %v3830
      %v3867 = vmul.f32 %v3848, %v3831
      %v3868 = vmul.f32 %v3848, %v3832
      %v3869 = vmul.f32 %v3848, %v3833
      %v3870 = vmul.f32 %v3848, %v3834
      %v3871 = vmul.f32 %v3848, %v3835
      %v3872 = vmul.f32 %v3848, %v3836
      %v3873 = vmul.f32 %v3848, %v3837
      %v3874 = vmul.f32 %v3848, %v3838
      %v3875 = vmul.f32 %v3848, %v3839
      %v3876 = vmul.f32 %v3848, %v3840
      %v3877 = vmul.f32 %v3848, %v3841
      %v3878 = vmul.f32 %v3848, %v3842
      %v3879 = vmul.f32 %v3848, %v3843
      %v3880 = vmul.f32 %v3848, %v3844
      %v3881 = vadd.f32 %v3780, %v3849
      %v3882 = vadd.f32 %v3781, %v3850
      %v3883 = vadd.f32 %v3782, %v3851
      %v3884 = vadd.f32 %v3783, %v3852
      %v3885 = vadd.f32 %v3784, %v3853
      %v3886 = vadd.f32 %v3785, %v3854
      %v3887 = vadd.f32 %v3786, %v3855
      %v3888 = vadd.f32 %v3787, %v3856
      %v3889 = vadd.f32 %v3788, %v3857
      %v3890 = vadd.f32 %v3789, %v3858
      %v3891 = vadd.f32 %v3790, %v3859
      %v3892 = vadd.f32 %v3791, %v3860
      %v3893 = vadd.f32 %v3792, %v3861
      %v3894 = vadd.f32 %v3793, %v3862
      %v3895 = vadd.f32 %v3794, %v3863
      %v3896 = vadd.f32 %v3795, %v3864
      %v3897 = vadd.f32 %v3796, %v3865
      %v3898 = vadd.f32 %v3797, %v3866
      %v3899 = vadd.f32 %v3798, %v3867
      %v3900 = vadd.f32 %v3799, %v3868
      %v3901 = vadd.f32 %v3800, %v3869
      %v3902 = vadd.f32 %v3801, %v3870
      %v3903 = vadd.f32 %v3802, %v3871
      %v3904 = vadd.f32 %v3803, %v3872
      %v3905 = vadd.f32 %v3804, %v3873
      %v3906 = vadd.f32 %v3805, %v3874
      %v3907 = vadd.f32 %v3806, %v3875
      %v3908 = vadd.f32 %v3807, %v3876
      %v3909 = vadd.f32 %v3808, %v3877
      %v3910 = vadd.f32 %v3809, %v3878
      %v3911 = vadd.f32 %v3810, %v3879
      %v3912 = vadd.f32 %v3811, %v3880
      %v3913 = vld [vmem:[%s3812 + $0x1] sm:$0xff]
      %v3914 = vld [vmem:[%s3812 + $0x9] sm:$0xff]
      %v3915 = vld [vmem:[%s3812 + $0x19] sm:$0xff]
      %v3916 = vld [vmem:[%s3812 + $0x21] sm:$0xff]
      %v3917 = vld [vmem:[%s3812 + $0x31] sm:$0xff]
      %v3918 = vld [vmem:[%s3812 + $0x39] sm:$0xff]
      %v3919 = vld [vmem:[%s3812 + $0x49] sm:$0xff]
      %v3920 = vld [vmem:[%s3812 + $0x51] sm:$0xff]
      %v3921 = vld [vmem:[%s3812 + $0x61] sm:$0xff]
      %v3922 = vld [vmem:[%s3812 + $0x69] sm:$0xff]
      %v3923 = vld [vmem:[%s3812 + $0x79] sm:$0xff]
      %v3924 = vld [vmem:[%s3812 + $0x81] sm:$0xff]
      %v3925 = vld [vmem:[%s3812 + $0x91] sm:$0xff]
      %v3926 = vld [vmem:[%s3812 + $0x99] sm:$0xff]
      %v3927 = vld [vmem:[%s3812 + $0xa9] sm:$0xff]
      %v3928 = vld [vmem:[%s3812 + $0xb1] sm:$0xff]
      %v3929 = vld [vmem:[%s3812 + $0xc1] sm:$0xff]
      %v3930 = vld [vmem:[%s3812 + $0xc9] sm:$0xff]
      %v3931 = vld [vmem:[%s3812 + $0xd9] sm:$0xff]
      %v3932 = vld [vmem:[%s3812 + $0xe1] sm:$0xff]
      %v3933 = vld [vmem:[%s3812 + $0xf1] sm:$0xff]
      %v3934 = vld [vmem:[%s3812 + $0xf9] sm:$0xff]
      %v3935 = vld [vmem:[%s3812 + $0x109] sm:$0xff]
      %v3936 = vld [vmem:[%s3812 + $0x111] sm:$0xff]
      %v3937 = vld [vmem:[%s3812 + $0x121] sm:$0xff]
      %v3938 = vld [vmem:[%s3812 + $0x129] sm:$0xff]
      %v3939 = vld [vmem:[%s3812 + $0x139] sm:$0xff]
      %v3940 = vld [vmem:[%s3812 + $0x141] sm:$0xff]
      %v3941 = vld [vmem:[%s3812 + $0x151] sm:$0xff]
      %v3942 = vld [vmem:[%s3812 + $0x159] sm:$0xff]
      %v3943 = vld [vmem:[%s3812 + $0x169] sm:$0xff]
      %v3944 = vld [vmem:[%s3812 + $0x171] sm:$0xff]
      %v3945 = vlaneseq
      %v3946 = vshrl.u32 %v3945, 7
      %v3947 = vsub.s32 4, %v3946
      %v3948 = vrot.slane %v235, %v3947
      %v3949 = vmul.f32 %v3948, %v3913
      %v3950 = vmul.f32 %v3948, %v3914
      %v3951 = vmul.f32 %v3948, %v3915
      %v3952 = vmul.f32 %v3948, %v3916
      %v3953 = vmul.f32 %v3948, %v3917
      %v3954 = vmul.f32 %v3948, %v3918
      %v3955 = vmul.f32 %v3948, %v3919
      %v3956 = vmul.f32 %v3948, %v3920
      %v3957 = vmul.f32 %v3948, %v3921
      %v3958 = vmul.f32 %v3948, %v3922
      %v3959 = vmul.f32 %v3948, %v3923
      %v3960 = vmul.f32 %v3948, %v3924
      %v3961 = vmul.f32 %v3948, %v3925
      %v3962 = vmul.f32 %v3948, %v3926
      %v3963 = vmul.f32 %v3948, %v3927
      %v3964 = vmul.f32 %v3948, %v3928
      %v3965 = vmul.f32 %v3948, %v3929
      %v3966 = vmul.f32 %v3948, %v3930
      %v3967 = vmul.f32 %v3948, %v3931
      %v3968 = vmul.f32 %v3948, %v3932
      %v3969 = vmul.f32 %v3948, %v3933
      %v3970 = vmul.f32 %v3948, %v3934
      %v3971 = vmul.f32 %v3948, %v3935
      %v3972 = vmul.f32 %v3948, %v3936
      %v3973 = vmul.f32 %v3948, %v3937
      %v3974 = vmul.f32 %v3948, %v3938
      %v3975 = vmul.f32 %v3948, %v3939
      %v3976 = vmul.f32 %v3948, %v3940
      %v3977 = vmul.f32 %v3948, %v3941
      %v3978 = vmul.f32 %v3948, %v3942
      %v3979 = vmul.f32 %v3948, %v3943
      %v3980 = vmul.f32 %v3948, %v3944
      %v3981 = vadd.f32 %v3881, %v3949
      %v3982 = vadd.f32 %v3882, %v3950
      %v3983 = vadd.f32 %v3883, %v3951
      %v3984 = vadd.f32 %v3884, %v3952
      %v3985 = vadd.f32 %v3885, %v3953
      %v3986 = vadd.f32 %v3886, %v3954
      %v3987 = vadd.f32 %v3887, %v3955
      %v3988 = vadd.f32 %v3888, %v3956
      %v3989 = vadd.f32 %v3889, %v3957
      %v3990 = vadd.f32 %v3890, %v3958
      %v3991 = vadd.f32 %v3891, %v3959
      %v3992 = vadd.f32 %v3892, %v3960
      %v3993 = vadd.f32 %v3893, %v3961
      %v3994 = vadd.f32 %v3894, %v3962
      %v3995 = vadd.f32 %v3895, %v3963
      %v3996 = vadd.f32 %v3896, %v3964
      %v3997 = vadd.f32 %v3897, %v3965
      %v3998 = vadd.f32 %v3898, %v3966
      %v3999 = vadd.f32 %v3899, %v3967
      %v4000 = vadd.f32 %v3900, %v3968
      %v4001 = vadd.f32 %v3901, %v3969
      %v4002 = vadd.f32 %v3902, %v3970
      %v4003 = vadd.f32 %v3903, %v3971
      %v4004 = vadd.f32 %v3904, %v3972
      %v4005 = vadd.f32 %v3905, %v3973
      %v4006 = vadd.f32 %v3906, %v3974
      %v4007 = vadd.f32 %v3907, %v3975
      %v4008 = vadd.f32 %v3908, %v3976
      %v4009 = vadd.f32 %v3909, %v3977
      %v4010 = vadd.f32 %v3910, %v3978
      %v4011 = vadd.f32 %v3911, %v3979
      %v4012 = vadd.f32 %v3912, %v3980
      %v4013 = vld [vmem:[%s3812 + $0x2] sm:$0xff]
      %v4014 = vld [vmem:[%s3812 + $0xa] sm:$0xff]
      %v4015 = vld [vmem:[%s3812 + $0x1a] sm:$0xff]
      %v4016 = vld [vmem:[%s3812 + $0x22] sm:$0xff]
      %v4017 = vld [vmem:[%s3812 + $0x32] sm:$0xff]
      %v4018 = vld [vmem:[%s3812 + $0x3a] sm:$0xff]
      %v4019 = vld [vmem:[%s3812 + $0x4a] sm:$0xff]
      %v4020 = vld [vmem:[%s3812 + $0x52] sm:$0xff]
      %v4021 = vld [vmem:[%s3812 + $0x62] sm:$0xff]
      %v4022 = vld [vmem:[%s3812 + $0x6a] sm:$0xff]
      %v4023 = vld [vmem:[%s3812 + $0x7a] sm:$0xff]
      %v4024 = vld [vmem:[%s3812 + $0x82] sm:$0xff]
      %v4025 = vld [vmem:[%s3812 + $0x92] sm:$0xff]
      %v4026 = vld [vmem:[%s3812 + $0x9a] sm:$0xff]
      %v4027 = vld [vmem:[%s3812 + $0xaa] sm:$0xff]
      %v4028 = vld [vmem:[%s3812 + $0xb2] sm:$0xff]
      %v4029 = vld [vmem:[%s3812 + $0xc2] sm:$0xff]
      %v4030 = vld [vmem:[%s3812 + $0xca] sm:$0xff]
      %v4031 = vld [vmem:[%s3812 + $0xda] sm:$0xff]
      %v4032 = vld [vmem:[%s3812 + $0xe2] sm:$0xff]
      %v4033 = vld [vmem:[%s3812 + $0xf2] sm:$0xff]
      %v4034 = vld [vmem:[%s3812 + $0xfa] sm:$0xff]
      %v4035 = vld [vmem:[%s3812 + $0x10a] sm:$0xff]
      %v4036 = vld [vmem:[%s3812 + $0x112] sm:$0xff]
      %v4037 = vld [vmem:[%s3812 + $0x122] sm:$0xff]
      %v4038 = vld [vmem:[%s3812 + $0x12a] sm:$0xff]
      %v4039 = vld [vmem:[%s3812 + $0x13a] sm:$0xff]
      %v4040 = vld [vmem:[%s3812 + $0x142] sm:$0xff]
      %v4041 = vld [vmem:[%s3812 + $0x152] sm:$0xff]
      %v4042 = vld [vmem:[%s3812 + $0x15a] sm:$0xff]
      %v4043 = vld [vmem:[%s3812 + $0x16a] sm:$0xff]
      %v4044 = vld [vmem:[%s3812 + $0x172] sm:$0xff]
      %v4045 = vlaneseq
      %v4046 = vshrl.u32 %v4045, 7
      %v4047 = vsub.s32 5, %v4046
      %v4048 = vrot.slane %v235, %v4047
      %v4049 = vmul.f32 %v4048, %v4013
      %v4050 = vmul.f32 %v4048, %v4014
      %v4051 = vmul.f32 %v4048, %v4015
      %v4052 = vmul.f32 %v4048, %v4016
      %v4053 = vmul.f32 %v4048, %v4017
      %v4054 = vmul.f32 %v4048, %v4018
      %v4055 = vmul.f32 %v4048, %v4019
      %v4056 = vmul.f32 %v4048, %v4020
      %v4057 = vmul.f32 %v4048, %v4021
      %v4058 = vmul.f32 %v4048, %v4022
      %v4059 = vmul.f32 %v4048, %v4023
      %v4060 = vmul.f32 %v4048, %v4024
      %v4061 = vmul.f32 %v4048, %v4025
      %v4062 = vmul.f32 %v4048, %v4026
      %v4063 = vmul.f32 %v4048, %v4027
      %v4064 = vmul.f32 %v4048, %v4028
      %v4065 = vmul.f32 %v4048, %v4029
      %v4066 = vmul.f32 %v4048, %v4030
      %v4067 = vmul.f32 %v4048, %v4031
      %v4068 = vmul.f32 %v4048, %v4032
      %v4069 = vmul.f32 %v4048, %v4033
      %v4070 = vmul.f32 %v4048, %v4034
      %v4071 = vmul.f32 %v4048, %v4035
      %v4072 = vmul.f32 %v4048, %v4036
      %v4073 = vmul.f32 %v4048, %v4037
      %v4074 = vmul.f32 %v4048, %v4038
      %v4075 = vmul.f32 %v4048, %v4039
      %v4076 = vmul.f32 %v4048, %v4040
      %v4077 = vmul.f32 %v4048, %v4041
      %v4078 = vmul.f32 %v4048, %v4042
      %v4079 = vmul.f32 %v4048, %v4043
      %v4080 = vmul.f32 %v4048, %v4044
      %v4081 = vadd.f32 %v3981, %v4049
      %v4082 = vadd.f32 %v3982, %v4050
      %v4083 = vadd.f32 %v3983, %v4051
      %v4084 = vadd.f32 %v3984, %v4052
      %v4085 = vadd.f32 %v3985, %v4053
      %v4086 = vadd.f32 %v3986, %v4054
      %v4087 = vadd.f32 %v3987, %v4055
      %v4088 = vadd.f32 %v3988, %v4056
      %v4089 = vadd.f32 %v3989, %v4057
      %v4090 = vadd.f32 %v3990, %v4058
      %v4091 = vadd.f32 %v3991, %v4059
      %v4092 = vadd.f32 %v3992, %v4060
      %v4093 = vadd.f32 %v3993, %v4061
      %v4094 = vadd.f32 %v3994, %v4062
      %v4095 = vadd.f32 %v3995, %v4063
      %v4096 = vadd.f32 %v3996, %v4064
      %v4097 = vadd.f32 %v3997, %v4065
      %v4098 = vadd.f32 %v3998, %v4066
      %v4099 = vadd.f32 %v3999, %v4067
      %v4100 = vadd.f32 %v4000, %v4068
      %v4101 = vadd.f32 %v4001, %v4069
      %v4102 = vadd.f32 %v4002, %v4070
      %v4103 = vadd.f32 %v4003, %v4071
      %v4104 = vadd.f32 %v4004, %v4072
      %v4105 = vadd.f32 %v4005, %v4073
      %v4106 = vadd.f32 %v4006, %v4074
      %v4107 = vadd.f32 %v4007, %v4075
      %v4108 = vadd.f32 %v4008, %v4076
      %v4109 = vadd.f32 %v4009, %v4077
      %v4110 = vadd.f32 %v4010, %v4078
      %v4111 = vadd.f32 %v4011, %v4079
      %v4112 = vadd.f32 %v4012, %v4080
      %v4113 = vld [vmem:[%s3812 + $0x3] sm:$0xff]
      %v4114 = vld [vmem:[%s3812 + $0xb] sm:$0xff]
      %v4115 = vld [vmem:[%s3812 + $0x1b] sm:$0xff]
      %v4116 = vld [vmem:[%s3812 + $0x23] sm:$0xff]
      %v4117 = vld [vmem:[%s3812 + $0x33] sm:$0xff]
      %v4118 = vld [vmem:[%s3812 + $0x3b] sm:$0xff]
      %v4119 = vld [vmem:[%s3812 + $0x4b] sm:$0xff]
      %v4120 = vld [vmem:[%s3812 + $0x53] sm:$0xff]
      %v4121 = vld [vmem:[%s3812 + $0x63] sm:$0xff]
      %v4122 = vld [vmem:[%s3812 + $0x6b] sm:$0xff]
      %v4123 = vld [vmem:[%s3812 + $0x7b] sm:$0xff]
      %v4124 = vld [vmem:[%s3812 + $0x83] sm:$0xff]
      %v4125 = vld [vmem:[%s3812 + $0x93] sm:$0xff]
      %v4126 = vld [vmem:[%s3812 + $0x9b] sm:$0xff]
      %v4127 = vld [vmem:[%s3812 + $0xab] sm:$0xff]
      %v4128 = vld [vmem:[%s3812 + $0xb3] sm:$0xff]
      %v4129 = vld [vmem:[%s3812 + $0xc3] sm:$0xff]
      %v4130 = vld [vmem:[%s3812 + $0xcb] sm:$0xff]
      %v4131 = vld [vmem:[%s3812 + $0xdb] sm:$0xff]
      %v4132 = vld [vmem:[%s3812 + $0xe3] sm:$0xff]
      %v4133 = vld [vmem:[%s3812 + $0xf3] sm:$0xff]
      %v4134 = vld [vmem:[%s3812 + $0xfb] sm:$0xff]
      %v4135 = vld [vmem:[%s3812 + $0x10b] sm:$0xff]
      %v4136 = vld [vmem:[%s3812 + $0x113] sm:$0xff]
      %v4137 = vld [vmem:[%s3812 + $0x123] sm:$0xff]
      %v4138 = vld [vmem:[%s3812 + $0x12b] sm:$0xff]
      %v4139 = vld [vmem:[%s3812 + $0x13b] sm:$0xff]
      %v4140 = vld [vmem:[%s3812 + $0x143] sm:$0xff]
      %v4141 = vld [vmem:[%s3812 + $0x153] sm:$0xff]
      %v4142 = vld [vmem:[%s3812 + $0x15b] sm:$0xff]
      %v4143 = vld [vmem:[%s3812 + $0x16b] sm:$0xff]
      %v4144 = vld [vmem:[%s3812 + $0x173] sm:$0xff]
      %v4145 = vlaneseq
      %v4146 = vshrl.u32 %v4145, 7
      %v4147 = vsub.s32 6, %v4146
      %v4148 = vrot.slane %v235, %v4147
      %v4149 = vmul.f32 %v4148, %v4113
      %v4150 = vmul.f32 %v4148, %v4114
      %v4151 = vmul.f32 %v4148, %v4115
      %v4152 = vmul.f32 %v4148, %v4116
      %v4153 = vmul.f32 %v4148, %v4117
      %v4154 = vmul.f32 %v4148, %v4118
      %v4155 = vmul.f32 %v4148, %v4119
      %v4156 = vmul.f32 %v4148, %v4120
      %v4157 = vmul.f32 %v4148, %v4121
      %v4158 = vmul.f32 %v4148, %v4122
      %v4159 = vmul.f32 %v4148, %v4123
      %v4160 = vmul.f32 %v4148, %v4124
      %v4161 = vmul.f32 %v4148, %v4125
      %v4162 = vmul.f32 %v4148, %v4126
      %v4163 = vmul.f32 %v4148, %v4127
      %v4164 = vmul.f32 %v4148, %v4128
      %v4165 = vmul.f32 %v4148, %v4129
      %v4166 = vmul.f32 %v4148, %v4130
      %v4167 = vmul.f32 %v4148, %v4131
      %v4168 = vmul.f32 %v4148, %v4132
      %v4169 = vmul.f32 %v4148, %v4133
      %v4170 = vmul.f32 %v4148, %v4134
      %v4171 = vmul.f32 %v4148, %v4135
      %v4172 = vmul.f32 %v4148, %v4136
      %v4173 = vmul.f32 %v4148, %v4137
      %v4174 = vmul.f32 %v4148, %v4138
      %v4175 = vmul.f32 %v4148, %v4139
      %v4176 = vmul.f32 %v4148, %v4140
      %v4177 = vmul.f32 %v4148, %v4141
      %v4178 = vmul.f32 %v4148, %v4142
      %v4179 = vmul.f32 %v4148, %v4143
      %v4180 = vmul.f32 %v4148, %v4144
      %v4181 = vadd.f32 %v4081, %v4149
      %v4182 = vadd.f32 %v4082, %v4150
      %v4183 = vadd.f32 %v4083, %v4151
      %v4184 = vadd.f32 %v4084, %v4152
      %v4185 = vadd.f32 %v4085, %v4153
      %v4186 = vadd.f32 %v4086, %v4154
      %v4187 = vadd.f32 %v4087, %v4155
      %v4188 = vadd.f32 %v4088, %v4156
      %v4189 = vadd.f32 %v4089, %v4157
      %v4190 = vadd.f32 %v4090, %v4158
      %v4191 = vadd.f32 %v4091, %v4159
      %v4192 = vadd.f32 %v4092, %v4160
      %v4193 = vadd.f32 %v4093, %v4161
      %v4194 = vadd.f32 %v4094, %v4162
      %v4195 = vadd.f32 %v4095, %v4163
      %v4196 = vadd.f32 %v4096, %v4164
      %v4197 = vadd.f32 %v4097, %v4165
      %v4198 = vadd.f32 %v4098, %v4166
      %v4199 = vadd.f32 %v4099, %v4167
      %v4200 = vadd.f32 %v4100, %v4168
      %v4201 = vadd.f32 %v4101, %v4169
      %v4202 = vadd.f32 %v4102, %v4170
      %v4203 = vadd.f32 %v4103, %v4171
      %v4204 = vadd.f32 %v4104, %v4172
      %v4205 = vadd.f32 %v4105, %v4173
      %v4206 = vadd.f32 %v4106, %v4174
      %v4207 = vadd.f32 %v4107, %v4175
      %v4208 = vadd.f32 %v4108, %v4176
      %v4209 = vadd.f32 %v4109, %v4177
      %v4210 = vadd.f32 %v4110, %v4178
      %v4211 = vadd.f32 %v4111, %v4179
      %v4212 = vadd.f32 %v4112, %v4180
      %v4213 = vld [vmem:[%s3812 + $0x4] sm:$0xff]
      %v4214 = vld [vmem:[%s3812 + $0xc] sm:$0xff]
      %v4215 = vld [vmem:[%s3812 + $0x1c] sm:$0xff]
      %v4216 = vld [vmem:[%s3812 + $0x24] sm:$0xff]
      %v4217 = vld [vmem:[%s3812 + $0x34] sm:$0xff]
      %v4218 = vld [vmem:[%s3812 + $0x3c] sm:$0xff]
      %v4219 = vld [vmem:[%s3812 + $0x4c] sm:$0xff]
      %v4220 = vld [vmem:[%s3812 + $0x54] sm:$0xff]
      %v4221 = vld [vmem:[%s3812 + $0x64] sm:$0xff]
      %v4222 = vld [vmem:[%s3812 + $0x6c] sm:$0xff]
      %v4223 = vld [vmem:[%s3812 + $0x7c] sm:$0xff]
      %v4224 = vld [vmem:[%s3812 + $0x84] sm:$0xff]
      %v4225 = vld [vmem:[%s3812 + $0x94] sm:$0xff]
      %v4226 = vld [vmem:[%s3812 + $0x9c] sm:$0xff]
      %v4227 = vld [vmem:[%s3812 + $0xac] sm:$0xff]
      %v4228 = vld [vmem:[%s3812 + $0xb4] sm:$0xff]
      %v4229 = vld [vmem:[%s3812 + $0xc4] sm:$0xff]
      %v4230 = vld [vmem:[%s3812 + $0xcc] sm:$0xff]
      %v4231 = vld [vmem:[%s3812 + $0xdc] sm:$0xff]
      %v4232 = vld [vmem:[%s3812 + $0xe4] sm:$0xff]
      %v4233 = vld [vmem:[%s3812 + $0xf4] sm:$0xff]
      %v4234 = vld [vmem:[%s3812 + $0xfc] sm:$0xff]
      %v4235 = vld [vmem:[%s3812 + $0x10c] sm:$0xff]
      %v4236 = vld [vmem:[%s3812 + $0x114] sm:$0xff]
      %v4237 = vld [vmem:[%s3812 + $0x124] sm:$0xff]
      %v4238 = vld [vmem:[%s3812 + $0x12c] sm:$0xff]
      %v4239 = vld [vmem:[%s3812 + $0x13c] sm:$0xff]
      %v4240 = vld [vmem:[%s3812 + $0x144] sm:$0xff]
      %v4241 = vld [vmem:[%s3812 + $0x154] sm:$0xff]
      %v4242 = vld [vmem:[%s3812 + $0x15c] sm:$0xff]
      %v4243 = vld [vmem:[%s3812 + $0x16c] sm:$0xff]
      %v4244 = vld [vmem:[%s3812 + $0x174] sm:$0xff]
      %v4245 = vlaneseq
      %v4246 = vshrl.u32 %v4245, 7
      %v4247 = vsub.s32 7, %v4246
      %v4248 = vrot.slane %v235, %v4247
      %v4249 = vmul.f32 %v4248, %v4213
      %v4250 = vmul.f32 %v4248, %v4214
      %v4251 = vmul.f32 %v4248, %v4215
      %v4252 = vmul.f32 %v4248, %v4216
      %v4253 = vmul.f32 %v4248, %v4217
      %v4254 = vmul.f32 %v4248, %v4218
      %v4255 = vmul.f32 %v4248, %v4219
      %v4256 = vmul.f32 %v4248, %v4220
      %v4257 = vmul.f32 %v4248, %v4221
      %v4258 = vmul.f32 %v4248, %v4222
      %v4259 = vmul.f32 %v4248, %v4223
      %v4260 = vmul.f32 %v4248, %v4224
      %v4261 = vmul.f32 %v4248, %v4225
      %v4262 = vmul.f32 %v4248, %v4226
      %v4263 = vmul.f32 %v4248, %v4227
      %v4264 = vmul.f32 %v4248, %v4228
      %v4265 = vmul.f32 %v4248, %v4229
      %v4266 = vmul.f32 %v4248, %v4230
      %v4267 = vmul.f32 %v4248, %v4231
      %v4268 = vmul.f32 %v4248, %v4232
      %v4269 = vmul.f32 %v4248, %v4233
      %v4270 = vmul.f32 %v4248, %v4234
      %v4271 = vmul.f32 %v4248, %v4235
      %v4272 = vmul.f32 %v4248, %v4236
      %v4273 = vmul.f32 %v4248, %v4237
      %v4274 = vmul.f32 %v4248, %v4238
      %v4275 = vmul.f32 %v4248, %v4239
      %v4276 = vmul.f32 %v4248, %v4240
      %v4277 = vmul.f32 %v4248, %v4241
      %v4278 = vmul.f32 %v4248, %v4242
      %v4279 = vmul.f32 %v4248, %v4243
      %v4280 = vmul.f32 %v4248, %v4244
      %v4281 = vadd.f32 %v4181, %v4249
      %v4282 = vadd.f32 %v4182, %v4250
      %v4283 = vadd.f32 %v4183, %v4251
      %v4284 = vadd.f32 %v4184, %v4252
      %v4285 = vadd.f32 %v4185, %v4253
      %v4286 = vadd.f32 %v4186, %v4254
      %v4287 = vadd.f32 %v4187, %v4255
      %v4288 = vadd.f32 %v4188, %v4256
      %v4289 = vadd.f32 %v4189, %v4257
      %v4290 = vadd.f32 %v4190, %v4258
      %v4291 = vadd.f32 %v4191, %v4259
      %v4292 = vadd.f32 %v4192, %v4260
      %v4293 = vadd.f32 %v4193, %v4261
      %v4294 = vadd.f32 %v4194, %v4262
      %v4295 = vadd.f32 %v4195, %v4263
      %v4296 = vadd.f32 %v4196, %v4264
      %v4297 = vadd.f32 %v4197, %v4265
      %v4298 = vadd.f32 %v4198, %v4266
      %v4299 = vadd.f32 %v4199, %v4267
      %v4300 = vadd.f32 %v4200, %v4268
      %v4301 = vadd.f32 %v4201, %v4269
      %v4302 = vadd.f32 %v4202, %v4270
      %v4303 = vadd.f32 %v4203, %v4271
      %v4304 = vadd.f32 %v4204, %v4272
      %v4305 = vadd.f32 %v4205, %v4273
      %v4306 = vadd.f32 %v4206, %v4274
      %v4307 = vadd.f32 %v4207, %v4275
      %v4308 = vadd.f32 %v4208, %v4276
      %v4309 = vadd.f32 %v4209, %v4277
      %v4310 = vadd.f32 %v4210, %v4278
      %v4311 = vadd.f32 %v4211, %v4279
      %v4312 = vadd.f32 %v4212, %v4280
      %v4313 = vld [vmem:[%s3812 + $0x5] sm:$0xff]
      %v4314 = vld [vmem:[%s3812 + $0xd] sm:$0xff]
      %v4315 = vld [vmem:[%s3812 + $0x1d] sm:$0xff]
      %v4316 = vld [vmem:[%s3812 + $0x25] sm:$0xff]
      %v4317 = vld [vmem:[%s3812 + $0x35] sm:$0xff]
      %v4318 = vld [vmem:[%s3812 + $0x3d] sm:$0xff]
      %v4319 = vld [vmem:[%s3812 + $0x4d] sm:$0xff]
      %v4320 = vld [vmem:[%s3812 + $0x55] sm:$0xff]
      %v4321 = vld [vmem:[%s3812 + $0x65] sm:$0xff]
      %v4322 = vld [vmem:[%s3812 + $0x6d] sm:$0xff]
      %v4323 = vld [vmem:[%s3812 + $0x7d] sm:$0xff]
      %v4324 = vld [vmem:[%s3812 + $0x85] sm:$0xff]
      %v4325 = vld [vmem:[%s3812 + $0x95] sm:$0xff]
      %v4326 = vld [vmem:[%s3812 + $0x9d] sm:$0xff]
      %v4327 = vld [vmem:[%s3812 + $0xad] sm:$0xff]
      %v4328 = vld [vmem:[%s3812 + $0xb5] sm:$0xff]
      %v4329 = vld [vmem:[%s3812 + $0xc5] sm:$0xff]
      %v4330 = vld [vmem:[%s3812 + $0xcd] sm:$0xff]
      %v4331 = vld [vmem:[%s3812 + $0xdd] sm:$0xff]
      %v4332 = vld [vmem:[%s3812 + $0xe5] sm:$0xff]
      %v4333 = vld [vmem:[%s3812 + $0xf5] sm:$0xff]
      %v4334 = vld [vmem:[%s3812 + $0xfd] sm:$0xff]
      %v4335 = vld [vmem:[%s3812 + $0x10d] sm:$0xff]
      %v4336 = vld [vmem:[%s3812 + $0x115] sm:$0xff]
      %v4337 = vld [vmem:[%s3812 + $0x125] sm:$0xff]
      %v4338 = vld [vmem:[%s3812 + $0x12d] sm:$0xff]
      %v4339 = vld [vmem:[%s3812 + $0x13d] sm:$0xff]
      %v4340 = vld [vmem:[%s3812 + $0x145] sm:$0xff]
      %v4341 = vld [vmem:[%s3812 + $0x155] sm:$0xff]
      %v4342 = vld [vmem:[%s3812 + $0x15d] sm:$0xff]
      %v4343 = vld [vmem:[%s3812 + $0x16d] sm:$0xff]
      %v4344 = vld [vmem:[%s3812 + $0x175] sm:$0xff]
      %v4345 = vlaneseq
      %v4346 = vshrl.u32 %v4345, 7
      %v4347 = vsub.s32 0, %v4346
      %v4348 = vrot.slane %v236, %v4347
      %v4349 = vmul.f32 %v4348, %v4313
      %v4350 = vmul.f32 %v4348, %v4314
      %v4351 = vmul.f32 %v4348, %v4315
      %v4352 = vmul.f32 %v4348, %v4316
      %v4353 = vmul.f32 %v4348, %v4317
      %v4354 = vmul.f32 %v4348, %v4318
      %v4355 = vmul.f32 %v4348, %v4319
      %v4356 = vmul.f32 %v4348, %v4320
      %v4357 = vmul.f32 %v4348, %v4321
      %v4358 = vmul.f32 %v4348, %v4322
      %v4359 = vmul.f32 %v4348, %v4323
      %v4360 = vmul.f32 %v4348, %v4324
      %v4361 = vmul.f32 %v4348, %v4325
      %v4362 = vmul.f32 %v4348, %v4326
      %v4363 = vmul.f32 %v4348, %v4327
      %v4364 = vmul.f32 %v4348, %v4328
      %v4365 = vmul.f32 %v4348, %v4329
      %v4366 = vmul.f32 %v4348, %v4330
      %v4367 = vmul.f32 %v4348, %v4331
      %v4368 = vmul.f32 %v4348, %v4332
      %v4369 = vmul.f32 %v4348, %v4333
      %v4370 = vmul.f32 %v4348, %v4334
      %v4371 = vmul.f32 %v4348, %v4335
      %v4372 = vmul.f32 %v4348, %v4336
      %v4373 = vmul.f32 %v4348, %v4337
      %v4374 = vmul.f32 %v4348, %v4338
      %v4375 = vmul.f32 %v4348, %v4339
      %v4376 = vmul.f32 %v4348, %v4340
      %v4377 = vmul.f32 %v4348, %v4341
      %v4378 = vmul.f32 %v4348, %v4342
      %v4379 = vmul.f32 %v4348, %v4343
      %v4380 = vmul.f32 %v4348, %v4344
      %v4381 = vadd.f32 %v4281, %v4349
      %v4382 = vadd.f32 %v4282, %v4350
      %v4383 = vadd.f32 %v4283, %v4351
      %v4384 = vadd.f32 %v4284, %v4352
      %v4385 = vadd.f32 %v4285, %v4353
      %v4386 = vadd.f32 %v4286, %v4354
      %v4387 = vadd.f32 %v4287, %v4355
      %v4388 = vadd.f32 %v4288, %v4356
      %v4389 = vadd.f32 %v4289, %v4357
      %v4390 = vadd.f32 %v4290, %v4358
      %v4391 = vadd.f32 %v4291, %v4359
      %v4392 = vadd.f32 %v4292, %v4360
      %v4393 = vadd.f32 %v4293, %v4361
      %v4394 = vadd.f32 %v4294, %v4362
      %v4395 = vadd.f32 %v4295, %v4363
      %v4396 = vadd.f32 %v4296, %v4364
      %v4397 = vadd.f32 %v4297, %v4365
      %v4398 = vadd.f32 %v4298, %v4366
      %v4399 = vadd.f32 %v4299, %v4367
      %v4400 = vadd.f32 %v4300, %v4368
      %v4401 = vadd.f32 %v4301, %v4369
      %v4402 = vadd.f32 %v4302, %v4370
      %v4403 = vadd.f32 %v4303, %v4371
      %v4404 = vadd.f32 %v4304, %v4372
      %v4405 = vadd.f32 %v4305, %v4373
      %v4406 = vadd.f32 %v4306, %v4374
      %v4407 = vadd.f32 %v4307, %v4375
      %v4408 = vadd.f32 %v4308, %v4376
      %v4409 = vadd.f32 %v4309, %v4377
      %v4410 = vadd.f32 %v4310, %v4378
      %v4411 = vadd.f32 %v4311, %v4379
      %v4412 = vadd.f32 %v4312, %v4380
      %v4413 = vld [vmem:[%s3812 + $0x6] sm:$0xff]
      %v4414 = vld [vmem:[%s3812 + $0xe] sm:$0xff]
      %v4415 = vld [vmem:[%s3812 + $0x1e] sm:$0xff]
      %v4416 = vld [vmem:[%s3812 + $0x26] sm:$0xff]
      %v4417 = vld [vmem:[%s3812 + $0x36] sm:$0xff]
      %v4418 = vld [vmem:[%s3812 + $0x3e] sm:$0xff]
      %v4419 = vld [vmem:[%s3812 + $0x4e] sm:$0xff]
      %v4420 = vld [vmem:[%s3812 + $0x56] sm:$0xff]
      %v4421 = vld [vmem:[%s3812 + $0x66] sm:$0xff]
      %v4422 = vld [vmem:[%s3812 + $0x6e] sm:$0xff]
      %v4423 = vld [vmem:[%s3812 + $0x7e] sm:$0xff]
      %v4424 = vld [vmem:[%s3812 + $0x86] sm:$0xff]
      %v4425 = vld [vmem:[%s3812 + $0x96] sm:$0xff]
      %v4426 = vld [vmem:[%s3812 + $0x9e] sm:$0xff]
      %v4427 = vld [vmem:[%s3812 + $0xae] sm:$0xff]
      %v4428 = vld [vmem:[%s3812 + $0xb6] sm:$0xff]
      %v4429 = vld [vmem:[%s3812 + $0xc6] sm:$0xff]
      %v4430 = vld [vmem:[%s3812 + $0xce] sm:$0xff]
      %v4431 = vld [vmem:[%s3812 + $0xde] sm:$0xff]
      %v4432 = vld [vmem:[%s3812 + $0xe6] sm:$0xff]
      %v4433 = vld [vmem:[%s3812 + $0xf6] sm:$0xff]
      %v4434 = vld [vmem:[%s3812 + $0xfe] sm:$0xff]
      %v4435 = vld [vmem:[%s3812 + $0x10e] sm:$0xff]
      %v4436 = vld [vmem:[%s3812 + $0x116] sm:$0xff]
      %v4437 = vld [vmem:[%s3812 + $0x126] sm:$0xff]
      %v4438 = vld [vmem:[%s3812 + $0x12e] sm:$0xff]
      %v4439 = vld [vmem:[%s3812 + $0x13e] sm:$0xff]
      %v4440 = vld [vmem:[%s3812 + $0x146] sm:$0xff]
      %v4441 = vld [vmem:[%s3812 + $0x156] sm:$0xff]
      %v4442 = vld [vmem:[%s3812 + $0x15e] sm:$0xff]
      %v4443 = vld [vmem:[%s3812 + $0x16e] sm:$0xff]
      %v4444 = vld [vmem:[%s3812 + $0x176] sm:$0xff]
      %v4445 = vlaneseq
      %v4446 = vshrl.u32 %v4445, 7
      %v4447 = vsub.s32 1, %v4446
      %v4448 = vrot.slane %v236, %v4447
      %v4449 = vmul.f32 %v4448, %v4413
      %v4450 = vmul.f32 %v4448, %v4414
      %v4451 = vmul.f32 %v4448, %v4415
      %v4452 = vmul.f32 %v4448, %v4416
      %v4453 = vmul.f32 %v4448, %v4417
      %v4454 = vmul.f32 %v4448, %v4418
      %v4455 = vmul.f32 %v4448, %v4419
      %v4456 = vmul.f32 %v4448, %v4420
      %v4457 = vmul.f32 %v4448, %v4421
      %v4458 = vmul.f32 %v4448, %v4422
      %v4459 = vmul.f32 %v4448, %v4423
      %v4460 = vmul.f32 %v4448, %v4424
      %v4461 = vmul.f32 %v4448, %v4425
      %v4462 = vmul.f32 %v4448, %v4426
      %v4463 = vmul.f32 %v4448, %v4427
      %v4464 = vmul.f32 %v4448, %v4428
      %v4465 = vmul.f32 %v4448, %v4429
      %v4466 = vmul.f32 %v4448, %v4430
      %v4467 = vmul.f32 %v4448, %v4431
      %v4468 = vmul.f32 %v4448, %v4432
      %v4469 = vmul.f32 %v4448, %v4433
      %v4470 = vmul.f32 %v4448, %v4434
      %v4471 = vmul.f32 %v4448, %v4435
      %v4472 = vmul.f32 %v4448, %v4436
      %v4473 = vmul.f32 %v4448, %v4437
      %v4474 = vmul.f32 %v4448, %v4438
      %v4475 = vmul.f32 %v4448, %v4439
      %v4476 = vmul.f32 %v4448, %v4440
      %v4477 = vmul.f32 %v4448, %v4441
      %v4478 = vmul.f32 %v4448, %v4442
      %v4479 = vmul.f32 %v4448, %v4443
      %v4480 = vmul.f32 %v4448, %v4444
      %v4481 = vadd.f32 %v4381, %v4449
      %v4482 = vadd.f32 %v4382, %v4450
      %v4483 = vadd.f32 %v4383, %v4451
      %v4484 = vadd.f32 %v4384, %v4452
      %v4485 = vadd.f32 %v4385, %v4453
      %v4486 = vadd.f32 %v4386, %v4454
      %v4487 = vadd.f32 %v4387, %v4455
      %v4488 = vadd.f32 %v4388, %v4456
      %v4489 = vadd.f32 %v4389, %v4457
      %v4490 = vadd.f32 %v4390, %v4458
      %v4491 = vadd.f32 %v4391, %v4459
      %v4492 = vadd.f32 %v4392, %v4460
      %v4493 = vadd.f32 %v4393, %v4461
      %v4494 = vadd.f32 %v4394, %v4462
      %v4495 = vadd.f32 %v4395, %v4463
      %v4496 = vadd.f32 %v4396, %v4464
      %v4497 = vadd.f32 %v4397, %v4465
      %v4498 = vadd.f32 %v4398, %v4466
      %v4499 = vadd.f32 %v4399, %v4467
      %v4500 = vadd.f32 %v4400, %v4468
      %v4501 = vadd.f32 %v4401, %v4469
      %v4502 = vadd.f32 %v4402, %v4470
      %v4503 = vadd.f32 %v4403, %v4471
      %v4504 = vadd.f32 %v4404, %v4472
      %v4505 = vadd.f32 %v4405, %v4473
      %v4506 = vadd.f32 %v4406, %v4474
      %v4507 = vadd.f32 %v4407, %v4475
      %v4508 = vadd.f32 %v4408, %v4476
      %v4509 = vadd.f32 %v4409, %v4477
      %v4510 = vadd.f32 %v4410, %v4478
      %v4511 = vadd.f32 %v4411, %v4479
      %v4512 = vadd.f32 %v4412, %v4480
      %s4513 = scalar_lea.vmem [#allocation2], 144
      %v4514 = vld [vmem:[%s4513] sm:$0xff]
      %v4515 = vld [vmem:[%s4513 + $0x8] sm:$0xff]
      %v4516 = vld [vmem:[%s4513 + $0x18] sm:$0xff]
      %v4517 = vld [vmem:[%s4513 + $0x20] sm:$0xff]
      %v4518 = vld [vmem:[%s4513 + $0x30] sm:$0xff]
      %v4519 = vld [vmem:[%s4513 + $0x38] sm:$0xff]
      %v4520 = vld [vmem:[%s4513 + $0x48] sm:$0xff]
      %v4521 = vld [vmem:[%s4513 + $0x50] sm:$0xff]
      %v4522 = vld [vmem:[%s4513 + $0x60] sm:$0xff]
      %v4523 = vld [vmem:[%s4513 + $0x68] sm:$0xff]
      %v4524 = vld [vmem:[%s4513 + $0x78] sm:$0xff]
      %v4525 = vld [vmem:[%s4513 + $0x80] sm:$0xff]
      %v4526 = vld [vmem:[%s4513 + $0x90] sm:$0xff]
      %v4527 = vld [vmem:[%s4513 + $0x98] sm:$0xff]
      %v4528 = vld [vmem:[%s4513 + $0xa8] sm:$0xff]
      %v4529 = vld [vmem:[%s4513 + $0xb0] sm:$0xff]
      %v4530 = vld [vmem:[%s4513 + $0xc0] sm:$0xff]
      %v4531 = vld [vmem:[%s4513 + $0xc8] sm:$0xff]
      %v4532 = vld [vmem:[%s4513 + $0xd8] sm:$0xff]
      %v4533 = vld [vmem:[%s4513 + $0xe0] sm:$0xff]
      %v4534 = vld [vmem:[%s4513 + $0xf0] sm:$0xff]
      %v4535 = vld [vmem:[%s4513 + $0xf8] sm:$0xff]
      %v4536 = vld [vmem:[%s4513 + $0x108] sm:$0xff]
      %v4537 = vld [vmem:[%s4513 + $0x110] sm:$0xff]
      %v4538 = vld [vmem:[%s4513 + $0x120] sm:$0xff]
      %v4539 = vld [vmem:[%s4513 + $0x128] sm:$0xff]
      %v4540 = vld [vmem:[%s4513 + $0x138] sm:$0xff]
      %v4541 = vld [vmem:[%s4513 + $0x140] sm:$0xff]
      %v4542 = vld [vmem:[%s4513 + $0x150] sm:$0xff]
      %v4543 = vld [vmem:[%s4513 + $0x158] sm:$0xff]
      %v4544 = vld [vmem:[%s4513 + $0x168] sm:$0xff]
      %v4545 = vld [vmem:[%s4513 + $0x170] sm:$0xff]
      %v4546 = vlaneseq
      %v4547 = vshrl.u32 %v4546, 7
      %v4548 = vsub.s32 2, %v4547
      %v4549 = vrot.slane %v236, %v4548
      %v4550 = vmul.f32 %v4549, %v4514
      %v4551 = vmul.f32 %v4549, %v4515
      %v4552 = vmul.f32 %v4549, %v4516
      %v4553 = vmul.f32 %v4549, %v4517
      %v4554 = vmul.f32 %v4549, %v4518
      %v4555 = vmul.f32 %v4549, %v4519
      %v4556 = vmul.f32 %v4549, %v4520
      %v4557 = vmul.f32 %v4549, %v4521
      %v4558 = vmul.f32 %v4549, %v4522
      %v4559 = vmul.f32 %v4549, %v4523
      %v4560 = vmul.f32 %v4549, %v4524
      %v4561 = vmul.f32 %v4549, %v4525
      %v4562 = vmul.f32 %v4549, %v4526
      %v4563 = vmul.f32 %v4549, %v4527
      %v4564 = vmul.f32 %v4549, %v4528
      %v4565 = vmul.f32 %v4549, %v4529
      %v4566 = vmul.f32 %v4549, %v4530
      %v4567 = vmul.f32 %v4549, %v4531
      %v4568 = vmul.f32 %v4549, %v4532
      %v4569 = vmul.f32 %v4549, %v4533
      %v4570 = vmul.f32 %v4549, %v4534
      %v4571 = vmul.f32 %v4549, %v4535
      %v4572 = vmul.f32 %v4549, %v4536
      %v4573 = vmul.f32 %v4549, %v4537
      %v4574 = vmul.f32 %v4549, %v4538
      %v4575 = vmul.f32 %v4549, %v4539
      %v4576 = vmul.f32 %v4549, %v4540
      %v4577 = vmul.f32 %v4549, %v4541
      %v4578 = vmul.f32 %v4549, %v4542
      %v4579 = vmul.f32 %v4549, %v4543
      %v4580 = vmul.f32 %v4549, %v4544
      %v4581 = vmul.f32 %v4549, %v4545
      %v4582 = vadd.f32 %v4481, %v4550
      %v4583 = vadd.f32 %v4482, %v4551
      %v4584 = vadd.f32 %v4483, %v4552
      %v4585 = vadd.f32 %v4484, %v4553
      %v4586 = vadd.f32 %v4485, %v4554
      %v4587 = vadd.f32 %v4486, %v4555
      %v4588 = vadd.f32 %v4487, %v4556
      %v4589 = vadd.f32 %v4488, %v4557
      %v4590 = vadd.f32 %v4489, %v4558
      %v4591 = vadd.f32 %v4490, %v4559
      %v4592 = vadd.f32 %v4491, %v4560
      %v4593 = vadd.f32 %v4492, %v4561
      %v4594 = vadd.f32 %v4493, %v4562
      %v4595 = vadd.f32 %v4494, %v4563
      %v4596 = vadd.f32 %v4495, %v4564
      %v4597 = vadd.f32 %v4496, %v4565
      %v4598 = vadd.f32 %v4497, %v4566
      %v4599 = vadd.f32 %v4498, %v4567
      %v4600 = vadd.f32 %v4499, %v4568
      %v4601 = vadd.f32 %v4500, %v4569
      %v4602 = vadd.f32 %v4501, %v4570
      %v4603 = vadd.f32 %v4502, %v4571
      %v4604 = vadd.f32 %v4503, %v4572
      %v4605 = vadd.f32 %v4504, %v4573
      %v4606 = vadd.f32 %v4505, %v4574
      %v4607 = vadd.f32 %v4506, %v4575
      %v4608 = vadd.f32 %v4507, %v4576
      %v4609 = vadd.f32 %v4508, %v4577
      %v4610 = vadd.f32 %v4509, %v4578
      %v4611 = vadd.f32 %v4510, %v4579
      %v4612 = vadd.f32 %v4511, %v4580
      %v4613 = vadd.f32 %v4512, %v4581
      %v4614 = vld [vmem:[%s4513 + $0x1] sm:$0xff]
      %v4615 = vld [vmem:[%s4513 + $0x9] sm:$0xff]
      %v4616 = vld [vmem:[%s4513 + $0x19] sm:$0xff]
      %v4617 = vld [vmem:[%s4513 + $0x21] sm:$0xff]
      %v4618 = vld [vmem:[%s4513 + $0x31] sm:$0xff]
      %v4619 = vld [vmem:[%s4513 + $0x39] sm:$0xff]
      %v4620 = vld [vmem:[%s4513 + $0x49] sm:$0xff]
      %v4621 = vld [vmem:[%s4513 + $0x51] sm:$0xff]
      %v4622 = vld [vmem:[%s4513 + $0x61] sm:$0xff]
      %v4623 = vld [vmem:[%s4513 + $0x69] sm:$0xff]
      %v4624 = vld [vmem:[%s4513 + $0x79] sm:$0xff]
      %v4625 = vld [vmem:[%s4513 + $0x81] sm:$0xff]
      %v4626 = vld [vmem:[%s4513 + $0x91] sm:$0xff]
      %v4627 = vld [vmem:[%s4513 + $0x99] sm:$0xff]
      %v4628 = vld [vmem:[%s4513 + $0xa9] sm:$0xff]
      %v4629 = vld [vmem:[%s4513 + $0xb1] sm:$0xff]
      %v4630 = vld [vmem:[%s4513 + $0xc1] sm:$0xff]
      %v4631 = vld [vmem:[%s4513 + $0xc9] sm:$0xff]
      %v4632 = vld [vmem:[%s4513 + $0xd9] sm:$0xff]
      %v4633 = vld [vmem:[%s4513 + $0xe1] sm:$0xff]
      %v4634 = vld [vmem:[%s4513 + $0xf1] sm:$0xff]
      %v4635 = vld [vmem:[%s4513 + $0xf9] sm:$0xff]
      %v4636 = vld [vmem:[%s4513 + $0x109] sm:$0xff]
      %v4637 = vld [vmem:[%s4513 + $0x111] sm:$0xff]
      %v4638 = vld [vmem:[%s4513 + $0x121] sm:$0xff]
      %v4639 = vld [vmem:[%s4513 + $0x129] sm:$0xff]
      %v4640 = vld [vmem:[%s4513 + $0x139] sm:$0xff]
      %v4641 = vld [vmem:[%s4513 + $0x141] sm:$0xff]
      %v4642 = vld [vmem:[%s4513 + $0x151] sm:$0xff]
      %v4643 = vld [vmem:[%s4513 + $0x159] sm:$0xff]
      %v4644 = vld [vmem:[%s4513 + $0x169] sm:$0xff]
      %v4645 = vld [vmem:[%s4513 + $0x171] sm:$0xff]
      %v4646 = vlaneseq
      %v4647 = vshrl.u32 %v4646, 7
      %v4648 = vsub.s32 3, %v4647
      %v4649 = vrot.slane %v236, %v4648
      %v4650 = vmul.f32 %v4649, %v4614
      %v4651 = vmul.f32 %v4649, %v4615
      %v4652 = vmul.f32 %v4649, %v4616
      %v4653 = vmul.f32 %v4649, %v4617
      %v4654 = vmul.f32 %v4649, %v4618
      %v4655 = vmul.f32 %v4649, %v4619
      %v4656 = vmul.f32 %v4649, %v4620
      %v4657 = vmul.f32 %v4649, %v4621
      %v4658 = vmul.f32 %v4649, %v4622
      %v4659 = vmul.f32 %v4649, %v4623
      %v4660 = vmul.f32 %v4649, %v4624
      %v4661 = vmul.f32 %v4649, %v4625
      %v4662 = vmul.f32 %v4649, %v4626
      %v4663 = vmul.f32 %v4649, %v4627
      %v4664 = vmul.f32 %v4649, %v4628
      %v4665 = vmul.f32 %v4649, %v4629
      %v4666 = vmul.f32 %v4649, %v4630
      %v4667 = vmul.f32 %v4649, %v4631
      %v4668 = vmul.f32 %v4649, %v4632
      %v4669 = vmul.f32 %v4649, %v4633
      %v4670 = vmul.f32 %v4649, %v4634
      %v4671 = vmul.f32 %v4649, %v4635
      %v4672 = vmul.f32 %v4649, %v4636
      %v4673 = vmul.f32 %v4649, %v4637
      %v4674 = vmul.f32 %v4649, %v4638
      %v4675 = vmul.f32 %v4649, %v4639
      %v4676 = vmul.f32 %v4649, %v4640
      %v4677 = vmul.f32 %v4649, %v4641
      %v4678 = vmul.f32 %v4649, %v4642
      %v4679 = vmul.f32 %v4649, %v4643
      %v4680 = vmul.f32 %v4649, %v4644
      %v4681 = vmul.f32 %v4649, %v4645
      %v4682 = vadd.f32 %v4582, %v4650
      %v4683 = vadd.f32 %v4583, %v4651
      %v4684 = vadd.f32 %v4584, %v4652
      %v4685 = vadd.f32 %v4585, %v4653
      %v4686 = vadd.f32 %v4586, %v4654
      %v4687 = vadd.f32 %v4587, %v4655
      %v4688 = vadd.f32 %v4588, %v4656
      %v4689 = vadd.f32 %v4589, %v4657
      %v4690 = vadd.f32 %v4590, %v4658
      %v4691 = vadd.f32 %v4591, %v4659
      %v4692 = vadd.f32 %v4592, %v4660
      %v4693 = vadd.f32 %v4593, %v4661
      %v4694 = vadd.f32 %v4594, %v4662
      %v4695 = vadd.f32 %v4595, %v4663
      %v4696 = vadd.f32 %v4596, %v4664
      %v4697 = vadd.f32 %v4597, %v4665
      %v4698 = vadd.f32 %v4598, %v4666
      %v4699 = vadd.f32 %v4599, %v4667
      %v4700 = vadd.f32 %v4600, %v4668
      %v4701 = vadd.f32 %v4601, %v4669
      %v4702 = vadd.f32 %v4602, %v4670
      %v4703 = vadd.f32 %v4603, %v4671
      %v4704 = vadd.f32 %v4604, %v4672
      %v4705 = vadd.f32 %v4605, %v4673
      %v4706 = vadd.f32 %v4606, %v4674
      %v4707 = vadd.f32 %v4607, %v4675
      %v4708 = vadd.f32 %v4608, %v4676
      %v4709 = vadd.f32 %v4609, %v4677
      %v4710 = vadd.f32 %v4610, %v4678
      %v4711 = vadd.f32 %v4611, %v4679
      %v4712 = vadd.f32 %v4612, %v4680
      %v4713 = vadd.f32 %v4613, %v4681
      %v4714 = vld [vmem:[%s4513 + $0x2] sm:$0xff]
      %v4715 = vld [vmem:[%s4513 + $0xa] sm:$0xff]
      %v4716 = vld [vmem:[%s4513 + $0x1a] sm:$0xff]
      %v4717 = vld [vmem:[%s4513 + $0x22] sm:$0xff]
      %v4718 = vld [vmem:[%s4513 + $0x32] sm:$0xff]
      %v4719 = vld [vmem:[%s4513 + $0x3a] sm:$0xff]
      %v4720 = vld [vmem:[%s4513 + $0x4a] sm:$0xff]
      %v4721 = vld [vmem:[%s4513 + $0x52] sm:$0xff]
      %v4722 = vld [vmem:[%s4513 + $0x62] sm:$0xff]
      %v4723 = vld [vmem:[%s4513 + $0x6a] sm:$0xff]
      %v4724 = vld [vmem:[%s4513 + $0x7a] sm:$0xff]
      %v4725 = vld [vmem:[%s4513 + $0x82] sm:$0xff]
      %v4726 = vld [vmem:[%s4513 + $0x92] sm:$0xff]
      %v4727 = vld [vmem:[%s4513 + $0x9a] sm:$0xff]
      %v4728 = vld [vmem:[%s4513 + $0xaa] sm:$0xff]
      %v4729 = vld [vmem:[%s4513 + $0xb2] sm:$0xff]
      %v4730 = vld [vmem:[%s4513 + $0xc2] sm:$0xff]
      %v4731 = vld [vmem:[%s4513 + $0xca] sm:$0xff]
      %v4732 = vld [vmem:[%s4513 + $0xda] sm:$0xff]
      %v4733 = vld [vmem:[%s4513 + $0xe2] sm:$0xff]
      %v4734 = vld [vmem:[%s4513 + $0xf2] sm:$0xff]
      %v4735 = vld [vmem:[%s4513 + $0xfa] sm:$0xff]
      %v4736 = vld [vmem:[%s4513 + $0x10a] sm:$0xff]
      %v4737 = vld [vmem:[%s4513 + $0x112] sm:$0xff]
      %v4738 = vld [vmem:[%s4513 + $0x122] sm:$0xff]
      %v4739 = vld [vmem:[%s4513 + $0x12a] sm:$0xff]
      %v4740 = vld [vmem:[%s4513 + $0x13a] sm:$0xff]
      %v4741 = vld [vmem:[%s4513 + $0x142] sm:$0xff]
      %v4742 = vld [vmem:[%s4513 + $0x152] sm:$0xff]
      %v4743 = vld [vmem:[%s4513 + $0x15a] sm:$0xff]
      %v4744 = vld [vmem:[%s4513 + $0x16a] sm:$0xff]
      %v4745 = vld [vmem:[%s4513 + $0x172] sm:$0xff]
      %v4746 = vlaneseq
      %v4747 = vshrl.u32 %v4746, 7
      %v4748 = vsub.s32 4, %v4747
      %v4749 = vrot.slane %v236, %v4748
      %v4750 = vmul.f32 %v4749, %v4714
      %v4751 = vmul.f32 %v4749, %v4715
      %v4752 = vmul.f32 %v4749, %v4716
      %v4753 = vmul.f32 %v4749, %v4717
      %v4754 = vmul.f32 %v4749, %v4718
      %v4755 = vmul.f32 %v4749, %v4719
      %v4756 = vmul.f32 %v4749, %v4720
      %v4757 = vmul.f32 %v4749, %v4721
      %v4758 = vmul.f32 %v4749, %v4722
      %v4759 = vmul.f32 %v4749, %v4723
      %v4760 = vmul.f32 %v4749, %v4724
      %v4761 = vmul.f32 %v4749, %v4725
      %v4762 = vmul.f32 %v4749, %v4726
      %v4763 = vmul.f32 %v4749, %v4727
      %v4764 = vmul.f32 %v4749, %v4728
      %v4765 = vmul.f32 %v4749, %v4729
      %v4766 = vmul.f32 %v4749, %v4730
      %v4767 = vmul.f32 %v4749, %v4731
      %v4768 = vmul.f32 %v4749, %v4732
      %v4769 = vmul.f32 %v4749, %v4733
      %v4770 = vmul.f32 %v4749, %v4734
      %v4771 = vmul.f32 %v4749, %v4735
      %v4772 = vmul.f32 %v4749, %v4736
      %v4773 = vmul.f32 %v4749, %v4737
      %v4774 = vmul.f32 %v4749, %v4738
      %v4775 = vmul.f32 %v4749, %v4739
      %v4776 = vmul.f32 %v4749, %v4740
      %v4777 = vmul.f32 %v4749, %v4741
      %v4778 = vmul.f32 %v4749, %v4742
      %v4779 = vmul.f32 %v4749, %v4743
      %v4780 = vmul.f32 %v4749, %v4744
      %v4781 = vmul.f32 %v4749, %v4745
      %v4782 = vadd.f32 %v4682, %v4750
      %v4783 = vadd.f32 %v4683, %v4751
      %v4784 = vadd.f32 %v4684, %v4752
      %v4785 = vadd.f32 %v4685, %v4753
      %v4786 = vadd.f32 %v4686, %v4754
      %v4787 = vadd.f32 %v4687, %v4755
      %v4788 = vadd.f32 %v4688, %v4756
      %v4789 = vadd.f32 %v4689, %v4757
      %v4790 = vadd.f32 %v4690, %v4758
      %v4791 = vadd.f32 %v4691, %v4759
      %v4792 = vadd.f32 %v4692, %v4760
      %v4793 = vadd.f32 %v4693, %v4761
      %v4794 = vadd.f32 %v4694, %v4762
      %v4795 = vadd.f32 %v4695, %v4763
      %v4796 = vadd.f32 %v4696, %v4764
      %v4797 = vadd.f32 %v4697, %v4765
      %v4798 = vadd.f32 %v4698, %v4766
      %v4799 = vadd.f32 %v4699, %v4767
      %v4800 = vadd.f32 %v4700, %v4768
      %v4801 = vadd.f32 %v4701, %v4769
      %v4802 = vadd.f32 %v4702, %v4770
      %v4803 = vadd.f32 %v4703, %v4771
      %v4804 = vadd.f32 %v4704, %v4772
      %v4805 = vadd.f32 %v4705, %v4773
      %v4806 = vadd.f32 %v4706, %v4774
      %v4807 = vadd.f32 %v4707, %v4775
      %v4808 = vadd.f32 %v4708, %v4776
      %v4809 = vadd.f32 %v4709, %v4777
      %v4810 = vadd.f32 %v4710, %v4778
      %v4811 = vadd.f32 %v4711, %v4779
      %v4812 = vadd.f32 %v4712, %v4780
      %v4813 = vadd.f32 %v4713, %v4781
      %v4814 = vld [vmem:[%s4513 + $0x3] sm:$0xff]
      %v4815 = vld [vmem:[%s4513 + $0xb] sm:$0xff]
      %v4816 = vld [vmem:[%s4513 + $0x1b] sm:$0xff]
      %v4817 = vld [vmem:[%s4513 + $0x23] sm:$0xff]
      %v4818 = vld [vmem:[%s4513 + $0x33] sm:$0xff]
      %v4819 = vld [vmem:[%s4513 + $0x3b] sm:$0xff]
      %v4820 = vld [vmem:[%s4513 + $0x4b] sm:$0xff]
      %v4821 = vld [vmem:[%s4513 + $0x53] sm:$0xff]
      %v4822 = vld [vmem:[%s4513 + $0x63] sm:$0xff]
      %v4823 = vld [vmem:[%s4513 + $0x6b] sm:$0xff]
      %v4824 = vld [vmem:[%s4513 + $0x7b] sm:$0xff]
      %v4825 = vld [vmem:[%s4513 + $0x83] sm:$0xff]
      %v4826 = vld [vmem:[%s4513 + $0x93] sm:$0xff]
      %v4827 = vld [vmem:[%s4513 + $0x9b] sm:$0xff]
      %v4828 = vld [vmem:[%s4513 + $0xab] sm:$0xff]
      %v4829 = vld [vmem:[%s4513 + $0xb3] sm:$0xff]
      %v4830 = vld [vmem:[%s4513 + $0xc3] sm:$0xff]
      %v4831 = vld [vmem:[%s4513 + $0xcb] sm:$0xff]
      %v4832 = vld [vmem:[%s4513 + $0xdb] sm:$0xff]
      %v4833 = vld [vmem:[%s4513 + $0xe3] sm:$0xff]
      %v4834 = vld [vmem:[%s4513 + $0xf3] sm:$0xff]
      %v4835 = vld [vmem:[%s4513 + $0xfb] sm:$0xff]
      %v4836 = vld [vmem:[%s4513 + $0x10b] sm:$0xff]
      %v4837 = vld [vmem:[%s4513 + $0x113] sm:$0xff]
      %v4838 = vld [vmem:[%s4513 + $0x123] sm:$0xff]
      %v4839 = vld [vmem:[%s4513 + $0x12b] sm:$0xff]
      %v4840 = vld [vmem:[%s4513 + $0x13b] sm:$0xff]
      %v4841 = vld [vmem:[%s4513 + $0x143] sm:$0xff]
      %v4842 = vld [vmem:[%s4513 + $0x153] sm:$0xff]
      %v4843 = vld [vmem:[%s4513 + $0x15b] sm:$0xff]
      %v4844 = vld [vmem:[%s4513 + $0x16b] sm:$0xff]
      %v4845 = vld [vmem:[%s4513 + $0x173] sm:$0xff]
      %v4846 = vlaneseq
      %v4847 = vshrl.u32 %v4846, 7
      %v4848 = vsub.s32 5, %v4847
      %v4849 = vrot.slane %v236, %v4848
      %v4850 = vmul.f32 %v4849, %v4814
      %v4851 = vmul.f32 %v4849, %v4815
      %v4852 = vmul.f32 %v4849, %v4816
      %v4853 = vmul.f32 %v4849, %v4817
      %v4854 = vmul.f32 %v4849, %v4818
      %v4855 = vmul.f32 %v4849, %v4819
      %v4856 = vmul.f32 %v4849, %v4820
      %v4857 = vmul.f32 %v4849, %v4821
      %v4858 = vmul.f32 %v4849, %v4822
      %v4859 = vmul.f32 %v4849, %v4823
      %v4860 = vmul.f32 %v4849, %v4824
      %v4861 = vmul.f32 %v4849, %v4825
      %v4862 = vmul.f32 %v4849, %v4826
      %v4863 = vmul.f32 %v4849, %v4827
      %v4864 = vmul.f32 %v4849, %v4828
      %v4865 = vmul.f32 %v4849, %v4829
      %v4866 = vmul.f32 %v4849, %v4830
      %v4867 = vmul.f32 %v4849, %v4831
      %v4868 = vmul.f32 %v4849, %v4832
      %v4869 = vmul.f32 %v4849, %v4833
      %v4870 = vmul.f32 %v4849, %v4834
      %v4871 = vmul.f32 %v4849, %v4835
      %v4872 = vmul.f32 %v4849, %v4836
      %v4873 = vmul.f32 %v4849, %v4837
      %v4874 = vmul.f32 %v4849, %v4838
      %v4875 = vmul.f32 %v4849, %v4839
      %v4876 = vmul.f32 %v4849, %v4840
      %v4877 = vmul.f32 %v4849, %v4841
      %v4878 = vmul.f32 %v4849, %v4842
      %v4879 = vmul.f32 %v4849, %v4843
      %v4880 = vmul.f32 %v4849, %v4844
      %v4881 = vmul.f32 %v4849, %v4845
      %v4882 = vadd.f32 %v4782, %v4850
      %v4883 = vadd.f32 %v4783, %v4851
      %v4884 = vadd.f32 %v4784, %v4852
      %v4885 = vadd.f32 %v4785, %v4853
      %v4886 = vadd.f32 %v4786, %v4854
      %v4887 = vadd.f32 %v4787, %v4855
      %v4888 = vadd.f32 %v4788, %v4856
      %v4889 = vadd.f32 %v4789, %v4857
      %v4890 = vadd.f32 %v4790, %v4858
      %v4891 = vadd.f32 %v4791, %v4859
      %v4892 = vadd.f32 %v4792, %v4860
      %v4893 = vadd.f32 %v4793, %v4861
      %v4894 = vadd.f32 %v4794, %v4862
      %v4895 = vadd.f32 %v4795, %v4863
      %v4896 = vadd.f32 %v4796, %v4864
      %v4897 = vadd.f32 %v4797, %v4865
      %v4898 = vadd.f32 %v4798, %v4866
      %v4899 = vadd.f32 %v4799, %v4867
      %v4900 = vadd.f32 %v4800, %v4868
      %v4901 = vadd.f32 %v4801, %v4869
      %v4902 = vadd.f32 %v4802, %v4870
      %v4903 = vadd.f32 %v4803, %v4871
      %v4904 = vadd.f32 %v4804, %v4872
      %v4905 = vadd.f32 %v4805, %v4873
      %v4906 = vadd.f32 %v4806, %v4874
      %v4907 = vadd.f32 %v4807, %v4875
      %v4908 = vadd.f32 %v4808, %v4876
      %v4909 = vadd.f32 %v4809, %v4877
      %v4910 = vadd.f32 %v4810, %v4878
      %v4911 = vadd.f32 %v4811, %v4879
      %v4912 = vadd.f32 %v4812, %v4880
      %v4913 = vadd.f32 %v4813, %v4881
      %v4914 = vld [vmem:[%s4513 + $0x4] sm:$0xff]
      %v4915 = vld [vmem:[%s4513 + $0xc] sm:$0xff]
      %v4916 = vld [vmem:[%s4513 + $0x1c] sm:$0xff]
      %v4917 = vld [vmem:[%s4513 + $0x24] sm:$0xff]
      %v4918 = vld [vmem:[%s4513 + $0x34] sm:$0xff]
      %v4919 = vld [vmem:[%s4513 + $0x3c] sm:$0xff]
      %v4920 = vld [vmem:[%s4513 + $0x4c] sm:$0xff]
      %v4921 = vld [vmem:[%s4513 + $0x54] sm:$0xff]
      %v4922 = vld [vmem:[%s4513 + $0x64] sm:$0xff]
      %v4923 = vld [vmem:[%s4513 + $0x6c] sm:$0xff]
      %v4924 = vld [vmem:[%s4513 + $0x7c] sm:$0xff]
      %v4925 = vld [vmem:[%s4513 + $0x84] sm:$0xff]
      %v4926 = vld [vmem:[%s4513 + $0x94] sm:$0xff]
      %v4927 = vld [vmem:[%s4513 + $0x9c] sm:$0xff]
      %v4928 = vld [vmem:[%s4513 + $0xac] sm:$0xff]
      %v4929 = vld [vmem:[%s4513 + $0xb4] sm:$0xff]
      %v4930 = vld [vmem:[%s4513 + $0xc4] sm:$0xff]
      %v4931 = vld [vmem:[%s4513 + $0xcc] sm:$0xff]
      %v4932 = vld [vmem:[%s4513 + $0xdc] sm:$0xff]
      %v4933 = vld [vmem:[%s4513 + $0xe4] sm:$0xff]
      %v4934 = vld [vmem:[%s4513 + $0xf4] sm:$0xff]
      %v4935 = vld [vmem:[%s4513 + $0xfc] sm:$0xff]
      %v4936 = vld [vmem:[%s4513 + $0x10c] sm:$0xff]
      %v4937 = vld [vmem:[%s4513 + $0x114] sm:$0xff]
      %v4938 = vld [vmem:[%s4513 + $0x124] sm:$0xff]
      %v4939 = vld [vmem:[%s4513 + $0x12c] sm:$0xff]
      %v4940 = vld [vmem:[%s4513 + $0x13c] sm:$0xff]
      %v4941 = vld [vmem:[%s4513 + $0x144] sm:$0xff]
      %v4942 = vld [vmem:[%s4513 + $0x154] sm:$0xff]
      %v4943 = vld [vmem:[%s4513 + $0x15c] sm:$0xff]
      %v4944 = vld [vmem:[%s4513 + $0x16c] sm:$0xff]
      %v4945 = vld [vmem:[%s4513 + $0x174] sm:$0xff]
      %v4946 = vlaneseq
      %v4947 = vshrl.u32 %v4946, 7
      %v4948 = vsub.s32 6, %v4947
      %v4949 = vrot.slane %v236, %v4948
      %v4950 = vmul.f32 %v4949, %v4914
      %v4951 = vmul.f32 %v4949, %v4915
      %v4952 = vmul.f32 %v4949, %v4916
      %v4953 = vmul.f32 %v4949, %v4917
      %v4954 = vmul.f32 %v4949, %v4918
      %v4955 = vmul.f32 %v4949, %v4919
      %v4956 = vmul.f32 %v4949, %v4920
      %v4957 = vmul.f32 %v4949, %v4921
      %v4958 = vmul.f32 %v4949, %v4922
      %v4959 = vmul.f32 %v4949, %v4923
      %v4960 = vmul.f32 %v4949, %v4924
      %v4961 = vmul.f32 %v4949, %v4925
      %v4962 = vmul.f32 %v4949, %v4926
      %v4963 = vmul.f32 %v4949, %v4927
      %v4964 = vmul.f32 %v4949, %v4928
      %v4965 = vmul.f32 %v4949, %v4929
      %v4966 = vmul.f32 %v4949, %v4930
      %v4967 = vmul.f32 %v4949, %v4931
      %v4968 = vmul.f32 %v4949, %v4932
      %v4969 = vmul.f32 %v4949, %v4933
      %v4970 = vmul.f32 %v4949, %v4934
      %v4971 = vmul.f32 %v4949, %v4935
      %v4972 = vmul.f32 %v4949, %v4936
      %v4973 = vmul.f32 %v4949, %v4937
      %v4974 = vmul.f32 %v4949, %v4938
      %v4975 = vmul.f32 %v4949, %v4939
      %v4976 = vmul.f32 %v4949, %v4940
      %v4977 = vmul.f32 %v4949, %v4941
      %v4978 = vmul.f32 %v4949, %v4942
      %v4979 = vmul.f32 %v4949, %v4943
      %v4980 = vmul.f32 %v4949, %v4944
      %v4981 = vmul.f32 %v4949, %v4945
      %v4982 = vadd.f32 %v4882, %v4950
      %v4983 = vadd.f32 %v4883, %v4951
      %v4984 = vadd.f32 %v4884, %v4952
      %v4985 = vadd.f32 %v4885, %v4953
      %v4986 = vadd.f32 %v4886, %v4954
      %v4987 = vadd.f32 %v4887, %v4955
      %v4988 = vadd.f32 %v4888, %v4956
      %v4989 = vadd.f32 %v4889, %v4957
      %v4990 = vadd.f32 %v4890, %v4958
      %v4991 = vadd.f32 %v4891, %v4959
      %v4992 = vadd.f32 %v4892, %v4960
      %v4993 = vadd.f32 %v4893, %v4961
      %v4994 = vadd.f32 %v4894, %v4962
      %v4995 = vadd.f32 %v4895, %v4963
      %v4996 = vadd.f32 %v4896, %v4964
      %v4997 = vadd.f32 %v4897, %v4965
      %v4998 = vadd.f32 %v4898, %v4966
      %v4999 = vadd.f32 %v4899, %v4967
      %v5000 = vadd.f32 %v4900, %v4968
      %v5001 = vadd.f32 %v4901, %v4969
      %v5002 = vadd.f32 %v4902, %v4970
      %v5003 = vadd.f32 %v4903, %v4971
      %v5004 = vadd.f32 %v4904, %v4972
      %v5005 = vadd.f32 %v4905, %v4973
      %v5006 = vadd.f32 %v4906, %v4974
      %v5007 = vadd.f32 %v4907, %v4975
      %v5008 = vadd.f32 %v4908, %v4976
      %v5009 = vadd.f32 %v4909, %v4977
      %v5010 = vadd.f32 %v4910, %v4978
      %v5011 = vadd.f32 %v4911, %v4979
      %v5012 = vadd.f32 %v4912, %v4980
      %v5013 = vadd.f32 %v4913, %v4981
      %v5014 = vld [vmem:[%s4513 + $0x5] sm:$0xff]
      %v5015 = vld [vmem:[%s4513 + $0xd] sm:$0xff]
      %v5016 = vld [vmem:[%s4513 + $0x1d] sm:$0xff]
      %v5017 = vld [vmem:[%s4513 + $0x25] sm:$0xff]
      %v5018 = vld [vmem:[%s4513 + $0x35] sm:$0xff]
      %v5019 = vld [vmem:[%s4513 + $0x3d] sm:$0xff]
      %v5020 = vld [vmem:[%s4513 + $0x4d] sm:$0xff]
      %v5021 = vld [vmem:[%s4513 + $0x55] sm:$0xff]
      %v5022 = vld [vmem:[%s4513 + $0x65] sm:$0xff]
      %v5023 = vld [vmem:[%s4513 + $0x6d] sm:$0xff]
      %v5024 = vld [vmem:[%s4513 + $0x7d] sm:$0xff]
      %v5025 = vld [vmem:[%s4513 + $0x85] sm:$0xff]
      %v5026 = vld [vmem:[%s4513 + $0x95] sm:$0xff]
      %v5027 = vld [vmem:[%s4513 + $0x9d] sm:$0xff]
      %v5028 = vld [vmem:[%s4513 + $0xad] sm:$0xff]
      %v5029 = vld [vmem:[%s4513 + $0xb5] sm:$0xff]
      %v5030 = vld [vmem:[%s4513 + $0xc5] sm:$0xff]
      %v5031 = vld [vmem:[%s4513 + $0xcd] sm:$0xff]
      %v5032 = vld [vmem:[%s4513 + $0xdd] sm:$0xff]
      %v5033 = vld [vmem:[%s4513 + $0xe5] sm:$0xff]
      %v5034 = vld [vmem:[%s4513 + $0xf5] sm:$0xff]
      %v5035 = vld [vmem:[%s4513 + $0xfd] sm:$0xff]
      %v5036 = vld [vmem:[%s4513 + $0x10d] sm:$0xff]
      %v5037 = vld [vmem:[%s4513 + $0x115] sm:$0xff]
      %v5038 = vld [vmem:[%s4513 + $0x125] sm:$0xff]
      %v5039 = vld [vmem:[%s4513 + $0x12d] sm:$0xff]
      %v5040 = vld [vmem:[%s4513 + $0x13d] sm:$0xff]
      %v5041 = vld [vmem:[%s4513 + $0x145] sm:$0xff]
      %v5042 = vld [vmem:[%s4513 + $0x155] sm:$0xff]
      %v5043 = vld [vmem:[%s4513 + $0x15d] sm:$0xff]
      %v5044 = vld [vmem:[%s4513 + $0x16d] sm:$0xff]
      %v5045 = vld [vmem:[%s4513 + $0x175] sm:$0xff]
      %v5046 = vlaneseq
      %v5047 = vshrl.u32 %v5046, 7
      %v5048 = vsub.s32 7, %v5047
      %v5049 = vrot.slane %v236, %v5048
      %v5050 = vmul.f32 %v5049, %v5014
      %v5051 = vmul.f32 %v5049, %v5015
      %v5052 = vmul.f32 %v5049, %v5016
      %v5053 = vmul.f32 %v5049, %v5017
      %v5054 = vmul.f32 %v5049, %v5018
      %v5055 = vmul.f32 %v5049, %v5019
      %v5056 = vmul.f32 %v5049, %v5020
      %v5057 = vmul.f32 %v5049, %v5021
      %v5058 = vmul.f32 %v5049, %v5022
      %v5059 = vmul.f32 %v5049, %v5023
      %v5060 = vmul.f32 %v5049, %v5024
      %v5061 = vmul.f32 %v5049, %v5025
      %v5062 = vmul.f32 %v5049, %v5026
      %v5063 = vmul.f32 %v5049, %v5027
      %v5064 = vmul.f32 %v5049, %v5028
      %v5065 = vmul.f32 %v5049, %v5029
      %v5066 = vmul.f32 %v5049, %v5030
      %v5067 = vmul.f32 %v5049, %v5031
      %v5068 = vmul.f32 %v5049, %v5032
      %v5069 = vmul.f32 %v5049, %v5033
      %v5070 = vmul.f32 %v5049, %v5034
      %v5071 = vmul.f32 %v5049, %v5035
      %v5072 = vmul.f32 %v5049, %v5036
      %v5073 = vmul.f32 %v5049, %v5037
      %v5074 = vmul.f32 %v5049, %v5038
      %v5075 = vmul.f32 %v5049, %v5039
      %v5076 = vmul.f32 %v5049, %v5040
      %v5077 = vmul.f32 %v5049, %v5041
      %v5078 = vmul.f32 %v5049, %v5042
      %v5079 = vmul.f32 %v5049, %v5043
      %v5080 = vmul.f32 %v5049, %v5044
      %v5081 = vmul.f32 %v5049, %v5045
      %v5082 = vadd.f32 %v4982, %v5050
      %v5083 = vadd.f32 %v4983, %v5051
      %v5084 = vadd.f32 %v4984, %v5052
      %v5085 = vadd.f32 %v4985, %v5053
      %v5086 = vadd.f32 %v4986, %v5054
      %v5087 = vadd.f32 %v4987, %v5055
      %v5088 = vadd.f32 %v4988, %v5056
      %v5089 = vadd.f32 %v4989, %v5057
      %v5090 = vadd.f32 %v4990, %v5058
      %v5091 = vadd.f32 %v4991, %v5059
      %v5092 = vadd.f32 %v4992, %v5060
      %v5093 = vadd.f32 %v4993, %v5061
      %v5094 = vadd.f32 %v4994, %v5062
      %v5095 = vadd.f32 %v4995, %v5063
      %v5096 = vadd.f32 %v4996, %v5064
      %v5097 = vadd.f32 %v4997, %v5065
      %v5098 = vadd.f32 %v4998, %v5066
      %v5099 = vadd.f32 %v4999, %v5067
      %v5100 = vadd.f32 %v5000, %v5068
      %v5101 = vadd.f32 %v5001, %v5069
      %v5102 = vadd.f32 %v5002, %v5070
      %v5103 = vadd.f32 %v5003, %v5071
      %v5104 = vadd.f32 %v5004, %v5072
      %v5105 = vadd.f32 %v5005, %v5073
      %v5106 = vadd.f32 %v5006, %v5074
      %v5107 = vadd.f32 %v5007, %v5075
      %v5108 = vadd.f32 %v5008, %v5076
      %v5109 = vadd.f32 %v5009, %v5077
      %v5110 = vadd.f32 %v5010, %v5078
      %v5111 = vadd.f32 %v5011, %v5079
      %v5112 = vadd.f32 %v5012, %v5080
      %v5113 = vadd.f32 %v5013, %v5081
      %v5114 = vld [vmem:[%s4513 + $0x6] sm:$0xff]
      %v5115 = vld [vmem:[%s4513 + $0xe] sm:$0xff]
      %v5116 = vld [vmem:[%s4513 + $0x1e] sm:$0xff]
      %v5117 = vld [vmem:[%s4513 + $0x26] sm:$0xff]
      %v5118 = vld [vmem:[%s4513 + $0x36] sm:$0xff]
      %v5119 = vld [vmem:[%s4513 + $0x3e] sm:$0xff]
      %v5120 = vld [vmem:[%s4513 + $0x4e] sm:$0xff]
      %v5121 = vld [vmem:[%s4513 + $0x56] sm:$0xff]
      %v5122 = vld [vmem:[%s4513 + $0x66] sm:$0xff]
      %v5123 = vld [vmem:[%s4513 + $0x6e] sm:$0xff]
      %v5124 = vld [vmem:[%s4513 + $0x7e] sm:$0xff]
      %v5125 = vld [vmem:[%s4513 + $0x86] sm:$0xff]
      %v5126 = vld [vmem:[%s4513 + $0x96] sm:$0xff]
      %v5127 = vld [vmem:[%s4513 + $0x9e] sm:$0xff]
      %v5128 = vld [vmem:[%s4513 + $0xae] sm:$0xff]
      %v5129 = vld [vmem:[%s4513 + $0xb6] sm:$0xff]
      %v5130 = vld [vmem:[%s4513 + $0xc6] sm:$0xff]
      %v5131 = vld [vmem:[%s4513 + $0xce] sm:$0xff]
      %v5132 = vld [vmem:[%s4513 + $0xde] sm:$0xff]
      %v5133 = vld [vmem:[%s4513 + $0xe6] sm:$0xff]
      %v5134 = vld [vmem:[%s4513 + $0xf6] sm:$0xff]
      %v5135 = vld [vmem:[%s4513 + $0xfe] sm:$0xff]
      %v5136 = vld [vmem:[%s4513 + $0x10e] sm:$0xff]
      %v5137 = vld [vmem:[%s4513 + $0x116] sm:$0xff]
      %v5138 = vld [vmem:[%s4513 + $0x126] sm:$0xff]
      %v5139 = vld [vmem:[%s4513 + $0x12e] sm:$0xff]
      %v5140 = vld [vmem:[%s4513 + $0x13e] sm:$0xff]
      %v5141 = vld [vmem:[%s4513 + $0x146] sm:$0xff]
      %v5142 = vld [vmem:[%s4513 + $0x156] sm:$0xff]
      %v5143 = vld [vmem:[%s4513 + $0x15e] sm:$0xff]
      %v5144 = vld [vmem:[%s4513 + $0x16e] sm:$0xff]
      %v5145 = vld [vmem:[%s4513 + $0x176] sm:$0xff]
      %v5146 = vlaneseq
      %v5147 = vshrl.u32 %v5146, 7
      %v5148 = vsub.s32 0, %v5147
      %v5149 = vrot.slane %v237, %v5148
      %v5150 = vmul.f32 %v5149, %v5114
      %v5151 = vmul.f32 %v5149, %v5115
      %v5152 = vmul.f32 %v5149, %v5116
      %v5153 = vmul.f32 %v5149, %v5117
      %v5154 = vmul.f32 %v5149, %v5118
      %v5155 = vmul.f32 %v5149, %v5119
      %v5156 = vmul.f32 %v5149, %v5120
      %v5157 = vmul.f32 %v5149, %v5121
      %v5158 = vmul.f32 %v5149, %v5122
      %v5159 = vmul.f32 %v5149, %v5123
      %v5160 = vmul.f32 %v5149, %v5124
      %v5161 = vmul.f32 %v5149, %v5125
      %v5162 = vmul.f32 %v5149, %v5126
      %v5163 = vmul.f32 %v5149, %v5127
      %v5164 = vmul.f32 %v5149, %v5128
      %v5165 = vmul.f32 %v5149, %v5129
      %v5166 = vmul.f32 %v5149, %v5130
      %v5167 = vmul.f32 %v5149, %v5131
      %v5168 = vmul.f32 %v5149, %v5132
      %v5169 = vmul.f32 %v5149, %v5133
      %v5170 = vmul.f32 %v5149, %v5134
      %v5171 = vmul.f32 %v5149, %v5135
      %v5172 = vmul.f32 %v5149, %v5136
      %v5173 = vmul.f32 %v5149, %v5137
      %v5174 = vmul.f32 %v5149, %v5138
      %v5175 = vmul.f32 %v5149, %v5139
      %v5176 = vmul.f32 %v5149, %v5140
      %v5177 = vmul.f32 %v5149, %v5141
      %v5178 = vmul.f32 %v5149, %v5142
      %v5179 = vmul.f32 %v5149, %v5143
      %v5180 = vmul.f32 %v5149, %v5144
      %v5181 = vmul.f32 %v5149, %v5145
      %v5182 = vadd.f32 %v5082, %v5150
      %v5183 = vadd.f32 %v5083, %v5151
      %v5184 = vadd.f32 %v5084, %v5152
      %v5185 = vadd.f32 %v5085, %v5153
      %v5186 = vadd.f32 %v5086, %v5154
      %v5187 = vadd.f32 %v5087, %v5155
      %v5188 = vadd.f32 %v5088, %v5156
      %v5189 = vadd.f32 %v5089, %v5157
      %v5190 = vadd.f32 %v5090, %v5158
      %v5191 = vadd.f32 %v5091, %v5159
      %v5192 = vadd.f32 %v5092, %v5160
      %v5193 = vadd.f32 %v5093, %v5161
      %v5194 = vadd.f32 %v5094, %v5162
      %v5195 = vadd.f32 %v5095, %v5163
      %v5196 = vadd.f32 %v5096, %v5164
      %v5197 = vadd.f32 %v5097, %v5165
      %v5198 = vadd.f32 %v5098, %v5166
      %v5199 = vadd.f32 %v5099, %v5167
      %v5200 = vadd.f32 %v5100, %v5168
      %v5201 = vadd.f32 %v5101, %v5169
      %v5202 = vadd.f32 %v5102, %v5170
      %v5203 = vadd.f32 %v5103, %v5171
      %v5204 = vadd.f32 %v5104, %v5172
      %v5205 = vadd.f32 %v5105, %v5173
      %v5206 = vadd.f32 %v5106, %v5174
      %v5207 = vadd.f32 %v5107, %v5175
      %v5208 = vadd.f32 %v5108, %v5176
      %v5209 = vadd.f32 %v5109, %v5177
      %v5210 = vadd.f32 %v5110, %v5178
      %v5211 = vadd.f32 %v5111, %v5179
      %v5212 = vadd.f32 %v5112, %v5180
      %v5213 = vadd.f32 %v5113, %v5181
      %v5215 = vlaneseq
      %v5216 = vshrl.u32 %v5215, 7
      %v5217 = vsub.s32 0, %v5216
      %v5218 = vrot.slane %v238, %v5217
      %v5220 = vadd.f32 %v5182, %v5218
      %v5221 = vadd.f32 %v5183, %v5218
      %v5222 = vadd.f32 %v5184, %v5218
      %v5223 = vadd.f32 %v5185, %v5218
      %v5224 = vadd.f32 %v5186, %v5218
      %v5225 = vadd.f32 %v5187, %v5218
      %v5226 = vadd.f32 %v5188, %v5218
      %v5227 = vadd.f32 %v5189, %v5218
      %v5228 = vadd.f32 %v5190, %v5218
      %v5229 = vadd.f32 %v5191, %v5218
      %v5230 = vadd.f32 %v5192, %v5218
      %v5231 = vadd.f32 %v5193, %v5218
      %v5232 = vadd.f32 %v5194, %v5218
      %v5233 = vadd.f32 %v5195, %v5218
      %v5234 = vadd.f32 %v5196, %v5218
      %v5235 = vadd.f32 %v5197, %v5218
      %v5236 = vadd.f32 %v5198, %v5218
      %v5237 = vadd.f32 %v5199, %v5218
      %v5238 = vadd.f32 %v5200, %v5218
      %v5239 = vadd.f32 %v5201, %v5218
      %v5240 = vadd.f32 %v5202, %v5218
      %v5241 = vadd.f32 %v5203, %v5218
      %v5242 = vadd.f32 %v5204, %v5218
      %v5243 = vadd.f32 %v5205, %v5218
      %v5244 = vadd.f32 %v5206, %v5218
      %v5245 = vadd.f32 %v5207, %v5218
      %v5246 = vadd.f32 %v5208, %v5218
      %v5247 = vadd.f32 %v5209, %v5218
      %v5248 = vadd.f32 %v5210, %v5218
      %v5249 = vadd.f32 %v5211, %v5218
      %v5250 = vadd.f32 %v5212, %v5218
      %v5251 = vadd.f32 %v5213, %v5218
      %v5252 = vstv %s239
      %v5253 = vmul.f32 %v5252, %v5220
      %v5254 = vmul.f32 %v5252, %v5221
      %v5255 = vmul.f32 %v5252, %v5222
      %v5256 = vmul.f32 %v5252, %v5223
      %v5257 = vmul.f32 %v5252, %v5224
      %v5258 = vmul.f32 %v5252, %v5225
      %v5259 = vmul.f32 %v5252, %v5226
      %v5260 = vmul.f32 %v5252, %v5227
      %v5261 = vmul.f32 %v5252, %v5228
      %v5262 = vmul.f32 %v5252, %v5229
      %v5263 = vmul.f32 %v5252, %v5230
      %v5264 = vmul.f32 %v5252, %v5231
      %v5265 = vmul.f32 %v5252, %v5232
      %v5266 = vmul.f32 %v5252, %v5233
      %v5267 = vmul.f32 %v5252, %v5234
      %v5268 = vmul.f32 %v5252, %v5235
      %v5269 = vmul.f32 %v5252, %v5236
      %v5270 = vmul.f32 %v5252, %v5237
      %v5271 = vmul.f32 %v5252, %v5238
      %v5272 = vmul.f32 %v5252, %v5239
      %v5273 = vmul.f32 %v5252, %v5240
      %v5274 = vmul.f32 %v5252, %v5241
      %v5275 = vmul.f32 %v5252, %v5242
      %v5276 = vmul.f32 %v5252, %v5243
      %v5277 = vmul.f32 %v5252, %v5244
      %v5278 = vmul.f32 %v5252, %v5245
      %v5279 = vmul.f32 %v5252, %v5246
      %v5280 = vmul.f32 %v5252, %v5247
      %v5281 = vmul.f32 %v5252, %v5248
      %v5282 = vmul.f32 %v5252, %v5249
      %v5283 = vmul.f32 %v5252, %v5250
      %v5284 = vmul.f32 %v5252, %v5251
      %v5285 = vadd.f32 %v5253, %v199
      %v5286 = vadd.f32 %v5254, %v200
      %v5287 = vadd.f32 %v5255, %v201
      %v5288 = vadd.f32 %v5256, %v202
      %v5289 = vadd.f32 %v5257, %v203
      %v5290 = vadd.f32 %v5258, %v204
      %v5291 = vadd.f32 %v5259, %v205
      %v5292 = vadd.f32 %v5260, %v206
      %v5293 = vadd.f32 %v5261, %v207
      %v5294 = vadd.f32 %v5262, %v208
      %v5295 = vadd.f32 %v5263, %v209
      %v5296 = vadd.f32 %v5264, %v210
      %v5297 = vadd.f32 %v5265, %v211
      %v5298 = vadd.f32 %v5266, %v212
      %v5299 = vadd.f32 %v5267, %v213
      %v5300 = vadd.f32 %v5268, %v214
      %v5301 = vadd.f32 %v5269, %v215
      %v5302 = vadd.f32 %v5270, %v216
      %v5303 = vadd.f32 %v5271, %v217
      %v5304 = vadd.f32 %v5272, %v218
      %v5305 = vadd.f32 %v5273, %v219
      %v5306 = vadd.f32 %v5274, %v220
      %v5307 = vadd.f32 %v5275, %v221
      %v5308 = vadd.f32 %v5276, %v222
      %v5309 = vadd.f32 %v5277, %v223
      %v5310 = vadd.f32 %v5278, %v224
      %v5311 = vadd.f32 %v5279, %v225
      %v5312 = vadd.f32 %v5280, %v226
      %v5313 = vadd.f32 %v5281, %v227
      %v5314 = vadd.f32 %v5282, %v228
      %v5315 = vadd.f32 %v5283, %v229
      %v5316 = vadd.f32 %v5284, %v230
      %5317 = vst.msk [vmem:[%s198] sm:$0xff] %vm240, %v5285
      %5318 = vst.msk [vmem:[%s198 + $0x8] sm:$0xff] %vm240, %v5286
      %5319 = vst.msk [vmem:[%s198 + $0x10] sm:$0xff] %vm240, %v5287
      %5320 = vst.msk [vmem:[%s198 + $0x18] sm:$0xff] %vm240, %v5288
      %5321 = vst.msk [vmem:[%s198 + $0x20] sm:$0xff] %vm240, %v5289
      %5322 = vst.msk [vmem:[%s198 + $0x28] sm:$0xff] %vm240, %v5290
      %5323 = vst.msk [vmem:[%s198 + $0x30] sm:$0xff] %vm240, %v5291
      %5324 = vst.msk [vmem:[%s198 + $0x38] sm:$0xff] %vm240, %v5292
      %5325 = vst.msk [vmem:[%s198 + $0x40] sm:$0xff] %vm240, %v5293
      %5326 = vst.msk [vmem:[%s198 + $0x48] sm:$0xff] %vm240, %v5294
      %5327 = vst.msk [vmem:[%s198 + $0x50] sm:$0xff] %vm240, %v5295
      %5328 = vst.msk [vmem:[%s198 + $0x58] sm:$0xff] %vm240, %v5296
      %5329 = vst.msk [vmem:[%s198 + $0x60] sm:$0xff] %vm240, %v5297
      %5330 = vst.msk [vmem:[%s198 + $0x68] sm:$0xff] %vm240, %v5298
      %5331 = vst.msk [vmem:[%s198 + $0x70] sm:$0xff] %vm240, %v5299
      %5332 = vst.msk [vmem:[%s198 + $0x78] sm:$0xff] %vm240, %v5300
      %5333 = vst.msk [vmem:[%s198 + $0x80] sm:$0xff] %vm240, %v5301
      %5334 = vst.msk [vmem:[%s198 + $0x88] sm:$0xff] %vm240, %v5302
      %5335 = vst.msk [vmem:[%s198 + $0x90] sm:$0xff] %vm240, %v5303
      %5336 = vst.msk [vmem:[%s198 + $0x98] sm:$0xff] %vm240, %v5304
      %5337 = vst.msk [vmem:[%s198 + $0xa0] sm:$0xff] %vm240, %v5305
      %5338 = vst.msk [vmem:[%s198 + $0xa8] sm:$0xff] %vm240, %v5306
      %5339 = vst.msk [vmem:[%s198 + $0xb0] sm:$0xff] %vm240, %v5307
      %5340 = vst.msk [vmem:[%s198 + $0xb8] sm:$0xff] %vm240, %v5308
      %5341 = vst.msk [vmem:[%s198 + $0xc0] sm:$0xff] %vm240, %v5309
      %5342 = vst.msk [vmem:[%s198 + $0xc8] sm:$0xff] %vm240, %v5310
      %5343 = vst.msk [vmem:[%s198 + $0xd0] sm:$0xff] %vm240, %v5311
      %5344 = vst.msk [vmem:[%s198 + $0xd8] sm:$0xff] %vm240, %v5312
      %5345 = vst.msk [vmem:[%s198 + $0xe0] sm:$0xff] %vm240, %v5313
      %5346 = vst.msk [vmem:[%s198 + $0xe8] sm:$0xff] %vm240, %v5314
      %5347 = vst.msk [vmem:[%s198 + $0xf0] sm:$0xff] %vm240, %v5315
      %5348 = vst.msk [vmem:[%s198 + $0xf8] sm:$0xff] %vm240, %v5316
      %p5349 = scmp.lt.s32.totalorder %s16, 1
      %s5350 = scalar_select %p5349, %s16, 1
      %s5351 = smul.addr %s5350, 32
      %s5352 = smul.addr %s5351, 8
      %s5353 = scalar_lea.vmem %s4, %s5352
      // Predicated region
      $region37: #{local_attention.1} parent=35 // pred_check
        %p5354 = pneg %p123
      $region38: #{local_attention.1} parent=35 // pred_check_branch
        %5356 = sbr.rel (%p5354) target = $region40
      $region39: #{local_attention.1} parent=35 // pred_region
        _
      $region40: #{local_attention.1} parent=35 // pred_fallthru
        _
    $region36: #{local_attention.1} parent=5 // pred_fallthru
      _
    %p5357 = scmp.le.s32.totalorder 2, %s11
    // Predicated region
    $region41: #{local_attention.1} parent=5 // pred_check
      %p5358 = pneg %p5357
    $region42: #{local_attention.1} parent=5 // pred_check_branch
      %5360 = sbr.rel (%p5358) target = $region44
    $region43: #{local_attention.1} parent=5 // pred_region
      %s5361 = ssub.s32 %s11, 2
      // Predicated region
      $region45: #{local_attention.1} parent=43 // pred_check
        %p5362 = pneg %p129
      $region46: #{local_attention.1} parent=43 // pred_check_branch
        %5364 = sbr.rel (%p5362) target = $region48
      $region47: #{local_attention.1} parent=43 // pred_region
        %p5365 = scmp.lt.s32.totalorder %s17, 1
        %s5366 = scalar_select %p5365, %s17, 1
        %s5367 = smul.addr %s5366, 32
        %s5368 = smul.addr %s5367, 8
        %s5369 = scalar_lea.vmem %s4, %s5368
      $region48: #{local_attention.1} parent=43 // pred_fallthru
        _
    $region44: #{local_attention.1} parent=5 // pred_fallthru
      _
  $region6: #{local_attention.1} parent=0 // loop_footer
    %s15 = sadd.s32 1, %s11
  $region7: #{local_attention.1} parent=0 // loop_footer_branch
    %10 = sbr.rel target = $region3
  $region8: #{local_attention.1} parent=0 // loop_exit
    _

</llo_original>
